<compile_context>
chip_gen: v5e
topology: v5e:2x2
jax: 0.10.0
libtpu: 0.0.40
codegen_flags: <defaults>
</compile_context>

<pallas_src>
import jax
import jax.numpy as jnp
from jax.experimental import pallas as pl
from jax.experimental.pallas import tpu as pltpu


C = 512     # model (channel) dim
F = 2048    # hidden dim
TF = 512    # hidden-dim tile size -> grid of F // TF = 4 steps


def _mlp_block_kernel(x_ref, g_ref, b_ref, w1_ref, b1_ref, w2_ref, b2_ref,
                      o_ref, xn_ref, acc_ref):
    k = pl.program_id(0)

    # LayerNorm computed once; its result stays resident in VMEM for every
    # hidden-dim grid step (x/gamma/beta block indices are constant).
    @pl.when(k == 0)
    def _():
        x = x_ref[...].astype(jnp.float32)                    # (Np, 512)
        mean = jnp.mean(x, axis=-1, keepdims=True)
        var = jnp.mean((x - mean) * (x - mean), axis=-1, keepdims=True)
        xn = (x - mean) * jax.lax.rsqrt(var + 1e-5)
        xn = xn * g_ref[...] + b_ref[...]                     # affine
        xn_ref[...] = xn.astype(xn_ref.dtype)                 # bf16 for the MXU
        acc_ref[...] = jnp.zeros_like(acc_ref)

    # Linear 512 -> TF slab (+ bias slab); f32 accumulation on the MXU.
    h = jnp.dot(xn_ref[...], w1_ref[...],
                preferred_element_type=jnp.float32) + b1_ref[...]

    # Exact GELU (approximate='none'): 0.5 * h * (1 + erf(h / sqrt(2)))
    inv_sqrt2 = jnp.float32(0.7071067811865476)
    h = 0.5 * h * (1.0 + jax.lax.erf(h * inv_sqrt2))
    # Dropout p=0.0 -> identity.

    # Partial Linear TF -> 512, accumulated over the F grid in f32.
    acc_ref[...] += jnp.dot(h.astype(w2_ref.dtype), w2_ref[...],
                            preferred_element_type=jnp.float32)

    @pl.when(k == pl.num_programs(0) - 1)
    def _():
        o_ref[...] = (acc_ref[...] + b2_ref[...]).astype(o_ref.dtype)
        # Dropout p=0.0 -> identity.


def mlp_block(x, gamma, beta, w1, b1, w2, b2):
    """x: (B, H, W, C). Weights stored as (in, out); biases as (out,)."""
    B, H, W, Cin = x.shape
    assert Cin == C
    N = B * H * W
    Np = ((N + 7) // 8) * 8            # pad tokens to a sublane multiple (196 -> 200)
    x2d = x.reshape(N, C)
    if Np != N:
        x2d = jnp.pad(x2d, ((0, Np - N), (0, 0)))

    # bf16 weights: halve HBM traffic, native MXU path; accumulate in f32.
    w1b = w1.astype(jnp.bfloat16)
    w2b = w2.astype(jnp.bfloat16)

    kf = F // TF
    grid_spec = pltpu.PrefetchScalarGridSpec(
        num_scalar_prefetch=0,
        grid=(kf,),
        in_specs=[
            pl.BlockSpec((Np, C), lambda k: (0, 0)),    # x  (resident)
            pl.BlockSpec((1, C), lambda k: (0, 0)),     # gamma
            pl.BlockSpec((1, C), lambda k: (0, 0)),     # beta
            pl.BlockSpec((C, TF), lambda k: (0, k)),    # w1 slab (pipelined)
            pl.BlockSpec((1, TF), lambda k: (0, k)),    # b1 slab
            pl.BlockSpec((TF, C), lambda k: (k, 0)),    # w2 slab (pipelined)
            pl.BlockSpec((1, C), lambda k: (0, 0)),     # b2
        ],
        out_specs=pl.BlockSpec((Np, C), lambda k: (0, 0)),
        scratch_shapes=[
            pltpu.VMEM((Np, C), jnp.bfloat16),          # normalized activations
            pltpu.VMEM((Np, C), jnp.float32),           # output accumulator
        ],
    )

    out2d = pl.pallas_call(
        _mlp_block_kernel,
        out_shape=jax.ShapeDtypeStruct((Np, C), x.dtype),
        grid_spec=grid_spec,
        compiler_params=pltpu.CompilerParams(
            dimension_semantics=("arbitrary",),          # F axis is a reduction
            vmem_limit_bytes=32 * 1024 * 1024,           # valid on v5e/v6e/v7x
        ),
    )(
        x2d,
        gamma.reshape(1, C),
        beta.reshape(1, C),
        w1b,
        b1.reshape(1, F),
        w2b,
        b2.reshape(1, C),
    )
    return out2d[:N].reshape(B, H, W, C)


def reference(x, gamma, beta, w1, b1, w2, b2):
    """Pure-JAX f32 reference of the PyTorch module's forward."""
    xf = x.astype(jnp.float32)
    mean = jnp.mean(xf, axis=-1, keepdims=True)
    var = jnp.mean((xf - mean) ** 2, axis=-1, keepdims=True)
    xn = (xf - mean) * jax.lax.rsqrt(var + 1e-5) * gamma + beta
    h = xn @ w1 + b1
    h = 0.5 * h * (1.0 + jax.lax.erf(h / jnp.sqrt(2.0)))
    return (h @ w2 + b2).astype(x.dtype)


if __name__ == "__main__":
    key = jax.random.PRNGKey(0)
    k_x, k_w1, k_b1, k_w2, k_b2 = jax.random.split(key, 5)

    B, H, W = 1, 14, 14

    x = jax.random.normal(k_x, (B, H, W, C), dtype=jnp.float32)

    # LayerNorm affine params (PyTorch default init: ones / zeros).
    gamma = jnp.ones((C,), dtype=jnp.float32)
    beta = jnp.zeros((C,), dtype=jnp.float32)

    # Linear params, deterministic init (stored as (in, out) for x @ W).
    w1 = jax.random.normal(k_w1, (C, F), dtype=jnp.float32) * 0.02
    b1 = jax.random.normal(k_b1, (F,), dtype=jnp.float32) * 0.01
    w2 = jax.random.normal(k_w2, (F, C), dtype=jnp.float32) * 0.02
    b2 = jax.random.normal(k_b2, (C,), dtype=jnp.float32) * 0.01

    out = mlp_block(x, gamma, beta, w1, b1, w2, b2)
    out = jax.block_until_ready(out)

    ref = reference(x, gamma, beta, w1, b1, w2, b2)
    assert out.shape == (B, H, W, C), out.shape
    # Tolerance relaxed vs. the f32 reference because weights/matmul inputs are
    # bf16 (f32 accumulation). Typical error is a few e-3 at output scale ~0.4.
    assert jnp.allclose(out, ref, atol=3e-2, rtol=3e-2), float(jnp.max(jnp.abs(out - ref)))

    print("KERNEL_OK")
</pallas_src>

<mosaic_0001>
module attributes {stable_mosaic.version = 11 : i64} {
  func.func @_mlp_block_kernel(%arg0: i32, %arg1: memref<200x512xf32, #tpu.memory_space<vmem>>, %arg2: memref<1x512xf32, #tpu.memory_space<vmem>>, %arg3: memref<1x512xf32, #tpu.memory_space<vmem>>, %arg4: memref<512x512xbf16, #tpu.memory_space<vmem>>, %arg5: memref<1x512xf32, #tpu.memory_space<vmem>>, %arg6: memref<512x512xbf16, #tpu.memory_space<vmem>>, %arg7: memref<1x512xf32, #tpu.memory_space<vmem>>, %arg8: memref<200x512xf32, #tpu.memory_space<vmem>>, %arg9: memref<200x512xbf16, #tpu.memory_space<vmem>>, %arg10: memref<200x512xf32, #tpu.memory_space<vmem>>) attributes {dimension_semantics = [#tpu.dimension_semantics<arbitrary>], iteration_bounds = array<i64: 4>, scalar_prefetch = 0 : i64, scratch_operands = 2 : i64, tpu.core_type = #tpu.core_type<tc>, window_params = [{pipeline_mode = #tpu.pipeline_mode<synchronous>, transform_indices = @transform_0, window_bounds = array<i64: 200, 512>}, {pipeline_mode = #tpu.pipeline_mode<synchronous>, transform_indices = @transform_1, window_bounds = array<i64: 1, 512>}, {pipeline_mode = #tpu.pipeline_mode<synchronous>, transform_indices = @transform_2, window_bounds = array<i64: 1, 512>}, {transform_indices = @transform_3, window_bounds = array<i64: 512, 512>}, {transform_indices = @transform_4, window_bounds = array<i64: 1, 512>}, {transform_indices = @transform_5, window_bounds = array<i64: 512, 512>}, {pipeline_mode = #tpu.pipeline_mode<synchronous>, transform_indices = @transform_6, window_bounds = array<i64: 1, 512>}, {pipeline_mode = #tpu.pipeline_mode<synchronous>, transform_indices = @transform_7, window_bounds = array<i64: 200, 512>}]} {
    %c0_i32 = arith.constant 0 : i32
    %0 = arith.cmpi eq, %arg0, %c0_i32 : i32
    %1 = arith.extui %0 : i1 to i32
    %c0_i32_0 = arith.constant 0 : i32
    %2 = arith.cmpi ne, %1, %c0_i32_0 : i32
    scf.if %2 {
      %c0_17 = arith.constant 0 : index
      %c0_18 = arith.constant 0 : index
      %26 = vector.load %arg1[%c0_17, %c0_18] : memref<200x512xf32, #tpu.memory_space<vmem>>, vector<200x512xf32>
      %cst_19 = arith.constant dense<0.000000e+00> : vector<200xf32>
      %27 = vector.multi_reduction <add>, %26, %cst_19 [1] : vector<200x512xf32> to vector<200xf32>
      %28 = vector.shape_cast %27 : vector<200xf32> to vector<200x1xf32>
      %cst_20 = arith.constant 5.120000e+02 : f32
      %29 = vector.broadcast %cst_20 : f32 to vector<200x1xf32>
      %30 = arith.divf %28, %29 : vector<200x1xf32>
      %31 = vector.broadcast %30 : vector<200x1xf32> to vector<200x512xf32>
      %32 = arith.subf %26, %31 : vector<200x512xf32>
      %33 = vector.broadcast %30 : vector<200x1xf32> to vector<200x512xf32>
      %34 = arith.subf %26, %33 : vector<200x512xf32>
      %35 = arith.mulf %32, %34 : vector<200x512xf32>
      %cst_21 = arith.constant dense<0.000000e+00> : vector<200xf32>
      %36 = vector.multi_reduction <add>, %35, %cst_21 [1] : vector<200x512xf32> to vector<200xf32>
      %37 = vector.shape_cast %36 : vector<200xf32> to vector<200x1xf32>
      %cst_22 = arith.constant 5.120000e+02 : f32
      %38 = vector.broadcast %cst_22 : f32 to vector<200x1xf32>
      %39 = arith.divf %37, %38 : vector<200x1xf32>
      %40 = vector.broadcast %30 : vector<200x1xf32> to vector<200x512xf32>
      %41 = arith.subf %26, %40 : vector<200x512xf32>
      %cst_23 = arith.constant 9.99999974E-6 : f32
      %42 = vector.broadcast %cst_23 : f32 to vector<200x1xf32>
      %43 = arith.addf %39, %42 : vector<200x1xf32>
      %44 = math.rsqrt %43 : vector<200x1xf32>
      %45 = vector.broadcast %44 : vector<200x1xf32> to vector<200x512xf32>
      %46 = arith.mulf %41, %45 : vector<200x512xf32>
      %c0_24 = arith.constant 0 : index
      %c0_25 = arith.constant 0 : index
      %47 = vector.load %arg2[%c0_24, %c0_25] : memref<1x512xf32, #tpu.memory_space<vmem>>, vector<1x512xf32>
      %48 = vector.broadcast %47 : vector<1x512xf32> to vector<200x512xf32>
      %49 = arith.mulf %46, %48 : vector<200x512xf32>
      %c0_26 = arith.constant 0 : index
      %c0_27 = arith.constant 0 : index
      %50 = vector.load %arg3[%c0_26, %c0_27] : memref<1x512xf32, #tpu.memory_space<vmem>>, vector<1x512xf32>
      %51 = vector.broadcast %50 : vector<1x512xf32> to vector<200x512xf32>
      %52 = arith.addf %49, %51 : vector<200x512xf32>
      %53 = arith.truncf %52 : vector<200x512xf32> to vector<200x512xbf16>
      %c0_28 = arith.constant 0 : index
      %c0_29 = arith.constant 0 : index
      %54 = vector.load %arg9[%c0_28, %c0_29] : memref<200x512xbf16, #tpu.memory_space<vmem>>, vector<200x512xbf16>
      tpu.vector_store %arg9[%c0_28, %c0_29], %53 {strides = array<i32>} : memref<200x512xbf16, #tpu.memory_space<vmem>>, vector<200x512xbf16>,
      %cst_30 = arith.constant 0.000000e+00 : f32
      %55 = vector.broadcast %cst_30 : f32 to vector<200x512xf32>
      %c0_31 = arith.constant 0 : index
      %c0_32 = arith.constant 0 : index
      %56 = vector.load %arg10[%c0_31, %c0_32] : memref<200x512xf32, #tpu.memory_space<vmem>>, vector<200x512xf32>
      tpu.vector_store %arg10[%c0_31, %c0_32], %55 {strides = array<i32>} : memref<200x512xf32, #tpu.memory_space<vmem>>, vector<200x512xf32>,
    } else {
    }
    %c0 = arith.constant 0 : index
    %c0_1 = arith.constant 0 : index
    %3 = vector.load %arg9[%c0, %c0_1] : memref<200x512xbf16, #tpu.memory_space<vmem>>, vector<200x512xbf16>
    %c0_2 = arith.constant 0 : index
    %c0_3 = arith.constant 0 : index
    %4 = vector.load %arg4[%c0_2, %c0_3] : memref<512x512xbf16, #tpu.memory_space<vmem>>, vector<512x512xbf16>
    %cst = arith.constant dense<0.000000e+00> : vector<200x512xf32>
    %5 = tpu.matmul %3, %4, %cst {dimension_numbers = #tpu.dot_dimension_numbers<[1], [0], [0], [1], [0, 0, 1, 1], [], []>} : vector<200x512xbf16>, vector<512x512xbf16>, vector<200x512xf32> -> vector<200x512xf32>
    %c0_4 = arith.constant 0 : index
    %c0_5 = arith.constant 0 : index
    %6 = vector.load %arg5[%c0_4, %c0_5] : memref<1x512xf32, #tpu.memory_space<vmem>>, vector<1x512xf32>
    %7 = vector.broadcast %6 : vector<1x512xf32> to vector<200x512xf32>
    %8 = arith.addf %5, %7 : vector<200x512xf32>
    %cst_6 = arith.constant 5.000000e-01 : f32
    %9 = vector.broadcast %cst_6 : f32 to vector<200x512xf32>
    %10 = arith.mulf %9, %8 : vector<200x512xf32>
    %cst_7 = arith.constant 0.707106769 : f32
    %11 = vector.broadcast %cst_7 : f32 to vector<200x512xf32>
    %12 = arith.mulf %8, %11 : vector<200x512xf32>
    %13 = math.erf %12 : vector<200x512xf32>
    %cst_8 = arith.constant 1.000000e+00 : f32
    %14 = vector.broadcast %cst_8 : f32 to vector<200x512xf32>
    %15 = arith.addf %14, %13 : vector<200x512xf32>
    %16 = arith.mulf %10, %15 : vector<200x512xf32>
    %c0_9 = arith.constant 0 : index
    %c0_10 = arith.constant 0 : index
    %17 = vector.load %arg10[%c0_9, %c0_10] : memref<200x512xf32, #tpu.memory_space<vmem>>, vector<200x512xf32>
    %18 = arith.truncf %16 : vector<200x512xf32> to vector<200x512xbf16>
    %c0_11 = arith.constant 0 : index
    %c0_12 = arith.constant 0 : index
    %19 = vector.load %arg6[%c0_11, %c0_12] : memref<512x512xbf16, #tpu.memory_space<vmem>>, vector<512x512xbf16>
    %cst_13 = arith.constant dense<0.000000e+00> : vector<200x512xf32>
    %20 = tpu.matmul %18, %19, %cst_13 {dimension_numbers = #tpu.dot_dimension_numbers<[1], [0], [0], [1], [0, 0, 1, 1], [], []>} : vector<200x512xbf16>, vector<512x512xbf16>, vector<200x512xf32> -> vector<200x512xf32>
    %21 = arith.addf %17, %20 : vector<200x512xf32>
    %c0_14 = arith.constant 0 : index
    %c0_15 = arith.constant 0 : index
    %22 = vector.load %arg10[%c0_14, %c0_15] : memref<200x512xf32, #tpu.memory_space<vmem>>, vector<200x512xf32>
    tpu.vector_store %arg10[%c0_14, %c0_15], %21 {strides = array<i32>} : memref<200x512xf32, #tpu.memory_space<vmem>>, vector<200x512xf32>,
    %c3_i32 = arith.constant 3 : i32
    %23 = arith.cmpi eq, %arg0, %c3_i32 : i32
    %24 = arith.extui %23 : i1 to i32
    %c0_i32_16 = arith.constant 0 : i32
    %25 = arith.cmpi ne, %24, %c0_i32_16 : i32
    scf.if %25 {
      %c0_17 = arith.constant 0 : index
      %c0_18 = arith.constant 0 : index
      %26 = vector.load %arg10[%c0_17, %c0_18] : memref<200x512xf32, #tpu.memory_space<vmem>>, vector<200x512xf32>
      %c0_19 = arith.constant 0 : index
      %c0_20 = arith.constant 0 : index
      %27 = vector.load %arg7[%c0_19, %c0_20] : memref<1x512xf32, #tpu.memory_space<vmem>>, vector<1x512xf32>
      %28 = vector.broadcast %27 : vector<1x512xf32> to vector<200x512xf32>
      %29 = arith.addf %26, %28 : vector<200x512xf32>
      %c0_21 = arith.constant 0 : index
      %c0_22 = arith.constant 0 : index
      %30 = vector.load %arg8[%c0_21, %c0_22] : memref<200x512xf32, #tpu.memory_space<vmem>>, vector<200x512xf32>
      tpu.vector_store %arg8[%c0_21, %c0_22], %29 {strides = array<i32>} : memref<200x512xf32, #tpu.memory_space<vmem>>, vector<200x512xf32>,
    } else {
    }
    return
  }
  func.func @transform_0(%arg0: i32) -> (i32, i32) {
    %c0_i32 = arith.constant 0 : i32
    %c0_i32_0 = arith.constant 0 : i32
    %c0_i32_1 = arith.constant 0 : i32
    return %c0_i32, %c0_i32_0 : i32, i32
  }
  func.func @transform_1(%arg0: i32) -> (i32, i32) {
    %c0_i32 = arith.constant 0 : i32
    %c0_i32_0 = arith.constant 0 : i32
    %c0_i32_1 = arith.constant 0 : i32
    return %c0_i32, %c0_i32_0 : i32, i32
  }
  func.func @transform_2(%arg0: i32) -> (i32, i32) {
    %c0_i32 = arith.constant 0 : i32
    %c0_i32_0 = arith.constant 0 : i32
    %c0_i32_1 = arith.constant 0 : i32
    return %c0_i32, %c0_i32_0 : i32, i32
  }
  func.func @transform_3(%arg0: i32) -> (i32, i32) {
    %c0_i32 = arith.constant 0 : i32
    %c0_i32_0 = arith.constant 0 : i32
    return %c0_i32, %arg0 : i32, i32
  }
  func.func @transform_4(%arg0: i32) -> (i32, i32) {
    %c0_i32 = arith.constant 0 : i32
    %c0_i32_0 = arith.constant 0 : i32
    return %c0_i32, %arg0 : i32, i32
  }
  func.func @transform_5(%arg0: i32) -> (i32, i32) {
    %c0_i32 = arith.constant 0 : i32
    %c0_i32_0 = arith.constant 0 : i32
    return %arg0, %c0_i32 : i32, i32
  }
  func.func @transform_6(%arg0: i32) -> (i32, i32) {
    %c0_i32 = arith.constant 0 : i32
    %c0_i32_0 = arith.constant 0 : i32
    %c0_i32_1 = arith.constant 0 : i32
    return %c0_i32, %c0_i32_0 : i32, i32
  }
  func.func @transform_7(%arg0: i32) -> (i32, i32) {
    %c0_i32 = arith.constant 0 : i32
    %c0_i32_0 = arith.constant 0 : i32
    %c0_i32_1 = arith.constant 0 : i32
    return %c0_i32, %c0_i32_0 : i32, i32
  }
}

</mosaic_0001>

<llo_original>
// kernel: tpu_custom_call.1
$region0: #{tpu_custom_call.1}
  #allocation0 [shape = 'u32[]', space=smem, size = 0x4, offset = 0x4, fixed_abs, tag = 'smem constant byte address 0x4 - core index']
  #allocation1 [shape = 'u32[72,128]{1,0:T(1,128)}', space=vmem, size = 0x9000, scoped, tag = 'internal scratch']
  #allocation2 [shape = 'bf16[200,512]{1,0:T(8,128)(2,1)}', space=vmem, size = 0x32000, scoped, tag = 'scratch operand']
  #allocation3 [shape = 'f32[200,512]{1,0:T(8,128)}', space=vmem, size = 0x64000, scoped, tag = 'scratch operand']
  %s0 = inlined_call_operand.hbm [shape: f32[200,512], index: 0, kind: input, shape index: {}]
  %s1 = inlined_call_operand.hbm [shape: f32[1,512], index: 1, kind: input, shape index: {}]
  %s2 = inlined_call_operand.hbm [shape: f32[1,512], index: 2, kind: input, shape index: {}]
  %s3 = inlined_call_operand.hbm [shape: bf16[512,2048], index: 3, kind: input, shape index: {}]
  %s4 = inlined_call_operand.hbm [shape: f32[1,2048], index: 4, kind: input, shape index: {}]
  %s5 = inlined_call_operand.hbm [shape: bf16[2048,512], index: 5, kind: input, shape index: {}]
  %s6 = inlined_call_operand.hbm [shape: f32[1,512], index: 6, kind: input, shape index: {}]
  %s7 = inlined_call_operand.hbm [shape: f32[200,512], index: 7, kind: output, shape index: {}]
  %s8 = sld [smem:[#allocation0]]
  $region97: #{tpu_custom_call.1} parent=0
    _
  %s10 = ssub.s32 1, %s8
  %s11 = scalar_select 0, %s10, %s8
  $region1: #{tpu_custom_call.1} parent=0
    #allocation4 [shape = 'u8[409600]{0}', space=vmem, size = 0x64000, scoped, tag = 'input window, operand 0, single buffered']
    #allocation5 [shape = 's32[2]{0}', space=sflag, size = 0x8, scoped, tag = 'scoped memory for tpu_custom_call.1']
    #allocation6 [shape = 's32[2]{0}', space=sflag, size = 0x8, scoped, tag = 'scoped memory for tpu_custom_call.1']
    #allocation7 [shape = 'u8[2048]{0}', space=vmem, size = 0x800, scoped, tag = 'input window, operand 1, single buffered']
    #allocation8 [shape = 's32[1]{0}', space=sflag, size = 0x4, scoped, tag = 'scoped memory for tpu_custom_call.1']
    #allocation9 [shape = 'u8[2048]{0}', space=vmem, size = 0x800, scoped, tag = 'input window, operand 2, single buffered']
    #allocation10 [shape = 'u8[1048576]{0}', space=vmem, size = 0x100000, scoped, tag = 'input window, operand 3']
    #allocation11 [shape = 's32[2]{0}', space=sflag, size = 0x8, scoped, tag = 'scoped memory for tpu_custom_call.1']
    #allocation12 [shape = 'u8[4096]{0}', space=vmem, size = 0x1000, scoped, tag = 'input window, operand 4']
    #allocation13 [shape = 'u8[1048576]{0}', space=vmem, size = 0x100000, scoped, tag = 'input window, operand 5']
    #allocation14 [shape = 's32[2]{0}', space=sflag, size = 0x8, scoped, tag = 'scoped memory for tpu_custom_call.1']
    #allocation15 [shape = 'u8[2048]{0}', space=vmem, size = 0x800, scoped, tag = 'input window, operand 6, single buffered']
    #allocation16 [shape = 'u8[409600]{0}', space=vmem, size = 0x64000, scoped, tag = 'output window, operand 0, single buffered']
    %12 = vsyncpa [#allocation5], 0
    %13 = vsyncpa [#allocation8], 0
    %14 = vsyncpa [#allocation11], 0
    %s15 = scalar_lea.sflag [#allocation11], 1
    %16 = vsyncpa %s15, 0
    %17 = vsyncpa [#allocation14], 0
    %s18 = scalar_lea.sflag [#allocation14], 1
    %19 = vsyncpa %s18, 0
    %20 = vsyncpa [#allocation6], 0
    loop: start=0, step=1, limit=6
    $region2: #{tpu_custom_call.1} parent=1 // loop_pre_header
      _
    $region3: #{tpu_custom_call.1} parent=1 // loop_header
      %s22 = sphi 0, %s26
      %p23 = scmp.ge.s32.totalorder %s22, 6
      %s30 = sphi 0, %s30
      %s32 = sphi 0, %s30
      %s33 = sphi 0, %s32
      %s47 = sphi 0, %s33
      %s51 = sphi 0, %s51
      %s53 = sphi 0, %s51
      %s54 = sphi 0, %s53
      %s68 = sphi 0, %s54
      %s72 = sphi 0, %s72
      %s74 = sphi 0, %s72
      %s75 = sphi 0, %s74
      %s89 = sphi 0, %s75
      %s95 = sphi 0, %s97
      %s98 = sphi 0, %s95
      %s99 = sphi 0, %s98
      %s115 = sphi 0, %s99
      %s121 = sphi 0, %s123
      %s124 = sphi 0, %s121
      %s125 = sphi 0, %s124
      %s141 = sphi 0, %s125
      %s147 = sphi 0, %s149
      %s150 = sphi 0, %s147
      %s151 = sphi 0, %s150
      %s167 = sphi 0, %s151
      %s171 = sphi 0, %s171
      %s173 = sphi 0, %s171
      %s174 = sphi 0, %s173
      %s188 = sphi 0, %s174
      %s192 = sphi 0, %s192
      %s194 = sphi 0, %s192
      %s195 = sphi 0, %s194
      %s209 = sphi 0, %s195
    $region4: #{tpu_custom_call.1} parent=1 // loop_header_branch
      %25 = sbr.rel (%p23) target = $region8
    $region5: #{tpu_custom_call.1} parent=1 // loop_body
      %s27 = ssub.s32 %s22, 1
      %s28 = ssub.s32 %s22, 2
      %s29 = sadd.s32 %s22, 1
      %s31 = sadd.s32 %s30, 1
      %p34 = scmp.eq.s32.totalorder %s22, 3
      %p35 = scmp.ne.s32.totalorder %s30, %s32
      %p36 = scmp.eq.s32.totalorder %s22, 0
      %p37 = por %p35, %p36
      %p38 = scmp.ne.s32.totalorder %s30, %s32
      %p39 = scmp.eq.s32.totalorder %s27, 3
      %p40 = por %p38, %p39
      %p41 = scmp.ne.s32.totalorder %s32, %s33
      %p42 = scmp.eq.s32.totalorder %s27, 0
      %p43 = por %p41, %p42
      %p44 = scmp.ne.s32.totalorder %s32, %s33
      %p45 = scmp.eq.s32.totalorder %s28, 3
      %p46 = por %p44, %p45
      %p48 = scmp.ne.s32.totalorder %s33, %s47
      %p49 = scmp.eq.s32.totalorder %s28, 0
      %p50 = por %p48, %p49
      %s52 = sadd.s32 %s51, 1
      %p55 = scmp.eq.s32.totalorder %s22, 3
      %p56 = scmp.ne.s32.totalorder %s51, %s53
      %p57 = scmp.eq.s32.totalorder %s22, 0
      %p58 = por %p56, %p57
      %p59 = scmp.ne.s32.totalorder %s51, %s53
      %p60 = scmp.eq.s32.totalorder %s27, 3
      %p61 = por %p59, %p60
      %p62 = scmp.ne.s32.totalorder %s53, %s54
      %p63 = scmp.eq.s32.totalorder %s27, 0
      %p64 = por %p62, %p63
      %p65 = scmp.ne.s32.totalorder %s53, %s54
      %p66 = scmp.eq.s32.totalorder %s28, 3
      %p67 = por %p65, %p66
      %p69 = scmp.ne.s32.totalorder %s54, %s68
      %p70 = scmp.eq.s32.totalorder %s28, 0
      %p71 = por %p69, %p70
      %s73 = sadd.s32 %s72, 1
      %p76 = scmp.eq.s32.totalorder %s22, 3
      %p77 = scmp.ne.s32.totalorder %s72, %s74
      %p78 = scmp.eq.s32.totalorder %s22, 0
      %p79 = por %p77, %p78
      %p80 = scmp.ne.s32.totalorder %s72, %s74
      %p81 = scmp.eq.s32.totalorder %s27, 3
      %p82 = por %p80, %p81
      %p83 = scmp.ne.s32.totalorder %s74, %s75
      %p84 = scmp.eq.s32.totalorder %s27, 0
      %p85 = por %p83, %p84
      %p86 = scmp.ne.s32.totalorder %s74, %s75
      %p87 = scmp.eq.s32.totalorder %s28, 3
      %p88 = por %p86, %p87
      %p90 = scmp.ne.s32.totalorder %s75, %s89
      %p91 = scmp.eq.s32.totalorder %s28, 0
      %p92 = por %p90, %p91
      %s93 = ssub.s32 %s22, %s29
      %p94 = scmp.eq.s32.totalorder %s93, 0
      %s96 = sadd.s32 %s95, 1
      %s97 = scalar_select %p94, %s95, %s96
      %p100 = pneg %p94
      %p101 = scmp.eq.s32.totalorder %s22, 3
      %p102 = por %p100, %p101
      %p103 = scmp.ne.s32.totalorder %s95, %s98
      %p104 = scmp.eq.s32.totalorder %s22, 0
      %p105 = por %p103, %p104
      %p106 = scmp.ne.s32.totalorder %s95, %s98
      %p107 = scmp.eq.s32.totalorder %s27, 3
      %p108 = por %p106, %p107
      %p109 = scmp.ne.s32.totalorder %s98, %s99
      %p110 = scmp.eq.s32.totalorder %s27, 0
      %p111 = por %p109, %p110
      %p112 = scmp.ne.s32.totalorder %s98, %s99
      %p113 = scmp.eq.s32.totalorder %s28, 3
      %p114 = por %p112, %p113
      %p116 = scmp.ne.s32.totalorder %s99, %s115
      %p117 = scmp.eq.s32.totalorder %s28, 0
      %p118 = por %p116, %p117
      %s119 = ssub.s32 %s22, %s29
      %p120 = scmp.eq.s32.totalorder %s119, 0
      %s122 = sadd.s32 %s121, 1
      %s123 = scalar_select %p120, %s121, %s122
      %p126 = pneg %p120
      %p127 = scmp.eq.s32.totalorder %s22, 3
      %p128 = por %p126, %p127
      %p129 = scmp.ne.s32.totalorder %s121, %s124
      %p130 = scmp.eq.s32.totalorder %s22, 0
      %p131 = por %p129, %p130
      %p132 = scmp.ne.s32.totalorder %s121, %s124
      %p133 = scmp.eq.s32.totalorder %s27, 3
      %p134 = por %p132, %p133
      %p135 = scmp.ne.s32.totalorder %s124, %s125
      %p136 = scmp.eq.s32.totalorder %s27, 0
      %p137 = por %p135, %p136
      %p138 = scmp.ne.s32.totalorder %s124, %s125
      %p139 = scmp.eq.s32.totalorder %s28, 3
      %p140 = por %p138, %p139
      %p142 = scmp.ne.s32.totalorder %s125, %s141
      %p143 = scmp.eq.s32.totalorder %s28, 0
      %p144 = por %p142, %p143
      %s145 = ssub.s32 %s22, %s29
      %p146 = scmp.eq.s32.totalorder %s145, 0
      %s148 = sadd.s32 %s147, 1
      %s149 = scalar_select %p146, %s147, %s148
      %p152 = pneg %p146
      %p153 = scmp.eq.s32.totalorder %s22, 3
      %p154 = por %p152, %p153
      %p155 = scmp.ne.s32.totalorder %s147, %s150
      %p156 = scmp.eq.s32.totalorder %s22, 0
      %p157 = por %p155, %p156
      %p158 = scmp.ne.s32.totalorder %s147, %s150
      %p159 = scmp.eq.s32.totalorder %s27, 3
      %p160 = por %p158, %p159
      %p161 = scmp.ne.s32.totalorder %s150, %s151
      %p162 = scmp.eq.s32.totalorder %s27, 0
      %p163 = por %p161, %p162
      %p164 = scmp.ne.s32.totalorder %s150, %s151
      %p165 = scmp.eq.s32.totalorder %s28, 3
      %p166 = por %p164, %p165
      %p168 = scmp.ne.s32.totalorder %s151, %s167
      %p169 = scmp.eq.s32.totalorder %s28, 0
      %p170 = por %p168, %p169
      %s172 = sadd.s32 %s171, 1
      %p175 = scmp.eq.s32.totalorder %s22, 3
      %p176 = scmp.ne.s32.totalorder %s171, %s173
      %p177 = scmp.eq.s32.totalorder %s22, 0
      %p178 = por %p176, %p177
      %p179 = scmp.ne.s32.totalorder %s171, %s173
      %p180 = scmp.eq.s32.totalorder %s27, 3
      %p181 = por %p179, %p180
      %p182 = scmp.ne.s32.totalorder %s173, %s174
      %p183 = scmp.eq.s32.totalorder %s27, 0
      %p184 = por %p182, %p183
      %p185 = scmp.ne.s32.totalorder %s173, %s174
      %p186 = scmp.eq.s32.totalorder %s28, 3
      %p187 = por %p185, %p186
      %p189 = scmp.ne.s32.totalorder %s174, %s188
      %p190 = scmp.eq.s32.totalorder %s28, 0
      %p191 = por %p189, %p190
      %s193 = sadd.s32 %s192, 1
      %p196 = scmp.eq.s32.totalorder %s22, 3
      %p197 = scmp.ne.s32.totalorder %s192, %s194
      %p198 = scmp.eq.s32.totalorder %s22, 0
      %p199 = por %p197, %p198
      %p200 = scmp.ne.s32.totalorder %s192, %s194
      %p201 = scmp.eq.s32.totalorder %s27, 3
      %p202 = por %p200, %p201
      %p203 = scmp.ne.s32.totalorder %s194, %s195
      %p204 = scmp.eq.s32.totalorder %s27, 0
      %p205 = por %p203, %p204
      %p206 = scmp.ne.s32.totalorder %s194, %s195
      %p207 = scmp.eq.s32.totalorder %s28, 3
      %p208 = por %p206, %p207
      %p210 = scmp.ne.s32.totalorder %s195, %s209
      %p211 = scmp.eq.s32.totalorder %s28, 0
      %p212 = por %p210, %p211
      %p213 = scmp.le.s32.totalorder 1, %s22
      %p214 = scmp.lt.s32.totalorder %s22, 5
      %p215 = pnand %p213, %p214
      %p216 = pneg %p215
      // Predicated region
      $region9: #{tpu_custom_call.1} parent=5 // pred_check
        _
      $region10: #{tpu_custom_call.1} parent=5 // pred_check_branch
        %218 = sbr.rel (%p215) target = $region12
      $region11: #{tpu_custom_call.1} parent=5 // pred_region
        %s219 = ssub.s32 %s22, 1
        // Predicated region
        $region13: #{tpu_custom_call.1} parent=11 // pred_check
          %p220 = pneg %p43
        $region14: #{tpu_custom_call.1} parent=11 // pred_check_branch
          %222 = sbr.rel (%p220) target = $region16
        $region15: #{tpu_custom_call.1} parent=11 // pred_region
          %224 = vsyncadd [#allocation5], 0
          %s225 = sshll.u32 %s0, 4
          %s226 = int_to_ptr.hbm [resolvable:$true] %s225
          %s227 = sshll.u32 [#allocation4], 4
          %s228 = int_to_ptr.vmem [resolvable:$true] %s227
          %233 = dma.hbm_to_vmem [thread:$0]  %s226, 12800, %s228, [#allocation5], 512, 512, 32
        $region16: #{tpu_custom_call.1} parent=11 // pred_fallthru
          _
        // Predicated region
        $region17: #{tpu_custom_call.1} parent=11 // pred_check
          %p234 = pneg %p64
        $region18: #{tpu_custom_call.1} parent=11 // pred_check_branch
          %236 = sbr.rel (%p234) target = $region20
        $region19: #{tpu_custom_call.1} parent=11 // pred_region
          %238 = vsyncadd [#allocation8], 0
          %s240 = sshll.u32 %s1, 4
          %s241 = int_to_ptr.hbm [resolvable:$true] %s240
          %s242 = sshll.u32 [#allocation7], 4
          %s243 = int_to_ptr.vmem [resolvable:$true] %s242
          %245 = dma.hbm_to_vmem [thread:$0]  %s241, 64, %s243, [#allocation8]
        $region20: #{tpu_custom_call.1} parent=11 // pred_fallthru
          _
        // Predicated region
        $region21: #{tpu_custom_call.1} parent=11 // pred_check
          %p246 = pneg %p85
        $region22: #{tpu_custom_call.1} parent=11 // pred_check_branch
          %248 = sbr.rel (%p246) target = $region24
        $region23: #{tpu_custom_call.1} parent=11 // pred_region
          %250 = vsyncadd [#allocation8], 0
          %s252 = sshll.u32 %s2, 4
          %s253 = int_to_ptr.hbm [resolvable:$true] %s252
          %s254 = sshll.u32 [#allocation9], 4
          %s255 = int_to_ptr.vmem [resolvable:$true] %s254
          %257 = dma.hbm_to_vmem [thread:$0]  %s253, 64, %s255, [#allocation8]
        $region24: #{tpu_custom_call.1} parent=11 // pred_fallthru
          _
        // Predicated region
        $region25: #{tpu_custom_call.1} parent=11 // pred_check
          %p258 = pneg %p184
        $region26: #{tpu_custom_call.1} parent=11 // pred_check_branch
          %260 = sbr.rel (%p258) target = $region28
        $region27: #{tpu_custom_call.1} parent=11 // pred_region
          %262 = vsyncadd [#allocation14], 0
          %s264 = sshll.u32 %s6, 4
          %s265 = int_to_ptr.hbm [resolvable:$true] %s264
          %s266 = sshll.u32 [#allocation15], 4
          %s267 = int_to_ptr.vmem [resolvable:$true] %s266
          %269 = dma.hbm_to_vmem [thread:$0]  %s265, 64, %s267, [#allocation14]
        $region28: #{tpu_custom_call.1} parent=11 // pred_fallthru
          _
      $region12: #{tpu_custom_call.1} parent=5 // pred_fallthru
        _
      %p270 = scmp.lt.s32.totalorder %s22, 4
      // Predicated region
      $region29: #{tpu_custom_call.1} parent=5 // pred_check
        %p271 = pneg %p270
      $region30: #{tpu_custom_call.1} parent=5 // pred_check_branch
        %273 = sbr.rel (%p271) target = $region32
      $region31: #{tpu_custom_call.1} parent=5 // pred_region
        // Predicated region
        $region33: #{tpu_custom_call.1} parent=31 // pred_check
          %p274 = pneg %p105
        $region34: #{tpu_custom_call.1} parent=31 // pred_check_branch
          %276 = sbr.rel (%p274) target = $region36
        $region35: #{tpu_custom_call.1} parent=31 // pred_region
          %s277 = sand.u32 %s22, 1
          %s278 = scalar_lea.sflag [#allocation11], %s277
          %s279 = sand.u32 %s95, 1
          %s280 = smul.addr %s279, 1024
          %s281 = scalar_lea.vmem [#allocation10], %s280
          %s282 = smul.u32 4, %s22
          %284 = vsyncadd %s278, 0
          %s285 = smul.addr %s282, 4
          %s286 = scalar_lea.hbm %s3, %s285
          %s287 = sshll.u32 %s286, 4
          %s288 = int_to_ptr.hbm [resolvable:$true] %s287
          %s289 = sshll.u32 %s281, 4
          %s290 = int_to_ptr.vmem [resolvable:$true] %s289
          %295 = dma.hbm_to_vmem [thread:$0]  %s288, 16384, %s290, %s278, 1024, 256, 16
        $region36: #{tpu_custom_call.1} parent=31 // pred_fallthru
          _
        // Predicated region
        $region37: #{tpu_custom_call.1} parent=31 // pred_check
          %p296 = pneg %p131
        $region38: #{tpu_custom_call.1} parent=31 // pred_check_branch
          %298 = sbr.rel (%p296) target = $region40
        $region39: #{tpu_custom_call.1} parent=31 // pred_region
          %s299 = sand.u32 %s22, 1
          %s300 = scalar_lea.sflag [#allocation11], %s299
          %s301 = sand.u32 %s121, 1
          %s302 = smul.addr %s301, 4
          %s303 = scalar_lea.vmem [#allocation12], %s302
          %s304 = smul.u32 4, %s22
          %306 = vsyncadd %s300, 0
          %s307 = scalar_lea.hbm %s4, %s304
          %s309 = sshll.u32 %s307, 4
          %s310 = int_to_ptr.hbm [resolvable:$true] %s309
          %s311 = sshll.u32 %s303, 4
          %s312 = int_to_ptr.vmem [resolvable:$true] %s311
          %314 = dma.hbm_to_vmem [thread:$0]  %s310, 64, %s312, %s300
        $region40: #{tpu_custom_call.1} parent=31 // pred_fallthru
          _
        // Predicated region
        $region41: #{tpu_custom_call.1} parent=31 // pred_check
          %p315 = pneg %p157
        $region42: #{tpu_custom_call.1} parent=31 // pred_check_branch
          %317 = sbr.rel (%p315) target = $region44
        $region43: #{tpu_custom_call.1} parent=31 // pred_region
          %s318 = sand.u32 %s22, 1
          %s319 = scalar_lea.sflag [#allocation14], %s318
          %s320 = sand.u32 %s147, 1
          %s321 = smul.addr %s320, 1024
          %s322 = scalar_lea.vmem [#allocation13], %s321
          %s323 = smul.u32 64, %s22
          %325 = vsyncadd %s319, 0
          %s326 = smul.addr %s323, 4
          %s327 = smul.addr %s326, 4
          %s328 = scalar_lea.hbm %s5, %s327
          %s329 = sshll.u32 %s328, 4
          %s330 = int_to_ptr.hbm [resolvable:$true] %s329
          %s331 = sshll.u32 %s322, 4
          %s332 = int_to_ptr.vmem [resolvable:$true] %s331
          %337 = dma.hbm_to_vmem [thread:$0]  %s330, 16384, %s332, %s319, 256, 256, 16
        $region44: #{tpu_custom_call.1} parent=31 // pred_fallthru
          _
      $region32: #{tpu_custom_call.1} parent=5 // pred_fallthru
        _
      %p338 = scmp.le.s32.totalorder 1, %s22
      %p339 = scmp.lt.s32.totalorder %s22, 5
      %p340 = pnand %p338, %p339
      %p341 = pneg %p340
      // Predicated region
      $region45: #{tpu_custom_call.1} parent=5 // pred_check
        _
      $region46: #{tpu_custom_call.1} parent=5 // pred_check_branch
        %343 = sbr.rel (%p340) target = $region48
      $region47: #{tpu_custom_call.1} parent=5 // pred_region
        %s344 = ssub.s32 %s22, 1
        // Predicated region
        $region49: #{tpu_custom_call.1} parent=47 // pred_check
          %p345 = pneg %p43
        $region50: #{tpu_custom_call.1} parent=47 // pred_check_branch
          %347 = sbr.rel (%p345) target = $region52
        $region51: #{tpu_custom_call.1} parent=47 // pred_region
          %349 = dma.done [#allocation5], 12800
        $region52: #{tpu_custom_call.1} parent=47 // pred_fallthru
          _
        // Predicated region
        $region53: #{tpu_custom_call.1} parent=47 // pred_check
          %p350 = pneg %p64
        $region54: #{tpu_custom_call.1} parent=47 // pred_check_branch
          %352 = sbr.rel (%p350) target = $region56
        $region55: #{tpu_custom_call.1} parent=47 // pred_region
          %354 = dma.done [#allocation8], 64
        $region56: #{tpu_custom_call.1} parent=47 // pred_fallthru
          _
        // Predicated region
        $region57: #{tpu_custom_call.1} parent=47 // pred_check
          %p355 = pneg %p85
        $region58: #{tpu_custom_call.1} parent=47 // pred_check_branch
          %357 = sbr.rel (%p355) target = $region60
        $region59: #{tpu_custom_call.1} parent=47 // pred_region
          %359 = dma.done [#allocation8], 64
        $region60: #{tpu_custom_call.1} parent=47 // pred_fallthru
          _
        %s360 = sand.u32 %s27, 1
        %s361 = scalar_lea.sflag [#allocation11], %s360
        %s362 = sand.u32 %s98, 1
        %s363 = smul.addr %s362, 1024
        %s364 = scalar_lea.vmem [#allocation10], %s363
        // Predicated region
        $region61: #{tpu_custom_call.1} parent=47 // pred_check
          %p365 = pneg %p111
        $region62: #{tpu_custom_call.1} parent=47 // pred_check_branch
          %367 = sbr.rel (%p365) target = $region64
        $region63: #{tpu_custom_call.1} parent=47 // pred_region
          %369 = dma.done %s361, 16384
        $region64: #{tpu_custom_call.1} parent=47 // pred_fallthru
          _
        %s370 = sand.u32 %s27, 1
        %s371 = scalar_lea.sflag [#allocation11], %s370
        %s372 = sand.u32 %s124, 1
        %s373 = smul.addr %s372, 4
        %s374 = scalar_lea.vmem [#allocation12], %s373
        // Predicated region
        $region65: #{tpu_custom_call.1} parent=47 // pred_check
          %p375 = pneg %p137
        $region66: #{tpu_custom_call.1} parent=47 // pred_check_branch
          %377 = sbr.rel (%p375) target = $region68
        $region67: #{tpu_custom_call.1} parent=47 // pred_region
          %379 = dma.done %s371, 64
        $region68: #{tpu_custom_call.1} parent=47 // pred_fallthru
          _
        %s380 = sand.u32 %s27, 1
        %s381 = scalar_lea.sflag [#allocation14], %s380
        %s382 = sand.u32 %s150, 1
        %s383 = smul.addr %s382, 1024
        %s384 = scalar_lea.vmem [#allocation13], %s383
        // Predicated region
        $region69: #{tpu_custom_call.1} parent=47 // pred_check
          %p385 = pneg %p163
        $region70: #{tpu_custom_call.1} parent=47 // pred_check_branch
          %387 = sbr.rel (%p385) target = $region72
        $region71: #{tpu_custom_call.1} parent=47 // pred_region
          %389 = dma.done %s381, 16384
        $region72: #{tpu_custom_call.1} parent=47 // pred_fallthru
          _
        // Predicated region
        $region73: #{tpu_custom_call.1} parent=47 // pred_check
          %p390 = pneg %p184
        $region74: #{tpu_custom_call.1} parent=47 // pred_check_branch
          %392 = sbr.rel (%p390) target = $region76
        $region75: #{tpu_custom_call.1} parent=47 // pred_region
          %394 = dma.done [#allocation14], 64
        $region76: #{tpu_custom_call.1} parent=47 // pred_fallthru
          _
        %p395 = pneg %p43
        %p396 = pneg %p40
        %p397 = pneg %p64
        %p398 = pneg %p61
        %p399 = pneg %p85
        %p400 = pneg %p82
        %s401 = sand.u32 %s27, 1
        %s402 = scalar_lea.sflag [#allocation11], %s401
        %s403 = sand.u32 %s98, 1
        %s404 = smul.addr %s403, 1024
        %s405 = scalar_lea.vmem [#allocation10], %s404
        %p406 = pneg %p111
        %p407 = pneg %p108
        %s408 = sand.u32 %s27, 1
        %s409 = scalar_lea.sflag [#allocation11], %s408
        %s410 = sand.u32 %s124, 1
        %s411 = smul.addr %s410, 4
        %s412 = scalar_lea.vmem [#allocation12], %s411
        %p413 = pneg %p137
        %p414 = pneg %p134
        %s415 = sand.u32 %s27, 1
        %s416 = scalar_lea.sflag [#allocation14], %s415
        %s417 = sand.u32 %s150, 1
        %s418 = smul.addr %s417, 1024
        %s419 = scalar_lea.vmem [#allocation13], %s418
        %p420 = pneg %p163
        %p421 = pneg %p160
        %p422 = pneg %p184
        %p423 = pneg %p181
        %p424 = pneg %p205
        %p425 = pneg %p202
        %s426 = smul.u32 4, %s27
        %s427 = smul.u32 4, %s27
        %s428 = smul.u32 64, %s27
        %p429 = scmp.eq.s32.totalorder %s27, 0
        // Predicated region
        $region77: #{tpu_custom_call.1} parent=47 // pred_check
          %p430 = pneg %p429
        $region78: #{tpu_custom_call.1} parent=47 // pred_check_branch
          %432 = sbr.rel (%p430) target = $region80
        $region79: #{tpu_custom_call.1} parent=47 // pred_region
          %v433 = vld [vmem:[#allocation4] sm:$0xff]
          %v434 = vld [vmem:[#allocation4 + $0x8] sm:$0xff]
          %v435 = vld [vmem:[#allocation4 + $0x10] sm:$0xff]
          %v436 = vld [vmem:[#allocation4 + $0x18] sm:$0xff]
          %v437 = vld [vmem:[#allocation4 + $0x20] sm:$0xff]
          %v438 = vld [vmem:[#allocation4 + $0x28] sm:$0xff]
          %v439 = vld [vmem:[#allocation4 + $0x30] sm:$0xff]
          %v440 = vld [vmem:[#allocation4 + $0x38] sm:$0xff]
          %v441 = vld [vmem:[#allocation4 + $0x40] sm:$0xff]
          %v442 = vld [vmem:[#allocation4 + $0x48] sm:$0xff]
          %v443 = vld [vmem:[#allocation4 + $0x50] sm:$0xff]
          %v444 = vld [vmem:[#allocation4 + $0x58] sm:$0xff]
          %v445 = vld [vmem:[#allocation4 + $0x60] sm:$0xff]
          %v446 = vld [vmem:[#allocation4 + $0x68] sm:$0xff]
          %v447 = vld [vmem:[#allocation4 + $0x70] sm:$0xff]
          %v448 = vld [vmem:[#allocation4 + $0x78] sm:$0xff]
          %v449 = vld [vmem:[#allocation4 + $0x80] sm:$0xff]
          %v450 = vld [vmem:[#allocation4 + $0x88] sm:$0xff]
          %v451 = vld [vmem:[#allocation4 + $0x90] sm:$0xff]
          %v452 = vld [vmem:[#allocation4 + $0x98] sm:$0xff]
          %v453 = vld [vmem:[#allocation4 + $0xa0] sm:$0xff]
          %v454 = vld [vmem:[#allocation4 + $0xa8] sm:$0xff]
          %v455 = vld [vmem:[#allocation4 + $0xb0] sm:$0xff]
          %v456 = vld [vmem:[#allocation4 + $0xb8] sm:$0xff]
          %v457 = vld [vmem:[#allocation4 + $0xc0] sm:$0xff]
          %v458 = vld [vmem:[#allocation4 + $0xc8] sm:$0xff]
          %v459 = vld [vmem:[#allocation4 + $0xd0] sm:$0xff]
          %v460 = vld [vmem:[#allocation4 + $0xd8] sm:$0xff]
          %v461 = vld [vmem:[#allocation4 + $0xe0] sm:$0xff]
          %v462 = vld [vmem:[#allocation4 + $0xe8] sm:$0xff]
          %v463 = vld [vmem:[#allocation4 + $0xf0] sm:$0xff]
          %v464 = vld [vmem:[#allocation4 + $0xf8] sm:$0xff]
          %v465 = vld [vmem:[#allocation4 + $0x100] sm:$0xff]
          %v466 = vld [vmem:[#allocation4 + $0x108] sm:$0xff]
          %v467 = vld [vmem:[#allocation4 + $0x110] sm:$0xff]
          %v468 = vld [vmem:[#allocation4 + $0x118] sm:$0xff]
          %v469 = vld [vmem:[#allocation4 + $0x120] sm:$0xff]
          %v470 = vld [vmem:[#allocation4 + $0x128] sm:$0xff]
          %v471 = vld [vmem:[#allocation4 + $0x130] sm:$0xff]
          %v472 = vld [vmem:[#allocation4 + $0x138] sm:$0xff]
          %v473 = vld [vmem:[#allocation4 + $0x140] sm:$0xff]
          %v474 = vld [vmem:[#allocation4 + $0x148] sm:$0xff]
          %v475 = vld [vmem:[#allocation4 + $0x150] sm:$0xff]
          %v476 = vld [vmem:[#allocation4 + $0x158] sm:$0xff]
          %v477 = vld [vmem:[#allocation4 + $0x160] sm:$0xff]
          %v478 = vld [vmem:[#allocation4 + $0x168] sm:$0xff]
          %v479 = vld [vmem:[#allocation4 + $0x170] sm:$0xff]
          %v480 = vld [vmem:[#allocation4 + $0x178] sm:$0xff]
          %v481 = vld [vmem:[#allocation4 + $0x180] sm:$0xff]
          %v482 = vld [vmem:[#allocation4 + $0x188] sm:$0xff]
          %v483 = vld [vmem:[#allocation4 + $0x190] sm:$0xff]
          %v484 = vld [vmem:[#allocation4 + $0x198] sm:$0xff]
          %v485 = vld [vmem:[#allocation4 + $0x1a0] sm:$0xff]
          %v486 = vld [vmem:[#allocation4 + $0x1a8] sm:$0xff]
          %v487 = vld [vmem:[#allocation4 + $0x1b0] sm:$0xff]
          %v488 = vld [vmem:[#allocation4 + $0x1b8] sm:$0xff]
          %v489 = vld [vmem:[#allocation4 + $0x1c0] sm:$0xff]
          %v490 = vld [vmem:[#allocation4 + $0x1c8] sm:$0xff]
          %v491 = vld [vmem:[#allocation4 + $0x1d0] sm:$0xff]
          %v492 = vld [vmem:[#allocation4 + $0x1d8] sm:$0xff]
          %v493 = vld [vmem:[#allocation4 + $0x1e0] sm:$0xff]
          %v494 = vld [vmem:[#allocation4 + $0x1e8] sm:$0xff]
          %v495 = vld [vmem:[#allocation4 + $0x1f0] sm:$0xff]
          %v496 = vld [vmem:[#allocation4 + $0x1f8] sm:$0xff]
          %v497 = vld [vmem:[#allocation4 + $0x200] sm:$0xff]
          %v498 = vld [vmem:[#allocation4 + $0x208] sm:$0xff]
          %v499 = vld [vmem:[#allocation4 + $0x210] sm:$0xff]
          %v500 = vld [vmem:[#allocation4 + $0x218] sm:$0xff]
          %v501 = vld [vmem:[#allocation4 + $0x220] sm:$0xff]
          %v502 = vld [vmem:[#allocation4 + $0x228] sm:$0xff]
          %v503 = vld [vmem:[#allocation4 + $0x230] sm:$0xff]
          %v504 = vld [vmem:[#allocation4 + $0x238] sm:$0xff]
          %v505 = vld [vmem:[#allocation4 + $0x240] sm:$0xff]
          %v506 = vld [vmem:[#allocation4 + $0x248] sm:$0xff]
          %v507 = vld [vmem:[#allocation4 + $0x250] sm:$0xff]
          %v508 = vld [vmem:[#allocation4 + $0x258] sm:$0xff]
          %v509 = vld [vmem:[#allocation4 + $0x260] sm:$0xff]
          %v510 = vld [vmem:[#allocation4 + $0x268] sm:$0xff]
          %v511 = vld [vmem:[#allocation4 + $0x270] sm:$0xff]
          %v512 = vld [vmem:[#allocation4 + $0x278] sm:$0xff]
          %v513 = vld [vmem:[#allocation4 + $0x280] sm:$0xff]
          %v514 = vld [vmem:[#allocation4 + $0x288] sm:$0xff]
          %v515 = vld [vmem:[#allocation4 + $0x290] sm:$0xff]
          %v516 = vld [vmem:[#allocation4 + $0x298] sm:$0xff]
          %v517 = vld [vmem:[#allocation4 + $0x2a0] sm:$0xff]
          %v518 = vld [vmem:[#allocation4 + $0x2a8] sm:$0xff]
          %v519 = vld [vmem:[#allocation4 + $0x2b0] sm:$0xff]
          %v520 = vld [vmem:[#allocation4 + $0x2b8] sm:$0xff]
          %v521 = vld [vmem:[#allocation4 + $0x2c0] sm:$0xff]
          %v522 = vld [vmem:[#allocation4 + $0x2c8] sm:$0xff]
          %v523 = vld [vmem:[#allocation4 + $0x2d0] sm:$0xff]
          %v524 = vld [vmem:[#allocation4 + $0x2d8] sm:$0xff]
          %v525 = vld [vmem:[#allocation4 + $0x2e0] sm:$0xff]
          %v526 = vld [vmem:[#allocation4 + $0x2e8] sm:$0xff]
          %v527 = vld [vmem:[#allocation4 + $0x2f0] sm:$0xff]
          %v528 = vld [vmem:[#allocation4 + $0x2f8] sm:$0xff]
          %v529 = vld [vmem:[#allocation4 + $0x300] sm:$0xff]
          %v530 = vld [vmem:[#allocation4 + $0x308] sm:$0xff]
          %v531 = vld [vmem:[#allocation4 + $0x310] sm:$0xff]
          %v532 = vld [vmem:[#allocation4 + $0x318] sm:$0xff]
          %v533 = vadd.f32 %v433, %v434
          %v534 = vadd.f32 %v533, %v435
          %v535 = vadd.f32 %v534, %v436
          %536 = vadd.xlane.f32.xlu0 %v535
          %v537 = vpop.xlane.xlu0 %536
          %v538 = vadd.f32 %v437, %v438
          %v539 = vadd.f32 %v538, %v439
          %v540 = vadd.f32 %v539, %v440
          %541 = vadd.xlane.f32.xlu0 %v540
          %v542 = vpop.xlane.xlu0 %541
          %v543 = vadd.f32 %v441, %v442
          %v544 = vadd.f32 %v543, %v443
          %v545 = vadd.f32 %v544, %v444
          %546 = vadd.xlane.f32.xlu0 %v545
          %v547 = vpop.xlane.xlu0 %546
          %v548 = vadd.f32 %v445, %v446
          %v549 = vadd.f32 %v548, %v447
          %v550 = vadd.f32 %v549, %v448
          %551 = vadd.xlane.f32.xlu0 %v550
          %v552 = vpop.xlane.xlu0 %551
          %v553 = vadd.f32 %v449, %v450
          %v554 = vadd.f32 %v553, %v451
          %v555 = vadd.f32 %v554, %v452
          %556 = vadd.xlane.f32.xlu0 %v555
          %v557 = vpop.xlane.xlu0 %556
          %v558 = vadd.f32 %v453, %v454
          %v559 = vadd.f32 %v558, %v455
          %v560 = vadd.f32 %v559, %v456
          %561 = vadd.xlane.f32.xlu0 %v560
          %v562 = vpop.xlane.xlu0 %561
          %v563 = vadd.f32 %v457, %v458
          %v564 = vadd.f32 %v563, %v459
          %v565 = vadd.f32 %v564, %v460
          %566 = vadd.xlane.f32.xlu0 %v565
          %v567 = vpop.xlane.xlu0 %566
          %v568 = vadd.f32 %v461, %v462
          %v569 = vadd.f32 %v568, %v463
          %v570 = vadd.f32 %v569, %v464
          %571 = vadd.xlane.f32.xlu0 %v570
          %v572 = vpop.xlane.xlu0 %571
          %v573 = vadd.f32 %v465, %v466
          %v574 = vadd.f32 %v573, %v467
          %v575 = vadd.f32 %v574, %v468
          %576 = vadd.xlane.f32.xlu0 %v575
          %v577 = vpop.xlane.xlu0 %576
          %v578 = vadd.f32 %v469, %v470
          %v579 = vadd.f32 %v578, %v471
          %v580 = vadd.f32 %v579, %v472
          %581 = vadd.xlane.f32.xlu0 %v580
          %v582 = vpop.xlane.xlu0 %581
          %v583 = vadd.f32 %v473, %v474
          %v584 = vadd.f32 %v583, %v475
          %v585 = vadd.f32 %v584, %v476
          %586 = vadd.xlane.f32.xlu0 %v585
          %v587 = vpop.xlane.xlu0 %586
          %v588 = vadd.f32 %v477, %v478
          %v589 = vadd.f32 %v588, %v479
          %v590 = vadd.f32 %v589, %v480
          %591 = vadd.xlane.f32.xlu0 %v590
          %v592 = vpop.xlane.xlu0 %591
          %v593 = vadd.f32 %v481, %v482
          %v594 = vadd.f32 %v593, %v483
          %v595 = vadd.f32 %v594, %v484
          %596 = vadd.xlane.f32.xlu0 %v595
          %v597 = vpop.xlane.xlu0 %596
          %v598 = vadd.f32 %v485, %v486
          %v599 = vadd.f32 %v598, %v487
          %v600 = vadd.f32 %v599, %v488
          %601 = vadd.xlane.f32.xlu0 %v600
          %v602 = vpop.xlane.xlu0 %601
          %v603 = vadd.f32 %v489, %v490
          %v604 = vadd.f32 %v603, %v491
          %v605 = vadd.f32 %v604, %v492
          %606 = vadd.xlane.f32.xlu0 %v605
          %v607 = vpop.xlane.xlu0 %606
          %v608 = vadd.f32 %v493, %v494
          %v609 = vadd.f32 %v608, %v495
          %v610 = vadd.f32 %v609, %v496
          %611 = vadd.xlane.f32.xlu0 %v610
          %v612 = vpop.xlane.xlu0 %611
          %v613 = vadd.f32 %v497, %v498
          %v614 = vadd.f32 %v613, %v499
          %v615 = vadd.f32 %v614, %v500
          %616 = vadd.xlane.f32.xlu0 %v615
          %v617 = vpop.xlane.xlu0 %616
          %v618 = vadd.f32 %v501, %v502
          %v619 = vadd.f32 %v618, %v503
          %v620 = vadd.f32 %v619, %v504
          %621 = vadd.xlane.f32.xlu0 %v620
          %v622 = vpop.xlane.xlu0 %621
          %v623 = vadd.f32 %v505, %v506
          %v624 = vadd.f32 %v623, %v507
          %v625 = vadd.f32 %v624, %v508
          %626 = vadd.xlane.f32.xlu0 %v625
          %v627 = vpop.xlane.xlu0 %626
          %v628 = vadd.f32 %v509, %v510
          %v629 = vadd.f32 %v628, %v511
          %v630 = vadd.f32 %v629, %v512
          %631 = vadd.xlane.f32.xlu0 %v630
          %v632 = vpop.xlane.xlu0 %631
          %v633 = vadd.f32 %v513, %v514
          %v634 = vadd.f32 %v633, %v515
          %v635 = vadd.f32 %v634, %v516
          %636 = vadd.xlane.f32.xlu0 %v635
          %v637 = vpop.xlane.xlu0 %636
          %v638 = vadd.f32 %v517, %v518
          %v639 = vadd.f32 %v638, %v519
          %v640 = vadd.f32 %v639, %v520
          %641 = vadd.xlane.f32.xlu0 %v640
          %v642 = vpop.xlane.xlu0 %641
          %v643 = vadd.f32 %v521, %v522
          %v644 = vadd.f32 %v643, %v523
          %v645 = vadd.f32 %v644, %v524
          %646 = vadd.xlane.f32.xlu0 %v645
          %v647 = vpop.xlane.xlu0 %646
          %v648 = vadd.f32 %v525, %v526
          %v649 = vadd.f32 %v648, %v527
          %v650 = vadd.f32 %v649, %v528
          %651 = vadd.xlane.f32.xlu0 %v650
          %v652 = vpop.xlane.xlu0 %651
          %v653 = vadd.f32 %v529, %v530
          %v654 = vadd.f32 %v653, %v531
          %v655 = vadd.f32 %v654, %v532
          %656 = vadd.xlane.f32.xlu0 %v655
          %v657 = vpop.xlane.xlu0 %656
          %v658 = vrcp.pop 512.0
          %v659 = vmul.f32 512.0, %v658
          %v660 = vsub.f32 1.0, %v659
          %v661 = vmul.f32 %v658, %v660
          %v662 = vadd.f32 %v658, %v661
          %vm663 = vweird.f32 %v658
          %v664 = vsel %vm663, %v658, %v662
          %v665 = vmul.f32 %v537, %v664
          %v666 = vmul.f32 %v542, %v664
          %v667 = vmul.f32 %v547, %v664
          %v668 = vmul.f32 %v552, %v664
          %v669 = vmul.f32 %v557, %v664
          %v670 = vmul.f32 %v562, %v664
          %v671 = vmul.f32 %v567, %v664
          %v672 = vmul.f32 %v572, %v664
          %v673 = vmul.f32 %v577, %v664
          %v674 = vmul.f32 %v582, %v664
          %v675 = vmul.f32 %v587, %v664
          %v676 = vmul.f32 %v592, %v664
          %v677 = vmul.f32 %v597, %v664
          %v678 = vmul.f32 %v602, %v664
          %v679 = vmul.f32 %v607, %v664
          %v680 = vmul.f32 %v612, %v664
          %v681 = vmul.f32 %v617, %v664
          %v682 = vmul.f32 %v622, %v664
          %v683 = vmul.f32 %v627, %v664
          %v684 = vmul.f32 %v632, %v664
          %v685 = vmul.f32 %v637, %v664
          %v686 = vmul.f32 %v642, %v664
          %v687 = vmul.f32 %v647, %v664
          %v688 = vmul.f32 %v652, %v664
          %v689 = vmul.f32 %v657, %v664
          %v690 = vsub.f32 %v433, %v665
          %v691 = vsub.f32 %v434, %v665
          %v692 = vsub.f32 %v435, %v665
          %v693 = vsub.f32 %v436, %v665
          %v694 = vsub.f32 %v437, %v666
          %v695 = vsub.f32 %v438, %v666
          %v696 = vsub.f32 %v439, %v666
          %v697 = vsub.f32 %v440, %v666
          %v698 = vsub.f32 %v441, %v667
          %v699 = vsub.f32 %v442, %v667
          %v700 = vsub.f32 %v443, %v667
          %v701 = vsub.f32 %v444, %v667
          %v702 = vsub.f32 %v445, %v668
          %v703 = vsub.f32 %v446, %v668
          %v704 = vsub.f32 %v447, %v668
          %v705 = vsub.f32 %v448, %v668
          %v706 = vsub.f32 %v449, %v669
          %v707 = vsub.f32 %v450, %v669
          %v708 = vsub.f32 %v451, %v669
          %v709 = vsub.f32 %v452, %v669
          %v710 = vsub.f32 %v453, %v670
          %v711 = vsub.f32 %v454, %v670
          %v712 = vsub.f32 %v455, %v670
          %v713 = vsub.f32 %v456, %v670
          %v714 = vsub.f32 %v457, %v671
          %v715 = vsub.f32 %v458, %v671
          %v716 = vsub.f32 %v459, %v671
          %v717 = vsub.f32 %v460, %v671
          %v718 = vsub.f32 %v461, %v672
          %v719 = vsub.f32 %v462, %v672
          %v720 = vsub.f32 %v463, %v672
          %v721 = vsub.f32 %v464, %v672
          %v722 = vsub.f32 %v465, %v673
          %v723 = vsub.f32 %v466, %v673
          %v724 = vsub.f32 %v467, %v673
          %v725 = vsub.f32 %v468, %v673
          %v726 = vsub.f32 %v469, %v674
          %v727 = vsub.f32 %v470, %v674
          %v728 = vsub.f32 %v471, %v674
          %v729 = vsub.f32 %v472, %v674
          %v730 = vsub.f32 %v473, %v675
          %v731 = vsub.f32 %v474, %v675
          %v732 = vsub.f32 %v475, %v675
          %v733 = vsub.f32 %v476, %v675
          %v734 = vsub.f32 %v477, %v676
          %v735 = vsub.f32 %v478, %v676
          %v736 = vsub.f32 %v479, %v676
          %v737 = vsub.f32 %v480, %v676
          %v738 = vsub.f32 %v481, %v677
          %v739 = vsub.f32 %v482, %v677
          %v740 = vsub.f32 %v483, %v677
          %v741 = vsub.f32 %v484, %v677
          %v742 = vsub.f32 %v485, %v678
          %v743 = vsub.f32 %v486, %v678
          %v744 = vsub.f32 %v487, %v678
          %v745 = vsub.f32 %v488, %v678
          %v746 = vsub.f32 %v489, %v679
          %v747 = vsub.f32 %v490, %v679
          %v748 = vsub.f32 %v491, %v679
          %v749 = vsub.f32 %v492, %v679
          %v750 = vsub.f32 %v493, %v680
          %v751 = vsub.f32 %v494, %v680
          %v752 = vsub.f32 %v495, %v680
          %v753 = vsub.f32 %v496, %v680
          %v754 = vsub.f32 %v497, %v681
          %v755 = vsub.f32 %v498, %v681
          %v756 = vsub.f32 %v499, %v681
          %v757 = vsub.f32 %v500, %v681
          %v758 = vsub.f32 %v501, %v682
          %v759 = vsub.f32 %v502, %v682
          %v760 = vsub.f32 %v503, %v682
          %v761 = vsub.f32 %v504, %v682
          %v762 = vsub.f32 %v505, %v683
          %v763 = vsub.f32 %v506, %v683
          %v764 = vsub.f32 %v507, %v683
          %v765 = vsub.f32 %v508, %v683
          %v766 = vsub.f32 %v509, %v684
          %v767 = vsub.f32 %v510, %v684
          %v768 = vsub.f32 %v511, %v684
          %v769 = vsub.f32 %v512, %v684
          %v770 = vsub.f32 %v513, %v685
          %v771 = vsub.f32 %v514, %v685
          %v772 = vsub.f32 %v515, %v685
          %v773 = vsub.f32 %v516, %v685
          %v774 = vsub.f32 %v517, %v686
          %v775 = vsub.f32 %v518, %v686
          %v776 = vsub.f32 %v519, %v686
          %v777 = vsub.f32 %v520, %v686
          %v778 = vsub.f32 %v521, %v687
          %v779 = vsub.f32 %v522, %v687
          %v780 = vsub.f32 %v523, %v687
          %v781 = vsub.f32 %v524, %v687
          %v782 = vsub.f32 %v525, %v688
          %v783 = vsub.f32 %v526, %v688
          %v784 = vsub.f32 %v527, %v688
          %v785 = vsub.f32 %v528, %v688
          %v786 = vsub.f32 %v529, %v689
          %v787 = vsub.f32 %v530, %v689
          %v788 = vsub.f32 %v531, %v689
          %v789 = vsub.f32 %v532, %v689
          %v790 = vmul.f32 %v690, %v690
          %v791 = vmul.f32 %v691, %v691
          %v792 = vmul.f32 %v692, %v692
          %v793 = vmul.f32 %v693, %v693
          %v794 = vmul.f32 %v694, %v694
          %v795 = vmul.f32 %v695, %v695
          %v796 = vmul.f32 %v696, %v696
          %v797 = vmul.f32 %v697, %v697
          %v798 = vmul.f32 %v698, %v698
          %v799 = vmul.f32 %v699, %v699
          %v800 = vmul.f32 %v700, %v700
          %v801 = vmul.f32 %v701, %v701
          %v802 = vmul.f32 %v702, %v702
          %v803 = vmul.f32 %v703, %v703
          %v804 = vmul.f32 %v704, %v704
          %v805 = vmul.f32 %v705, %v705
          %v806 = vmul.f32 %v706, %v706
          %v807 = vmul.f32 %v707, %v707
          %v808 = vmul.f32 %v708, %v708
          %v809 = vmul.f32 %v709, %v709
          %v810 = vmul.f32 %v710, %v710
          %v811 = vmul.f32 %v711, %v711
          %v812 = vmul.f32 %v712, %v712
          %v813 = vmul.f32 %v713, %v713
          %v814 = vmul.f32 %v714, %v714
          %v815 = vmul.f32 %v715, %v715
          %v816 = vmul.f32 %v716, %v716
          %v817 = vmul.f32 %v717, %v717
          %v818 = vmul.f32 %v718, %v718
          %v819 = vmul.f32 %v719, %v719
          %v820 = vmul.f32 %v720, %v720
          %v821 = vmul.f32 %v721, %v721
          %v822 = vmul.f32 %v722, %v722
          %v823 = vmul.f32 %v723, %v723
          %v824 = vmul.f32 %v724, %v724
          %v825 = vmul.f32 %v725, %v725
          %v826 = vmul.f32 %v726, %v726
          %v827 = vmul.f32 %v727, %v727
          %v828 = vmul.f32 %v728, %v728
          %v829 = vmul.f32 %v729, %v729
          %v830 = vmul.f32 %v730, %v730
          %v831 = vmul.f32 %v731, %v731
          %v832 = vmul.f32 %v732, %v732
          %v833 = vmul.f32 %v733, %v733
          %v834 = vmul.f32 %v734, %v734
          %v835 = vmul.f32 %v735, %v735
          %v836 = vmul.f32 %v736, %v736
          %v837 = vmul.f32 %v737, %v737
          %v838 = vmul.f32 %v738, %v738
          %v839 = vmul.f32 %v739, %v739
          %v840 = vmul.f32 %v740, %v740
          %v841 = vmul.f32 %v741, %v741
          %v842 = vmul.f32 %v742, %v742
          %v843 = vmul.f32 %v743, %v743
          %v844 = vmul.f32 %v744, %v744
          %v845 = vmul.f32 %v745, %v745
          %v846 = vmul.f32 %v746, %v746
          %v847 = vmul.f32 %v747, %v747
          %v848 = vmul.f32 %v748, %v748
          %v849 = vmul.f32 %v749, %v749
          %v850 = vmul.f32 %v750, %v750
          %v851 = vmul.f32 %v751, %v751
          %v852 = vmul.f32 %v752, %v752
          %v853 = vmul.f32 %v753, %v753
          %v854 = vmul.f32 %v754, %v754
          %v855 = vmul.f32 %v755, %v755
          %v856 = vmul.f32 %v756, %v756
          %v857 = vmul.f32 %v757, %v757
          %v858 = vmul.f32 %v758, %v758
          %v859 = vmul.f32 %v759, %v759
          %v860 = vmul.f32 %v760, %v760
          %v861 = vmul.f32 %v761, %v761
          %v862 = vmul.f32 %v762, %v762
          %v863 = vmul.f32 %v763, %v763
          %v864 = vmul.f32 %v764, %v764
          %v865 = vmul.f32 %v765, %v765
          %v866 = vmul.f32 %v766, %v766
          %v867 = vmul.f32 %v767, %v767
          %v868 = vmul.f32 %v768, %v768
          %v869 = vmul.f32 %v769, %v769
          %v870 = vmul.f32 %v770, %v770
          %v871 = vmul.f32 %v771, %v771
          %v872 = vmul.f32 %v772, %v772
          %v873 = vmul.f32 %v773, %v773
          %v874 = vmul.f32 %v774, %v774
          %v875 = vmul.f32 %v775, %v775
          %v876 = vmul.f32 %v776, %v776
          %v877 = vmul.f32 %v777, %v777
          %v878 = vmul.f32 %v778, %v778
          %v879 = vmul.f32 %v779, %v779
          %v880 = vmul.f32 %v780, %v780
          %v881 = vmul.f32 %v781, %v781
          %v882 = vmul.f32 %v782, %v782
          %v883 = vmul.f32 %v783, %v783
          %v884 = vmul.f32 %v784, %v784
          %v885 = vmul.f32 %v785, %v785
          %v886 = vmul.f32 %v786, %v786
          %v887 = vmul.f32 %v787, %v787
          %v888 = vmul.f32 %v788, %v788
          %v889 = vmul.f32 %v789, %v789
          %v890 = vadd.f32 %v790, %v791
          %v891 = vadd.f32 %v890, %v792
          %v892 = vadd.f32 %v891, %v793
          %893 = vadd.xlane.f32.xlu0 %v892
          %v894 = vpop.xlane.xlu0 %893
          %v895 = vadd.f32 %v794, %v795
          %v896 = vadd.f32 %v895, %v796
          %v897 = vadd.f32 %v896, %v797
          %898 = vadd.xlane.f32.xlu0 %v897
          %v899 = vpop.xlane.xlu0 %898
          %v900 = vadd.f32 %v798, %v799
          %v901 = vadd.f32 %v900, %v800
          %v902 = vadd.f32 %v901, %v801
          %903 = vadd.xlane.f32.xlu0 %v902
          %v904 = vpop.xlane.xlu0 %903
          %v905 = vadd.f32 %v802, %v803
          %v906 = vadd.f32 %v905, %v804
          %v907 = vadd.f32 %v906, %v805
          %908 = vadd.xlane.f32.xlu0 %v907
          %v909 = vpop.xlane.xlu0 %908
          %v910 = vadd.f32 %v806, %v807
          %v911 = vadd.f32 %v910, %v808
          %v912 = vadd.f32 %v911, %v809
          %913 = vadd.xlane.f32.xlu0 %v912
          %v914 = vpop.xlane.xlu0 %913
          %v915 = vadd.f32 %v810, %v811
          %v916 = vadd.f32 %v915, %v812
          %v917 = vadd.f32 %v916, %v813
          %918 = vadd.xlane.f32.xlu0 %v917
          %v919 = vpop.xlane.xlu0 %918
          %v920 = vadd.f32 %v814, %v815
          %v921 = vadd.f32 %v920, %v816
          %v922 = vadd.f32 %v921, %v817
          %923 = vadd.xlane.f32.xlu0 %v922
          %v924 = vpop.xlane.xlu0 %923
          %v925 = vadd.f32 %v818, %v819
          %v926 = vadd.f32 %v925, %v820
          %v927 = vadd.f32 %v926, %v821
          %928 = vadd.xlane.f32.xlu0 %v927
          %v929 = vpop.xlane.xlu0 %928
          %v930 = vadd.f32 %v822, %v823
          %v931 = vadd.f32 %v930, %v824
          %v932 = vadd.f32 %v931, %v825
          %933 = vadd.xlane.f32.xlu0 %v932
          %v934 = vpop.xlane.xlu0 %933
          %v935 = vadd.f32 %v826, %v827
          %v936 = vadd.f32 %v935, %v828
          %v937 = vadd.f32 %v936, %v829
          %938 = vadd.xlane.f32.xlu0 %v937
          %v939 = vpop.xlane.xlu0 %938
          %v940 = vadd.f32 %v830, %v831
          %v941 = vadd.f32 %v940, %v832
          %v942 = vadd.f32 %v941, %v833
          %943 = vadd.xlane.f32.xlu0 %v942
          %v944 = vpop.xlane.xlu0 %943
          %v945 = vadd.f32 %v834, %v835
          %v946 = vadd.f32 %v945, %v836
          %v947 = vadd.f32 %v946, %v837
          %948 = vadd.xlane.f32.xlu0 %v947
          %v949 = vpop.xlane.xlu0 %948
          %v950 = vadd.f32 %v838, %v839
          %v951 = vadd.f32 %v950, %v840
          %v952 = vadd.f32 %v951, %v841
          %953 = vadd.xlane.f32.xlu0 %v952
          %v954 = vpop.xlane.xlu0 %953
          %v955 = vadd.f32 %v842, %v843
          %v956 = vadd.f32 %v955, %v844
          %v957 = vadd.f32 %v956, %v845
          %958 = vadd.xlane.f32.xlu0 %v957
          %v959 = vpop.xlane.xlu0 %958
          %v960 = vadd.f32 %v846, %v847
          %v961 = vadd.f32 %v960, %v848
          %v962 = vadd.f32 %v961, %v849
          %963 = vadd.xlane.f32.xlu0 %v962
          %v964 = vpop.xlane.xlu0 %963
          %v965 = vadd.f32 %v850, %v851
          %v966 = vadd.f32 %v965, %v852
          %v967 = vadd.f32 %v966, %v853
          %968 = vadd.xlane.f32.xlu0 %v967
          %v969 = vpop.xlane.xlu0 %968
          %v970 = vadd.f32 %v854, %v855
          %v971 = vadd.f32 %v970, %v856
          %v972 = vadd.f32 %v971, %v857
          %973 = vadd.xlane.f32.xlu0 %v972
          %v974 = vpop.xlane.xlu0 %973
          %v975 = vadd.f32 %v858, %v859
          %v976 = vadd.f32 %v975, %v860
          %v977 = vadd.f32 %v976, %v861
          %978 = vadd.xlane.f32.xlu0 %v977
          %v979 = vpop.xlane.xlu0 %978
          %v980 = vadd.f32 %v862, %v863
          %v981 = vadd.f32 %v980, %v864
          %v982 = vadd.f32 %v981, %v865
          %983 = vadd.xlane.f32.xlu0 %v982
          %v984 = vpop.xlane.xlu0 %983
          %v985 = vadd.f32 %v866, %v867
          %v986 = vadd.f32 %v985, %v868
          %v987 = vadd.f32 %v986, %v869
          %988 = vadd.xlane.f32.xlu0 %v987
          %v989 = vpop.xlane.xlu0 %988
          %v990 = vadd.f32 %v870, %v871
          %v991 = vadd.f32 %v990, %v872
          %v992 = vadd.f32 %v991, %v873
          %993 = vadd.xlane.f32.xlu0 %v992
          %v994 = vpop.xlane.xlu0 %993
          %v995 = vadd.f32 %v874, %v875
          %v996 = vadd.f32 %v995, %v876
          %v997 = vadd.f32 %v996, %v877
          %998 = vadd.xlane.f32.xlu0 %v997
          %v999 = vpop.xlane.xlu0 %998
          %v1000 = vadd.f32 %v878, %v879
          %v1001 = vadd.f32 %v1000, %v880
          %v1002 = vadd.f32 %v1001, %v881
          %1003 = vadd.xlane.f32.xlu0 %v1002
          %v1004 = vpop.xlane.xlu0 %1003
          %v1005 = vadd.f32 %v882, %v883
          %v1006 = vadd.f32 %v1005, %v884
          %v1007 = vadd.f32 %v1006, %v885
          %1008 = vadd.xlane.f32.xlu0 %v1007
          %v1009 = vpop.xlane.xlu0 %1008
          %v1010 = vadd.f32 %v886, %v887
          %v1011 = vadd.f32 %v1010, %v888
          %v1012 = vadd.f32 %v1011, %v889
          %1013 = vadd.xlane.f32.xlu0 %v1012
          %v1014 = vpop.xlane.xlu0 %1013
          %v1015 = vmul.f32 %v894, %v664
          %v1016 = vmul.f32 %v899, %v664
          %v1017 = vmul.f32 %v904, %v664
          %v1018 = vmul.f32 %v909, %v664
          %v1019 = vmul.f32 %v914, %v664
          %v1020 = vmul.f32 %v919, %v664
          %v1021 = vmul.f32 %v924, %v664
          %v1022 = vmul.f32 %v929, %v664
          %v1023 = vmul.f32 %v934, %v664
          %v1024 = vmul.f32 %v939, %v664
          %v1025 = vmul.f32 %v944, %v664
          %v1026 = vmul.f32 %v949, %v664
          %v1027 = vmul.f32 %v954, %v664
          %v1028 = vmul.f32 %v959, %v664
          %v1029 = vmul.f32 %v964, %v664
          %v1030 = vmul.f32 %v969, %v664
          %v1031 = vmul.f32 %v974, %v664
          %v1032 = vmul.f32 %v979, %v664
          %v1033 = vmul.f32 %v984, %v664
          %v1034 = vmul.f32 %v989, %v664
          %v1035 = vmul.f32 %v994, %v664
          %v1036 = vmul.f32 %v999, %v664
          %v1037 = vmul.f32 %v1004, %v664
          %v1038 = vmul.f32 %v1009, %v664
          %v1039 = vmul.f32 %v1014, %v664
          %v1040 = vadd.f32 %v1015, 1e-05
          %v1041 = vadd.f32 %v1016, 1e-05
          %v1042 = vadd.f32 %v1017, 1e-05
          %v1043 = vadd.f32 %v1018, 1e-05
          %v1044 = vadd.f32 %v1019, 1e-05
          %v1045 = vadd.f32 %v1020, 1e-05
          %v1046 = vadd.f32 %v1021, 1e-05
          %v1047 = vadd.f32 %v1022, 1e-05
          %v1048 = vadd.f32 %v1023, 1e-05
          %v1049 = vadd.f32 %v1024, 1e-05
          %v1050 = vadd.f32 %v1025, 1e-05
          %v1051 = vadd.f32 %v1026, 1e-05
          %v1052 = vadd.f32 %v1027, 1e-05
          %v1053 = vadd.f32 %v1028, 1e-05
          %v1054 = vadd.f32 %v1029, 1e-05
          %v1055 = vadd.f32 %v1030, 1e-05
          %v1056 = vadd.f32 %v1031, 1e-05
          %v1057 = vadd.f32 %v1032, 1e-05
          %v1058 = vadd.f32 %v1033, 1e-05
          %v1059 = vadd.f32 %v1034, 1e-05
          %v1060 = vadd.f32 %v1035, 1e-05
          %v1061 = vadd.f32 %v1036, 1e-05
          %v1062 = vadd.f32 %v1037, 1e-05
          %v1063 = vadd.f32 %v1038, 1e-05
          %v1064 = vadd.f32 %v1039, 1e-05
          %v1065 = vrsqrt.pop %v1040
          %v1066 = vmul.f32 %v1065, %v1040
          %v1067 = vmul.f32 %v1066, %v1065
          %v1068 = vmul.f32 0.5, %v1067
          %v1069 = vsub.f32 1.5, %v1068
          %v1070 = vmul.f32 %v1065, %v1069
          %vm1071 = vweird.f32 %v1040
          %vm1072 = vweird.f32 %v1065
          %vm1073 = vmor %vm1071, %vm1072
          %v1074 = vsel %vm1073, %v1065, %v1070
          %v1075 = vrsqrt.pop %v1041
          %v1076 = vmul.f32 %v1075, %v1041
          %v1077 = vmul.f32 %v1076, %v1075
          %v1078 = vmul.f32 0.5, %v1077
          %v1079 = vsub.f32 1.5, %v1078
          %v1080 = vmul.f32 %v1075, %v1079
          %vm1081 = vweird.f32 %v1041
          %vm1082 = vweird.f32 %v1075
          %vm1083 = vmor %vm1081, %vm1082
          %v1084 = vsel %vm1083, %v1075, %v1080
          %v1085 = vrsqrt.pop %v1042
          %v1086 = vmul.f32 %v1085, %v1042
          %v1087 = vmul.f32 %v1086, %v1085
          %v1088 = vmul.f32 0.5, %v1087
          %v1089 = vsub.f32 1.5, %v1088
          %v1090 = vmul.f32 %v1085, %v1089
          %vm1091 = vweird.f32 %v1042
          %vm1092 = vweird.f32 %v1085
          %vm1093 = vmor %vm1091, %vm1092
          %v1094 = vsel %vm1093, %v1085, %v1090
          %v1095 = vrsqrt.pop %v1043
          %v1096 = vmul.f32 %v1095, %v1043
          %v1097 = vmul.f32 %v1096, %v1095
          %v1098 = vmul.f32 0.5, %v1097
          %v1099 = vsub.f32 1.5, %v1098
          %v1100 = vmul.f32 %v1095, %v1099
          %vm1101 = vweird.f32 %v1043
          %vm1102 = vweird.f32 %v1095
          %vm1103 = vmor %vm1101, %vm1102
          %v1104 = vsel %vm1103, %v1095, %v1100
          %v1105 = vrsqrt.pop %v1044
          %v1106 = vmul.f32 %v1105, %v1044
          %v1107 = vmul.f32 %v1106, %v1105
          %v1108 = vmul.f32 0.5, %v1107
          %v1109 = vsub.f32 1.5, %v1108
          %v1110 = vmul.f32 %v1105, %v1109
          %vm1111 = vweird.f32 %v1044
          %vm1112 = vweird.f32 %v1105
          %vm1113 = vmor %vm1111, %vm1112
          %v1114 = vsel %vm1113, %v1105, %v1110
          %v1115 = vrsqrt.pop %v1045
          %v1116 = vmul.f32 %v1115, %v1045
          %v1117 = vmul.f32 %v1116, %v1115
          %v1118 = vmul.f32 0.5, %v1117
          %v1119 = vsub.f32 1.5, %v1118
          %v1120 = vmul.f32 %v1115, %v1119
          %vm1121 = vweird.f32 %v1045
          %vm1122 = vweird.f32 %v1115
          %vm1123 = vmor %vm1121, %vm1122
          %v1124 = vsel %vm1123, %v1115, %v1120
          %v1125 = vrsqrt.pop %v1046
          %v1126 = vmul.f32 %v1125, %v1046
          %v1127 = vmul.f32 %v1126, %v1125
          %v1128 = vmul.f32 0.5, %v1127
          %v1129 = vsub.f32 1.5, %v1128
          %v1130 = vmul.f32 %v1125, %v1129
          %vm1131 = vweird.f32 %v1046
          %vm1132 = vweird.f32 %v1125
          %vm1133 = vmor %vm1131, %vm1132
          %v1134 = vsel %vm1133, %v1125, %v1130
          %v1135 = vrsqrt.pop %v1047
          %v1136 = vmul.f32 %v1135, %v1047
          %v1137 = vmul.f32 %v1136, %v1135
          %v1138 = vmul.f32 0.5, %v1137
          %v1139 = vsub.f32 1.5, %v1138
          %v1140 = vmul.f32 %v1135, %v1139
          %vm1141 = vweird.f32 %v1047
          %vm1142 = vweird.f32 %v1135
          %vm1143 = vmor %vm1141, %vm1142
          %v1144 = vsel %vm1143, %v1135, %v1140
          %v1145 = vrsqrt.pop %v1048
          %v1146 = vmul.f32 %v1145, %v1048
          %v1147 = vmul.f32 %v1146, %v1145
          %v1148 = vmul.f32 0.5, %v1147
          %v1149 = vsub.f32 1.5, %v1148
          %v1150 = vmul.f32 %v1145, %v1149
          %vm1151 = vweird.f32 %v1048
          %vm1152 = vweird.f32 %v1145
          %vm1153 = vmor %vm1151, %vm1152
          %v1154 = vsel %vm1153, %v1145, %v1150
          %v1155 = vrsqrt.pop %v1049
          %v1156 = vmul.f32 %v1155, %v1049
          %v1157 = vmul.f32 %v1156, %v1155
          %v1158 = vmul.f32 0.5, %v1157
          %v1159 = vsub.f32 1.5, %v1158
          %v1160 = vmul.f32 %v1155, %v1159
          %vm1161 = vweird.f32 %v1049
          %vm1162 = vweird.f32 %v1155
          %vm1163 = vmor %vm1161, %vm1162
          %v1164 = vsel %vm1163, %v1155, %v1160
          %v1165 = vrsqrt.pop %v1050
          %v1166 = vmul.f32 %v1165, %v1050
          %v1167 = vmul.f32 %v1166, %v1165
          %v1168 = vmul.f32 0.5, %v1167
          %v1169 = vsub.f32 1.5, %v1168
          %v1170 = vmul.f32 %v1165, %v1169
          %vm1171 = vweird.f32 %v1050
          %vm1172 = vweird.f32 %v1165
          %vm1173 = vmor %vm1171, %vm1172
          %v1174 = vsel %vm1173, %v1165, %v1170
          %v1175 = vrsqrt.pop %v1051
          %v1176 = vmul.f32 %v1175, %v1051
          %v1177 = vmul.f32 %v1176, %v1175
          %v1178 = vmul.f32 0.5, %v1177
          %v1179 = vsub.f32 1.5, %v1178
          %v1180 = vmul.f32 %v1175, %v1179
          %vm1181 = vweird.f32 %v1051
          %vm1182 = vweird.f32 %v1175
          %vm1183 = vmor %vm1181, %vm1182
          %v1184 = vsel %vm1183, %v1175, %v1180
          %v1185 = vrsqrt.pop %v1052
          %v1186 = vmul.f32 %v1185, %v1052
          %v1187 = vmul.f32 %v1186, %v1185
          %v1188 = vmul.f32 0.5, %v1187
          %v1189 = vsub.f32 1.5, %v1188
          %v1190 = vmul.f32 %v1185, %v1189
          %vm1191 = vweird.f32 %v1052
          %vm1192 = vweird.f32 %v1185
          %vm1193 = vmor %vm1191, %vm1192
          %v1194 = vsel %vm1193, %v1185, %v1190
          %v1195 = vrsqrt.pop %v1053
          %v1196 = vmul.f32 %v1195, %v1053
          %v1197 = vmul.f32 %v1196, %v1195
          %v1198 = vmul.f32 0.5, %v1197
          %v1199 = vsub.f32 1.5, %v1198
          %v1200 = vmul.f32 %v1195, %v1199
          %vm1201 = vweird.f32 %v1053
          %vm1202 = vweird.f32 %v1195
          %vm1203 = vmor %vm1201, %vm1202
          %v1204 = vsel %vm1203, %v1195, %v1200
          %v1205 = vrsqrt.pop %v1054
          %v1206 = vmul.f32 %v1205, %v1054
          %v1207 = vmul.f32 %v1206, %v1205
          %v1208 = vmul.f32 0.5, %v1207
          %v1209 = vsub.f32 1.5, %v1208
          %v1210 = vmul.f32 %v1205, %v1209
          %vm1211 = vweird.f32 %v1054
          %vm1212 = vweird.f32 %v1205
          %vm1213 = vmor %vm1211, %vm1212
          %v1214 = vsel %vm1213, %v1205, %v1210
          %v1215 = vrsqrt.pop %v1055
          %v1216 = vmul.f32 %v1215, %v1055
          %v1217 = vmul.f32 %v1216, %v1215
          %v1218 = vmul.f32 0.5, %v1217
          %v1219 = vsub.f32 1.5, %v1218
          %v1220 = vmul.f32 %v1215, %v1219
          %vm1221 = vweird.f32 %v1055
          %vm1222 = vweird.f32 %v1215
          %vm1223 = vmor %vm1221, %vm1222
          %v1224 = vsel %vm1223, %v1215, %v1220
          %v1225 = vrsqrt.pop %v1056
          %v1226 = vmul.f32 %v1225, %v1056
          %v1227 = vmul.f32 %v1226, %v1225
          %v1228 = vmul.f32 0.5, %v1227
          %v1229 = vsub.f32 1.5, %v1228
          %v1230 = vmul.f32 %v1225, %v1229
          %vm1231 = vweird.f32 %v1056
          %vm1232 = vweird.f32 %v1225
          %vm1233 = vmor %vm1231, %vm1232
          %v1234 = vsel %vm1233, %v1225, %v1230
          %v1235 = vrsqrt.pop %v1057
          %v1236 = vmul.f32 %v1235, %v1057
          %v1237 = vmul.f32 %v1236, %v1235
          %v1238 = vmul.f32 0.5, %v1237
          %v1239 = vsub.f32 1.5, %v1238
          %v1240 = vmul.f32 %v1235, %v1239
          %vm1241 = vweird.f32 %v1057
          %vm1242 = vweird.f32 %v1235
          %vm1243 = vmor %vm1241, %vm1242
          %v1244 = vsel %vm1243, %v1235, %v1240
          %v1245 = vrsqrt.pop %v1058
          %v1246 = vmul.f32 %v1245, %v1058
          %v1247 = vmul.f32 %v1246, %v1245
          %v1248 = vmul.f32 0.5, %v1247
          %v1249 = vsub.f32 1.5, %v1248
          %v1250 = vmul.f32 %v1245, %v1249
          %vm1251 = vweird.f32 %v1058
          %vm1252 = vweird.f32 %v1245
          %vm1253 = vmor %vm1251, %vm1252
          %v1254 = vsel %vm1253, %v1245, %v1250
          %v1255 = vrsqrt.pop %v1059
          %v1256 = vmul.f32 %v1255, %v1059
          %v1257 = vmul.f32 %v1256, %v1255
          %v1258 = vmul.f32 0.5, %v1257
          %v1259 = vsub.f32 1.5, %v1258
          %v1260 = vmul.f32 %v1255, %v1259
          %vm1261 = vweird.f32 %v1059
          %vm1262 = vweird.f32 %v1255
          %vm1263 = vmor %vm1261, %vm1262
          %v1264 = vsel %vm1263, %v1255, %v1260
          %v1265 = vrsqrt.pop %v1060
          %v1266 = vmul.f32 %v1265, %v1060
          %v1267 = vmul.f32 %v1266, %v1265
          %v1268 = vmul.f32 0.5, %v1267
          %v1269 = vsub.f32 1.5, %v1268
          %v1270 = vmul.f32 %v1265, %v1269
          %vm1271 = vweird.f32 %v1060
          %vm1272 = vweird.f32 %v1265
          %vm1273 = vmor %vm1271, %vm1272
          %v1274 = vsel %vm1273, %v1265, %v1270
          %v1275 = vrsqrt.pop %v1061
          %v1276 = vmul.f32 %v1275, %v1061
          %v1277 = vmul.f32 %v1276, %v1275
          %v1278 = vmul.f32 0.5, %v1277
          %v1279 = vsub.f32 1.5, %v1278
          %v1280 = vmul.f32 %v1275, %v1279
          %vm1281 = vweird.f32 %v1061
          %vm1282 = vweird.f32 %v1275
          %vm1283 = vmor %vm1281, %vm1282
          %v1284 = vsel %vm1283, %v1275, %v1280
          %v1285 = vrsqrt.pop %v1062
          %v1286 = vmul.f32 %v1285, %v1062
          %v1287 = vmul.f32 %v1286, %v1285
          %v1288 = vmul.f32 0.5, %v1287
          %v1289 = vsub.f32 1.5, %v1288
          %v1290 = vmul.f32 %v1285, %v1289
          %vm1291 = vweird.f32 %v1062
          %vm1292 = vweird.f32 %v1285
          %vm1293 = vmor %vm1291, %vm1292
          %v1294 = vsel %vm1293, %v1285, %v1290
          %v1295 = vrsqrt.pop %v1063
          %v1296 = vmul.f32 %v1295, %v1063
          %v1297 = vmul.f32 %v1296, %v1295
          %v1298 = vmul.f32 0.5, %v1297
          %v1299 = vsub.f32 1.5, %v1298
          %v1300 = vmul.f32 %v1295, %v1299
          %vm1301 = vweird.f32 %v1063
          %vm1302 = vweird.f32 %v1295
          %vm1303 = vmor %vm1301, %vm1302
          %v1304 = vsel %vm1303, %v1295, %v1300
          %v1305 = vrsqrt.pop %v1064
          %v1306 = vmul.f32 %v1305, %v1064
          %v1307 = vmul.f32 %v1306, %v1305
          %v1308 = vmul.f32 0.5, %v1307
          %v1309 = vsub.f32 1.5, %v1308
          %v1310 = vmul.f32 %v1305, %v1309
          %vm1311 = vweird.f32 %v1064
          %vm1312 = vweird.f32 %v1305
          %vm1313 = vmor %vm1311, %vm1312
          %v1314 = vsel %vm1313, %v1305, %v1310
          %v1315 = vmul.f32 %v690, %v1074
          %v1316 = vmul.f32 %v691, %v1074
          %v1317 = vmul.f32 %v692, %v1074
          %v1318 = vmul.f32 %v693, %v1074
          %v1319 = vmul.f32 %v694, %v1084
          %v1320 = vmul.f32 %v695, %v1084
          %v1321 = vmul.f32 %v696, %v1084
          %v1322 = vmul.f32 %v697, %v1084
          %v1323 = vmul.f32 %v698, %v1094
          %v1324 = vmul.f32 %v699, %v1094
          %v1325 = vmul.f32 %v700, %v1094
          %v1326 = vmul.f32 %v701, %v1094
          %v1327 = vmul.f32 %v702, %v1104
          %v1328 = vmul.f32 %v703, %v1104
          %v1329 = vmul.f32 %v704, %v1104
          %v1330 = vmul.f32 %v705, %v1104
          %v1331 = vmul.f32 %v706, %v1114
          %v1332 = vmul.f32 %v707, %v1114
          %v1333 = vmul.f32 %v708, %v1114
          %v1334 = vmul.f32 %v709, %v1114
          %v1335 = vmul.f32 %v710, %v1124
          %v1336 = vmul.f32 %v711, %v1124
          %v1337 = vmul.f32 %v712, %v1124
          %v1338 = vmul.f32 %v713, %v1124
          %v1339 = vmul.f32 %v714, %v1134
          %v1340 = vmul.f32 %v715, %v1134
          %v1341 = vmul.f32 %v716, %v1134
          %v1342 = vmul.f32 %v717, %v1134
          %v1343 = vmul.f32 %v718, %v1144
          %v1344 = vmul.f32 %v719, %v1144
          %v1345 = vmul.f32 %v720, %v1144
          %v1346 = vmul.f32 %v721, %v1144
          %v1347 = vmul.f32 %v722, %v1154
          %v1348 = vmul.f32 %v723, %v1154
          %v1349 = vmul.f32 %v724, %v1154
          %v1350 = vmul.f32 %v725, %v1154
          %v1351 = vmul.f32 %v726, %v1164
          %v1352 = vmul.f32 %v727, %v1164
          %v1353 = vmul.f32 %v728, %v1164
          %v1354 = vmul.f32 %v729, %v1164
          %v1355 = vmul.f32 %v730, %v1174
          %v1356 = vmul.f32 %v731, %v1174
          %v1357 = vmul.f32 %v732, %v1174
          %v1358 = vmul.f32 %v733, %v1174
          %v1359 = vmul.f32 %v734, %v1184
          %v1360 = vmul.f32 %v735, %v1184
          %v1361 = vmul.f32 %v736, %v1184
          %v1362 = vmul.f32 %v737, %v1184
          %v1363 = vmul.f32 %v738, %v1194
          %v1364 = vmul.f32 %v739, %v1194
          %v1365 = vmul.f32 %v740, %v1194
          %v1366 = vmul.f32 %v741, %v1194
          %v1367 = vmul.f32 %v742, %v1204
          %v1368 = vmul.f32 %v743, %v1204
          %v1369 = vmul.f32 %v744, %v1204
          %v1370 = vmul.f32 %v745, %v1204
          %v1371 = vmul.f32 %v746, %v1214
          %v1372 = vmul.f32 %v747, %v1214
          %v1373 = vmul.f32 %v748, %v1214
          %v1374 = vmul.f32 %v749, %v1214
          %v1375 = vmul.f32 %v750, %v1224
          %v1376 = vmul.f32 %v751, %v1224
          %v1377 = vmul.f32 %v752, %v1224
          %v1378 = vmul.f32 %v753, %v1224
          %v1379 = vmul.f32 %v754, %v1234
          %v1380 = vmul.f32 %v755, %v1234
          %v1381 = vmul.f32 %v756, %v1234
          %v1382 = vmul.f32 %v757, %v1234
          %v1383 = vmul.f32 %v758, %v1244
          %v1384 = vmul.f32 %v759, %v1244
          %v1385 = vmul.f32 %v760, %v1244
          %v1386 = vmul.f32 %v761, %v1244
          %v1387 = vmul.f32 %v762, %v1254
          %v1388 = vmul.f32 %v763, %v1254
          %v1389 = vmul.f32 %v764, %v1254
          %v1390 = vmul.f32 %v765, %v1254
          %v1391 = vmul.f32 %v766, %v1264
          %v1392 = vmul.f32 %v767, %v1264
          %v1393 = vmul.f32 %v768, %v1264
          %v1394 = vmul.f32 %v769, %v1264
          %v1395 = vmul.f32 %v770, %v1274
          %v1396 = vmul.f32 %v771, %v1274
          %v1397 = vmul.f32 %v772, %v1274
          %v1398 = vmul.f32 %v773, %v1274
          %v1399 = vmul.f32 %v774, %v1284
          %v1400 = vmul.f32 %v775, %v1284
          %v1401 = vmul.f32 %v776, %v1284
          %v1402 = vmul.f32 %v777, %v1284
          %v1403 = vmul.f32 %v778, %v1294
          %v1404 = vmul.f32 %v779, %v1294
          %v1405 = vmul.f32 %v780, %v1294
          %v1406 = vmul.f32 %v781, %v1294
          %v1407 = vmul.f32 %v782, %v1304
          %v1408 = vmul.f32 %v783, %v1304
          %v1409 = vmul.f32 %v784, %v1304
          %v1410 = vmul.f32 %v785, %v1304
          %v1411 = vmul.f32 %v786, %v1314
          %v1412 = vmul.f32 %v787, %v1314
          %v1413 = vmul.f32 %v788, %v1314
          %v1414 = vmul.f32 %v789, %v1314
          %v1415 = vld [vmem:[#allocation7] sm:$0xf]
          %v1417 = vperm.slane %v1415, 0
          %v1418 = vperm.slane %v1415, 1
          %v1419 = vperm.slane %v1415, 2
          %v1420 = vperm.slane %v1415, 3
          %v1425 = vmul.f32 %v1315, %v1417
          %v1426 = vmul.f32 %v1316, %v1418
          %v1427 = vmul.f32 %v1317, %v1419
          %v1428 = vmul.f32 %v1318, %v1420
          %v1429 = vmul.f32 %v1319, %v1417
          %v1430 = vmul.f32 %v1320, %v1418
          %v1431 = vmul.f32 %v1321, %v1419
          %v1432 = vmul.f32 %v1322, %v1420
          %v1433 = vmul.f32 %v1323, %v1417
          %v1434 = vmul.f32 %v1324, %v1418
          %v1435 = vmul.f32 %v1325, %v1419
          %v1436 = vmul.f32 %v1326, %v1420
          %v1437 = vmul.f32 %v1327, %v1417
          %v1438 = vmul.f32 %v1328, %v1418
          %v1439 = vmul.f32 %v1329, %v1419
          %v1440 = vmul.f32 %v1330, %v1420
          %v1441 = vmul.f32 %v1331, %v1417
          %v1442 = vmul.f32 %v1332, %v1418
          %v1443 = vmul.f32 %v1333, %v1419
          %v1444 = vmul.f32 %v1334, %v1420
          %v1445 = vmul.f32 %v1335, %v1417
          %v1446 = vmul.f32 %v1336, %v1418
          %v1447 = vmul.f32 %v1337, %v1419
          %v1448 = vmul.f32 %v1338, %v1420
          %v1449 = vmul.f32 %v1339, %v1417
          %v1450 = vmul.f32 %v1340, %v1418
          %v1451 = vmul.f32 %v1341, %v1419
          %v1452 = vmul.f32 %v1342, %v1420
          %v1453 = vmul.f32 %v1343, %v1417
          %v1454 = vmul.f32 %v1344, %v1418
          %v1455 = vmul.f32 %v1345, %v1419
          %v1456 = vmul.f32 %v1346, %v1420
          %v1457 = vmul.f32 %v1347, %v1417
          %v1458 = vmul.f32 %v1348, %v1418
          %v1459 = vmul.f32 %v1349, %v1419
          %v1460 = vmul.f32 %v1350, %v1420
          %v1461 = vmul.f32 %v1351, %v1417
          %v1462 = vmul.f32 %v1352, %v1418
          %v1463 = vmul.f32 %v1353, %v1419
          %v1464 = vmul.f32 %v1354, %v1420
          %v1465 = vmul.f32 %v1355, %v1417
          %v1466 = vmul.f32 %v1356, %v1418
          %v1467 = vmul.f32 %v1357, %v1419
          %v1468 = vmul.f32 %v1358, %v1420
          %v1469 = vmul.f32 %v1359, %v1417
          %v1470 = vmul.f32 %v1360, %v1418
          %v1471 = vmul.f32 %v1361, %v1419
          %v1472 = vmul.f32 %v1362, %v1420
          %v1473 = vmul.f32 %v1363, %v1417
          %v1474 = vmul.f32 %v1364, %v1418
          %v1475 = vmul.f32 %v1365, %v1419
          %v1476 = vmul.f32 %v1366, %v1420
          %v1477 = vmul.f32 %v1367, %v1417
          %v1478 = vmul.f32 %v1368, %v1418
          %v1479 = vmul.f32 %v1369, %v1419
          %v1480 = vmul.f32 %v1370, %v1420
          %v1481 = vmul.f32 %v1371, %v1417
          %v1482 = vmul.f32 %v1372, %v1418
          %v1483 = vmul.f32 %v1373, %v1419
          %v1484 = vmul.f32 %v1374, %v1420
          %v1485 = vmul.f32 %v1375, %v1417
          %v1486 = vmul.f32 %v1376, %v1418
          %v1487 = vmul.f32 %v1377, %v1419
          %v1488 = vmul.f32 %v1378, %v1420
          %v1489 = vmul.f32 %v1379, %v1417
          %v1490 = vmul.f32 %v1380, %v1418
          %v1491 = vmul.f32 %v1381, %v1419
          %v1492 = vmul.f32 %v1382, %v1420
          %v1493 = vmul.f32 %v1383, %v1417
          %v1494 = vmul.f32 %v1384, %v1418
          %v1495 = vmul.f32 %v1385, %v1419
          %v1496 = vmul.f32 %v1386, %v1420
          %v1497 = vmul.f32 %v1387, %v1417
          %v1498 = vmul.f32 %v1388, %v1418
          %v1499 = vmul.f32 %v1389, %v1419
          %v1500 = vmul.f32 %v1390, %v1420
          %v1501 = vmul.f32 %v1391, %v1417
          %v1502 = vmul.f32 %v1392, %v1418
          %v1503 = vmul.f32 %v1393, %v1419
          %v1504 = vmul.f32 %v1394, %v1420
          %v1505 = vmul.f32 %v1395, %v1417
          %v1506 = vmul.f32 %v1396, %v1418
          %v1507 = vmul.f32 %v1397, %v1419
          %v1508 = vmul.f32 %v1398, %v1420
          %v1509 = vmul.f32 %v1399, %v1417
          %v1510 = vmul.f32 %v1400, %v1418
          %v1511 = vmul.f32 %v1401, %v1419
          %v1512 = vmul.f32 %v1402, %v1420
          %v1513 = vmul.f32 %v1403, %v1417
          %v1514 = vmul.f32 %v1404, %v1418
          %v1515 = vmul.f32 %v1405, %v1419
          %v1516 = vmul.f32 %v1406, %v1420
          %v1517 = vmul.f32 %v1407, %v1417
          %v1518 = vmul.f32 %v1408, %v1418
          %v1519 = vmul.f32 %v1409, %v1419
          %v1520 = vmul.f32 %v1410, %v1420
          %v1521 = vmul.f32 %v1411, %v1417
          %v1522 = vmul.f32 %v1412, %v1418
          %v1523 = vmul.f32 %v1413, %v1419
          %v1524 = vmul.f32 %v1414, %v1420
          %v1525 = vld [vmem:[#allocation9] sm:$0xf]
          %v1527 = vperm.slane %v1525, 0
          %v1528 = vperm.slane %v1525, 1
          %v1529 = vperm.slane %v1525, 2
          %v1530 = vperm.slane %v1525, 3
          %v1535 = vadd.f32 %v1425, %v1527
          %v1536 = vadd.f32 %v1426, %v1528
          %v1537 = vadd.f32 %v1427, %v1529
          %v1538 = vadd.f32 %v1428, %v1530
          %v1539 = vadd.f32 %v1429, %v1527
          %v1540 = vadd.f32 %v1430, %v1528
          %v1541 = vadd.f32 %v1431, %v1529
          %v1542 = vadd.f32 %v1432, %v1530
          %v1543 = vadd.f32 %v1433, %v1527
          %v1544 = vadd.f32 %v1434, %v1528
          %v1545 = vadd.f32 %v1435, %v1529
          %v1546 = vadd.f32 %v1436, %v1530
          %v1547 = vadd.f32 %v1437, %v1527
          %v1548 = vadd.f32 %v1438, %v1528
          %v1549 = vadd.f32 %v1439, %v1529
          %v1550 = vadd.f32 %v1440, %v1530
          %v1551 = vadd.f32 %v1441, %v1527
          %v1552 = vadd.f32 %v1442, %v1528
          %v1553 = vadd.f32 %v1443, %v1529
          %v1554 = vadd.f32 %v1444, %v1530
          %v1555 = vadd.f32 %v1445, %v1527
          %v1556 = vadd.f32 %v1446, %v1528
          %v1557 = vadd.f32 %v1447, %v1529
          %v1558 = vadd.f32 %v1448, %v1530
          %v1559 = vadd.f32 %v1449, %v1527
          %v1560 = vadd.f32 %v1450, %v1528
          %v1561 = vadd.f32 %v1451, %v1529
          %v1562 = vadd.f32 %v1452, %v1530
          %v1563 = vadd.f32 %v1453, %v1527
          %v1564 = vadd.f32 %v1454, %v1528
          %v1565 = vadd.f32 %v1455, %v1529
          %v1566 = vadd.f32 %v1456, %v1530
          %v1567 = vadd.f32 %v1457, %v1527
          %v1568 = vadd.f32 %v1458, %v1528
          %v1569 = vadd.f32 %v1459, %v1529
          %v1570 = vadd.f32 %v1460, %v1530
          %v1571 = vadd.f32 %v1461, %v1527
          %v1572 = vadd.f32 %v1462, %v1528
          %v1573 = vadd.f32 %v1463, %v1529
          %v1574 = vadd.f32 %v1464, %v1530
          %v1575 = vadd.f32 %v1465, %v1527
          %v1576 = vadd.f32 %v1466, %v1528
          %v1577 = vadd.f32 %v1467, %v1529
          %v1578 = vadd.f32 %v1468, %v1530
          %v1579 = vadd.f32 %v1469, %v1527
          %v1580 = vadd.f32 %v1470, %v1528
          %v1581 = vadd.f32 %v1471, %v1529
          %v1582 = vadd.f32 %v1472, %v1530
          %v1583 = vadd.f32 %v1473, %v1527
          %v1584 = vadd.f32 %v1474, %v1528
          %v1585 = vadd.f32 %v1475, %v1529
          %v1586 = vadd.f32 %v1476, %v1530
          %v1587 = vadd.f32 %v1477, %v1527
          %v1588 = vadd.f32 %v1478, %v1528
          %v1589 = vadd.f32 %v1479, %v1529
          %v1590 = vadd.f32 %v1480, %v1530
          %v1591 = vadd.f32 %v1481, %v1527
          %v1592 = vadd.f32 %v1482, %v1528
          %v1593 = vadd.f32 %v1483, %v1529
          %v1594 = vadd.f32 %v1484, %v1530
          %v1595 = vadd.f32 %v1485, %v1527
          %v1596 = vadd.f32 %v1486, %v1528
          %v1597 = vadd.f32 %v1487, %v1529
          %v1598 = vadd.f32 %v1488, %v1530
          %v1599 = vadd.f32 %v1489, %v1527
          %v1600 = vadd.f32 %v1490, %v1528
          %v1601 = vadd.f32 %v1491, %v1529
          %v1602 = vadd.f32 %v1492, %v1530
          %v1603 = vadd.f32 %v1493, %v1527
          %v1604 = vadd.f32 %v1494, %v1528
          %v1605 = vadd.f32 %v1495, %v1529
          %v1606 = vadd.f32 %v1496, %v1530
          %v1607 = vadd.f32 %v1497, %v1527
          %v1608 = vadd.f32 %v1498, %v1528
          %v1609 = vadd.f32 %v1499, %v1529
          %v1610 = vadd.f32 %v1500, %v1530
          %v1611 = vadd.f32 %v1501, %v1527
          %v1612 = vadd.f32 %v1502, %v1528
          %v1613 = vadd.f32 %v1503, %v1529
          %v1614 = vadd.f32 %v1504, %v1530
          %v1615 = vadd.f32 %v1505, %v1527
          %v1616 = vadd.f32 %v1506, %v1528
          %v1617 = vadd.f32 %v1507, %v1529
          %v1618 = vadd.f32 %v1508, %v1530
          %v1619 = vadd.f32 %v1509, %v1527
          %v1620 = vadd.f32 %v1510, %v1528
          %v1621 = vadd.f32 %v1511, %v1529
          %v1622 = vadd.f32 %v1512, %v1530
          %v1623 = vadd.f32 %v1513, %v1527
          %v1624 = vadd.f32 %v1514, %v1528
          %v1625 = vadd.f32 %v1515, %v1529
          %v1626 = vadd.f32 %v1516, %v1530
          %v1627 = vadd.f32 %v1517, %v1527
          %v1628 = vadd.f32 %v1518, %v1528
          %v1629 = vadd.f32 %v1519, %v1529
          %v1630 = vadd.f32 %v1520, %v1530
          %v1631 = vadd.f32 %v1521, %v1527
          %v1632 = vadd.f32 %v1522, %v1528
          %v1633 = vadd.f32 %v1523, %v1529
          %v1634 = vadd.f32 %v1524, %v1530
          %v1635 = vpack.c.bf16 %v1536, %v1535
          %v1636 = vpack.c.bf16 %v1538, %v1537
          %v1637 = vpack.c.bf16 %v1540, %v1539
          %v1638 = vpack.c.bf16 %v1542, %v1541
          %v1639 = vpack.c.bf16 %v1544, %v1543
          %v1640 = vpack.c.bf16 %v1546, %v1545
          %v1641 = vpack.c.bf16 %v1548, %v1547
          %v1642 = vpack.c.bf16 %v1550, %v1549
          %v1643 = vpack.c.bf16 %v1552, %v1551
          %v1644 = vpack.c.bf16 %v1554, %v1553
          %v1645 = vpack.c.bf16 %v1556, %v1555
          %v1646 = vpack.c.bf16 %v1558, %v1557
          %v1647 = vpack.c.bf16 %v1560, %v1559
          %v1648 = vpack.c.bf16 %v1562, %v1561
          %v1649 = vpack.c.bf16 %v1564, %v1563
          %v1650 = vpack.c.bf16 %v1566, %v1565
          %v1651 = vpack.c.bf16 %v1568, %v1567
          %v1652 = vpack.c.bf16 %v1570, %v1569
          %v1653 = vpack.c.bf16 %v1572, %v1571
          %v1654 = vpack.c.bf16 %v1574, %v1573
          %v1655 = vpack.c.bf16 %v1576, %v1575
          %v1656 = vpack.c.bf16 %v1578, %v1577
          %v1657 = vpack.c.bf16 %v1580, %v1579
          %v1658 = vpack.c.bf16 %v1582, %v1581
          %v1659 = vpack.c.bf16 %v1584, %v1583
          %v1660 = vpack.c.bf16 %v1586, %v1585
          %v1661 = vpack.c.bf16 %v1588, %v1587
          %v1662 = vpack.c.bf16 %v1590, %v1589
          %v1663 = vpack.c.bf16 %v1592, %v1591
          %v1664 = vpack.c.bf16 %v1594, %v1593
          %v1665 = vpack.c.bf16 %v1596, %v1595
          %v1666 = vpack.c.bf16 %v1598, %v1597
          %v1667 = vpack.c.bf16 %v1600, %v1599
          %v1668 = vpack.c.bf16 %v1602, %v1601
          %v1669 = vpack.c.bf16 %v1604, %v1603
          %v1670 = vpack.c.bf16 %v1606, %v1605
          %v1671 = vpack.c.bf16 %v1608, %v1607
          %v1672 = vpack.c.bf16 %v1610, %v1609
          %v1673 = vpack.c.bf16 %v1612, %v1611
          %v1674 = vpack.c.bf16 %v1614, %v1613
          %v1675 = vpack.c.bf16 %v1616, %v1615
          %v1676 = vpack.c.bf16 %v1618, %v1617
          %v1677 = vpack.c.bf16 %v1620, %v1619
          %v1678 = vpack.c.bf16 %v1622, %v1621
          %v1679 = vpack.c.bf16 %v1624, %v1623
          %v1680 = vpack.c.bf16 %v1626, %v1625
          %v1681 = vpack.c.bf16 %v1628, %v1627
          %v1682 = vpack.c.bf16 %v1630, %v1629
          %v1683 = vpack.c.bf16 %v1632, %v1631
          %v1684 = vpack.c.bf16 %v1634, %v1633
          %1685 = vst [vmem:[#allocation2] sm:$0xff] %v1635
          %1686 = vst [vmem:[#allocation2 + $0x8] sm:$0xff] %v1636
          %1687 = vst [vmem:[#allocation2 + $0x10] sm:$0xff] %v1637
          %1688 = vst [vmem:[#allocation2 + $0x18] sm:$0xff] %v1638
          %1689 = vst [vmem:[#allocation2 + $0x20] sm:$0xff] %v1639
          %1690 = vst [vmem:[#allocation2 + $0x28] sm:$0xff] %v1640
          %1691 = vst [vmem:[#allocation2 + $0x30] sm:$0xff] %v1641
          %1692 = vst [vmem:[#allocation2 + $0x38] sm:$0xff] %v1642
          %1693 = vst [vmem:[#allocation2 + $0x40] sm:$0xff] %v1643
          %1694 = vst [vmem:[#allocation2 + $0x48] sm:$0xff] %v1644
          %1695 = vst [vmem:[#allocation2 + $0x50] sm:$0xff] %v1645
          %1696 = vst [vmem:[#allocation2 + $0x58] sm:$0xff] %v1646
          %1697 = vst [vmem:[#allocation2 + $0x60] sm:$0xff] %v1647
          %1698 = vst [vmem:[#allocation2 + $0x68] sm:$0xff] %v1648
          %1699 = vst [vmem:[#allocation2 + $0x70] sm:$0xff] %v1649
          %1700 = vst [vmem:[#allocation2 + $0x78] sm:$0xff] %v1650
          %1701 = vst [vmem:[#allocation2 + $0x80] sm:$0xff] %v1651
          %1702 = vst [vmem:[#allocation2 + $0x88] sm:$0xff] %v1652
          %1703 = vst [vmem:[#allocation2 + $0x90] sm:$0xff] %v1653
          %1704 = vst [vmem:[#allocation2 + $0x98] sm:$0xff] %v1654
          %1705 = vst [vmem:[#allocation2 + $0xa0] sm:$0xff] %v1655
          %1706 = vst [vmem:[#allocation2 + $0xa8] sm:$0xff] %v1656
          %1707 = vst [vmem:[#allocation2 + $0xb0] sm:$0xff] %v1657
          %1708 = vst [vmem:[#allocation2 + $0xb8] sm:$0xff] %v1658
          %1709 = vst [vmem:[#allocation2 + $0xc0] sm:$0xff] %v1659
          %1710 = vst [vmem:[#allocation2 + $0xc8] sm:$0xff] %v1660
          %1711 = vst [vmem:[#allocation2 + $0xd0] sm:$0xff] %v1661
          %1712 = vst [vmem:[#allocation2 + $0xd8] sm:$0xff] %v1662
          %1713 = vst [vmem:[#allocation2 + $0xe0] sm:$0xff] %v1663
          %1714 = vst [vmem:[#allocation2 + $0xe8] sm:$0xff] %v1664
          %1715 = vst [vmem:[#allocation2 + $0xf0] sm:$0xff] %v1665
          %1716 = vst [vmem:[#allocation2 + $0xf8] sm:$0xff] %v1666
          %1717 = vst [vmem:[#allocation2 + $0x100] sm:$0xff] %v1667
          %1718 = vst [vmem:[#allocation2 + $0x108] sm:$0xff] %v1668
          %1719 = vst [vmem:[#allocation2 + $0x110] sm:$0xff] %v1669
          %1720 = vst [vmem:[#allocation2 + $0x118] sm:$0xff] %v1670
          %1721 = vst [vmem:[#allocation2 + $0x120] sm:$0xff] %v1671
          %1722 = vst [vmem:[#allocation2 + $0x128] sm:$0xff] %v1672
          %1723 = vst [vmem:[#allocation2 + $0x130] sm:$0xff] %v1673
          %1724 = vst [vmem:[#allocation2 + $0x138] sm:$0xff] %v1674
          %1725 = vst [vmem:[#allocation2 + $0x140] sm:$0xff] %v1675
          %1726 = vst [vmem:[#allocation2 + $0x148] sm:$0xff] %v1676
          %1727 = vst [vmem:[#allocation2 + $0x150] sm:$0xff] %v1677
          %1728 = vst [vmem:[#allocation2 + $0x158] sm:$0xff] %v1678
          %1729 = vst [vmem:[#allocation2 + $0x160] sm:$0xff] %v1679
          %1730 = vst [vmem:[#allocation2 + $0x168] sm:$0xff] %v1680
          %1731 = vst [vmem:[#allocation2 + $0x170] sm:$0xff] %v1681
          %1732 = vst [vmem:[#allocation2 + $0x178] sm:$0xff] %v1682
          %1733 = vst [vmem:[#allocation2 + $0x180] sm:$0xff] %v1683
          %1734 = vst [vmem:[#allocation2 + $0x188] sm:$0xff] %v1684
          %1735 = vst [vmem:[#allocation3] sm:$0xff] 0.0
          %1736 = vst [vmem:[#allocation3 + $0x8] sm:$0xff] 0.0
          %1737 = vst [vmem:[#allocation3 + $0x10] sm:$0xff] 0.0
          %1738 = vst [vmem:[#allocation3 + $0x18] sm:$0xff] 0.0
          %1739 = vst [vmem:[#allocation3 + $0x20] sm:$0xff] 0.0
          %1740 = vst [vmem:[#allocation3 + $0x28] sm:$0xff] 0.0
          %1741 = vst [vmem:[#allocation3 + $0x30] sm:$0xff] 0.0
          %1742 = vst [vmem:[#allocation3 + $0x38] sm:$0xff] 0.0
          %1743 = vst [vmem:[#allocation3 + $0x40] sm:$0xff] 0.0
          %1744 = vst [vmem:[#allocation3 + $0x48] sm:$0xff] 0.0
          %1745 = vst [vmem:[#allocation3 + $0x50] sm:$0xff] 0.0
          %1746 = vst [vmem:[#allocation3 + $0x58] sm:$0xff] 0.0
          %1747 = vst [vmem:[#allocation3 + $0x60] sm:$0xff] 0.0
          %1748 = vst [vmem:[#allocation3 + $0x68] sm:$0xff] 0.0
          %1749 = vst [vmem:[#allocation3 + $0x70] sm:$0xff] 0.0
          %1750 = vst [vmem:[#allocation3 + $0x78] sm:$0xff] 0.0
          %1751 = vst [vmem:[#allocation3 + $0x80] sm:$0xff] 0.0
          %1752 = vst [vmem:[#allocation3 + $0x88] sm:$0xff] 0.0
          %1753 = vst [vmem:[#allocation3 + $0x90] sm:$0xff] 0.0
          %1754 = vst [vmem:[#allocation3 + $0x98] sm:$0xff] 0.0
          %1755 = vst [vmem:[#allocation3 + $0xa0] sm:$0xff] 0.0
          %1756 = vst [vmem:[#allocation3 + $0xa8] sm:$0xff] 0.0
          %1757 = vst [vmem:[#allocation3 + $0xb0] sm:$0xff] 0.0
          %1758 = vst [vmem:[#allocation3 + $0xb8] sm:$0xff] 0.0
          %1759 = vst [vmem:[#allocation3 + $0xc0] sm:$0xff] 0.0
          %1760 = vst [vmem:[#allocation3 + $0xc8] sm:$0xff] 0.0
          %1761 = vst [vmem:[#allocation3 + $0xd0] sm:$0xff] 0.0
          %1762 = vst [vmem:[#allocation3 + $0xd8] sm:$0xff] 0.0
          %1763 = vst [vmem:[#allocation3 + $0xe0] sm:$0xff] 0.0
          %1764 = vst [vmem:[#allocation3 + $0xe8] sm:$0xff] 0.0
          %1765 = vst [vmem:[#allocation3 + $0xf0] sm:$0xff] 0.0
          %1766 = vst [vmem:[#allocation3 + $0xf8] sm:$0xff] 0.0
          %1767 = vst [vmem:[#allocation3 + $0x100] sm:$0xff] 0.0
          %1768 = vst [vmem:[#allocation3 + $0x108] sm:$0xff] 0.0
          %1769 = vst [vmem:[#allocation3 + $0x110] sm:$0xff] 0.0
          %1770 = vst [vmem:[#allocation3 + $0x118] sm:$0xff] 0.0
          %1771 = vst [vmem:[#allocation3 + $0x120] sm:$0xff] 0.0
          %1772 = vst [vmem:[#allocation3 + $0x128] sm:$0xff] 0.0
          %1773 = vst [vmem:[#allocation3 + $0x130] sm:$0xff] 0.0
          %1774 = vst [vmem:[#allocation3 + $0x138] sm:$0xff] 0.0
          %1775 = vst [vmem:[#allocation3 + $0x140] sm:$0xff] 0.0
          %1776 = vst [vmem:[#allocation3 + $0x148] sm:$0xff] 0.0
          %1777 = vst [vmem:[#allocation3 + $0x150] sm:$0xff] 0.0
          %1778 = vst [vmem:[#allocation3 + $0x158] sm:$0xff] 0.0
          %1779 = vst [vmem:[#allocation3 + $0x160] sm:$0xff] 0.0
          %1780 = vst [vmem:[#allocation3 + $0x168] sm:$0xff] 0.0
          %1781 = vst [vmem:[#allocation3 + $0x170] sm:$0xff] 0.0
          %1782 = vst [vmem:[#allocation3 + $0x178] sm:$0xff] 0.0
          %1783 = vst [vmem:[#allocation3 + $0x180] sm:$0xff] 0.0
          %1784 = vst [vmem:[#allocation3 + $0x188] sm:$0xff] 0.0
          %1785 = vst [vmem:[#allocation3 + $0x190] sm:$0xff] 0.0
          %1786 = vst [vmem:[#allocation3 + $0x198] sm:$0xff] 0.0
          %1787 = vst [vmem:[#allocation3 + $0x1a0] sm:$0xff] 0.0
          %1788 = vst [vmem:[#allocation3 + $0x1a8] sm:$0xff] 0.0
          %1789 = vst [vmem:[#allocation3 + $0x1b0] sm:$0xff] 0.0
          %1790 = vst [vmem:[#allocation3 + $0x1b8] sm:$0xff] 0.0
          %1791 = vst [vmem:[#allocation3 + $0x1c0] sm:$0xff] 0.0
          %1792 = vst [vmem:[#allocation3 + $0x1c8] sm:$0xff] 0.0
          %1793 = vst [vmem:[#allocation3 + $0x1d0] sm:$0xff] 0.0
          %1794 = vst [vmem:[#allocation3 + $0x1d8] sm:$0xff] 0.0
          %1795 = vst [vmem:[#allocation3 + $0x1e0] sm:$0xff] 0.0
          %1796 = vst [vmem:[#allocation3 + $0x1e8] sm:$0xff] 0.0
          %1797 = vst [vmem:[#allocation3 + $0x1f0] sm:$0xff] 0.0
          %1798 = vst [vmem:[#allocation3 + $0x1f8] sm:$0xff] 0.0
          %1799 = vst [vmem:[#allocation3 + $0x200] sm:$0xff] 0.0
          %1800 = vst [vmem:[#allocation3 + $0x208] sm:$0xff] 0.0
          %1801 = vst [vmem:[#allocation3 + $0x210] sm:$0xff] 0.0
          %1802 = vst [vmem:[#allocation3 + $0x218] sm:$0xff] 0.0
          %1803 = vst [vmem:[#allocation3 + $0x220] sm:$0xff] 0.0
          %1804 = vst [vmem:[#allocation3 + $0x228] sm:$0xff] 0.0
          %1805 = vst [vmem:[#allocation3 + $0x230] sm:$0xff] 0.0
          %1806 = vst [vmem:[#allocation3 + $0x238] sm:$0xff] 0.0
          %1807 = vst [vmem:[#allocation3 + $0x240] sm:$0xff] 0.0
          %1808 = vst [vmem:[#allocation3 + $0x248] sm:$0xff] 0.0
          %1809 = vst [vmem:[#allocation3 + $0x250] sm:$0xff] 0.0
          %1810 = vst [vmem:[#allocation3 + $0x258] sm:$0xff] 0.0
          %1811 = vst [vmem:[#allocation3 + $0x260] sm:$0xff] 0.0
          %1812 = vst [vmem:[#allocation3 + $0x268] sm:$0xff] 0.0
          %1813 = vst [vmem:[#allocation3 + $0x270] sm:$0xff] 0.0
          %1814 = vst [vmem:[#allocation3 + $0x278] sm:$0xff] 0.0
          %1815 = vst [vmem:[#allocation3 + $0x280] sm:$0xff] 0.0
          %1816 = vst [vmem:[#allocation3 + $0x288] sm:$0xff] 0.0
          %1817 = vst [vmem:[#allocation3 + $0x290] sm:$0xff] 0.0
          %1818 = vst [vmem:[#allocation3 + $0x298] sm:$0xff] 0.0
          %1819 = vst [vmem:[#allocation3 + $0x2a0] sm:$0xff] 0.0
          %1820 = vst [vmem:[#allocation3 + $0x2a8] sm:$0xff] 0.0
          %1821 = vst [vmem:[#allocation3 + $0x2b0] sm:$0xff] 0.0
          %1822 = vst [vmem:[#allocation3 + $0x2b8] sm:$0xff] 0.0
          %1823 = vst [vmem:[#allocation3 + $0x2c0] sm:$0xff] 0.0
          %1824 = vst [vmem:[#allocation3 + $0x2c8] sm:$0xff] 0.0
          %1825 = vst [vmem:[#allocation3 + $0x2d0] sm:$0xff] 0.0
          %1826 = vst [vmem:[#allocation3 + $0x2d8] sm:$0xff] 0.0
          %1827 = vst [vmem:[#allocation3 + $0x2e0] sm:$0xff] 0.0
          %1828 = vst [vmem:[#allocation3 + $0x2e8] sm:$0xff] 0.0
          %1829 = vst [vmem:[#allocation3 + $0x2f0] sm:$0xff] 0.0
          %1830 = vst [vmem:[#allocation3 + $0x2f8] sm:$0xff] 0.0
          %1831 = vst [vmem:[#allocation3 + $0x300] sm:$0xff] 0.0
          %1832 = vst [vmem:[#allocation3 + $0x308] sm:$0xff] 0.0
          %1833 = vst [vmem:[#allocation3 + $0x310] sm:$0xff] 0.0
          %1834 = vst [vmem:[#allocation3 + $0x318] sm:$0xff] 0.0
        $region80: #{tpu_custom_call.1} parent=47 // pred_fallthru
          _
        %v1835 = vld [vmem:[#allocation2] sm:$0xff]
        %v1836 = vld [vmem:[#allocation2 + $0x8] sm:$0xff]
        %v1837 = vld [vmem:[#allocation2 + $0x10] sm:$0xff]
        %v1838 = vld [vmem:[#allocation2 + $0x18] sm:$0xff]
        %v1839 = vld [vmem:[#allocation2 + $0x20] sm:$0xff]
        %v1840 = vld [vmem:[#allocation2 + $0x28] sm:$0xff]
        %v1841 = vld [vmem:[#allocation2 + $0x30] sm:$0xff]
        %v1842 = vld [vmem:[#allocation2 + $0x38] sm:$0xff]
        %v1843 = vld [vmem:[#allocation2 + $0x40] sm:$0xff]
        %v1844 = vld [vmem:[#allocation2 + $0x48] sm:$0xff]
        %v1845 = vld [vmem:[#allocation2 + $0x50] sm:$0xff]
        %v1846 = vld [vmem:[#allocation2 + $0x58] sm:$0xff]
        %v1847 = vld [vmem:[#allocation2 + $0x60] sm:$0xff]
        %v1848 = vld [vmem:[#allocation2 + $0x68] sm:$0xff]
        %v1849 = vld [vmem:[#allocation2 + $0x70] sm:$0xff]
        %v1850 = vld [vmem:[#allocation2 + $0x78] sm:$0xff]
        %v1851 = vld [vmem:[#allocation2 + $0x80] sm:$0xff]
        %v1852 = vld [vmem:[#allocation2 + $0x88] sm:$0xff]
        %v1853 = vld [vmem:[#allocation2 + $0x90] sm:$0xff]
        %v1854 = vld [vmem:[#allocation2 + $0x98] sm:$0xff]
        %v1855 = vld [vmem:[#allocation2 + $0xa0] sm:$0xff]
        %v1856 = vld [vmem:[#allocation2 + $0xa8] sm:$0xff]
        %v1857 = vld [vmem:[#allocation2 + $0xb0] sm:$0xff]
        %v1858 = vld [vmem:[#allocation2 + $0xb8] sm:$0xff]
        %v1859 = vld [vmem:[#allocation2 + $0xc0] sm:$0xff]
        %v1860 = vld [vmem:[#allocation2 + $0xc8] sm:$0xff]
        %v1861 = vld [vmem:[#allocation2 + $0xd0] sm:$0xff]
        %v1862 = vld [vmem:[#allocation2 + $0xd8] sm:$0xff]
        %v1863 = vld [vmem:[#allocation2 + $0xe0] sm:$0xff]
        %v1864 = vld [vmem:[#allocation2 + $0xe8] sm:$0xff]
        %v1865 = vld [vmem:[#allocation2 + $0xf0] sm:$0xff]
        %v1866 = vld [vmem:[#allocation2 + $0xf8] sm:$0xff]
        %v1867 = vld [vmem:[#allocation2 + $0x100] sm:$0xff]
        %v1868 = vld [vmem:[#allocation2 + $0x108] sm:$0xff]
        %v1869 = vld [vmem:[#allocation2 + $0x110] sm:$0xff]
        %v1870 = vld [vmem:[#allocation2 + $0x118] sm:$0xff]
        %v1871 = vld [vmem:[#allocation2 + $0x120] sm:$0xff]
        %v1872 = vld [vmem:[#allocation2 + $0x128] sm:$0xff]
        %v1873 = vld [vmem:[#allocation2 + $0x130] sm:$0xff]
        %v1874 = vld [vmem:[#allocation2 + $0x138] sm:$0xff]
        %v1875 = vld [vmem:[#allocation2 + $0x140] sm:$0xff]
        %v1876 = vld [vmem:[#allocation2 + $0x148] sm:$0xff]
        %v1877 = vld [vmem:[#allocation2 + $0x150] sm:$0xff]
        %v1878 = vld [vmem:[#allocation2 + $0x158] sm:$0xff]
        %v1879 = vld [vmem:[#allocation2 + $0x160] sm:$0xff]
        %v1880 = vld [vmem:[#allocation2 + $0x168] sm:$0xff]
        %v1881 = vld [vmem:[#allocation2 + $0x170] sm:$0xff]
        %v1882 = vld [vmem:[#allocation2 + $0x178] sm:$0xff]
        %v1883 = vld [vmem:[#allocation2 + $0x180] sm:$0xff]
        %v1884 = vld [vmem:[#allocation2 + $0x188] sm:$0xff]
        %v1885 = vld [vmem:[%s364] sm:$0xff]
        %v1886 = vld [vmem:[%s364 + $0x8] sm:$0xff]
        %v1887 = vld [vmem:[%s364 + $0x10] sm:$0xff]
        %v1888 = vld [vmem:[%s364 + $0x18] sm:$0xff]
        %v1889 = vld [vmem:[%s364 + $0x20] sm:$0xff]
        %v1890 = vld [vmem:[%s364 + $0x28] sm:$0xff]
        %v1891 = vld [vmem:[%s364 + $0x30] sm:$0xff]
        %v1892 = vld [vmem:[%s364 + $0x38] sm:$0xff]
        %v1893 = vld [vmem:[%s364 + $0x40] sm:$0xff]
        %v1894 = vld [vmem:[%s364 + $0x48] sm:$0xff]
        %v1895 = vld [vmem:[%s364 + $0x50] sm:$0xff]
        %v1896 = vld [vmem:[%s364 + $0x58] sm:$0xff]
        %v1897 = vld [vmem:[%s364 + $0x60] sm:$0xff]
        %v1898 = vld [vmem:[%s364 + $0x68] sm:$0xff]
        %v1899 = vld [vmem:[%s364 + $0x70] sm:$0xff]
        %v1900 = vld [vmem:[%s364 + $0x78] sm:$0xff]
        %v1901 = vld [vmem:[%s364 + $0x80] sm:$0xff]
        %v1902 = vld [vmem:[%s364 + $0x88] sm:$0xff]
        %v1903 = vld [vmem:[%s364 + $0x90] sm:$0xff]
        %v1904 = vld [vmem:[%s364 + $0x98] sm:$0xff]
        %v1905 = vld [vmem:[%s364 + $0xa0] sm:$0xff]
        %v1906 = vld [vmem:[%s364 + $0xa8] sm:$0xff]
        %v1907 = vld [vmem:[%s364 + $0xb0] sm:$0xff]
        %v1908 = vld [vmem:[%s364 + $0xb8] sm:$0xff]
        %v1909 = vld [vmem:[%s364 + $0xc0] sm:$0xff]
        %v1910 = vld [vmem:[%s364 + $0xc8] sm:$0xff]
        %v1911 = vld [vmem:[%s364 + $0xd0] sm:$0xff]
        %v1912 = vld [vmem:[%s364 + $0xd8] sm:$0xff]
        %v1913 = vld [vmem:[%s364 + $0xe0] sm:$0xff]
        %v1914 = vld [vmem:[%s364 + $0xe8] sm:$0xff]
        %v1915 = vld [vmem:[%s364 + $0xf0] sm:$0xff]
        %v1916 = vld [vmem:[%s364 + $0xf8] sm:$0xff]
        %v1917 = vld [vmem:[%s364 + $0x100] sm:$0xff]
        %v1918 = vld [vmem:[%s364 + $0x108] sm:$0xff]
        %v1919 = vld [vmem:[%s364 + $0x110] sm:$0xff]
        %v1920 = vld [vmem:[%s364 + $0x118] sm:$0xff]
        %v1921 = vld [vmem:[%s364 + $0x120] sm:$0xff]
        %v1922 = vld [vmem:[%s364 + $0x128] sm:$0xff]
        %v1923 = vld [vmem:[%s364 + $0x130] sm:$0xff]
        %v1924 = vld [vmem:[%s364 + $0x138] sm:$0xff]
        %v1925 = vld [vmem:[%s364 + $0x140] sm:$0xff]
        %v1926 = vld [vmem:[%s364 + $0x148] sm:$0xff]
        %v1927 = vld [vmem:[%s364 + $0x150] sm:$0xff]
        %v1928 = vld [vmem:[%s364 + $0x158] sm:$0xff]
        %v1929 = vld [vmem:[%s364 + $0x160] sm:$0xff]
        %v1930 = vld [vmem:[%s364 + $0x168] sm:$0xff]
        %v1931 = vld [vmem:[%s364 + $0x170] sm:$0xff]
        %v1932 = vld [vmem:[%s364 + $0x178] sm:$0xff]
        %v1933 = vld [vmem:[%s364 + $0x180] sm:$0xff]
        %v1934 = vld [vmem:[%s364 + $0x188] sm:$0xff]
        %v1935 = vld [vmem:[%s364 + $0x190] sm:$0xff]
        %v1936 = vld [vmem:[%s364 + $0x198] sm:$0xff]
        %v1937 = vld [vmem:[%s364 + $0x1a0] sm:$0xff]
        %v1938 = vld [vmem:[%s364 + $0x1a8] sm:$0xff]
        %v1939 = vld [vmem:[%s364 + $0x1b0] sm:$0xff]
        %v1940 = vld [vmem:[%s364 + $0x1b8] sm:$0xff]
        %v1941 = vld [vmem:[%s364 + $0x1c0] sm:$0xff]
        %v1942 = vld [vmem:[%s364 + $0x1c8] sm:$0xff]
        %v1943 = vld [vmem:[%s364 + $0x1d0] sm:$0xff]
        %v1944 = vld [vmem:[%s364 + $0x1d8] sm:$0xff]
        %v1945 = vld [vmem:[%s364 + $0x1e0] sm:$0xff]
        %v1946 = vld [vmem:[%s364 + $0x1e8] sm:$0xff]
        %v1947 = vld [vmem:[%s364 + $0x1f0] sm:$0xff]
        %v1948 = vld [vmem:[%s364 + $0x1f8] sm:$0xff]
        %v1949 = vld [vmem:[%s364 + $0x200] sm:$0xff]
        %v1950 = vld [vmem:[%s364 + $0x208] sm:$0xff]
        %v1951 = vld [vmem:[%s364 + $0x210] sm:$0xff]
        %v1952 = vld [vmem:[%s364 + $0x218] sm:$0xff]
        %v1953 = vld [vmem:[%s364 + $0x220] sm:$0xff]
        %v1954 = vld [vmem:[%s364 + $0x228] sm:$0xff]
        %v1955 = vld [vmem:[%s364 + $0x230] sm:$0xff]
        %v1956 = vld [vmem:[%s364 + $0x238] sm:$0xff]
        %v1957 = vld [vmem:[%s364 + $0x240] sm:$0xff]
        %v1958 = vld [vmem:[%s364 + $0x248] sm:$0xff]
        %v1959 = vld [vmem:[%s364 + $0x250] sm:$0xff]
        %v1960 = vld [vmem:[%s364 + $0x258] sm:$0xff]
        %v1961 = vld [vmem:[%s364 + $0x260] sm:$0xff]
        %v1962 = vld [vmem:[%s364 + $0x268] sm:$0xff]
        %v1963 = vld [vmem:[%s364 + $0x270] sm:$0xff]
        %v1964 = vld [vmem:[%s364 + $0x278] sm:$0xff]
        %v1965 = vld [vmem:[%s364 + $0x280] sm:$0xff]
        %v1966 = vld [vmem:[%s364 + $0x288] sm:$0xff]
        %v1967 = vld [vmem:[%s364 + $0x290] sm:$0xff]
        %v1968 = vld [vmem:[%s364 + $0x298] sm:$0xff]
        %v1969 = vld [vmem:[%s364 + $0x2a0] sm:$0xff]
        %v1970 = vld [vmem:[%s364 + $0x2a8] sm:$0xff]
        %v1971 = vld [vmem:[%s364 + $0x2b0] sm:$0xff]
        %v1972 = vld [vmem:[%s364 + $0x2b8] sm:$0xff]
        %v1973 = vld [vmem:[%s364 + $0x2c0] sm:$0xff]
        %v1974 = vld [vmem:[%s364 + $0x2c8] sm:$0xff]
        %v1975 = vld [vmem:[%s364 + $0x2d0] sm:$0xff]
        %v1976 = vld [vmem:[%s364 + $0x2d8] sm:$0xff]
        %v1977 = vld [vmem:[%s364 + $0x2e0] sm:$0xff]
        %v1978 = vld [vmem:[%s364 + $0x2e8] sm:$0xff]
        %v1979 = vld [vmem:[%s364 + $0x2f0] sm:$0xff]
        %v1980 = vld [vmem:[%s364 + $0x2f8] sm:$0xff]
        %v1981 = vld [vmem:[%s364 + $0x300] sm:$0xff]
        %v1982 = vld [vmem:[%s364 + $0x308] sm:$0xff]
        %v1983 = vld [vmem:[%s364 + $0x310] sm:$0xff]
        %v1984 = vld [vmem:[%s364 + $0x318] sm:$0xff]
        %v1985 = vld [vmem:[%s364 + $0x320] sm:$0xff]
        %v1986 = vld [vmem:[%s364 + $0x328] sm:$0xff]
        %v1987 = vld [vmem:[%s364 + $0x330] sm:$0xff]
        %v1988 = vld [vmem:[%s364 + $0x338] sm:$0xff]
        %v1989 = vld [vmem:[%s364 + $0x340] sm:$0xff]
        %v1990 = vld [vmem:[%s364 + $0x348] sm:$0xff]
        %v1991 = vld [vmem:[%s364 + $0x350] sm:$0xff]
        %v1992 = vld [vmem:[%s364 + $0x358] sm:$0xff]
        %v1993 = vld [vmem:[%s364 + $0x360] sm:$0xff]
        %v1994 = vld [vmem:[%s364 + $0x368] sm:$0xff]
        %v1995 = vld [vmem:[%s364 + $0x370] sm:$0xff]
        %v1996 = vld [vmem:[%s364 + $0x378] sm:$0xff]
        %v1997 = vld [vmem:[%s364 + $0x380] sm:$0xff]
        %v1998 = vld [vmem:[%s364 + $0x388] sm:$0xff]
        %v1999 = vld [vmem:[%s364 + $0x390] sm:$0xff]
        %v2000 = vld [vmem:[%s364 + $0x398] sm:$0xff]
        %v2001 = vld [vmem:[%s364 + $0x3a0] sm:$0xff]
        %v2002 = vld [vmem:[%s364 + $0x3a8] sm:$0xff]
        %v2003 = vld [vmem:[%s364 + $0x3b0] sm:$0xff]
        %v2004 = vld [vmem:[%s364 + $0x3b8] sm:$0xff]
        %v2005 = vld [vmem:[%s364 + $0x3c0] sm:$0xff]
        %v2006 = vld [vmem:[%s364 + $0x3c8] sm:$0xff]
        %v2007 = vld [vmem:[%s364 + $0x3d0] sm:$0xff]
        %v2008 = vld [vmem:[%s364 + $0x3d8] sm:$0xff]
        %v2009 = vld [vmem:[%s364 + $0x3e0] sm:$0xff]
        %v2010 = vld [vmem:[%s364 + $0x3e8] sm:$0xff]
        %v2011 = vld [vmem:[%s364 + $0x3f0] sm:$0xff]
        %v2012 = vld [vmem:[%s364 + $0x3f8] sm:$0xff]
        %v2013 = vld [vmem:[%s374] sm:$0xf]
        %v2015 = vperm.slane %v2013, 0
        %v2016 = vperm.slane %v2013, 1
        %v2017 = vperm.slane %v2013, 2
        %v2018 = vperm.slane %v2013, 3
        %v2073 = vunpack.c.l.b16 %v1835
        %v2074 = vunpack.c.h.b16 %v1835
        %v2075 = vunpack.c.l.b16 %v1836
        %v2076 = vunpack.c.h.b16 %v1836
        %v2077 = vunpack.c.l.b16 %v1837
        %v2078 = vunpack.c.h.b16 %v1837
        %v2079 = vunpack.c.l.b16 %v1838
        %v2080 = vunpack.c.h.b16 %v1838
        %v2081 = vunpack.c.l.b16 %v1839
        %v2082 = vunpack.c.h.b16 %v1839
        %v2083 = vunpack.c.l.b16 %v1840
        %v2084 = vunpack.c.h.b16 %v1840
        %v2085 = vunpack.c.l.b16 %v1841
        %v2086 = vunpack.c.h.b16 %v1841
        %v2087 = vunpack.c.l.b16 %v1842
        %v2088 = vunpack.c.h.b16 %v1842
        %v2089 = vunpack.c.l.b16 %v1843
        %v2090 = vunpack.c.h.b16 %v1843
        %v2091 = vunpack.c.l.b16 %v1844
        %v2092 = vunpack.c.h.b16 %v1844
        %v2093 = vunpack.c.l.b16 %v1845
        %v2094 = vunpack.c.h.b16 %v1845
        %v2095 = vunpack.c.l.b16 %v1846
        %v2096 = vunpack.c.h.b16 %v1846
        %v2097 = vunpack.c.l.b16 %v1847
        %v2098 = vunpack.c.h.b16 %v1847
        %v2099 = vunpack.c.l.b16 %v1848
        %v2100 = vunpack.c.h.b16 %v1848
        %v2101 = vunpack.c.l.b16 %v1849
        %v2102 = vunpack.c.h.b16 %v1849
        %v2103 = vunpack.c.l.b16 %v1850
        %v2104 = vunpack.c.h.b16 %v1850
        %v2105 = vunpack.c.l.b16 %v1851
        %v2106 = vunpack.c.h.b16 %v1851
        %v2107 = vunpack.c.l.b16 %v1852
        %v2108 = vunpack.c.h.b16 %v1852
        %v2109 = vunpack.c.l.b16 %v1853
        %v2110 = vunpack.c.h.b16 %v1853
        %v2111 = vunpack.c.l.b16 %v1854
        %v2112 = vunpack.c.h.b16 %v1854
        %v2113 = vunpack.c.l.b16 %v1855
        %v2114 = vunpack.c.h.b16 %v1855
        %v2115 = vunpack.c.l.b16 %v1856
        %v2116 = vunpack.c.h.b16 %v1856
        %v2117 = vunpack.c.l.b16 %v1857
        %v2118 = vunpack.c.h.b16 %v1857
        %v2119 = vunpack.c.l.b16 %v1858
        %v2120 = vunpack.c.h.b16 %v1858
        %v2121 = vunpack.c.l.b16 %v1859
        %v2122 = vunpack.c.h.b16 %v1859
        %v2123 = vunpack.c.l.b16 %v1860
        %v2124 = vunpack.c.h.b16 %v1860
        %v2125 = vunpack.c.l.b16 %v1861
        %v2126 = vunpack.c.h.b16 %v1861
        %v2127 = vunpack.c.l.b16 %v1862
        %v2128 = vunpack.c.h.b16 %v1862
        %v2129 = vunpack.c.l.b16 %v1863
        %v2130 = vunpack.c.h.b16 %v1863
        %v2131 = vunpack.c.l.b16 %v1864
        %v2132 = vunpack.c.h.b16 %v1864
        %v2133 = vunpack.c.l.b16 %v1865
        %v2134 = vunpack.c.h.b16 %v1865
        %v2135 = vunpack.c.l.b16 %v1866
        %v2136 = vunpack.c.h.b16 %v1866
        %v2137 = vunpack.c.l.b16 %v1867
        %v2138 = vunpack.c.h.b16 %v1867
        %v2139 = vunpack.c.l.b16 %v1868
        %v2140 = vunpack.c.h.b16 %v1868
        %v2141 = vunpack.c.l.b16 %v1869
        %v2142 = vunpack.c.h.b16 %v1869
        %v2143 = vunpack.c.l.b16 %v1870
        %v2144 = vunpack.c.h.b16 %v1870
        %v2145 = vunpack.c.l.b16 %v1871
        %v2146 = vunpack.c.h.b16 %v1871
        %v2147 = vunpack.c.l.b16 %v1872
        %v2148 = vunpack.c.h.b16 %v1872
        %v2149 = vunpack.c.l.b16 %v1873
        %v2150 = vunpack.c.h.b16 %v1873
        %v2151 = vunpack.c.l.b16 %v1874
        %v2152 = vunpack.c.h.b16 %v1874
        %v2153 = vunpack.c.l.b16 %v1875
        %v2154 = vunpack.c.h.b16 %v1875
        %v2155 = vunpack.c.l.b16 %v1876
        %v2156 = vunpack.c.h.b16 %v1876
        %v2157 = vunpack.c.l.b16 %v1877
        %v2158 = vunpack.c.h.b16 %v1877
        %v2159 = vunpack.c.l.b16 %v1878
        %v2160 = vunpack.c.h.b16 %v1878
        %v2161 = vunpack.c.l.b16 %v1879
        %v2162 = vunpack.c.h.b16 %v1879
        %v2163 = vunpack.c.l.b16 %v1880
        %v2164 = vunpack.c.h.b16 %v1880
        %v2165 = vunpack.c.l.b16 %v1881
        %v2166 = vunpack.c.h.b16 %v1881
        %v2167 = vunpack.c.l.b16 %v1882
        %v2168 = vunpack.c.h.b16 %v1882
        %v2169 = vunpack.c.l.b16 %v1883
        %v2170 = vunpack.c.h.b16 %v1883
        %v2171 = vunpack.c.l.b16 %v1884
        %v2172 = vunpack.c.h.b16 %v1884
        %v2173 = vpack.c.b16 %v2077, %v2073
        %v2174 = vpack.c.b16 %v2078, %v2074
        %v2175 = vpack.c.b16 %v2079, %v2075
        %v2176 = vpack.c.b16 %v2080, %v2076
        %v2177 = vpack.c.b16 %v2085, %v2081
        %v2178 = vpack.c.b16 %v2086, %v2082
        %v2179 = vpack.c.b16 %v2087, %v2083
        %v2180 = vpack.c.b16 %v2088, %v2084
        %v2181 = vpack.c.b16 %v2093, %v2089
        %v2182 = vpack.c.b16 %v2094, %v2090
        %v2183 = vpack.c.b16 %v2095, %v2091
        %v2184 = vpack.c.b16 %v2096, %v2092
        %v2185 = vpack.c.b16 %v2101, %v2097
        %v2186 = vpack.c.b16 %v2102, %v2098
        %v2187 = vpack.c.b16 %v2103, %v2099
        %v2188 = vpack.c.b16 %v2104, %v2100
        %v2189 = vpack.c.b16 %v2109, %v2105
        %v2190 = vpack.c.b16 %v2110, %v2106
        %v2191 = vpack.c.b16 %v2111, %v2107
        %v2192 = vpack.c.b16 %v2112, %v2108
        %v2193 = vpack.c.b16 %v2117, %v2113
        %v2194 = vpack.c.b16 %v2118, %v2114
        %v2195 = vpack.c.b16 %v2119, %v2115
        %v2196 = vpack.c.b16 %v2120, %v2116
        %v2197 = vpack.c.b16 %v2125, %v2121
        %v2198 = vpack.c.b16 %v2126, %v2122
        %v2199 = vpack.c.b16 %v2127, %v2123
        %v2200 = vpack.c.b16 %v2128, %v2124
        %v2201 = vpack.c.b16 %v2133, %v2129
        %v2202 = vpack.c.b16 %v2134, %v2130
        %v2203 = vpack.c.b16 %v2135, %v2131
        %v2204 = vpack.c.b16 %v2136, %v2132
        %v2205 = vpack.c.b16 %v2141, %v2137
        %v2206 = vpack.c.b16 %v2142, %v2138
        %v2207 = vpack.c.b16 %v2143, %v2139
        %v2208 = vpack.c.b16 %v2144, %v2140
        %v2209 = vpack.c.b16 %v2149, %v2145
        %v2210 = vpack.c.b16 %v2150, %v2146
        %v2211 = vpack.c.b16 %v2151, %v2147
        %v2212 = vpack.c.b16 %v2152, %v2148
        %v2213 = vpack.c.b16 %v2157, %v2153
        %v2214 = vpack.c.b16 %v2158, %v2154
        %v2215 = vpack.c.b16 %v2159, %v2155
        %v2216 = vpack.c.b16 %v2160, %v2156
        %v2217 = vpack.c.b16 %v2165, %v2161
        %v2218 = vpack.c.b16 %v2166, %v2162
        %v2219 = vpack.c.b16 %v2167, %v2163
        %v2220 = vpack.c.b16 %v2168, %v2164
        %v2221 = vpack.c.b16 %v2169, %v2169
        %v2222 = vpack.c.b16 %v2170, %v2170
        %v2223 = vpack.c.b16 %v2171, %v2171
        %v2224 = vpack.c.b16 %v2172, %v2172
        %v2405 = vunpack.c.l.b16 %v1885
        %v2406 = vunpack.c.h.b16 %v1885
        %v2407 = vunpack.c.l.b16 %v1886
        %v2408 = vunpack.c.h.b16 %v1886
        %v2409 = vunpack.c.l.b16 %v1887
        %v2410 = vunpack.c.h.b16 %v1887
        %v2411 = vunpack.c.l.b16 %v1888
        %v2412 = vunpack.c.h.b16 %v1888
        %v2413 = vunpack.c.l.b16 %v1889
        %v2414 = vunpack.c.h.b16 %v1889
        %v2415 = vunpack.c.l.b16 %v1890
        %v2416 = vunpack.c.h.b16 %v1890
        %v2417 = vunpack.c.l.b16 %v1891
        %v2418 = vunpack.c.h.b16 %v1891
        %v2419 = vunpack.c.l.b16 %v1892
        %v2420 = vunpack.c.h.b16 %v1892
        %v2421 = vunpack.c.l.b16 %v1893
        %v2422 = vunpack.c.h.b16 %v1893
        %v2423 = vunpack.c.l.b16 %v1894
        %v2424 = vunpack.c.h.b16 %v1894
        %v2425 = vunpack.c.l.b16 %v1895
        %v2426 = vunpack.c.h.b16 %v1895
        %v2427 = vunpack.c.l.b16 %v1896
        %v2428 = vunpack.c.h.b16 %v1896
        %v2429 = vunpack.c.l.b16 %v1897
        %v2430 = vunpack.c.h.b16 %v1897
        %v2431 = vunpack.c.l.b16 %v1898
        %v2432 = vunpack.c.h.b16 %v1898
        %v2433 = vunpack.c.l.b16 %v1899
        %v2434 = vunpack.c.h.b16 %v1899
        %v2435 = vunpack.c.l.b16 %v1900
        %v2436 = vunpack.c.h.b16 %v1900
        %v2437 = vunpack.c.l.b16 %v1901
        %v2438 = vunpack.c.h.b16 %v1901
        %v2439 = vunpack.c.l.b16 %v1902
        %v2440 = vunpack.c.h.b16 %v1902
        %v2441 = vunpack.c.l.b16 %v1903
        %v2442 = vunpack.c.h.b16 %v1903
        %v2443 = vunpack.c.l.b16 %v1904
        %v2444 = vunpack.c.h.b16 %v1904
        %v2445 = vunpack.c.l.b16 %v1905
        %v2446 = vunpack.c.h.b16 %v1905
        %v2447 = vunpack.c.l.b16 %v1906
        %v2448 = vunpack.c.h.b16 %v1906
        %v2449 = vunpack.c.l.b16 %v1907
        %v2450 = vunpack.c.h.b16 %v1907
        %v2451 = vunpack.c.l.b16 %v1908
        %v2452 = vunpack.c.h.b16 %v1908
        %v2453 = vunpack.c.l.b16 %v1909
        %v2454 = vunpack.c.h.b16 %v1909
        %v2455 = vunpack.c.l.b16 %v1910
        %v2456 = vunpack.c.h.b16 %v1910
        %v2457 = vunpack.c.l.b16 %v1911
        %v2458 = vunpack.c.h.b16 %v1911
        %v2459 = vunpack.c.l.b16 %v1912
        %v2460 = vunpack.c.h.b16 %v1912
        %v2461 = vunpack.c.l.b16 %v1913
        %v2462 = vunpack.c.h.b16 %v1913
        %v2463 = vunpack.c.l.b16 %v1914
        %v2464 = vunpack.c.h.b16 %v1914
        %v2465 = vunpack.c.l.b16 %v1915
        %v2466 = vunpack.c.h.b16 %v1915
        %v2467 = vunpack.c.l.b16 %v1916
        %v2468 = vunpack.c.h.b16 %v1916
        %v2469 = vunpack.c.l.b16 %v1917
        %v2470 = vunpack.c.h.b16 %v1917
        %v2471 = vunpack.c.l.b16 %v1918
        %v2472 = vunpack.c.h.b16 %v1918
        %v2473 = vunpack.c.l.b16 %v1919
        %v2474 = vunpack.c.h.b16 %v1919
        %v2475 = vunpack.c.l.b16 %v1920
        %v2476 = vunpack.c.h.b16 %v1920
        %v2477 = vunpack.c.l.b16 %v1921
        %v2478 = vunpack.c.h.b16 %v1921
        %v2479 = vunpack.c.l.b16 %v1922
        %v2480 = vunpack.c.h.b16 %v1922
        %v2481 = vunpack.c.l.b16 %v1923
        %v2482 = vunpack.c.h.b16 %v1923
        %v2483 = vunpack.c.l.b16 %v1924
        %v2484 = vunpack.c.h.b16 %v1924
        %v2485 = vunpack.c.l.b16 %v1925
        %v2486 = vunpack.c.h.b16 %v1925
        %v2487 = vunpack.c.l.b16 %v1926
        %v2488 = vunpack.c.h.b16 %v1926
        %v2489 = vunpack.c.l.b16 %v1927
        %v2490 = vunpack.c.h.b16 %v1927
        %v2491 = vunpack.c.l.b16 %v1928
        %v2492 = vunpack.c.h.b16 %v1928
        %v2493 = vunpack.c.l.b16 %v1929
        %v2494 = vunpack.c.h.b16 %v1929
        %v2495 = vunpack.c.l.b16 %v1930
        %v2496 = vunpack.c.h.b16 %v1930
        %v2497 = vunpack.c.l.b16 %v1931
        %v2498 = vunpack.c.h.b16 %v1931
        %v2499 = vunpack.c.l.b16 %v1932
        %v2500 = vunpack.c.h.b16 %v1932
        %v2501 = vunpack.c.l.b16 %v1933
        %v2502 = vunpack.c.h.b16 %v1933
        %v2503 = vunpack.c.l.b16 %v1934
        %v2504 = vunpack.c.h.b16 %v1934
        %v2505 = vunpack.c.l.b16 %v1935
        %v2506 = vunpack.c.h.b16 %v1935
        %v2507 = vunpack.c.l.b16 %v1936
        %v2508 = vunpack.c.h.b16 %v1936
        %v2509 = vunpack.c.l.b16 %v1937
        %v2510 = vunpack.c.h.b16 %v1937
        %v2511 = vunpack.c.l.b16 %v1938
        %v2512 = vunpack.c.h.b16 %v1938
        %v2513 = vunpack.c.l.b16 %v1939
        %v2514 = vunpack.c.h.b16 %v1939
        %v2515 = vunpack.c.l.b16 %v1940
        %v2516 = vunpack.c.h.b16 %v1940
        %v2517 = vunpack.c.l.b16 %v1941
        %v2518 = vunpack.c.h.b16 %v1941
        %v2519 = vunpack.c.l.b16 %v1942
        %v2520 = vunpack.c.h.b16 %v1942
        %v2521 = vunpack.c.l.b16 %v1943
        %v2522 = vunpack.c.h.b16 %v1943
        %v2523 = vunpack.c.l.b16 %v1944
        %v2524 = vunpack.c.h.b16 %v1944
        %v2525 = vunpack.c.l.b16 %v1945
        %v2526 = vunpack.c.h.b16 %v1945
        %v2527 = vunpack.c.l.b16 %v1946
        %v2528 = vunpack.c.h.b16 %v1946
        %v2529 = vunpack.c.l.b16 %v1947
        %v2530 = vunpack.c.h.b16 %v1947
        %v2531 = vunpack.c.l.b16 %v1948
        %v2532 = vunpack.c.h.b16 %v1948
        %v2533 = vunpack.c.l.b16 %v1949
        %v2534 = vunpack.c.h.b16 %v1949
        %v2535 = vunpack.c.l.b16 %v1950
        %v2536 = vunpack.c.h.b16 %v1950
        %v2537 = vunpack.c.l.b16 %v1951
        %v2538 = vunpack.c.h.b16 %v1951
        %v2539 = vunpack.c.l.b16 %v1952
        %v2540 = vunpack.c.h.b16 %v1952
        %v2541 = vunpack.c.l.b16 %v1953
        %v2542 = vunpack.c.h.b16 %v1953
        %v2543 = vunpack.c.l.b16 %v1954
        %v2544 = vunpack.c.h.b16 %v1954
        %v2545 = vunpack.c.l.b16 %v1955
        %v2546 = vunpack.c.h.b16 %v1955
        %v2547 = vunpack.c.l.b16 %v1956
        %v2548 = vunpack.c.h.b16 %v1956
        %v2549 = vunpack.c.l.b16 %v1957
        %v2550 = vunpack.c.h.b16 %v1957
        %v2551 = vunpack.c.l.b16 %v1958
        %v2552 = vunpack.c.h.b16 %v1958
        %v2553 = vunpack.c.l.b16 %v1959
        %v2554 = vunpack.c.h.b16 %v1959
        %v2555 = vunpack.c.l.b16 %v1960
        %v2556 = vunpack.c.h.b16 %v1960
        %v2557 = vunpack.c.l.b16 %v1961
        %v2558 = vunpack.c.h.b16 %v1961
        %v2559 = vunpack.c.l.b16 %v1962
        %v2560 = vunpack.c.h.b16 %v1962
        %v2561 = vunpack.c.l.b16 %v1963
        %v2562 = vunpack.c.h.b16 %v1963
        %v2563 = vunpack.c.l.b16 %v1964
        %v2564 = vunpack.c.h.b16 %v1964
        %v2565 = vunpack.c.l.b16 %v1965
        %v2566 = vunpack.c.h.b16 %v1965
        %v2567 = vunpack.c.l.b16 %v1966
        %v2568 = vunpack.c.h.b16 %v1966
        %v2569 = vunpack.c.l.b16 %v1967
        %v2570 = vunpack.c.h.b16 %v1967
        %v2571 = vunpack.c.l.b16 %v1968
        %v2572 = vunpack.c.h.b16 %v1968
        %v2573 = vunpack.c.l.b16 %v1969
        %v2574 = vunpack.c.h.b16 %v1969
        %v2575 = vunpack.c.l.b16 %v1970
        %v2576 = vunpack.c.h.b16 %v1970
        %v2577 = vunpack.c.l.b16 %v1971
        %v2578 = vunpack.c.h.b16 %v1971
        %v2579 = vunpack.c.l.b16 %v1972
        %v2580 = vunpack.c.h.b16 %v1972
        %v2581 = vunpack.c.l.b16 %v1973
        %v2582 = vunpack.c.h.b16 %v1973
        %v2583 = vunpack.c.l.b16 %v1974
        %v2584 = vunpack.c.h.b16 %v1974
        %v2585 = vunpack.c.l.b16 %v1975
        %v2586 = vunpack.c.h.b16 %v1975
        %v2587 = vunpack.c.l.b16 %v1976
        %v2588 = vunpack.c.h.b16 %v1976
        %v2589 = vunpack.c.l.b16 %v1977
        %v2590 = vunpack.c.h.b16 %v1977
        %v2591 = vunpack.c.l.b16 %v1978
        %v2592 = vunpack.c.h.b16 %v1978
        %v2593 = vunpack.c.l.b16 %v1979
        %v2594 = vunpack.c.h.b16 %v1979
        %v2595 = vunpack.c.l.b16 %v1980
        %v2596 = vunpack.c.h.b16 %v1980
        %v2597 = vunpack.c.l.b16 %v1981
        %v2598 = vunpack.c.h.b16 %v1981
        %v2599 = vunpack.c.l.b16 %v1982
        %v2600 = vunpack.c.h.b16 %v1982
        %v2601 = vunpack.c.l.b16 %v1983
        %v2602 = vunpack.c.h.b16 %v1983
        %v2603 = vunpack.c.l.b16 %v1984
        %v2604 = vunpack.c.h.b16 %v1984
        %v2605 = vunpack.c.l.b16 %v1985
        %v2606 = vunpack.c.h.b16 %v1985
        %v2607 = vunpack.c.l.b16 %v1986
        %v2608 = vunpack.c.h.b16 %v1986
        %v2609 = vunpack.c.l.b16 %v1987
        %v2610 = vunpack.c.h.b16 %v1987
        %v2611 = vunpack.c.l.b16 %v1988
        %v2612 = vunpack.c.h.b16 %v1988
        %v2613 = vunpack.c.l.b16 %v1989
        %v2614 = vunpack.c.h.b16 %v1989
        %v2615 = vunpack.c.l.b16 %v1990
        %v2616 = vunpack.c.h.b16 %v1990
        %v2617 = vunpack.c.l.b16 %v1991
        %v2618 = vunpack.c.h.b16 %v1991
        %v2619 = vunpack.c.l.b16 %v1992
        %v2620 = vunpack.c.h.b16 %v1992
        %v2621 = vunpack.c.l.b16 %v1993
        %v2622 = vunpack.c.h.b16 %v1993
        %v2623 = vunpack.c.l.b16 %v1994
        %v2624 = vunpack.c.h.b16 %v1994
        %v2625 = vunpack.c.l.b16 %v1995
        %v2626 = vunpack.c.h.b16 %v1995
        %v2627 = vunpack.c.l.b16 %v1996
        %v2628 = vunpack.c.h.b16 %v1996
        %v2629 = vunpack.c.l.b16 %v1997
        %v2630 = vunpack.c.h.b16 %v1997
        %v2631 = vunpack.c.l.b16 %v1998
        %v2632 = vunpack.c.h.b16 %v1998
        %v2633 = vunpack.c.l.b16 %v1999
        %v2634 = vunpack.c.h.b16 %v1999
        %v2635 = vunpack.c.l.b16 %v2000
        %v2636 = vunpack.c.h.b16 %v2000
        %v2637 = vunpack.c.l.b16 %v2001
        %v2638 = vunpack.c.h.b16 %v2001
        %v2639 = vunpack.c.l.b16 %v2002
        %v2640 = vunpack.c.h.b16 %v2002
        %v2641 = vunpack.c.l.b16 %v2003
        %v2642 = vunpack.c.h.b16 %v2003
        %v2643 = vunpack.c.l.b16 %v2004
        %v2644 = vunpack.c.h.b16 %v2004
        %v2645 = vunpack.c.l.b16 %v2005
        %v2646 = vunpack.c.h.b16 %v2005
        %v2647 = vunpack.c.l.b16 %v2006
        %v2648 = vunpack.c.h.b16 %v2006
        %v2649 = vunpack.c.l.b16 %v2007
        %v2650 = vunpack.c.h.b16 %v2007
        %v2651 = vunpack.c.l.b16 %v2008
        %v2652 = vunpack.c.h.b16 %v2008
        %v2653 = vunpack.c.l.b16 %v2009
        %v2654 = vunpack.c.h.b16 %v2009
        %v2655 = vunpack.c.l.b16 %v2010
        %v2656 = vunpack.c.h.b16 %v2010
        %v2657 = vunpack.c.l.b16 %v2011
        %v2658 = vunpack.c.h.b16 %v2011
        %v2659 = vunpack.c.l.b16 %v2012
        %v2660 = vunpack.c.h.b16 %v2012
        %v2661 = vpack.c.b16 %v2409, %v2405
        %v2662 = vpack.c.b16 %v2410, %v2406
        %v2663 = vpack.c.b16 %v2411, %v2407
        %v2664 = vpack.c.b16 %v2412, %v2408
        %v2665 = vpack.c.b16 %v2417, %v2413
        %v2666 = vpack.c.b16 %v2418, %v2414
        %v2667 = vpack.c.b16 %v2419, %v2415
        %v2668 = vpack.c.b16 %v2420, %v2416
        %v2669 = vpack.c.b16 %v2425, %v2421
        %v2670 = vpack.c.b16 %v2426, %v2422
        %v2671 = vpack.c.b16 %v2427, %v2423
        %v2672 = vpack.c.b16 %v2428, %v2424
        %v2673 = vpack.c.b16 %v2433, %v2429
        %v2674 = vpack.c.b16 %v2434, %v2430
        %v2675 = vpack.c.b16 %v2435, %v2431
        %v2676 = vpack.c.b16 %v2436, %v2432
        %v2677 = vpack.c.b16 %v2441, %v2437
        %v2678 = vpack.c.b16 %v2442, %v2438
        %v2679 = vpack.c.b16 %v2443, %v2439
        %v2680 = vpack.c.b16 %v2444, %v2440
        %v2681 = vpack.c.b16 %v2449, %v2445
        %v2682 = vpack.c.b16 %v2450, %v2446
        %v2683 = vpack.c.b16 %v2451, %v2447
        %v2684 = vpack.c.b16 %v2452, %v2448
        %v2685 = vpack.c.b16 %v2457, %v2453
        %v2686 = vpack.c.b16 %v2458, %v2454
        %v2687 = vpack.c.b16 %v2459, %v2455
        %v2688 = vpack.c.b16 %v2460, %v2456
        %v2689 = vpack.c.b16 %v2465, %v2461
        %v2690 = vpack.c.b16 %v2466, %v2462
        %v2691 = vpack.c.b16 %v2467, %v2463
        %v2692 = vpack.c.b16 %v2468, %v2464
        %v2693 = vpack.c.b16 %v2473, %v2469
        %v2694 = vpack.c.b16 %v2474, %v2470
        %v2695 = vpack.c.b16 %v2475, %v2471
        %v2696 = vpack.c.b16 %v2476, %v2472
        %v2697 = vpack.c.b16 %v2481, %v2477
        %v2698 = vpack.c.b16 %v2482, %v2478
        %v2699 = vpack.c.b16 %v2483, %v2479
        %v2700 = vpack.c.b16 %v2484, %v2480
        %v2701 = vpack.c.b16 %v2489, %v2485
        %v2702 = vpack.c.b16 %v2490, %v2486
        %v2703 = vpack.c.b16 %v2491, %v2487
        %v2704 = vpack.c.b16 %v2492, %v2488
        %v2705 = vpack.c.b16 %v2497, %v2493
        %v2706 = vpack.c.b16 %v2498, %v2494
        %v2707 = vpack.c.b16 %v2499, %v2495
        %v2708 = vpack.c.b16 %v2500, %v2496
        %v2709 = vpack.c.b16 %v2505, %v2501
        %v2710 = vpack.c.b16 %v2506, %v2502
        %v2711 = vpack.c.b16 %v2507, %v2503
        %v2712 = vpack.c.b16 %v2508, %v2504
        %v2713 = vpack.c.b16 %v2513, %v2509
        %v2714 = vpack.c.b16 %v2514, %v2510
        %v2715 = vpack.c.b16 %v2515, %v2511
        %v2716 = vpack.c.b16 %v2516, %v2512
        %v2717 = vpack.c.b16 %v2521, %v2517
        %v2718 = vpack.c.b16 %v2522, %v2518
        %v2719 = vpack.c.b16 %v2523, %v2519
        %v2720 = vpack.c.b16 %v2524, %v2520
        %v2721 = vpack.c.b16 %v2529, %v2525
        %v2722 = vpack.c.b16 %v2530, %v2526
        %v2723 = vpack.c.b16 %v2531, %v2527
        %v2724 = vpack.c.b16 %v2532, %v2528
        %v2725 = vpack.c.b16 %v2537, %v2533
        %v2726 = vpack.c.b16 %v2538, %v2534
        %v2727 = vpack.c.b16 %v2539, %v2535
        %v2728 = vpack.c.b16 %v2540, %v2536
        %v2729 = vpack.c.b16 %v2545, %v2541
        %v2730 = vpack.c.b16 %v2546, %v2542
        %v2731 = vpack.c.b16 %v2547, %v2543
        %v2732 = vpack.c.b16 %v2548, %v2544
        %v2733 = vpack.c.b16 %v2553, %v2549
        %v2734 = vpack.c.b16 %v2554, %v2550
        %v2735 = vpack.c.b16 %v2555, %v2551
        %v2736 = vpack.c.b16 %v2556, %v2552
        %v2737 = vpack.c.b16 %v2561, %v2557
        %v2738 = vpack.c.b16 %v2562, %v2558
        %v2739 = vpack.c.b16 %v2563, %v2559
        %v2740 = vpack.c.b16 %v2564, %v2560
        %v2741 = vpack.c.b16 %v2569, %v2565
        %v2742 = vpack.c.b16 %v2570, %v2566
        %v2743 = vpack.c.b16 %v2571, %v2567
        %v2744 = vpack.c.b16 %v2572, %v2568
        %v2745 = vpack.c.b16 %v2577, %v2573
        %v2746 = vpack.c.b16 %v2578, %v2574
        %v2747 = vpack.c.b16 %v2579, %v2575
        %v2748 = vpack.c.b16 %v2580, %v2576
        %v2749 = vpack.c.b16 %v2585, %v2581
        %v2750 = vpack.c.b16 %v2586, %v2582
        %v2751 = vpack.c.b16 %v2587, %v2583
        %v2752 = vpack.c.b16 %v2588, %v2584
        %v2753 = vpack.c.b16 %v2593, %v2589
        %v2754 = vpack.c.b16 %v2594, %v2590
        %v2755 = vpack.c.b16 %v2595, %v2591
        %v2756 = vpack.c.b16 %v2596, %v2592
        %v2757 = vpack.c.b16 %v2601, %v2597
        %v2758 = vpack.c.b16 %v2602, %v2598
        %v2759 = vpack.c.b16 %v2603, %v2599
        %v2760 = vpack.c.b16 %v2604, %v2600
        %v2761 = vpack.c.b16 %v2609, %v2605
        %v2762 = vpack.c.b16 %v2610, %v2606
        %v2763 = vpack.c.b16 %v2611, %v2607
        %v2764 = vpack.c.b16 %v2612, %v2608
        %v2765 = vpack.c.b16 %v2617, %v2613
        %v2766 = vpack.c.b16 %v2618, %v2614
        %v2767 = vpack.c.b16 %v2619, %v2615
        %v2768 = vpack.c.b16 %v2620, %v2616
        %v2769 = vpack.c.b16 %v2625, %v2621
        %v2770 = vpack.c.b16 %v2626, %v2622
        %v2771 = vpack.c.b16 %v2627, %v2623
        %v2772 = vpack.c.b16 %v2628, %v2624
        %v2773 = vpack.c.b16 %v2633, %v2629
        %v2774 = vpack.c.b16 %v2634, %v2630
        %v2775 = vpack.c.b16 %v2635, %v2631
        %v2776 = vpack.c.b16 %v2636, %v2632
        %v2777 = vpack.c.b16 %v2641, %v2637
        %v2778 = vpack.c.b16 %v2642, %v2638
        %v2779 = vpack.c.b16 %v2643, %v2639
        %v2780 = vpack.c.b16 %v2644, %v2640
        %v2781 = vpack.c.b16 %v2649, %v2645
        %v2782 = vpack.c.b16 %v2650, %v2646
        %v2783 = vpack.c.b16 %v2651, %v2647
        %v2784 = vpack.c.b16 %v2652, %v2648
        %v2785 = vpack.c.b16 %v2657, %v2653
        %v2786 = vpack.c.b16 %v2658, %v2654
        %v2787 = vpack.c.b16 %v2659, %v2655
        %v2788 = vpack.c.b16 %v2660, %v2656
        %2917 = vmatpush.bf16.msra.mxu0 %v2689
        %2918 = vmatpush.bf16.msra.mxu0 %v2685
        %2919 = vmatpush.bf16.msra.mxu0 %v2681
        %2920 = vmatpush.bf16.msra.mxu0 %v2677
        %2921 = vmatpush.bf16.msra.mxu0 %v2673
        %2922 = vmatpush.bf16.msra.mxu0 %v2669
        %2923 = vmatpush.bf16.msra.mxu0 %v2665
        %2924 = vmatpush.bf16.msra.mxu0 %v2661
        %2925 = vmatmul.bf16.gmra.mxu0 %v2173
        %v2926 = vpop.f32.mrf.mxu0
        %v2927 = vadd.f32 %v2015, %v2926
        %v2928 = vpop.f32.mrf.mxu0
        %v2929 = vadd.f32 %v2015, %v2928
        %2930 = vmatmul.bf16.gmra.mxu0 %v2177
        %v2931 = vpop.f32.mrf.mxu0
        %v2932 = vadd.f32 %v2015, %v2931
        %v2933 = vpop.f32.mrf.mxu0
        %v2934 = vadd.f32 %v2015, %v2933
        %2935 = vmatmul.bf16.gmra.mxu0 %v2181
        %v2936 = vpop.f32.mrf.mxu0
        %v2937 = vadd.f32 %v2015, %v2936
        %v2938 = vpop.f32.mrf.mxu0
        %v2939 = vadd.f32 %v2015, %v2938
        %2940 = vmatmul.bf16.gmra.mxu0 %v2185
        %v2941 = vpop.f32.mrf.mxu0
        %v2942 = vadd.f32 %v2015, %v2941
        %v2943 = vpop.f32.mrf.mxu0
        %v2944 = vadd.f32 %v2015, %v2943
        %2945 = vmatmul.bf16.gmra.mxu0 %v2189
        %v2946 = vpop.f32.mrf.mxu0
        %v2947 = vadd.f32 %v2015, %v2946
        %v2948 = vpop.f32.mrf.mxu0
        %v2949 = vadd.f32 %v2015, %v2948
        %2950 = vmatmul.bf16.gmra.mxu0 %v2193
        %v2951 = vpop.f32.mrf.mxu0
        %v2952 = vadd.f32 %v2015, %v2951
        %v2953 = vpop.f32.mrf.mxu0
        %v2954 = vadd.f32 %v2015, %v2953
        %2955 = vmatmul.bf16.gmra.mxu0 %v2197
        %v2956 = vpop.f32.mrf.mxu0
        %v2957 = vadd.f32 %v2015, %v2956
        %v2958 = vpop.f32.mrf.mxu0
        %v2959 = vadd.f32 %v2015, %v2958
        %2960 = vmatmul.bf16.gmra.mxu0 %v2201
        %v2961 = vpop.f32.mrf.mxu0
        %v2962 = vadd.f32 %v2015, %v2961
        %v2963 = vpop.f32.mrf.mxu0
        %v2964 = vadd.f32 %v2015, %v2963
        %2965 = vmatmul.bf16.gmra.mxu0 %v2205
        %v2966 = vpop.f32.mrf.mxu0
        %v2967 = vadd.f32 %v2015, %v2966
        %v2968 = vpop.f32.mrf.mxu0
        %v2969 = vadd.f32 %v2015, %v2968
        %2970 = vmatmul.bf16.gmra.mxu0 %v2209
        %v2971 = vpop.f32.mrf.mxu0
        %v2972 = vadd.f32 %v2015, %v2971
        %v2973 = vpop.f32.mrf.mxu0
        %v2974 = vadd.f32 %v2015, %v2973
        %2975 = vmatmul.bf16.gmra.mxu0 %v2213
        %v2976 = vpop.f32.mrf.mxu0
        %v2977 = vadd.f32 %v2015, %v2976
        %v2978 = vpop.f32.mrf.mxu0
        %v2979 = vadd.f32 %v2015, %v2978
        %2980 = vmatmul.bf16.gmra.mxu0 %v2217
        %v2981 = vpop.f32.mrf.mxu0
        %v2982 = vadd.f32 %v2015, %v2981
        %v2983 = vpop.f32.mrf.mxu0
        %v2984 = vadd.f32 %v2015, %v2983
        %2985 = vmatmul.bf16.gmra.mxu0 %v2221
        %v2986 = vpop.f32.mrf.mxu0
        %v2987 = vadd.f32 %v2015, %v2986
        %v2988 = vpop.f32.mrf.mxu0
        %2989 = vdwg.mxu0
        %2990 = vmatpush.bf16.msra.mxu0 %v2721
        %2991 = vmatpush.bf16.msra.mxu0 %v2717
        %2992 = vmatpush.bf16.msra.mxu0 %v2713
        %2993 = vmatpush.bf16.msra.mxu0 %v2709
        %2994 = vmatpush.bf16.msra.mxu0 %v2705
        %2995 = vmatpush.bf16.msra.mxu0 %v2701
        %2996 = vmatpush.bf16.msra.mxu0 %v2697
        %2997 = vmatpush.bf16.msra.mxu0 %v2693
        %2998 = vmatmul.bf16.gmra.mxu0 %v2174
        %v2999 = vpop.f32.mrf.mxu0
        %v3000 = vadd.f32 %v2927, %v2999
        %v3001 = vpop.f32.mrf.mxu0
        %v3002 = vadd.f32 %v2929, %v3001
        %3003 = vmatmul.bf16.gmra.mxu0 %v2178
        %v3004 = vpop.f32.mrf.mxu0
        %v3005 = vadd.f32 %v2932, %v3004
        %v3006 = vpop.f32.mrf.mxu0
        %v3007 = vadd.f32 %v2934, %v3006
        %3008 = vmatmul.bf16.gmra.mxu0 %v2182
        %v3009 = vpop.f32.mrf.mxu0
        %v3010 = vadd.f32 %v2937, %v3009
        %v3011 = vpop.f32.mrf.mxu0
        %v3012 = vadd.f32 %v2939, %v3011
        %3013 = vmatmul.bf16.gmra.mxu0 %v2186
        %v3014 = vpop.f32.mrf.mxu0
        %v3015 = vadd.f32 %v2942, %v3014
        %v3016 = vpop.f32.mrf.mxu0
        %v3017 = vadd.f32 %v2944, %v3016
        %3018 = vmatmul.bf16.gmra.mxu0 %v2190
        %v3019 = vpop.f32.mrf.mxu0
        %v3020 = vadd.f32 %v2947, %v3019
        %v3021 = vpop.f32.mrf.mxu0
        %v3022 = vadd.f32 %v2949, %v3021
        %3023 = vmatmul.bf16.gmra.mxu0 %v2194
        %v3024 = vpop.f32.mrf.mxu0
        %v3025 = vadd.f32 %v2952, %v3024
        %v3026 = vpop.f32.mrf.mxu0
        %v3027 = vadd.f32 %v2954, %v3026
        %3028 = vmatmul.bf16.gmra.mxu0 %v2198
        %v3029 = vpop.f32.mrf.mxu0
        %v3030 = vadd.f32 %v2957, %v3029
        %v3031 = vpop.f32.mrf.mxu0
        %v3032 = vadd.f32 %v2959, %v3031
        %3033 = vmatmul.bf16.gmra.mxu0 %v2202
        %v3034 = vpop.f32.mrf.mxu0
        %v3035 = vadd.f32 %v2962, %v3034
        %v3036 = vpop.f32.mrf.mxu0
        %v3037 = vadd.f32 %v2964, %v3036
        %3038 = vmatmul.bf16.gmra.mxu0 %v2206
        %v3039 = vpop.f32.mrf.mxu0
        %v3040 = vadd.f32 %v2967, %v3039
        %v3041 = vpop.f32.mrf.mxu0
        %v3042 = vadd.f32 %v2969, %v3041
        %3043 = vmatmul.bf16.gmra.mxu0 %v2210
        %v3044 = vpop.f32.mrf.mxu0
        %v3045 = vadd.f32 %v2972, %v3044
        %v3046 = vpop.f32.mrf.mxu0
        %v3047 = vadd.f32 %v2974, %v3046
        %3048 = vmatmul.bf16.gmra.mxu0 %v2214
        %v3049 = vpop.f32.mrf.mxu0
        %v3050 = vadd.f32 %v2977, %v3049
        %v3051 = vpop.f32.mrf.mxu0
        %v3052 = vadd.f32 %v2979, %v3051
        %3053 = vmatmul.bf16.gmra.mxu0 %v2218
        %v3054 = vpop.f32.mrf.mxu0
        %v3055 = vadd.f32 %v2982, %v3054
        %v3056 = vpop.f32.mrf.mxu0
        %v3057 = vadd.f32 %v2984, %v3056
        %3058 = vmatmul.bf16.gmra.mxu0 %v2222
        %v3059 = vpop.f32.mrf.mxu0
        %v3060 = vadd.f32 %v2987, %v3059
        %v3061 = vpop.f32.mrf.mxu0
        %3062 = vdwg.mxu0
        %3063 = vmatpush.bf16.msra.mxu0 %v2753
        %3064 = vmatpush.bf16.msra.mxu0 %v2749
        %3065 = vmatpush.bf16.msra.mxu0 %v2745
        %3066 = vmatpush.bf16.msra.mxu0 %v2741
        %3067 = vmatpush.bf16.msra.mxu0 %v2737
        %3068 = vmatpush.bf16.msra.mxu0 %v2733
        %3069 = vmatpush.bf16.msra.mxu0 %v2729
        %3070 = vmatpush.bf16.msra.mxu0 %v2725
        %3071 = vmatmul.bf16.gmra.mxu0 %v2175
        %v3072 = vpop.f32.mrf.mxu0
        %v3073 = vadd.f32 %v3000, %v3072
        %v3074 = vpop.f32.mrf.mxu0
        %v3075 = vadd.f32 %v3002, %v3074
        %3076 = vmatmul.bf16.gmra.mxu0 %v2179
        %v3077 = vpop.f32.mrf.mxu0
        %v3078 = vadd.f32 %v3005, %v3077
        %v3079 = vpop.f32.mrf.mxu0
        %v3080 = vadd.f32 %v3007, %v3079
        %3081 = vmatmul.bf16.gmra.mxu0 %v2183
        %v3082 = vpop.f32.mrf.mxu0
        %v3083 = vadd.f32 %v3010, %v3082
        %v3084 = vpop.f32.mrf.mxu0
        %v3085 = vadd.f32 %v3012, %v3084
        %3086 = vmatmul.bf16.gmra.mxu0 %v2187
        %v3087 = vpop.f32.mrf.mxu0
        %v3088 = vadd.f32 %v3015, %v3087
        %v3089 = vpop.f32.mrf.mxu0
        %v3090 = vadd.f32 %v3017, %v3089
        %3091 = vmatmul.bf16.gmra.mxu0 %v2191
        %v3092 = vpop.f32.mrf.mxu0
        %v3093 = vadd.f32 %v3020, %v3092
        %v3094 = vpop.f32.mrf.mxu0
        %v3095 = vadd.f32 %v3022, %v3094
        %3096 = vmatmul.bf16.gmra.mxu0 %v2195
        %v3097 = vpop.f32.mrf.mxu0
        %v3098 = vadd.f32 %v3025, %v3097
        %v3099 = vpop.f32.mrf.mxu0
        %v3100 = vadd.f32 %v3027, %v3099
        %3101 = vmatmul.bf16.gmra.mxu0 %v2199
        %v3102 = vpop.f32.mrf.mxu0
        %v3103 = vadd.f32 %v3030, %v3102
        %v3104 = vpop.f32.mrf.mxu0
        %v3105 = vadd.f32 %v3032, %v3104
        %3106 = vmatmul.bf16.gmra.mxu0 %v2203
        %v3107 = vpop.f32.mrf.mxu0
        %v3108 = vadd.f32 %v3035, %v3107
        %v3109 = vpop.f32.mrf.mxu0
        %v3110 = vadd.f32 %v3037, %v3109
        %3111 = vmatmul.bf16.gmra.mxu0 %v2207
        %v3112 = vpop.f32.mrf.mxu0
        %v3113 = vadd.f32 %v3040, %v3112
        %v3114 = vpop.f32.mrf.mxu0
        %v3115 = vadd.f32 %v3042, %v3114
        %3116 = vmatmul.bf16.gmra.mxu0 %v2211
        %v3117 = vpop.f32.mrf.mxu0
        %v3118 = vadd.f32 %v3045, %v3117
        %v3119 = vpop.f32.mrf.mxu0
        %v3120 = vadd.f32 %v3047, %v3119
        %3121 = vmatmul.bf16.gmra.mxu0 %v2215
        %v3122 = vpop.f32.mrf.mxu0
        %v3123 = vadd.f32 %v3050, %v3122
        %v3124 = vpop.f32.mrf.mxu0
        %v3125 = vadd.f32 %v3052, %v3124
        %3126 = vmatmul.bf16.gmra.mxu0 %v2219
        %v3127 = vpop.f32.mrf.mxu0
        %v3128 = vadd.f32 %v3055, %v3127
        %v3129 = vpop.f32.mrf.mxu0
        %v3130 = vadd.f32 %v3057, %v3129
        %3131 = vmatmul.bf16.gmra.mxu0 %v2223
        %v3132 = vpop.f32.mrf.mxu0
        %v3133 = vadd.f32 %v3060, %v3132
        %v3134 = vpop.f32.mrf.mxu0
        %3135 = vdwg.mxu0
        %3136 = vmatpush.bf16.msra.mxu0 %v2785
        %3137 = vmatpush.bf16.msra.mxu0 %v2781
        %3138 = vmatpush.bf16.msra.mxu0 %v2777
        %3139 = vmatpush.bf16.msra.mxu0 %v2773
        %3140 = vmatpush.bf16.msra.mxu0 %v2769
        %3141 = vmatpush.bf16.msra.mxu0 %v2765
        %3142 = vmatpush.bf16.msra.mxu0 %v2761
        %3143 = vmatpush.bf16.msra.mxu0 %v2757
        %3144 = vmatmul.bf16.gmra.mxu0 %v2176
        %v3145 = vpop.f32.mrf.mxu0
        %v3146 = vadd.f32 %v3073, %v3145
        %v3147 = vpop.f32.mrf.mxu0
        %v3148 = vadd.f32 %v3075, %v3147
        %3149 = vmatmul.bf16.gmra.mxu0 %v2180
        %v3150 = vpop.f32.mrf.mxu0
        %v3151 = vadd.f32 %v3078, %v3150
        %v3152 = vpop.f32.mrf.mxu0
        %v3153 = vadd.f32 %v3080, %v3152
        %3154 = vmatmul.bf16.gmra.mxu0 %v2184
        %v3155 = vpop.f32.mrf.mxu0
        %v3156 = vadd.f32 %v3083, %v3155
        %v3157 = vpop.f32.mrf.mxu0
        %v3158 = vadd.f32 %v3085, %v3157
        %3159 = vmatmul.bf16.gmra.mxu0 %v2188
        %v3160 = vpop.f32.mrf.mxu0
        %v3161 = vadd.f32 %v3088, %v3160
        %v3162 = vpop.f32.mrf.mxu0
        %v3163 = vadd.f32 %v3090, %v3162
        %3164 = vmatmul.bf16.gmra.mxu0 %v2192
        %v3165 = vpop.f32.mrf.mxu0
        %v3166 = vadd.f32 %v3093, %v3165
        %v3167 = vpop.f32.mrf.mxu0
        %v3168 = vadd.f32 %v3095, %v3167
        %3169 = vmatmul.bf16.gmra.mxu0 %v2196
        %v3170 = vpop.f32.mrf.mxu0
        %v3171 = vadd.f32 %v3098, %v3170
        %v3172 = vpop.f32.mrf.mxu0
        %v3173 = vadd.f32 %v3100, %v3172
        %3174 = vmatmul.bf16.gmra.mxu0 %v2200
        %v3175 = vpop.f32.mrf.mxu0
        %v3176 = vadd.f32 %v3103, %v3175
        %v3177 = vpop.f32.mrf.mxu0
        %v3178 = vadd.f32 %v3105, %v3177
        %3179 = vmatmul.bf16.gmra.mxu0 %v2204
        %v3180 = vpop.f32.mrf.mxu0
        %v3181 = vadd.f32 %v3108, %v3180
        %v3182 = vpop.f32.mrf.mxu0
        %v3183 = vadd.f32 %v3110, %v3182
        %3184 = vmatmul.bf16.gmra.mxu0 %v2208
        %v3185 = vpop.f32.mrf.mxu0
        %v3186 = vadd.f32 %v3113, %v3185
        %v3187 = vpop.f32.mrf.mxu0
        %v3188 = vadd.f32 %v3115, %v3187
        %3189 = vmatmul.bf16.gmra.mxu0 %v2212
        %v3190 = vpop.f32.mrf.mxu0
        %v3191 = vadd.f32 %v3118, %v3190
        %v3192 = vpop.f32.mrf.mxu0
        %v3193 = vadd.f32 %v3120, %v3192
        %3194 = vmatmul.bf16.gmra.mxu0 %v2216
        %v3195 = vpop.f32.mrf.mxu0
        %v3196 = vadd.f32 %v3123, %v3195
        %v3197 = vpop.f32.mrf.mxu0
        %v3198 = vadd.f32 %v3125, %v3197
        %3199 = vmatmul.bf16.gmra.mxu0 %v2220
        %v3200 = vpop.f32.mrf.mxu0
        %v3201 = vadd.f32 %v3128, %v3200
        %v3202 = vpop.f32.mrf.mxu0
        %v3203 = vadd.f32 %v3130, %v3202
        %3204 = vmatmul.bf16.gmra.mxu0 %v2224
        %v3205 = vpop.f32.mrf.mxu0
        %v3206 = vadd.f32 %v3133, %v3205
        %v3207 = vpop.f32.mrf.mxu0
        %3208 = vdwg.mxu0
        %3209 = vmatpush.bf16.msra.mxu0 %v2690
        %3210 = vmatpush.bf16.msra.mxu0 %v2686
        %3211 = vmatpush.bf16.msra.mxu0 %v2682
        %3212 = vmatpush.bf16.msra.mxu0 %v2678
        %3213 = vmatpush.bf16.msra.mxu0 %v2674
        %3214 = vmatpush.bf16.msra.mxu0 %v2670
        %3215 = vmatpush.bf16.msra.mxu0 %v2666
        %3216 = vmatpush.bf16.msra.mxu0 %v2662
        %3217 = vmatmul.bf16.gmra.mxu0 %v2173
        %v3218 = vpop.f32.mrf.mxu0
        %v3219 = vadd.f32 %v2016, %v3218
        %v3220 = vpop.f32.mrf.mxu0
        %v3221 = vadd.f32 %v2016, %v3220
        %3222 = vmatmul.bf16.gmra.mxu0 %v2177
        %v3223 = vpop.f32.mrf.mxu0
        %v3224 = vadd.f32 %v2016, %v3223
        %v3225 = vpop.f32.mrf.mxu0
        %v3226 = vadd.f32 %v2016, %v3225
        %3227 = vmatmul.bf16.gmra.mxu0 %v2181
        %v3228 = vpop.f32.mrf.mxu0
        %v3229 = vadd.f32 %v2016, %v3228
        %v3230 = vpop.f32.mrf.mxu0
        %v3231 = vadd.f32 %v2016, %v3230
        %3232 = vmatmul.bf16.gmra.mxu0 %v2185
        %v3233 = vpop.f32.mrf.mxu0
        %v3234 = vadd.f32 %v2016, %v3233
        %v3235 = vpop.f32.mrf.mxu0
        %v3236 = vadd.f32 %v2016, %v3235
        %3237 = vmatmul.bf16.gmra.mxu0 %v2189
        %v3238 = vpop.f32.mrf.mxu0
        %v3239 = vadd.f32 %v2016, %v3238
        %v3240 = vpop.f32.mrf.mxu0
        %v3241 = vadd.f32 %v2016, %v3240
        %3242 = vmatmul.bf16.gmra.mxu0 %v2193
        %v3243 = vpop.f32.mrf.mxu0
        %v3244 = vadd.f32 %v2016, %v3243
        %v3245 = vpop.f32.mrf.mxu0
        %v3246 = vadd.f32 %v2016, %v3245
        %3247 = vmatmul.bf16.gmra.mxu0 %v2197
        %v3248 = vpop.f32.mrf.mxu0
        %v3249 = vadd.f32 %v2016, %v3248
        %v3250 = vpop.f32.mrf.mxu0
        %v3251 = vadd.f32 %v2016, %v3250
        %3252 = vmatmul.bf16.gmra.mxu0 %v2201
        %v3253 = vpop.f32.mrf.mxu0
        %v3254 = vadd.f32 %v2016, %v3253
        %v3255 = vpop.f32.mrf.mxu0
        %v3256 = vadd.f32 %v2016, %v3255
        %3257 = vmatmul.bf16.gmra.mxu0 %v2205
        %v3258 = vpop.f32.mrf.mxu0
        %v3259 = vadd.f32 %v2016, %v3258
        %v3260 = vpop.f32.mrf.mxu0
        %v3261 = vadd.f32 %v2016, %v3260
        %3262 = vmatmul.bf16.gmra.mxu0 %v2209
        %v3263 = vpop.f32.mrf.mxu0
        %v3264 = vadd.f32 %v2016, %v3263
        %v3265 = vpop.f32.mrf.mxu0
        %v3266 = vadd.f32 %v2016, %v3265
        %3267 = vmatmul.bf16.gmra.mxu0 %v2213
        %v3268 = vpop.f32.mrf.mxu0
        %v3269 = vadd.f32 %v2016, %v3268
        %v3270 = vpop.f32.mrf.mxu0
        %v3271 = vadd.f32 %v2016, %v3270
        %3272 = vmatmul.bf16.gmra.mxu0 %v2217
        %v3273 = vpop.f32.mrf.mxu0
        %v3274 = vadd.f32 %v2016, %v3273
        %v3275 = vpop.f32.mrf.mxu0
        %v3276 = vadd.f32 %v2016, %v3275
        %3277 = vmatmul.bf16.gmra.mxu0 %v2221
        %v3278 = vpop.f32.mrf.mxu0
        %v3279 = vadd.f32 %v2016, %v3278
        %v3280 = vpop.f32.mrf.mxu0
        %3281 = vdwg.mxu0
        %3282 = vmatpush.bf16.msra.mxu0 %v2722
        %3283 = vmatpush.bf16.msra.mxu0 %v2718
        %3284 = vmatpush.bf16.msra.mxu0 %v2714
        %3285 = vmatpush.bf16.msra.mxu0 %v2710
        %3286 = vmatpush.bf16.msra.mxu0 %v2706
        %3287 = vmatpush.bf16.msra.mxu0 %v2702
        %3288 = vmatpush.bf16.msra.mxu0 %v2698
        %3289 = vmatpush.bf16.msra.mxu0 %v2694
        %3290 = vmatmul.bf16.gmra.mxu0 %v2174
        %v3291 = vpop.f32.mrf.mxu0
        %v3292 = vadd.f32 %v3219, %v3291
        %v3293 = vpop.f32.mrf.mxu0
        %v3294 = vadd.f32 %v3221, %v3293
        %3295 = vmatmul.bf16.gmra.mxu0 %v2178
        %v3296 = vpop.f32.mrf.mxu0
        %v3297 = vadd.f32 %v3224, %v3296
        %v3298 = vpop.f32.mrf.mxu0
        %v3299 = vadd.f32 %v3226, %v3298
        %3300 = vmatmul.bf16.gmra.mxu0 %v2182
        %v3301 = vpop.f32.mrf.mxu0
        %v3302 = vadd.f32 %v3229, %v3301
        %v3303 = vpop.f32.mrf.mxu0
        %v3304 = vadd.f32 %v3231, %v3303
        %3305 = vmatmul.bf16.gmra.mxu0 %v2186
        %v3306 = vpop.f32.mrf.mxu0
        %v3307 = vadd.f32 %v3234, %v3306
        %v3308 = vpop.f32.mrf.mxu0
        %v3309 = vadd.f32 %v3236, %v3308
        %3310 = vmatmul.bf16.gmra.mxu0 %v2190
        %v3311 = vpop.f32.mrf.mxu0
        %v3312 = vadd.f32 %v3239, %v3311
        %v3313 = vpop.f32.mrf.mxu0
        %v3314 = vadd.f32 %v3241, %v3313
        %3315 = vmatmul.bf16.gmra.mxu0 %v2194
        %v3316 = vpop.f32.mrf.mxu0
        %v3317 = vadd.f32 %v3244, %v3316
        %v3318 = vpop.f32.mrf.mxu0
        %v3319 = vadd.f32 %v3246, %v3318
        %3320 = vmatmul.bf16.gmra.mxu0 %v2198
        %v3321 = vpop.f32.mrf.mxu0
        %v3322 = vadd.f32 %v3249, %v3321
        %v3323 = vpop.f32.mrf.mxu0
        %v3324 = vadd.f32 %v3251, %v3323
        %3325 = vmatmul.bf16.gmra.mxu0 %v2202
        %v3326 = vpop.f32.mrf.mxu0
        %v3327 = vadd.f32 %v3254, %v3326
        %v3328 = vpop.f32.mrf.mxu0
        %v3329 = vadd.f32 %v3256, %v3328
        %3330 = vmatmul.bf16.gmra.mxu0 %v2206
        %v3331 = vpop.f32.mrf.mxu0
        %v3332 = vadd.f32 %v3259, %v3331
        %v3333 = vpop.f32.mrf.mxu0
        %v3334 = vadd.f32 %v3261, %v3333
        %3335 = vmatmul.bf16.gmra.mxu0 %v2210
        %v3336 = vpop.f32.mrf.mxu0
        %v3337 = vadd.f32 %v3264, %v3336
        %v3338 = vpop.f32.mrf.mxu0
        %v3339 = vadd.f32 %v3266, %v3338
        %3340 = vmatmul.bf16.gmra.mxu0 %v2214
        %v3341 = vpop.f32.mrf.mxu0
        %v3342 = vadd.f32 %v3269, %v3341
        %v3343 = vpop.f32.mrf.mxu0
        %v3344 = vadd.f32 %v3271, %v3343
        %3345 = vmatmul.bf16.gmra.mxu0 %v2218
        %v3346 = vpop.f32.mrf.mxu0
        %v3347 = vadd.f32 %v3274, %v3346
        %v3348 = vpop.f32.mrf.mxu0
        %v3349 = vadd.f32 %v3276, %v3348
        %3350 = vmatmul.bf16.gmra.mxu0 %v2222
        %v3351 = vpop.f32.mrf.mxu0
        %v3352 = vadd.f32 %v3279, %v3351
        %v3353 = vpop.f32.mrf.mxu0
        %3354 = vdwg.mxu0
        %3355 = vmatpush.bf16.msra.mxu0 %v2754
        %3356 = vmatpush.bf16.msra.mxu0 %v2750
        %3357 = vmatpush.bf16.msra.mxu0 %v2746
        %3358 = vmatpush.bf16.msra.mxu0 %v2742
        %3359 = vmatpush.bf16.msra.mxu0 %v2738
        %3360 = vmatpush.bf16.msra.mxu0 %v2734
        %3361 = vmatpush.bf16.msra.mxu0 %v2730
        %3362 = vmatpush.bf16.msra.mxu0 %v2726
        %3363 = vmatmul.bf16.gmra.mxu0 %v2175
        %v3364 = vpop.f32.mrf.mxu0
        %v3365 = vadd.f32 %v3292, %v3364
        %v3366 = vpop.f32.mrf.mxu0
        %v3367 = vadd.f32 %v3294, %v3366
        %3368 = vmatmul.bf16.gmra.mxu0 %v2179
        %v3369 = vpop.f32.mrf.mxu0
        %v3370 = vadd.f32 %v3297, %v3369
        %v3371 = vpop.f32.mrf.mxu0
        %v3372 = vadd.f32 %v3299, %v3371
        %3373 = vmatmul.bf16.gmra.mxu0 %v2183
        %v3374 = vpop.f32.mrf.mxu0
        %v3375 = vadd.f32 %v3302, %v3374
        %v3376 = vpop.f32.mrf.mxu0
        %v3377 = vadd.f32 %v3304, %v3376
        %3378 = vmatmul.bf16.gmra.mxu0 %v2187
        %v3379 = vpop.f32.mrf.mxu0
        %v3380 = vadd.f32 %v3307, %v3379
        %v3381 = vpop.f32.mrf.mxu0
        %v3382 = vadd.f32 %v3309, %v3381
        %3383 = vmatmul.bf16.gmra.mxu0 %v2191
        %v3384 = vpop.f32.mrf.mxu0
        %v3385 = vadd.f32 %v3312, %v3384
        %v3386 = vpop.f32.mrf.mxu0
        %v3387 = vadd.f32 %v3314, %v3386
        %3388 = vmatmul.bf16.gmra.mxu0 %v2195
        %v3389 = vpop.f32.mrf.mxu0
        %v3390 = vadd.f32 %v3317, %v3389
        %v3391 = vpop.f32.mrf.mxu0
        %v3392 = vadd.f32 %v3319, %v3391
        %3393 = vmatmul.bf16.gmra.mxu0 %v2199
        %v3394 = vpop.f32.mrf.mxu0
        %v3395 = vadd.f32 %v3322, %v3394
        %v3396 = vpop.f32.mrf.mxu0
        %v3397 = vadd.f32 %v3324, %v3396
        %3398 = vmatmul.bf16.gmra.mxu0 %v2203
        %v3399 = vpop.f32.mrf.mxu0
        %v3400 = vadd.f32 %v3327, %v3399
        %v3401 = vpop.f32.mrf.mxu0
        %v3402 = vadd.f32 %v3329, %v3401
        %3403 = vmatmul.bf16.gmra.mxu0 %v2207
        %v3404 = vpop.f32.mrf.mxu0
        %v3405 = vadd.f32 %v3332, %v3404
        %v3406 = vpop.f32.mrf.mxu0
        %v3407 = vadd.f32 %v3334, %v3406
        %3408 = vmatmul.bf16.gmra.mxu0 %v2211
        %v3409 = vpop.f32.mrf.mxu0
        %v3410 = vadd.f32 %v3337, %v3409
        %v3411 = vpop.f32.mrf.mxu0
        %v3412 = vadd.f32 %v3339, %v3411
        %3413 = vmatmul.bf16.gmra.mxu0 %v2215
        %v3414 = vpop.f32.mrf.mxu0
        %v3415 = vadd.f32 %v3342, %v3414
        %v3416 = vpop.f32.mrf.mxu0
        %v3417 = vadd.f32 %v3344, %v3416
        %3418 = vmatmul.bf16.gmra.mxu0 %v2219
        %v3419 = vpop.f32.mrf.mxu0
        %v3420 = vadd.f32 %v3347, %v3419
        %v3421 = vpop.f32.mrf.mxu0
        %v3422 = vadd.f32 %v3349, %v3421
        %3423 = vmatmul.bf16.gmra.mxu0 %v2223
        %v3424 = vpop.f32.mrf.mxu0
        %v3425 = vadd.f32 %v3352, %v3424
        %v3426 = vpop.f32.mrf.mxu0
        %3427 = vdwg.mxu0
        %3428 = vmatpush.bf16.msra.mxu0 %v2786
        %3429 = vmatpush.bf16.msra.mxu0 %v2782
        %3430 = vmatpush.bf16.msra.mxu0 %v2778
        %3431 = vmatpush.bf16.msra.mxu0 %v2774
        %3432 = vmatpush.bf16.msra.mxu0 %v2770
        %3433 = vmatpush.bf16.msra.mxu0 %v2766
        %3434 = vmatpush.bf16.msra.mxu0 %v2762
        %3435 = vmatpush.bf16.msra.mxu0 %v2758
        %3436 = vmatmul.bf16.gmra.mxu0 %v2176
        %v3437 = vpop.f32.mrf.mxu0
        %v3438 = vadd.f32 %v3365, %v3437
        %v3439 = vpop.f32.mrf.mxu0
        %v3440 = vadd.f32 %v3367, %v3439
        %3441 = vmatmul.bf16.gmra.mxu0 %v2180
        %v3442 = vpop.f32.mrf.mxu0
        %v3443 = vadd.f32 %v3370, %v3442
        %v3444 = vpop.f32.mrf.mxu0
        %v3445 = vadd.f32 %v3372, %v3444
        %3446 = vmatmul.bf16.gmra.mxu0 %v2184
        %v3447 = vpop.f32.mrf.mxu0
        %v3448 = vadd.f32 %v3375, %v3447
        %v3449 = vpop.f32.mrf.mxu0
        %v3450 = vadd.f32 %v3377, %v3449
        %3451 = vmatmul.bf16.gmra.mxu0 %v2188
        %v3452 = vpop.f32.mrf.mxu0
        %v3453 = vadd.f32 %v3380, %v3452
        %v3454 = vpop.f32.mrf.mxu0
        %v3455 = vadd.f32 %v3382, %v3454
        %3456 = vmatmul.bf16.gmra.mxu0 %v2192
        %v3457 = vpop.f32.mrf.mxu0
        %v3458 = vadd.f32 %v3385, %v3457
        %v3459 = vpop.f32.mrf.mxu0
        %v3460 = vadd.f32 %v3387, %v3459
        %3461 = vmatmul.bf16.gmra.mxu0 %v2196
        %v3462 = vpop.f32.mrf.mxu0
        %v3463 = vadd.f32 %v3390, %v3462
        %v3464 = vpop.f32.mrf.mxu0
        %v3465 = vadd.f32 %v3392, %v3464
        %3466 = vmatmul.bf16.gmra.mxu0 %v2200
        %v3467 = vpop.f32.mrf.mxu0
        %v3468 = vadd.f32 %v3395, %v3467
        %v3469 = vpop.f32.mrf.mxu0
        %v3470 = vadd.f32 %v3397, %v3469
        %3471 = vmatmul.bf16.gmra.mxu0 %v2204
        %v3472 = vpop.f32.mrf.mxu0
        %v3473 = vadd.f32 %v3400, %v3472
        %v3474 = vpop.f32.mrf.mxu0
        %v3475 = vadd.f32 %v3402, %v3474
        %3476 = vmatmul.bf16.gmra.mxu0 %v2208
        %v3477 = vpop.f32.mrf.mxu0
        %v3478 = vadd.f32 %v3405, %v3477
        %v3479 = vpop.f32.mrf.mxu0
        %v3480 = vadd.f32 %v3407, %v3479
        %3481 = vmatmul.bf16.gmra.mxu0 %v2212
        %v3482 = vpop.f32.mrf.mxu0
        %v3483 = vadd.f32 %v3410, %v3482
        %v3484 = vpop.f32.mrf.mxu0
        %v3485 = vadd.f32 %v3412, %v3484
        %3486 = vmatmul.bf16.gmra.mxu0 %v2216
        %v3487 = vpop.f32.mrf.mxu0
        %v3488 = vadd.f32 %v3415, %v3487
        %v3489 = vpop.f32.mrf.mxu0
        %v3490 = vadd.f32 %v3417, %v3489
        %3491 = vmatmul.bf16.gmra.mxu0 %v2220
        %v3492 = vpop.f32.mrf.mxu0
        %v3493 = vadd.f32 %v3420, %v3492
        %v3494 = vpop.f32.mrf.mxu0
        %v3495 = vadd.f32 %v3422, %v3494
        %3496 = vmatmul.bf16.gmra.mxu0 %v2224
        %v3497 = vpop.f32.mrf.mxu0
        %v3498 = vadd.f32 %v3425, %v3497
        %v3499 = vpop.f32.mrf.mxu0
        %3500 = vdwg.mxu0
        %3501 = vmatpush.bf16.msra.mxu0 %v2691
        %3502 = vmatpush.bf16.msra.mxu0 %v2687
        %3503 = vmatpush.bf16.msra.mxu0 %v2683
        %3504 = vmatpush.bf16.msra.mxu0 %v2679
        %3505 = vmatpush.bf16.msra.mxu0 %v2675
        %3506 = vmatpush.bf16.msra.mxu0 %v2671
        %3507 = vmatpush.bf16.msra.mxu0 %v2667
        %3508 = vmatpush.bf16.msra.mxu0 %v2663
        %3509 = vmatmul.bf16.gmra.mxu0 %v2173
        %v3510 = vpop.f32.mrf.mxu0
        %v3511 = vadd.f32 %v2017, %v3510
        %v3512 = vpop.f32.mrf.mxu0
        %v3513 = vadd.f32 %v2017, %v3512
        %3514 = vmatmul.bf16.gmra.mxu0 %v2177
        %v3515 = vpop.f32.mrf.mxu0
        %v3516 = vadd.f32 %v2017, %v3515
        %v3517 = vpop.f32.mrf.mxu0
        %v3518 = vadd.f32 %v2017, %v3517
        %3519 = vmatmul.bf16.gmra.mxu0 %v2181
        %v3520 = vpop.f32.mrf.mxu0
        %v3521 = vadd.f32 %v2017, %v3520
        %v3522 = vpop.f32.mrf.mxu0
        %v3523 = vadd.f32 %v2017, %v3522
        %3524 = vmatmul.bf16.gmra.mxu0 %v2185
        %v3525 = vpop.f32.mrf.mxu0
        %v3526 = vadd.f32 %v2017, %v3525
        %v3527 = vpop.f32.mrf.mxu0
        %v3528 = vadd.f32 %v2017, %v3527
        %3529 = vmatmul.bf16.gmra.mxu0 %v2189
        %v3530 = vpop.f32.mrf.mxu0
        %v3531 = vadd.f32 %v2017, %v3530
        %v3532 = vpop.f32.mrf.mxu0
        %v3533 = vadd.f32 %v2017, %v3532
        %3534 = vmatmul.bf16.gmra.mxu0 %v2193
        %v3535 = vpop.f32.mrf.mxu0
        %v3536 = vadd.f32 %v2017, %v3535
        %v3537 = vpop.f32.mrf.mxu0
        %v3538 = vadd.f32 %v2017, %v3537
        %3539 = vmatmul.bf16.gmra.mxu0 %v2197
        %v3540 = vpop.f32.mrf.mxu0
        %v3541 = vadd.f32 %v2017, %v3540
        %v3542 = vpop.f32.mrf.mxu0
        %v3543 = vadd.f32 %v2017, %v3542
        %3544 = vmatmul.bf16.gmra.mxu0 %v2201
        %v3545 = vpop.f32.mrf.mxu0
        %v3546 = vadd.f32 %v2017, %v3545
        %v3547 = vpop.f32.mrf.mxu0
        %v3548 = vadd.f32 %v2017, %v3547
        %3549 = vmatmul.bf16.gmra.mxu0 %v2205
        %v3550 = vpop.f32.mrf.mxu0
        %v3551 = vadd.f32 %v2017, %v3550
        %v3552 = vpop.f32.mrf.mxu0
        %v3553 = vadd.f32 %v2017, %v3552
        %3554 = vmatmul.bf16.gmra.mxu0 %v2209
        %v3555 = vpop.f32.mrf.mxu0
        %v3556 = vadd.f32 %v2017, %v3555
        %v3557 = vpop.f32.mrf.mxu0
        %v3558 = vadd.f32 %v2017, %v3557
        %3559 = vmatmul.bf16.gmra.mxu0 %v2213
        %v3560 = vpop.f32.mrf.mxu0
        %v3561 = vadd.f32 %v2017, %v3560
        %v3562 = vpop.f32.mrf.mxu0
        %v3563 = vadd.f32 %v2017, %v3562
        %3564 = vmatmul.bf16.gmra.mxu0 %v2217
        %v3565 = vpop.f32.mrf.mxu0
        %v3566 = vadd.f32 %v2017, %v3565
        %v3567 = vpop.f32.mrf.mxu0
        %v3568 = vadd.f32 %v2017, %v3567
        %3569 = vmatmul.bf16.gmra.mxu0 %v2221
        %v3570 = vpop.f32.mrf.mxu0
        %v3571 = vadd.f32 %v2017, %v3570
        %v3572 = vpop.f32.mrf.mxu0
        %3573 = vdwg.mxu0
        %3574 = vmatpush.bf16.msra.mxu0 %v2723
        %3575 = vmatpush.bf16.msra.mxu0 %v2719
        %3576 = vmatpush.bf16.msra.mxu0 %v2715
        %3577 = vmatpush.bf16.msra.mxu0 %v2711
        %3578 = vmatpush.bf16.msra.mxu0 %v2707
        %3579 = vmatpush.bf16.msra.mxu0 %v2703
        %3580 = vmatpush.bf16.msra.mxu0 %v2699
        %3581 = vmatpush.bf16.msra.mxu0 %v2695
        %3582 = vmatmul.bf16.gmra.mxu0 %v2174
        %v3583 = vpop.f32.mrf.mxu0
        %v3584 = vadd.f32 %v3511, %v3583
        %v3585 = vpop.f32.mrf.mxu0
        %v3586 = vadd.f32 %v3513, %v3585
        %3587 = vmatmul.bf16.gmra.mxu0 %v2178
        %v3588 = vpop.f32.mrf.mxu0
        %v3589 = vadd.f32 %v3516, %v3588
        %v3590 = vpop.f32.mrf.mxu0
        %v3591 = vadd.f32 %v3518, %v3590
        %3592 = vmatmul.bf16.gmra.mxu0 %v2182
        %v3593 = vpop.f32.mrf.mxu0
        %v3594 = vadd.f32 %v3521, %v3593
        %v3595 = vpop.f32.mrf.mxu0
        %v3596 = vadd.f32 %v3523, %v3595
        %3597 = vmatmul.bf16.gmra.mxu0 %v2186
        %v3598 = vpop.f32.mrf.mxu0
        %v3599 = vadd.f32 %v3526, %v3598
        %v3600 = vpop.f32.mrf.mxu0
        %v3601 = vadd.f32 %v3528, %v3600
        %3602 = vmatmul.bf16.gmra.mxu0 %v2190
        %v3603 = vpop.f32.mrf.mxu0
        %v3604 = vadd.f32 %v3531, %v3603
        %v3605 = vpop.f32.mrf.mxu0
        %v3606 = vadd.f32 %v3533, %v3605
        %3607 = vmatmul.bf16.gmra.mxu0 %v2194
        %v3608 = vpop.f32.mrf.mxu0
        %v3609 = vadd.f32 %v3536, %v3608
        %v3610 = vpop.f32.mrf.mxu0
        %v3611 = vadd.f32 %v3538, %v3610
        %3612 = vmatmul.bf16.gmra.mxu0 %v2198
        %v3613 = vpop.f32.mrf.mxu0
        %v3614 = vadd.f32 %v3541, %v3613
        %v3615 = vpop.f32.mrf.mxu0
        %v3616 = vadd.f32 %v3543, %v3615
        %3617 = vmatmul.bf16.gmra.mxu0 %v2202
        %v3618 = vpop.f32.mrf.mxu0
        %v3619 = vadd.f32 %v3546, %v3618
        %v3620 = vpop.f32.mrf.mxu0
        %v3621 = vadd.f32 %v3548, %v3620
        %3622 = vmatmul.bf16.gmra.mxu0 %v2206
        %v3623 = vpop.f32.mrf.mxu0
        %v3624 = vadd.f32 %v3551, %v3623
        %v3625 = vpop.f32.mrf.mxu0
        %v3626 = vadd.f32 %v3553, %v3625
        %3627 = vmatmul.bf16.gmra.mxu0 %v2210
        %v3628 = vpop.f32.mrf.mxu0
        %v3629 = vadd.f32 %v3556, %v3628
        %v3630 = vpop.f32.mrf.mxu0
        %v3631 = vadd.f32 %v3558, %v3630
        %3632 = vmatmul.bf16.gmra.mxu0 %v2214
        %v3633 = vpop.f32.mrf.mxu0
        %v3634 = vadd.f32 %v3561, %v3633
        %v3635 = vpop.f32.mrf.mxu0
        %v3636 = vadd.f32 %v3563, %v3635
        %3637 = vmatmul.bf16.gmra.mxu0 %v2218
        %v3638 = vpop.f32.mrf.mxu0
        %v3639 = vadd.f32 %v3566, %v3638
        %v3640 = vpop.f32.mrf.mxu0
        %v3641 = vadd.f32 %v3568, %v3640
        %3642 = vmatmul.bf16.gmra.mxu0 %v2222
        %v3643 = vpop.f32.mrf.mxu0
        %v3644 = vadd.f32 %v3571, %v3643
        %v3645 = vpop.f32.mrf.mxu0
        %3646 = vdwg.mxu0
        %3647 = vmatpush.bf16.msra.mxu0 %v2755
        %3648 = vmatpush.bf16.msra.mxu0 %v2751
        %3649 = vmatpush.bf16.msra.mxu0 %v2747
        %3650 = vmatpush.bf16.msra.mxu0 %v2743
        %3651 = vmatpush.bf16.msra.mxu0 %v2739
        %3652 = vmatpush.bf16.msra.mxu0 %v2735
        %3653 = vmatpush.bf16.msra.mxu0 %v2731
        %3654 = vmatpush.bf16.msra.mxu0 %v2727
        %3655 = vmatmul.bf16.gmra.mxu0 %v2175
        %v3656 = vpop.f32.mrf.mxu0
        %v3657 = vadd.f32 %v3584, %v3656
        %v3658 = vpop.f32.mrf.mxu0
        %v3659 = vadd.f32 %v3586, %v3658
        %3660 = vmatmul.bf16.gmra.mxu0 %v2179
        %v3661 = vpop.f32.mrf.mxu0
        %v3662 = vadd.f32 %v3589, %v3661
        %v3663 = vpop.f32.mrf.mxu0
        %v3664 = vadd.f32 %v3591, %v3663
        %3665 = vmatmul.bf16.gmra.mxu0 %v2183
        %v3666 = vpop.f32.mrf.mxu0
        %v3667 = vadd.f32 %v3594, %v3666
        %v3668 = vpop.f32.mrf.mxu0
        %v3669 = vadd.f32 %v3596, %v3668
        %3670 = vmatmul.bf16.gmra.mxu0 %v2187
        %v3671 = vpop.f32.mrf.mxu0
        %v3672 = vadd.f32 %v3599, %v3671
        %v3673 = vpop.f32.mrf.mxu0
        %v3674 = vadd.f32 %v3601, %v3673
        %3675 = vmatmul.bf16.gmra.mxu0 %v2191
        %v3676 = vpop.f32.mrf.mxu0
        %v3677 = vadd.f32 %v3604, %v3676
        %v3678 = vpop.f32.mrf.mxu0
        %v3679 = vadd.f32 %v3606, %v3678
        %3680 = vmatmul.bf16.gmra.mxu0 %v2195
        %v3681 = vpop.f32.mrf.mxu0
        %v3682 = vadd.f32 %v3609, %v3681
        %v3683 = vpop.f32.mrf.mxu0
        %v3684 = vadd.f32 %v3611, %v3683
        %3685 = vmatmul.bf16.gmra.mxu0 %v2199
        %v3686 = vpop.f32.mrf.mxu0
        %v3687 = vadd.f32 %v3614, %v3686
        %v3688 = vpop.f32.mrf.mxu0
        %v3689 = vadd.f32 %v3616, %v3688
        %3690 = vmatmul.bf16.gmra.mxu0 %v2203
        %v3691 = vpop.f32.mrf.mxu0
        %v3692 = vadd.f32 %v3619, %v3691
        %v3693 = vpop.f32.mrf.mxu0
        %v3694 = vadd.f32 %v3621, %v3693
        %3695 = vmatmul.bf16.gmra.mxu0 %v2207
        %v3696 = vpop.f32.mrf.mxu0
        %v3697 = vadd.f32 %v3624, %v3696
        %v3698 = vpop.f32.mrf.mxu0
        %v3699 = vadd.f32 %v3626, %v3698
        %3700 = vmatmul.bf16.gmra.mxu0 %v2211
        %v3701 = vpop.f32.mrf.mxu0
        %v3702 = vadd.f32 %v3629, %v3701
        %v3703 = vpop.f32.mrf.mxu0
        %v3704 = vadd.f32 %v3631, %v3703
        %3705 = vmatmul.bf16.gmra.mxu0 %v2215
        %v3706 = vpop.f32.mrf.mxu0
        %v3707 = vadd.f32 %v3634, %v3706
        %v3708 = vpop.f32.mrf.mxu0
        %v3709 = vadd.f32 %v3636, %v3708
        %3710 = vmatmul.bf16.gmra.mxu0 %v2219
        %v3711 = vpop.f32.mrf.mxu0
        %v3712 = vadd.f32 %v3639, %v3711
        %v3713 = vpop.f32.mrf.mxu0
        %v3714 = vadd.f32 %v3641, %v3713
        %3715 = vmatmul.bf16.gmra.mxu0 %v2223
        %v3716 = vpop.f32.mrf.mxu0
        %v3717 = vadd.f32 %v3644, %v3716
        %v3718 = vpop.f32.mrf.mxu0
        %3719 = vdwg.mxu0
        %3720 = vmatpush.bf16.msra.mxu0 %v2787
        %3721 = vmatpush.bf16.msra.mxu0 %v2783
        %3722 = vmatpush.bf16.msra.mxu0 %v2779
        %3723 = vmatpush.bf16.msra.mxu0 %v2775
        %3724 = vmatpush.bf16.msra.mxu0 %v2771
        %3725 = vmatpush.bf16.msra.mxu0 %v2767
        %3726 = vmatpush.bf16.msra.mxu0 %v2763
        %3727 = vmatpush.bf16.msra.mxu0 %v2759
        %3728 = vmatmul.bf16.gmra.mxu0 %v2176
        %v3729 = vpop.f32.mrf.mxu0
        %v3730 = vadd.f32 %v3657, %v3729
        %v3731 = vpop.f32.mrf.mxu0
        %v3732 = vadd.f32 %v3659, %v3731
        %3733 = vmatmul.bf16.gmra.mxu0 %v2180
        %v3734 = vpop.f32.mrf.mxu0
        %v3735 = vadd.f32 %v3662, %v3734
        %v3736 = vpop.f32.mrf.mxu0
        %v3737 = vadd.f32 %v3664, %v3736
        %3738 = vmatmul.bf16.gmra.mxu0 %v2184
        %v3739 = vpop.f32.mrf.mxu0
        %v3740 = vadd.f32 %v3667, %v3739
        %v3741 = vpop.f32.mrf.mxu0
        %v3742 = vadd.f32 %v3669, %v3741
        %3743 = vmatmul.bf16.gmra.mxu0 %v2188
        %v3744 = vpop.f32.mrf.mxu0
        %v3745 = vadd.f32 %v3672, %v3744
        %v3746 = vpop.f32.mrf.mxu0
        %v3747 = vadd.f32 %v3674, %v3746
        %3748 = vmatmul.bf16.gmra.mxu0 %v2192
        %v3749 = vpop.f32.mrf.mxu0
        %v3750 = vadd.f32 %v3677, %v3749
        %v3751 = vpop.f32.mrf.mxu0
        %v3752 = vadd.f32 %v3679, %v3751
        %3753 = vmatmul.bf16.gmra.mxu0 %v2196
        %v3754 = vpop.f32.mrf.mxu0
        %v3755 = vadd.f32 %v3682, %v3754
        %v3756 = vpop.f32.mrf.mxu0
        %v3757 = vadd.f32 %v3684, %v3756
        %3758 = vmatmul.bf16.gmra.mxu0 %v2200
        %v3759 = vpop.f32.mrf.mxu0
        %v3760 = vadd.f32 %v3687, %v3759
        %v3761 = vpop.f32.mrf.mxu0
        %v3762 = vadd.f32 %v3689, %v3761
        %3763 = vmatmul.bf16.gmra.mxu0 %v2204
        %v3764 = vpop.f32.mrf.mxu0
        %v3765 = vadd.f32 %v3692, %v3764
        %v3766 = vpop.f32.mrf.mxu0
        %v3767 = vadd.f32 %v3694, %v3766
        %3768 = vmatmul.bf16.gmra.mxu0 %v2208
        %v3769 = vpop.f32.mrf.mxu0
        %v3770 = vadd.f32 %v3697, %v3769
        %v3771 = vpop.f32.mrf.mxu0
        %v3772 = vadd.f32 %v3699, %v3771
        %3773 = vmatmul.bf16.gmra.mxu0 %v2212
        %v3774 = vpop.f32.mrf.mxu0
        %v3775 = vadd.f32 %v3702, %v3774
        %v3776 = vpop.f32.mrf.mxu0
        %v3777 = vadd.f32 %v3704, %v3776
        %3778 = vmatmul.bf16.gmra.mxu0 %v2216
        %v3779 = vpop.f32.mrf.mxu0
        %v3780 = vadd.f32 %v3707, %v3779
        %v3781 = vpop.f32.mrf.mxu0
        %v3782 = vadd.f32 %v3709, %v3781
        %3783 = vmatmul.bf16.gmra.mxu0 %v2220
        %v3784 = vpop.f32.mrf.mxu0
        %v3785 = vadd.f32 %v3712, %v3784
        %v3786 = vpop.f32.mrf.mxu0
        %v3787 = vadd.f32 %v3714, %v3786
        %3788 = vmatmul.bf16.gmra.mxu0 %v2224
        %v3789 = vpop.f32.mrf.mxu0
        %v3790 = vadd.f32 %v3717, %v3789
        %v3791 = vpop.f32.mrf.mxu0
        %3792 = vdwg.mxu0
        %3793 = vmatpush.bf16.msra.mxu0 %v2692
        %3794 = vmatpush.bf16.msra.mxu0 %v2688
        %3795 = vmatpush.bf16.msra.mxu0 %v2684
        %3796 = vmatpush.bf16.msra.mxu0 %v2680
        %3797 = vmatpush.bf16.msra.mxu0 %v2676
        %3798 = vmatpush.bf16.msra.mxu0 %v2672
        %3799 = vmatpush.bf16.msra.mxu0 %v2668
        %3800 = vmatpush.bf16.msra.mxu0 %v2664
        %3801 = vmatmul.bf16.gmra.mxu0 %v2173
        %v3802 = vpop.f32.mrf.mxu0
        %v3803 = vadd.f32 %v2018, %v3802
        %v3804 = vpop.f32.mrf.mxu0
        %v3805 = vadd.f32 %v2018, %v3804
        %3806 = vmatmul.bf16.gmra.mxu0 %v2177
        %v3807 = vpop.f32.mrf.mxu0
        %v3808 = vadd.f32 %v2018, %v3807
        %v3809 = vpop.f32.mrf.mxu0
        %v3810 = vadd.f32 %v2018, %v3809
        %3811 = vmatmul.bf16.gmra.mxu0 %v2181
        %v3812 = vpop.f32.mrf.mxu0
        %v3813 = vadd.f32 %v2018, %v3812
        %v3814 = vpop.f32.mrf.mxu0
        %v3815 = vadd.f32 %v2018, %v3814
        %3816 = vmatmul.bf16.gmra.mxu0 %v2185
        %v3817 = vpop.f32.mrf.mxu0
        %v3818 = vadd.f32 %v2018, %v3817
        %v3819 = vpop.f32.mrf.mxu0
        %v3820 = vadd.f32 %v2018, %v3819
        %3821 = vmatmul.bf16.gmra.mxu0 %v2189
        %v3822 = vpop.f32.mrf.mxu0
        %v3823 = vadd.f32 %v2018, %v3822
        %v3824 = vpop.f32.mrf.mxu0
        %v3825 = vadd.f32 %v2018, %v3824
        %3826 = vmatmul.bf16.gmra.mxu0 %v2193
        %v3827 = vpop.f32.mrf.mxu0
        %v3828 = vadd.f32 %v2018, %v3827
        %v3829 = vpop.f32.mrf.mxu0
        %v3830 = vadd.f32 %v2018, %v3829
        %3831 = vmatmul.bf16.gmra.mxu0 %v2197
        %v3832 = vpop.f32.mrf.mxu0
        %v3833 = vadd.f32 %v2018, %v3832
        %v3834 = vpop.f32.mrf.mxu0
        %v3835 = vadd.f32 %v2018, %v3834
        %3836 = vmatmul.bf16.gmra.mxu0 %v2201
        %v3837 = vpop.f32.mrf.mxu0
        %v3838 = vadd.f32 %v2018, %v3837
        %v3839 = vpop.f32.mrf.mxu0
        %v3840 = vadd.f32 %v2018, %v3839
        %3841 = vmatmul.bf16.gmra.mxu0 %v2205
        %v3842 = vpop.f32.mrf.mxu0
        %v3843 = vadd.f32 %v2018, %v3842
        %v3844 = vpop.f32.mrf.mxu0
        %v3845 = vadd.f32 %v2018, %v3844
        %3846 = vmatmul.bf16.gmra.mxu0 %v2209
        %v3847 = vpop.f32.mrf.mxu0
        %v3848 = vadd.f32 %v2018, %v3847
        %v3849 = vpop.f32.mrf.mxu0
        %v3850 = vadd.f32 %v2018, %v3849
        %3851 = vmatmul.bf16.gmra.mxu0 %v2213
        %v3852 = vpop.f32.mrf.mxu0
        %v3853 = vadd.f32 %v2018, %v3852
        %v3854 = vpop.f32.mrf.mxu0
        %v3855 = vadd.f32 %v2018, %v3854
        %3856 = vmatmul.bf16.gmra.mxu0 %v2217
        %v3857 = vpop.f32.mrf.mxu0
        %v3858 = vadd.f32 %v2018, %v3857
        %v3859 = vpop.f32.mrf.mxu0
        %v3860 = vadd.f32 %v2018, %v3859
        %3861 = vmatmul.bf16.gmra.mxu0 %v2221
        %v3862 = vpop.f32.mrf.mxu0
        %v3863 = vadd.f32 %v2018, %v3862
        %v3864 = vpop.f32.mrf.mxu0
        %3865 = vdwg.mxu0
        %3866 = vmatpush.bf16.msra.mxu0 %v2724
        %3867 = vmatpush.bf16.msra.mxu0 %v2720
        %3868 = vmatpush.bf16.msra.mxu0 %v2716
        %3869 = vmatpush.bf16.msra.mxu0 %v2712
        %3870 = vmatpush.bf16.msra.mxu0 %v2708
        %3871 = vmatpush.bf16.msra.mxu0 %v2704
        %3872 = vmatpush.bf16.msra.mxu0 %v2700
        %3873 = vmatpush.bf16.msra.mxu0 %v2696
        %3874 = vmatmul.bf16.gmra.mxu0 %v2174
        %v3875 = vpop.f32.mrf.mxu0
        %v3876 = vadd.f32 %v3803, %v3875
        %v3877 = vpop.f32.mrf.mxu0
        %v3878 = vadd.f32 %v3805, %v3877
        %3879 = vmatmul.bf16.gmra.mxu0 %v2178
        %v3880 = vpop.f32.mrf.mxu0
        %v3881 = vadd.f32 %v3808, %v3880
        %v3882 = vpop.f32.mrf.mxu0
        %v3883 = vadd.f32 %v3810, %v3882
        %3884 = vmatmul.bf16.gmra.mxu0 %v2182
        %v3885 = vpop.f32.mrf.mxu0
        %v3886 = vadd.f32 %v3813, %v3885
        %v3887 = vpop.f32.mrf.mxu0
        %v3888 = vadd.f32 %v3815, %v3887
        %3889 = vmatmul.bf16.gmra.mxu0 %v2186
        %v3890 = vpop.f32.mrf.mxu0
        %v3891 = vadd.f32 %v3818, %v3890
        %v3892 = vpop.f32.mrf.mxu0
        %v3893 = vadd.f32 %v3820, %v3892
        %3894 = vmatmul.bf16.gmra.mxu0 %v2190
        %v3895 = vpop.f32.mrf.mxu0
        %v3896 = vadd.f32 %v3823, %v3895
        %v3897 = vpop.f32.mrf.mxu0
        %v3898 = vadd.f32 %v3825, %v3897
        %3899 = vmatmul.bf16.gmra.mxu0 %v2194
        %v3900 = vpop.f32.mrf.mxu0
        %v3901 = vadd.f32 %v3828, %v3900
        %v3902 = vpop.f32.mrf.mxu0
        %v3903 = vadd.f32 %v3830, %v3902
        %3904 = vmatmul.bf16.gmra.mxu0 %v2198
        %v3905 = vpop.f32.mrf.mxu0
        %v3906 = vadd.f32 %v3833, %v3905
        %v3907 = vpop.f32.mrf.mxu0
        %v3908 = vadd.f32 %v3835, %v3907
        %3909 = vmatmul.bf16.gmra.mxu0 %v2202
        %v3910 = vpop.f32.mrf.mxu0
        %v3911 = vadd.f32 %v3838, %v3910
        %v3912 = vpop.f32.mrf.mxu0
        %v3913 = vadd.f32 %v3840, %v3912
        %3914 = vmatmul.bf16.gmra.mxu0 %v2206
        %v3915 = vpop.f32.mrf.mxu0
        %v3916 = vadd.f32 %v3843, %v3915
        %v3917 = vpop.f32.mrf.mxu0
        %v3918 = vadd.f32 %v3845, %v3917
        %3919 = vmatmul.bf16.gmra.mxu0 %v2210
        %v3920 = vpop.f32.mrf.mxu0
        %v3921 = vadd.f32 %v3848, %v3920
        %v3922 = vpop.f32.mrf.mxu0
        %v3923 = vadd.f32 %v3850, %v3922
        %3924 = vmatmul.bf16.gmra.mxu0 %v2214
        %v3925 = vpop.f32.mrf.mxu0
        %v3926 = vadd.f32 %v3853, %v3925
        %v3927 = vpop.f32.mrf.mxu0
        %v3928 = vadd.f32 %v3855, %v3927
        %3929 = vmatmul.bf16.gmra.mxu0 %v2218
        %v3930 = vpop.f32.mrf.mxu0
        %v3931 = vadd.f32 %v3858, %v3930
        %v3932 = vpop.f32.mrf.mxu0
        %v3933 = vadd.f32 %v3860, %v3932
        %3934 = vmatmul.bf16.gmra.mxu0 %v2222
        %v3935 = vpop.f32.mrf.mxu0
        %v3936 = vadd.f32 %v3863, %v3935
        %v3937 = vpop.f32.mrf.mxu0
        %3938 = vdwg.mxu0
        %3939 = vmatpush.bf16.msra.mxu0 %v2756
        %3940 = vmatpush.bf16.msra.mxu0 %v2752
        %3941 = vmatpush.bf16.msra.mxu0 %v2748
        %3942 = vmatpush.bf16.msra.mxu0 %v2744
        %3943 = vmatpush.bf16.msra.mxu0 %v2740
        %3944 = vmatpush.bf16.msra.mxu0 %v2736
        %3945 = vmatpush.bf16.msra.mxu0 %v2732
        %3946 = vmatpush.bf16.msra.mxu0 %v2728
        %3947 = vmatmul.bf16.gmra.mxu0 %v2175
        %v3948 = vpop.f32.mrf.mxu0
        %v3949 = vadd.f32 %v3876, %v3948
        %v3950 = vpop.f32.mrf.mxu0
        %v3951 = vadd.f32 %v3878, %v3950
        %3952 = vmatmul.bf16.gmra.mxu0 %v2179
        %v3953 = vpop.f32.mrf.mxu0
        %v3954 = vadd.f32 %v3881, %v3953
        %v3955 = vpop.f32.mrf.mxu0
        %v3956 = vadd.f32 %v3883, %v3955
        %3957 = vmatmul.bf16.gmra.mxu0 %v2183
        %v3958 = vpop.f32.mrf.mxu0
        %v3959 = vadd.f32 %v3886, %v3958
        %v3960 = vpop.f32.mrf.mxu0
        %v3961 = vadd.f32 %v3888, %v3960
        %3962 = vmatmul.bf16.gmra.mxu0 %v2187
        %v3963 = vpop.f32.mrf.mxu0
        %v3964 = vadd.f32 %v3891, %v3963
        %v3965 = vpop.f32.mrf.mxu0
        %v3966 = vadd.f32 %v3893, %v3965
        %3967 = vmatmul.bf16.gmra.mxu0 %v2191
        %v3968 = vpop.f32.mrf.mxu0
        %v3969 = vadd.f32 %v3896, %v3968
        %v3970 = vpop.f32.mrf.mxu0
        %v3971 = vadd.f32 %v3898, %v3970
        %3972 = vmatmul.bf16.gmra.mxu0 %v2195
        %v3973 = vpop.f32.mrf.mxu0
        %v3974 = vadd.f32 %v3901, %v3973
        %v3975 = vpop.f32.mrf.mxu0
        %v3976 = vadd.f32 %v3903, %v3975
        %3977 = vmatmul.bf16.gmra.mxu0 %v2199
        %v3978 = vpop.f32.mrf.mxu0
        %v3979 = vadd.f32 %v3906, %v3978
        %v3980 = vpop.f32.mrf.mxu0
        %v3981 = vadd.f32 %v3908, %v3980
        %3982 = vmatmul.bf16.gmra.mxu0 %v2203
        %v3983 = vpop.f32.mrf.mxu0
        %v3984 = vadd.f32 %v3911, %v3983
        %v3985 = vpop.f32.mrf.mxu0
        %v3986 = vadd.f32 %v3913, %v3985
        %3987 = vmatmul.bf16.gmra.mxu0 %v2207
        %v3988 = vpop.f32.mrf.mxu0
        %v3989 = vadd.f32 %v3916, %v3988
        %v3990 = vpop.f32.mrf.mxu0
        %v3991 = vadd.f32 %v3918, %v3990
        %3992 = vmatmul.bf16.gmra.mxu0 %v2211
        %v3993 = vpop.f32.mrf.mxu0
        %v3994 = vadd.f32 %v3921, %v3993
        %v3995 = vpop.f32.mrf.mxu0
        %v3996 = vadd.f32 %v3923, %v3995
        %3997 = vmatmul.bf16.gmra.mxu0 %v2215
        %v3998 = vpop.f32.mrf.mxu0
        %v3999 = vadd.f32 %v3926, %v3998
        %v4000 = vpop.f32.mrf.mxu0
        %v4001 = vadd.f32 %v3928, %v4000
        %4002 = vmatmul.bf16.gmra.mxu0 %v2219
        %v4003 = vpop.f32.mrf.mxu0
        %v4004 = vadd.f32 %v3931, %v4003
        %v4005 = vpop.f32.mrf.mxu0
        %v4006 = vadd.f32 %v3933, %v4005
        %4007 = vmatmul.bf16.gmra.mxu0 %v2223
        %v4008 = vpop.f32.mrf.mxu0
        %v4009 = vadd.f32 %v3936, %v4008
        %v4010 = vpop.f32.mrf.mxu0
        %4011 = vdwg.mxu0
        %4012 = vmatpush.bf16.msra.mxu0 %v2788
        %4013 = vmatpush.bf16.msra.mxu0 %v2784
        %4014 = vmatpush.bf16.msra.mxu0 %v2780
        %4015 = vmatpush.bf16.msra.mxu0 %v2776
        %4016 = vmatpush.bf16.msra.mxu0 %v2772
        %4017 = vmatpush.bf16.msra.mxu0 %v2768
        %4018 = vmatpush.bf16.msra.mxu0 %v2764
        %4019 = vmatpush.bf16.msra.mxu0 %v2760
        %4020 = vmatmul.bf16.gmra.mxu0 %v2176
        %v4021 = vpop.f32.mrf.mxu0
        %v4022 = vadd.f32 %v3949, %v4021
        %v4023 = vpop.f32.mrf.mxu0
        %v4024 = vadd.f32 %v3951, %v4023
        %4025 = vmatmul.bf16.gmra.mxu0 %v2180
        %v4026 = vpop.f32.mrf.mxu0
        %v4027 = vadd.f32 %v3954, %v4026
        %v4028 = vpop.f32.mrf.mxu0
        %v4029 = vadd.f32 %v3956, %v4028
        %4030 = vmatmul.bf16.gmra.mxu0 %v2184
        %v4031 = vpop.f32.mrf.mxu0
        %v4032 = vadd.f32 %v3959, %v4031
        %v4033 = vpop.f32.mrf.mxu0
        %v4034 = vadd.f32 %v3961, %v4033
        %4035 = vmatmul.bf16.gmra.mxu0 %v2188
        %v4036 = vpop.f32.mrf.mxu0
        %v4037 = vadd.f32 %v3964, %v4036
        %v4038 = vpop.f32.mrf.mxu0
        %v4039 = vadd.f32 %v3966, %v4038
        %4040 = vmatmul.bf16.gmra.mxu0 %v2192
        %v4041 = vpop.f32.mrf.mxu0
        %v4042 = vadd.f32 %v3969, %v4041
        %v4043 = vpop.f32.mrf.mxu0
        %v4044 = vadd.f32 %v3971, %v4043
        %4045 = vmatmul.bf16.gmra.mxu0 %v2196
        %v4046 = vpop.f32.mrf.mxu0
        %v4047 = vadd.f32 %v3974, %v4046
        %v4048 = vpop.f32.mrf.mxu0
        %v4049 = vadd.f32 %v3976, %v4048
        %4050 = vmatmul.bf16.gmra.mxu0 %v2200
        %v4051 = vpop.f32.mrf.mxu0
        %v4052 = vadd.f32 %v3979, %v4051
        %v4053 = vpop.f32.mrf.mxu0
        %v4054 = vadd.f32 %v3981, %v4053
        %4055 = vmatmul.bf16.gmra.mxu0 %v2204
        %v4056 = vpop.f32.mrf.mxu0
        %v4057 = vadd.f32 %v3984, %v4056
        %v4058 = vpop.f32.mrf.mxu0
        %v4059 = vadd.f32 %v3986, %v4058
        %4060 = vmatmul.bf16.gmra.mxu0 %v2208
        %v4061 = vpop.f32.mrf.mxu0
        %v4062 = vadd.f32 %v3989, %v4061
        %v4063 = vpop.f32.mrf.mxu0
        %v4064 = vadd.f32 %v3991, %v4063
        %4065 = vmatmul.bf16.gmra.mxu0 %v2212
        %v4066 = vpop.f32.mrf.mxu0
        %v4067 = vadd.f32 %v3994, %v4066
        %v4068 = vpop.f32.mrf.mxu0
        %v4069 = vadd.f32 %v3996, %v4068
        %4070 = vmatmul.bf16.gmra.mxu0 %v2216
        %v4071 = vpop.f32.mrf.mxu0
        %v4072 = vadd.f32 %v3999, %v4071
        %v4073 = vpop.f32.mrf.mxu0
        %v4074 = vadd.f32 %v4001, %v4073
        %4075 = vmatmul.bf16.gmra.mxu0 %v2220
        %v4076 = vpop.f32.mrf.mxu0
        %v4077 = vadd.f32 %v4004, %v4076
        %v4078 = vpop.f32.mrf.mxu0
        %v4079 = vadd.f32 %v4006, %v4078
        %4080 = vmatmul.bf16.gmra.mxu0 %v2224
        %v4081 = vpop.f32.mrf.mxu0
        %v4082 = vadd.f32 %v4009, %v4081
        %v4083 = vpop.f32.mrf.mxu0
        %4084 = vdwg.mxu0
        %v4085 = vmul.f32 %v3146, 0.5
        %v4086 = vmul.f32 %v3438, 0.5
        %v4087 = vmul.f32 %v3730, 0.5
        %v4088 = vmul.f32 %v4022, 0.5
        %v4089 = vmul.f32 %v3148, 0.5
        %v4090 = vmul.f32 %v3440, 0.5
        %v4091 = vmul.f32 %v3732, 0.5
        %v4092 = vmul.f32 %v4024, 0.5
        %v4093 = vmul.f32 %v3151, 0.5
        %v4094 = vmul.f32 %v3443, 0.5
        %v4095 = vmul.f32 %v3735, 0.5
        %v4096 = vmul.f32 %v4027, 0.5
        %v4097 = vmul.f32 %v3153, 0.5
        %v4098 = vmul.f32 %v3445, 0.5
        %v4099 = vmul.f32 %v3737, 0.5
        %v4100 = vmul.f32 %v4029, 0.5
        %v4101 = vmul.f32 %v3156, 0.5
        %v4102 = vmul.f32 %v3448, 0.5
        %v4103 = vmul.f32 %v3740, 0.5
        %v4104 = vmul.f32 %v4032, 0.5
        %v4105 = vmul.f32 %v3158, 0.5
        %v4106 = vmul.f32 %v3450, 0.5
        %v4107 = vmul.f32 %v3742, 0.5
        %v4108 = vmul.f32 %v4034, 0.5
        %v4109 = vmul.f32 %v3161, 0.5
        %v4110 = vmul.f32 %v3453, 0.5
        %v4111 = vmul.f32 %v3745, 0.5
        %v4112 = vmul.f32 %v4037, 0.5
        %v4113 = vmul.f32 %v3163, 0.5
        %v4114 = vmul.f32 %v3455, 0.5
        %v4115 = vmul.f32 %v3747, 0.5
        %v4116 = vmul.f32 %v4039, 0.5
        %v4117 = vmul.f32 %v3166, 0.5
        %v4118 = vmul.f32 %v3458, 0.5
        %v4119 = vmul.f32 %v3750, 0.5
        %v4120 = vmul.f32 %v4042, 0.5
        %v4121 = vmul.f32 %v3168, 0.5
        %v4122 = vmul.f32 %v3460, 0.5
        %v4123 = vmul.f32 %v3752, 0.5
        %v4124 = vmul.f32 %v4044, 0.5
        %v4125 = vmul.f32 %v3171, 0.5
        %v4126 = vmul.f32 %v3463, 0.5
        %v4127 = vmul.f32 %v3755, 0.5
        %v4128 = vmul.f32 %v4047, 0.5
        %v4129 = vmul.f32 %v3173, 0.5
        %v4130 = vmul.f32 %v3465, 0.5
        %v4131 = vmul.f32 %v3757, 0.5
        %v4132 = vmul.f32 %v4049, 0.5
        %v4133 = vmul.f32 %v3176, 0.5
        %v4134 = vmul.f32 %v3468, 0.5
        %v4135 = vmul.f32 %v3760, 0.5
        %v4136 = vmul.f32 %v4052, 0.5
        %v4137 = vmul.f32 %v3178, 0.5
        %v4138 = vmul.f32 %v3470, 0.5
        %v4139 = vmul.f32 %v3762, 0.5
        %v4140 = vmul.f32 %v4054, 0.5
        %v4141 = vmul.f32 %v3181, 0.5
        %v4142 = vmul.f32 %v3473, 0.5
        %v4143 = vmul.f32 %v3765, 0.5
        %v4144 = vmul.f32 %v4057, 0.5
        %v4145 = vmul.f32 %v3183, 0.5
        %v4146 = vmul.f32 %v3475, 0.5
        %v4147 = vmul.f32 %v3767, 0.5
        %v4148 = vmul.f32 %v4059, 0.5
        %v4149 = vmul.f32 %v3186, 0.5
        %v4150 = vmul.f32 %v3478, 0.5
        %v4151 = vmul.f32 %v3770, 0.5
        %v4152 = vmul.f32 %v4062, 0.5
        %v4153 = vmul.f32 %v3188, 0.5
        %v4154 = vmul.f32 %v3480, 0.5
        %v4155 = vmul.f32 %v3772, 0.5
        %v4156 = vmul.f32 %v4064, 0.5
        %v4157 = vmul.f32 %v3191, 0.5
        %v4158 = vmul.f32 %v3483, 0.5
        %v4159 = vmul.f32 %v3775, 0.5
        %v4160 = vmul.f32 %v4067, 0.5
        %v4161 = vmul.f32 %v3193, 0.5
        %v4162 = vmul.f32 %v3485, 0.5
        %v4163 = vmul.f32 %v3777, 0.5
        %v4164 = vmul.f32 %v4069, 0.5
        %v4165 = vmul.f32 %v3196, 0.5
        %v4166 = vmul.f32 %v3488, 0.5
        %v4167 = vmul.f32 %v3780, 0.5
        %v4168 = vmul.f32 %v4072, 0.5
        %v4169 = vmul.f32 %v3198, 0.5
        %v4170 = vmul.f32 %v3490, 0.5
        %v4171 = vmul.f32 %v3782, 0.5
        %v4172 = vmul.f32 %v4074, 0.5
        %v4173 = vmul.f32 %v3201, 0.5
        %v4174 = vmul.f32 %v3493, 0.5
        %v4175 = vmul.f32 %v3785, 0.5
        %v4176 = vmul.f32 %v4077, 0.5
        %v4177 = vmul.f32 %v3203, 0.5
        %v4178 = vmul.f32 %v3495, 0.5
        %v4179 = vmul.f32 %v3787, 0.5
        %v4180 = vmul.f32 %v4079, 0.5
        %v4181 = vmul.f32 %v3206, 0.5
        %v4182 = vmul.f32 %v3498, 0.5
        %v4183 = vmul.f32 %v3790, 0.5
        %v4184 = vmul.f32 %v4082, 0.5
        %v4185 = vmul.f32 %v3146, 0.70710677
        %v4186 = vmul.f32 %v3438, 0.70710677
        %v4187 = vmul.f32 %v3730, 0.70710677
        %v4188 = vmul.f32 %v4022, 0.70710677
        %v4189 = vmul.f32 %v3148, 0.70710677
        %v4190 = vmul.f32 %v3440, 0.70710677
        %v4191 = vmul.f32 %v3732, 0.70710677
        %v4192 = vmul.f32 %v4024, 0.70710677
        %v4193 = vmul.f32 %v3151, 0.70710677
        %v4194 = vmul.f32 %v3443, 0.70710677
        %v4195 = vmul.f32 %v3735, 0.70710677
        %v4196 = vmul.f32 %v4027, 0.70710677
        %v4197 = vmul.f32 %v3153, 0.70710677
        %v4198 = vmul.f32 %v3445, 0.70710677
        %v4199 = vmul.f32 %v3737, 0.70710677
        %v4200 = vmul.f32 %v4029, 0.70710677
        %v4201 = vmul.f32 %v3156, 0.70710677
        %v4202 = vmul.f32 %v3448, 0.70710677
        %v4203 = vmul.f32 %v3740, 0.70710677
        %v4204 = vmul.f32 %v4032, 0.70710677
        %v4205 = vmul.f32 %v3158, 0.70710677
        %v4206 = vmul.f32 %v3450, 0.70710677
        %v4207 = vmul.f32 %v3742, 0.70710677
        %v4208 = vmul.f32 %v4034, 0.70710677
        %v4209 = vmul.f32 %v3161, 0.70710677
        %v4210 = vmul.f32 %v3453, 0.70710677
        %v4211 = vmul.f32 %v3745, 0.70710677
        %v4212 = vmul.f32 %v4037, 0.70710677
        %v4213 = vmul.f32 %v3163, 0.70710677
        %v4214 = vmul.f32 %v3455, 0.70710677
        %v4215 = vmul.f32 %v3747, 0.70710677
        %v4216 = vmul.f32 %v4039, 0.70710677
        %v4217 = vmul.f32 %v3166, 0.70710677
        %v4218 = vmul.f32 %v3458, 0.70710677
        %v4219 = vmul.f32 %v3750, 0.70710677
        %v4220 = vmul.f32 %v4042, 0.70710677
        %v4221 = vmul.f32 %v3168, 0.70710677
        %v4222 = vmul.f32 %v3460, 0.70710677
        %v4223 = vmul.f32 %v3752, 0.70710677
        %v4224 = vmul.f32 %v4044, 0.70710677
        %v4225 = vmul.f32 %v3171, 0.70710677
        %v4226 = vmul.f32 %v3463, 0.70710677
        %v4227 = vmul.f32 %v3755, 0.70710677
        %v4228 = vmul.f32 %v4047, 0.70710677
        %v4229 = vmul.f32 %v3173, 0.70710677
        %v4230 = vmul.f32 %v3465, 0.70710677
        %v4231 = vmul.f32 %v3757, 0.70710677
        %v4232 = vmul.f32 %v4049, 0.70710677
        %v4233 = vmul.f32 %v3176, 0.70710677
        %v4234 = vmul.f32 %v3468, 0.70710677
        %v4235 = vmul.f32 %v3760, 0.70710677
        %v4236 = vmul.f32 %v4052, 0.70710677
        %v4237 = vmul.f32 %v3178, 0.70710677
        %v4238 = vmul.f32 %v3470, 0.70710677
        %v4239 = vmul.f32 %v3762, 0.70710677
        %v4240 = vmul.f32 %v4054, 0.70710677
        %v4241 = vmul.f32 %v3181, 0.70710677
        %v4242 = vmul.f32 %v3473, 0.70710677
        %v4243 = vmul.f32 %v3765, 0.70710677
        %v4244 = vmul.f32 %v4057, 0.70710677
        %v4245 = vmul.f32 %v3183, 0.70710677
        %v4246 = vmul.f32 %v3475, 0.70710677
        %v4247 = vmul.f32 %v3767, 0.70710677
        %v4248 = vmul.f32 %v4059, 0.70710677
        %v4249 = vmul.f32 %v3186, 0.70710677
        %v4250 = vmul.f32 %v3478, 0.70710677
        %v4251 = vmul.f32 %v3770, 0.70710677
        %v4252 = vmul.f32 %v4062, 0.70710677
        %v4253 = vmul.f32 %v3188, 0.70710677
        %v4254 = vmul.f32 %v3480, 0.70710677
        %v4255 = vmul.f32 %v3772, 0.70710677
        %v4256 = vmul.f32 %v4064, 0.70710677
        %v4257 = vmul.f32 %v3191, 0.70710677
        %v4258 = vmul.f32 %v3483, 0.70710677
        %v4259 = vmul.f32 %v3775, 0.70710677
        %v4260 = vmul.f32 %v4067, 0.70710677
        %v4261 = vmul.f32 %v3193, 0.70710677
        %v4262 = vmul.f32 %v3485, 0.70710677
        %v4263 = vmul.f32 %v3777, 0.70710677
        %v4264 = vmul.f32 %v4069, 0.70710677
        %v4265 = vmul.f32 %v3196, 0.70710677
        %v4266 = vmul.f32 %v3488, 0.70710677
        %v4267 = vmul.f32 %v3780, 0.70710677
        %v4268 = vmul.f32 %v4072, 0.70710677
        %v4269 = vmul.f32 %v3198, 0.70710677
        %v4270 = vmul.f32 %v3490, 0.70710677
        %v4271 = vmul.f32 %v3782, 0.70710677
        %v4272 = vmul.f32 %v4074, 0.70710677
        %v4273 = vmul.f32 %v3201, 0.70710677
        %v4274 = vmul.f32 %v3493, 0.70710677
        %v4275 = vmul.f32 %v3785, 0.70710677
        %v4276 = vmul.f32 %v4077, 0.70710677
        %v4277 = vmul.f32 %v3203, 0.70710677
        %v4278 = vmul.f32 %v3495, 0.70710677
        %v4279 = vmul.f32 %v3787, 0.70710677
        %v4280 = vmul.f32 %v4079, 0.70710677
        %v4281 = vmul.f32 %v3206, 0.70710677
        %v4282 = vmul.f32 %v3498, 0.70710677
        %v4283 = vmul.f32 %v3790, 0.70710677
        %v4284 = vmul.f32 %v4082, 0.70710677
        %v4285 = vmul.f32 %v4185, %v4185
        %v4286 = vmin.f32 16.0, %v4285
        %v4287 = vmul.f32 %v4286, 2.1237322e-06
        %v4288 = vadd.f32 %v4287, 0.00028619796
        %v4289 = vmul.f32 %v4286, %v4288
        %v4290 = vadd.f32 %v4289, 0.0036580483
        %v4291 = vmul.f32 %v4286, %v4290
        %v4292 = vadd.f32 %v4291, 0.05243302
        %v4293 = vmul.f32 %v4286, %v4292
        %v4294 = vadd.f32 %v4293, 0.18741608
        %v4295 = vmul.f32 %v4286, %v4294
        %v4296 = vadd.f32 %v4295, 1.1283791
        %v4297 = vmul.f32 %v4185, %v4296
        %v4298 = vmul.f32 %v4286, 3.8918573e-05
        %v4299 = vadd.f32 %v4298, 0.001143296
        %v4300 = vmul.f32 %v4286, %v4299
        %v4301 = vadd.f32 %v4300, 0.014752088
        %v4302 = vmul.f32 %v4286, %v4301
        %v4303 = vadd.f32 %v4302, 0.112945676
        %v4304 = vmul.f32 %v4286, %v4303
        %v4305 = vadd.f32 %v4304, 0.4994258
        %v4306 = vmul.f32 %v4286, %v4305
        %v4307 = vadd.f32 %v4306, 1.0
        %v4308 = vrcp.pop %v4307
        %v4309 = vmul.f32 %v4307, %v4308
        %v4310 = vsub.f32 1.0, %v4309
        %v4311 = vmul.f32 %v4308, %v4310
        %v4312 = vadd.f32 %v4308, %v4311
        %vm4313 = vweird.f32 %v4307
        %vm4314 = vweird.f32 %v4308
        %vm4315 = vmor %vm4313, %vm4314
        %v4316 = vsel %vm4315, %v4308, %v4312
        %v4317 = vand.u32 2147483647, %v4307
        %vm4318 = vcmp.eq.f32.partialorder %v4317, 8.507059e+37
        %v4319 = vand.u32 %v4307, 2147483648
        %v4320 = vor.u32 1.1754944e-38, %v4319
        %v4321 = vsel %vm4318, %v4320, %v4316
        %v4322 = vmul.f32 %v4297, %v4321
        %v4323 = vmin.f32 %v4322, 1.0
        %v4324 = vmax.f32 %v4323, -1.0
        %v4325 = vmul.f32 %v4186, %v4186
        %v4326 = vmin.f32 16.0, %v4325
        %v4327 = vmul.f32 %v4326, 2.1237322e-06
        %v4328 = vadd.f32 %v4327, 0.00028619796
        %v4329 = vmul.f32 %v4326, %v4328
        %v4330 = vadd.f32 %v4329, 0.0036580483
        %v4331 = vmul.f32 %v4326, %v4330
        %v4332 = vadd.f32 %v4331, 0.05243302
        %v4333 = vmul.f32 %v4326, %v4332
        %v4334 = vadd.f32 %v4333, 0.18741608
        %v4335 = vmul.f32 %v4326, %v4334
        %v4336 = vadd.f32 %v4335, 1.1283791
        %v4337 = vmul.f32 %v4186, %v4336
        %v4338 = vmul.f32 %v4326, 3.8918573e-05
        %v4339 = vadd.f32 %v4338, 0.001143296
        %v4340 = vmul.f32 %v4326, %v4339
        %v4341 = vadd.f32 %v4340, 0.014752088
        %v4342 = vmul.f32 %v4326, %v4341
        %v4343 = vadd.f32 %v4342, 0.112945676
        %v4344 = vmul.f32 %v4326, %v4343
        %v4345 = vadd.f32 %v4344, 0.4994258
        %v4346 = vmul.f32 %v4326, %v4345
        %v4347 = vadd.f32 %v4346, 1.0
        %v4348 = vrcp.pop %v4347
        %v4349 = vmul.f32 %v4347, %v4348
        %v4350 = vsub.f32 1.0, %v4349
        %v4351 = vmul.f32 %v4348, %v4350
        %v4352 = vadd.f32 %v4348, %v4351
        %vm4353 = vweird.f32 %v4347
        %vm4354 = vweird.f32 %v4348
        %vm4355 = vmor %vm4353, %vm4354
        %v4356 = vsel %vm4355, %v4348, %v4352
        %v4357 = vand.u32 2147483647, %v4347
        %vm4358 = vcmp.eq.f32.partialorder %v4357, 8.507059e+37
        %v4359 = vand.u32 %v4347, 2147483648
        %v4360 = vor.u32 1.1754944e-38, %v4359
        %v4361 = vsel %vm4358, %v4360, %v4356
        %v4362 = vmul.f32 %v4337, %v4361
        %v4363 = vmin.f32 %v4362, 1.0
        %v4364 = vmax.f32 %v4363, -1.0
        %v4365 = vmul.f32 %v4187, %v4187
        %v4366 = vmin.f32 16.0, %v4365
        %v4367 = vmul.f32 %v4366, 2.1237322e-06
        %v4368 = vadd.f32 %v4367, 0.00028619796
        %v4369 = vmul.f32 %v4366, %v4368
        %v4370 = vadd.f32 %v4369, 0.0036580483
        %v4371 = vmul.f32 %v4366, %v4370
        %v4372 = vadd.f32 %v4371, 0.05243302
        %v4373 = vmul.f32 %v4366, %v4372
        %v4374 = vadd.f32 %v4373, 0.18741608
        %v4375 = vmul.f32 %v4366, %v4374
        %v4376 = vadd.f32 %v4375, 1.1283791
        %v4377 = vmul.f32 %v4187, %v4376
        %v4378 = vmul.f32 %v4366, 3.8918573e-05
        %v4379 = vadd.f32 %v4378, 0.001143296
        %v4380 = vmul.f32 %v4366, %v4379
        %v4381 = vadd.f32 %v4380, 0.014752088
        %v4382 = vmul.f32 %v4366, %v4381
        %v4383 = vadd.f32 %v4382, 0.112945676
        %v4384 = vmul.f32 %v4366, %v4383
        %v4385 = vadd.f32 %v4384, 0.4994258
        %v4386 = vmul.f32 %v4366, %v4385
        %v4387 = vadd.f32 %v4386, 1.0
        %v4388 = vrcp.pop %v4387
        %v4389 = vmul.f32 %v4387, %v4388
        %v4390 = vsub.f32 1.0, %v4389
        %v4391 = vmul.f32 %v4388, %v4390
        %v4392 = vadd.f32 %v4388, %v4391
        %vm4393 = vweird.f32 %v4387
        %vm4394 = vweird.f32 %v4388
        %vm4395 = vmor %vm4393, %vm4394
        %v4396 = vsel %vm4395, %v4388, %v4392
        %v4397 = vand.u32 2147483647, %v4387
        %vm4398 = vcmp.eq.f32.partialorder %v4397, 8.507059e+37
        %v4399 = vand.u32 %v4387, 2147483648
        %v4400 = vor.u32 1.1754944e-38, %v4399
        %v4401 = vsel %vm4398, %v4400, %v4396
        %v4402 = vmul.f32 %v4377, %v4401
        %v4403 = vmin.f32 %v4402, 1.0
        %v4404 = vmax.f32 %v4403, -1.0
        %v4405 = vmul.f32 %v4188, %v4188
        %v4406 = vmin.f32 16.0, %v4405
        %v4407 = vmul.f32 %v4406, 2.1237322e-06
        %v4408 = vadd.f32 %v4407, 0.00028619796
        %v4409 = vmul.f32 %v4406, %v4408
        %v4410 = vadd.f32 %v4409, 0.0036580483
        %v4411 = vmul.f32 %v4406, %v4410
        %v4412 = vadd.f32 %v4411, 0.05243302
        %v4413 = vmul.f32 %v4406, %v4412
        %v4414 = vadd.f32 %v4413, 0.18741608
        %v4415 = vmul.f32 %v4406, %v4414
        %v4416 = vadd.f32 %v4415, 1.1283791
        %v4417 = vmul.f32 %v4188, %v4416
        %v4418 = vmul.f32 %v4406, 3.8918573e-05
        %v4419 = vadd.f32 %v4418, 0.001143296
        %v4420 = vmul.f32 %v4406, %v4419
        %v4421 = vadd.f32 %v4420, 0.014752088
        %v4422 = vmul.f32 %v4406, %v4421
        %v4423 = vadd.f32 %v4422, 0.112945676
        %v4424 = vmul.f32 %v4406, %v4423
        %v4425 = vadd.f32 %v4424, 0.4994258
        %v4426 = vmul.f32 %v4406, %v4425
        %v4427 = vadd.f32 %v4426, 1.0
        %v4428 = vrcp.pop %v4427
        %v4429 = vmul.f32 %v4427, %v4428
        %v4430 = vsub.f32 1.0, %v4429
        %v4431 = vmul.f32 %v4428, %v4430
        %v4432 = vadd.f32 %v4428, %v4431
        %vm4433 = vweird.f32 %v4427
        %vm4434 = vweird.f32 %v4428
        %vm4435 = vmor %vm4433, %vm4434
        %v4436 = vsel %vm4435, %v4428, %v4432
        %v4437 = vand.u32 2147483647, %v4427
        %vm4438 = vcmp.eq.f32.partialorder %v4437, 8.507059e+37
        %v4439 = vand.u32 %v4427, 2147483648
        %v4440 = vor.u32 1.1754944e-38, %v4439
        %v4441 = vsel %vm4438, %v4440, %v4436
        %v4442 = vmul.f32 %v4417, %v4441
        %v4443 = vmin.f32 %v4442, 1.0
        %v4444 = vmax.f32 %v4443, -1.0
        %v4445 = vmul.f32 %v4189, %v4189
        %v4446 = vmin.f32 16.0, %v4445
        %v4447 = vmul.f32 %v4446, 2.1237322e-06
        %v4448 = vadd.f32 %v4447, 0.00028619796
        %v4449 = vmul.f32 %v4446, %v4448
        %v4450 = vadd.f32 %v4449, 0.0036580483
        %v4451 = vmul.f32 %v4446, %v4450
        %v4452 = vadd.f32 %v4451, 0.05243302
        %v4453 = vmul.f32 %v4446, %v4452
        %v4454 = vadd.f32 %v4453, 0.18741608
        %v4455 = vmul.f32 %v4446, %v4454
        %v4456 = vadd.f32 %v4455, 1.1283791
        %v4457 = vmul.f32 %v4189, %v4456
        %v4458 = vmul.f32 %v4446, 3.8918573e-05
        %v4459 = vadd.f32 %v4458, 0.001143296
        %v4460 = vmul.f32 %v4446, %v4459
        %v4461 = vadd.f32 %v4460, 0.014752088
        %v4462 = vmul.f32 %v4446, %v4461
        %v4463 = vadd.f32 %v4462, 0.112945676
        %v4464 = vmul.f32 %v4446, %v4463
        %v4465 = vadd.f32 %v4464, 0.4994258
        %v4466 = vmul.f32 %v4446, %v4465
        %v4467 = vadd.f32 %v4466, 1.0
        %v4468 = vrcp.pop %v4467
        %v4469 = vmul.f32 %v4467, %v4468
        %v4470 = vsub.f32 1.0, %v4469
        %v4471 = vmul.f32 %v4468, %v4470
        %v4472 = vadd.f32 %v4468, %v4471
        %vm4473 = vweird.f32 %v4467
        %vm4474 = vweird.f32 %v4468
        %vm4475 = vmor %vm4473, %vm4474
        %v4476 = vsel %vm4475, %v4468, %v4472
        %v4477 = vand.u32 2147483647, %v4467
        %vm4478 = vcmp.eq.f32.partialorder %v4477, 8.507059e+37
        %v4479 = vand.u32 %v4467, 2147483648
        %v4480 = vor.u32 1.1754944e-38, %v4479
        %v4481 = vsel %vm4478, %v4480, %v4476
        %v4482 = vmul.f32 %v4457, %v4481
        %v4483 = vmin.f32 %v4482, 1.0
        %v4484 = vmax.f32 %v4483, -1.0
        %v4485 = vmul.f32 %v4190, %v4190
        %v4486 = vmin.f32 16.0, %v4485
        %v4487 = vmul.f32 %v4486, 2.1237322e-06
        %v4488 = vadd.f32 %v4487, 0.00028619796
        %v4489 = vmul.f32 %v4486, %v4488
        %v4490 = vadd.f32 %v4489, 0.0036580483
        %v4491 = vmul.f32 %v4486, %v4490
        %v4492 = vadd.f32 %v4491, 0.05243302
        %v4493 = vmul.f32 %v4486, %v4492
        %v4494 = vadd.f32 %v4493, 0.18741608
        %v4495 = vmul.f32 %v4486, %v4494
        %v4496 = vadd.f32 %v4495, 1.1283791
        %v4497 = vmul.f32 %v4190, %v4496
        %v4498 = vmul.f32 %v4486, 3.8918573e-05
        %v4499 = vadd.f32 %v4498, 0.001143296
        %v4500 = vmul.f32 %v4486, %v4499
        %v4501 = vadd.f32 %v4500, 0.014752088
        %v4502 = vmul.f32 %v4486, %v4501
        %v4503 = vadd.f32 %v4502, 0.112945676
        %v4504 = vmul.f32 %v4486, %v4503
        %v4505 = vadd.f32 %v4504, 0.4994258
        %v4506 = vmul.f32 %v4486, %v4505
        %v4507 = vadd.f32 %v4506, 1.0
        %v4508 = vrcp.pop %v4507
        %v4509 = vmul.f32 %v4507, %v4508
        %v4510 = vsub.f32 1.0, %v4509
        %v4511 = vmul.f32 %v4508, %v4510
        %v4512 = vadd.f32 %v4508, %v4511
        %vm4513 = vweird.f32 %v4507
        %vm4514 = vweird.f32 %v4508
        %vm4515 = vmor %vm4513, %vm4514
        %v4516 = vsel %vm4515, %v4508, %v4512
        %v4517 = vand.u32 2147483647, %v4507
        %vm4518 = vcmp.eq.f32.partialorder %v4517, 8.507059e+37
        %v4519 = vand.u32 %v4507, 2147483648
        %v4520 = vor.u32 1.1754944e-38, %v4519
        %v4521 = vsel %vm4518, %v4520, %v4516
        %v4522 = vmul.f32 %v4497, %v4521
        %v4523 = vmin.f32 %v4522, 1.0
        %v4524 = vmax.f32 %v4523, -1.0
        %v4525 = vmul.f32 %v4191, %v4191
        %v4526 = vmin.f32 16.0, %v4525
        %v4527 = vmul.f32 %v4526, 2.1237322e-06
        %v4528 = vadd.f32 %v4527, 0.00028619796
        %v4529 = vmul.f32 %v4526, %v4528
        %v4530 = vadd.f32 %v4529, 0.0036580483
        %v4531 = vmul.f32 %v4526, %v4530
        %v4532 = vadd.f32 %v4531, 0.05243302
        %v4533 = vmul.f32 %v4526, %v4532
        %v4534 = vadd.f32 %v4533, 0.18741608
        %v4535 = vmul.f32 %v4526, %v4534
        %v4536 = vadd.f32 %v4535, 1.1283791
        %v4537 = vmul.f32 %v4191, %v4536
        %v4538 = vmul.f32 %v4526, 3.8918573e-05
        %v4539 = vadd.f32 %v4538, 0.001143296
        %v4540 = vmul.f32 %v4526, %v4539
        %v4541 = vadd.f32 %v4540, 0.014752088
        %v4542 = vmul.f32 %v4526, %v4541
        %v4543 = vadd.f32 %v4542, 0.112945676
        %v4544 = vmul.f32 %v4526, %v4543
        %v4545 = vadd.f32 %v4544, 0.4994258
        %v4546 = vmul.f32 %v4526, %v4545
        %v4547 = vadd.f32 %v4546, 1.0
        %v4548 = vrcp.pop %v4547
        %v4549 = vmul.f32 %v4547, %v4548
        %v4550 = vsub.f32 1.0, %v4549
        %v4551 = vmul.f32 %v4548, %v4550
        %v4552 = vadd.f32 %v4548, %v4551
        %vm4553 = vweird.f32 %v4547
        %vm4554 = vweird.f32 %v4548
        %vm4555 = vmor %vm4553, %vm4554
        %v4556 = vsel %vm4555, %v4548, %v4552
        %v4557 = vand.u32 2147483647, %v4547
        %vm4558 = vcmp.eq.f32.partialorder %v4557, 8.507059e+37
        %v4559 = vand.u32 %v4547, 2147483648
        %v4560 = vor.u32 1.1754944e-38, %v4559
        %v4561 = vsel %vm4558, %v4560, %v4556
        %v4562 = vmul.f32 %v4537, %v4561
        %v4563 = vmin.f32 %v4562, 1.0
        %v4564 = vmax.f32 %v4563, -1.0
        %v4565 = vmul.f32 %v4192, %v4192
        %v4566 = vmin.f32 16.0, %v4565
        %v4567 = vmul.f32 %v4566, 2.1237322e-06
        %v4568 = vadd.f32 %v4567, 0.00028619796
        %v4569 = vmul.f32 %v4566, %v4568
        %v4570 = vadd.f32 %v4569, 0.0036580483
        %v4571 = vmul.f32 %v4566, %v4570
        %v4572 = vadd.f32 %v4571, 0.05243302
        %v4573 = vmul.f32 %v4566, %v4572
        %v4574 = vadd.f32 %v4573, 0.18741608
        %v4575 = vmul.f32 %v4566, %v4574
        %v4576 = vadd.f32 %v4575, 1.1283791
        %v4577 = vmul.f32 %v4192, %v4576
        %v4578 = vmul.f32 %v4566, 3.8918573e-05
        %v4579 = vadd.f32 %v4578, 0.001143296
        %v4580 = vmul.f32 %v4566, %v4579
        %v4581 = vadd.f32 %v4580, 0.014752088
        %v4582 = vmul.f32 %v4566, %v4581
        %v4583 = vadd.f32 %v4582, 0.112945676
        %v4584 = vmul.f32 %v4566, %v4583
        %v4585 = vadd.f32 %v4584, 0.4994258
        %v4586 = vmul.f32 %v4566, %v4585
        %v4587 = vadd.f32 %v4586, 1.0
        %v4588 = vrcp.pop %v4587
        %v4589 = vmul.f32 %v4587, %v4588
        %v4590 = vsub.f32 1.0, %v4589
        %v4591 = vmul.f32 %v4588, %v4590
        %v4592 = vadd.f32 %v4588, %v4591
        %vm4593 = vweird.f32 %v4587
        %vm4594 = vweird.f32 %v4588
        %vm4595 = vmor %vm4593, %vm4594
        %v4596 = vsel %vm4595, %v4588, %v4592
        %v4597 = vand.u32 2147483647, %v4587
        %vm4598 = vcmp.eq.f32.partialorder %v4597, 8.507059e+37
        %v4599 = vand.u32 %v4587, 2147483648
        %v4600 = vor.u32 1.1754944e-38, %v4599
        %v4601 = vsel %vm4598, %v4600, %v4596
        %v4602 = vmul.f32 %v4577, %v4601
        %v4603 = vmin.f32 %v4602, 1.0
        %v4604 = vmax.f32 %v4603, -1.0
        %v4605 = vmul.f32 %v4193, %v4193
        %v4606 = vmin.f32 16.0, %v4605
        %v4607 = vmul.f32 %v4606, 2.1237322e-06
        %v4608 = vadd.f32 %v4607, 0.00028619796
        %v4609 = vmul.f32 %v4606, %v4608
        %v4610 = vadd.f32 %v4609, 0.0036580483
        %v4611 = vmul.f32 %v4606, %v4610
        %v4612 = vadd.f32 %v4611, 0.05243302
        %v4613 = vmul.f32 %v4606, %v4612
        %v4614 = vadd.f32 %v4613, 0.18741608
        %v4615 = vmul.f32 %v4606, %v4614
        %v4616 = vadd.f32 %v4615, 1.1283791
        %v4617 = vmul.f32 %v4193, %v4616
        %v4618 = vmul.f32 %v4606, 3.8918573e-05
        %v4619 = vadd.f32 %v4618, 0.001143296
        %v4620 = vmul.f32 %v4606, %v4619
        %v4621 = vadd.f32 %v4620, 0.014752088
        %v4622 = vmul.f32 %v4606, %v4621
        %v4623 = vadd.f32 %v4622, 0.112945676
        %v4624 = vmul.f32 %v4606, %v4623
        %v4625 = vadd.f32 %v4624, 0.4994258
        %v4626 = vmul.f32 %v4606, %v4625
        %v4627 = vadd.f32 %v4626, 1.0
        %v4628 = vrcp.pop %v4627
        %v4629 = vmul.f32 %v4627, %v4628
        %v4630 = vsub.f32 1.0, %v4629
        %v4631 = vmul.f32 %v4628, %v4630
        %v4632 = vadd.f32 %v4628, %v4631
        %vm4633 = vweird.f32 %v4627
        %vm4634 = vweird.f32 %v4628
        %vm4635 = vmor %vm4633, %vm4634
        %v4636 = vsel %vm4635, %v4628, %v4632
        %v4637 = vand.u32 2147483647, %v4627
        %vm4638 = vcmp.eq.f32.partialorder %v4637, 8.507059e+37
        %v4639 = vand.u32 %v4627, 2147483648
        %v4640 = vor.u32 1.1754944e-38, %v4639
        %v4641 = vsel %vm4638, %v4640, %v4636
        %v4642 = vmul.f32 %v4617, %v4641
        %v4643 = vmin.f32 %v4642, 1.0
        %v4644 = vmax.f32 %v4643, -1.0
        %v4645 = vmul.f32 %v4194, %v4194
        %v4646 = vmin.f32 16.0, %v4645
        %v4647 = vmul.f32 %v4646, 2.1237322e-06
        %v4648 = vadd.f32 %v4647, 0.00028619796
        %v4649 = vmul.f32 %v4646, %v4648
        %v4650 = vadd.f32 %v4649, 0.0036580483
        %v4651 = vmul.f32 %v4646, %v4650
        %v4652 = vadd.f32 %v4651, 0.05243302
        %v4653 = vmul.f32 %v4646, %v4652
        %v4654 = vadd.f32 %v4653, 0.18741608
        %v4655 = vmul.f32 %v4646, %v4654
        %v4656 = vadd.f32 %v4655, 1.1283791
        %v4657 = vmul.f32 %v4194, %v4656
        %v4658 = vmul.f32 %v4646, 3.8918573e-05
        %v4659 = vadd.f32 %v4658, 0.001143296
        %v4660 = vmul.f32 %v4646, %v4659
        %v4661 = vadd.f32 %v4660, 0.014752088
        %v4662 = vmul.f32 %v4646, %v4661
        %v4663 = vadd.f32 %v4662, 0.112945676
        %v4664 = vmul.f32 %v4646, %v4663
        %v4665 = vadd.f32 %v4664, 0.4994258
        %v4666 = vmul.f32 %v4646, %v4665
        %v4667 = vadd.f32 %v4666, 1.0
        %v4668 = vrcp.pop %v4667
        %v4669 = vmul.f32 %v4667, %v4668
        %v4670 = vsub.f32 1.0, %v4669
        %v4671 = vmul.f32 %v4668, %v4670
        %v4672 = vadd.f32 %v4668, %v4671
        %vm4673 = vweird.f32 %v4667
        %vm4674 = vweird.f32 %v4668
        %vm4675 = vmor %vm4673, %vm4674
        %v4676 = vsel %vm4675, %v4668, %v4672
        %v4677 = vand.u32 2147483647, %v4667
        %vm4678 = vcmp.eq.f32.partialorder %v4677, 8.507059e+37
        %v4679 = vand.u32 %v4667, 2147483648
        %v4680 = vor.u32 1.1754944e-38, %v4679
        %v4681 = vsel %vm4678, %v4680, %v4676
        %v4682 = vmul.f32 %v4657, %v4681
        %v4683 = vmin.f32 %v4682, 1.0
        %v4684 = vmax.f32 %v4683, -1.0
        %v4685 = vmul.f32 %v4195, %v4195
        %v4686 = vmin.f32 16.0, %v4685
        %v4687 = vmul.f32 %v4686, 2.1237322e-06
        %v4688 = vadd.f32 %v4687, 0.00028619796
        %v4689 = vmul.f32 %v4686, %v4688
        %v4690 = vadd.f32 %v4689, 0.0036580483
        %v4691 = vmul.f32 %v4686, %v4690
        %v4692 = vadd.f32 %v4691, 0.05243302
        %v4693 = vmul.f32 %v4686, %v4692
        %v4694 = vadd.f32 %v4693, 0.18741608
        %v4695 = vmul.f32 %v4686, %v4694
        %v4696 = vadd.f32 %v4695, 1.1283791
        %v4697 = vmul.f32 %v4195, %v4696
        %v4698 = vmul.f32 %v4686, 3.8918573e-05
        %v4699 = vadd.f32 %v4698, 0.001143296
        %v4700 = vmul.f32 %v4686, %v4699
        %v4701 = vadd.f32 %v4700, 0.014752088
        %v4702 = vmul.f32 %v4686, %v4701
        %v4703 = vadd.f32 %v4702, 0.112945676
        %v4704 = vmul.f32 %v4686, %v4703
        %v4705 = vadd.f32 %v4704, 0.4994258
        %v4706 = vmul.f32 %v4686, %v4705
        %v4707 = vadd.f32 %v4706, 1.0
        %v4708 = vrcp.pop %v4707
        %v4709 = vmul.f32 %v4707, %v4708
        %v4710 = vsub.f32 1.0, %v4709
        %v4711 = vmul.f32 %v4708, %v4710
        %v4712 = vadd.f32 %v4708, %v4711
        %vm4713 = vweird.f32 %v4707
        %vm4714 = vweird.f32 %v4708
        %vm4715 = vmor %vm4713, %vm4714
        %v4716 = vsel %vm4715, %v4708, %v4712
        %v4717 = vand.u32 2147483647, %v4707
        %vm4718 = vcmp.eq.f32.partialorder %v4717, 8.507059e+37
        %v4719 = vand.u32 %v4707, 2147483648
        %v4720 = vor.u32 1.1754944e-38, %v4719
        %v4721 = vsel %vm4718, %v4720, %v4716
        %v4722 = vmul.f32 %v4697, %v4721
        %v4723 = vmin.f32 %v4722, 1.0
        %v4724 = vmax.f32 %v4723, -1.0
        %v4725 = vmul.f32 %v4196, %v4196
        %v4726 = vmin.f32 16.0, %v4725
        %v4727 = vmul.f32 %v4726, 2.1237322e-06
        %v4728 = vadd.f32 %v4727, 0.00028619796
        %v4729 = vmul.f32 %v4726, %v4728
        %v4730 = vadd.f32 %v4729, 0.0036580483
        %v4731 = vmul.f32 %v4726, %v4730
        %v4732 = vadd.f32 %v4731, 0.05243302
        %v4733 = vmul.f32 %v4726, %v4732
        %v4734 = vadd.f32 %v4733, 0.18741608
        %v4735 = vmul.f32 %v4726, %v4734
        %v4736 = vadd.f32 %v4735, 1.1283791
        %v4737 = vmul.f32 %v4196, %v4736
        %v4738 = vmul.f32 %v4726, 3.8918573e-05
        %v4739 = vadd.f32 %v4738, 0.001143296
        %v4740 = vmul.f32 %v4726, %v4739
        %v4741 = vadd.f32 %v4740, 0.014752088
        %v4742 = vmul.f32 %v4726, %v4741
        %v4743 = vadd.f32 %v4742, 0.112945676
        %v4744 = vmul.f32 %v4726, %v4743
        %v4745 = vadd.f32 %v4744, 0.4994258
        %v4746 = vmul.f32 %v4726, %v4745
        %v4747 = vadd.f32 %v4746, 1.0
        %v4748 = vrcp.pop %v4747
        %v4749 = vmul.f32 %v4747, %v4748
        %v4750 = vsub.f32 1.0, %v4749
        %v4751 = vmul.f32 %v4748, %v4750
        %v4752 = vadd.f32 %v4748, %v4751
        %vm4753 = vweird.f32 %v4747
        %vm4754 = vweird.f32 %v4748
        %vm4755 = vmor %vm4753, %vm4754
        %v4756 = vsel %vm4755, %v4748, %v4752
        %v4757 = vand.u32 2147483647, %v4747
        %vm4758 = vcmp.eq.f32.partialorder %v4757, 8.507059e+37
        %v4759 = vand.u32 %v4747, 2147483648
        %v4760 = vor.u32 1.1754944e-38, %v4759
        %v4761 = vsel %vm4758, %v4760, %v4756
        %v4762 = vmul.f32 %v4737, %v4761
        %v4763 = vmin.f32 %v4762, 1.0
        %v4764 = vmax.f32 %v4763, -1.0
        %v4765 = vmul.f32 %v4197, %v4197
        %v4766 = vmin.f32 16.0, %v4765
        %v4767 = vmul.f32 %v4766, 2.1237322e-06
        %v4768 = vadd.f32 %v4767, 0.00028619796
        %v4769 = vmul.f32 %v4766, %v4768
        %v4770 = vadd.f32 %v4769, 0.0036580483
        %v4771 = vmul.f32 %v4766, %v4770
        %v4772 = vadd.f32 %v4771, 0.05243302
        %v4773 = vmul.f32 %v4766, %v4772
        %v4774 = vadd.f32 %v4773, 0.18741608
        %v4775 = vmul.f32 %v4766, %v4774
        %v4776 = vadd.f32 %v4775, 1.1283791
        %v4777 = vmul.f32 %v4197, %v4776
        %v4778 = vmul.f32 %v4766, 3.8918573e-05
        %v4779 = vadd.f32 %v4778, 0.001143296
        %v4780 = vmul.f32 %v4766, %v4779
        %v4781 = vadd.f32 %v4780, 0.014752088
        %v4782 = vmul.f32 %v4766, %v4781
        %v4783 = vadd.f32 %v4782, 0.112945676
        %v4784 = vmul.f32 %v4766, %v4783
        %v4785 = vadd.f32 %v4784, 0.4994258
        %v4786 = vmul.f32 %v4766, %v4785
        %v4787 = vadd.f32 %v4786, 1.0
        %v4788 = vrcp.pop %v4787
        %v4789 = vmul.f32 %v4787, %v4788
        %v4790 = vsub.f32 1.0, %v4789
        %v4791 = vmul.f32 %v4788, %v4790
        %v4792 = vadd.f32 %v4788, %v4791
        %vm4793 = vweird.f32 %v4787
        %vm4794 = vweird.f32 %v4788
        %vm4795 = vmor %vm4793, %vm4794
        %v4796 = vsel %vm4795, %v4788, %v4792
        %v4797 = vand.u32 2147483647, %v4787
        %vm4798 = vcmp.eq.f32.partialorder %v4797, 8.507059e+37
        %v4799 = vand.u32 %v4787, 2147483648
        %v4800 = vor.u32 1.1754944e-38, %v4799
        %v4801 = vsel %vm4798, %v4800, %v4796
        %v4802 = vmul.f32 %v4777, %v4801
        %v4803 = vmin.f32 %v4802, 1.0
        %v4804 = vmax.f32 %v4803, -1.0
        %v4805 = vmul.f32 %v4198, %v4198
        %v4806 = vmin.f32 16.0, %v4805
        %v4807 = vmul.f32 %v4806, 2.1237322e-06
        %v4808 = vadd.f32 %v4807, 0.00028619796
        %v4809 = vmul.f32 %v4806, %v4808
        %v4810 = vadd.f32 %v4809, 0.0036580483
        %v4811 = vmul.f32 %v4806, %v4810
        %v4812 = vadd.f32 %v4811, 0.05243302
        %v4813 = vmul.f32 %v4806, %v4812
        %v4814 = vadd.f32 %v4813, 0.18741608
        %v4815 = vmul.f32 %v4806, %v4814
        %v4816 = vadd.f32 %v4815, 1.1283791
        %v4817 = vmul.f32 %v4198, %v4816
        %v4818 = vmul.f32 %v4806, 3.8918573e-05
        %v4819 = vadd.f32 %v4818, 0.001143296
        %v4820 = vmul.f32 %v4806, %v4819
        %v4821 = vadd.f32 %v4820, 0.014752088
        %v4822 = vmul.f32 %v4806, %v4821
        %v4823 = vadd.f32 %v4822, 0.112945676
        %v4824 = vmul.f32 %v4806, %v4823
        %v4825 = vadd.f32 %v4824, 0.4994258
        %v4826 = vmul.f32 %v4806, %v4825
        %v4827 = vadd.f32 %v4826, 1.0
        %v4828 = vrcp.pop %v4827
        %v4829 = vmul.f32 %v4827, %v4828
        %v4830 = vsub.f32 1.0, %v4829
        %v4831 = vmul.f32 %v4828, %v4830
        %v4832 = vadd.f32 %v4828, %v4831
        %vm4833 = vweird.f32 %v4827
        %vm4834 = vweird.f32 %v4828
        %vm4835 = vmor %vm4833, %vm4834
        %v4836 = vsel %vm4835, %v4828, %v4832
        %v4837 = vand.u32 2147483647, %v4827
        %vm4838 = vcmp.eq.f32.partialorder %v4837, 8.507059e+37
        %v4839 = vand.u32 %v4827, 2147483648
        %v4840 = vor.u32 1.1754944e-38, %v4839
        %v4841 = vsel %vm4838, %v4840, %v4836
        %v4842 = vmul.f32 %v4817, %v4841
        %v4843 = vmin.f32 %v4842, 1.0
        %v4844 = vmax.f32 %v4843, -1.0
        %v4845 = vmul.f32 %v4199, %v4199
        %v4846 = vmin.f32 16.0, %v4845
        %v4847 = vmul.f32 %v4846, 2.1237322e-06
        %v4848 = vadd.f32 %v4847, 0.00028619796
        %v4849 = vmul.f32 %v4846, %v4848
        %v4850 = vadd.f32 %v4849, 0.0036580483
        %v4851 = vmul.f32 %v4846, %v4850
        %v4852 = vadd.f32 %v4851, 0.05243302
        %v4853 = vmul.f32 %v4846, %v4852
        %v4854 = vadd.f32 %v4853, 0.18741608
        %v4855 = vmul.f32 %v4846, %v4854
        %v4856 = vadd.f32 %v4855, 1.1283791
        %v4857 = vmul.f32 %v4199, %v4856
        %v4858 = vmul.f32 %v4846, 3.8918573e-05
        %v4859 = vadd.f32 %v4858, 0.001143296
        %v4860 = vmul.f32 %v4846, %v4859
        %v4861 = vadd.f32 %v4860, 0.014752088
        %v4862 = vmul.f32 %v4846, %v4861
        %v4863 = vadd.f32 %v4862, 0.112945676
        %v4864 = vmul.f32 %v4846, %v4863
        %v4865 = vadd.f32 %v4864, 0.4994258
        %v4866 = vmul.f32 %v4846, %v4865
        %v4867 = vadd.f32 %v4866, 1.0
        %v4868 = vrcp.pop %v4867
        %v4869 = vmul.f32 %v4867, %v4868
        %v4870 = vsub.f32 1.0, %v4869
        %v4871 = vmul.f32 %v4868, %v4870
        %v4872 = vadd.f32 %v4868, %v4871
        %vm4873 = vweird.f32 %v4867
        %vm4874 = vweird.f32 %v4868
        %vm4875 = vmor %vm4873, %vm4874
        %v4876 = vsel %vm4875, %v4868, %v4872
        %v4877 = vand.u32 2147483647, %v4867
        %vm4878 = vcmp.eq.f32.partialorder %v4877, 8.507059e+37
        %v4879 = vand.u32 %v4867, 2147483648
        %v4880 = vor.u32 1.1754944e-38, %v4879
        %v4881 = vsel %vm4878, %v4880, %v4876
        %v4882 = vmul.f32 %v4857, %v4881
        %v4883 = vmin.f32 %v4882, 1.0
        %v4884 = vmax.f32 %v4883, -1.0
        %v4885 = vmul.f32 %v4200, %v4200
        %v4886 = vmin.f32 16.0, %v4885
        %v4887 = vmul.f32 %v4886, 2.1237322e-06
        %v4888 = vadd.f32 %v4887, 0.00028619796
        %v4889 = vmul.f32 %v4886, %v4888
        %v4890 = vadd.f32 %v4889, 0.0036580483
        %v4891 = vmul.f32 %v4886, %v4890
        %v4892 = vadd.f32 %v4891, 0.05243302
        %v4893 = vmul.f32 %v4886, %v4892
        %v4894 = vadd.f32 %v4893, 0.18741608
        %v4895 = vmul.f32 %v4886, %v4894
        %v4896 = vadd.f32 %v4895, 1.1283791
        %v4897 = vmul.f32 %v4200, %v4896
        %v4898 = vmul.f32 %v4886, 3.8918573e-05
        %v4899 = vadd.f32 %v4898, 0.001143296
        %v4900 = vmul.f32 %v4886, %v4899
        %v4901 = vadd.f32 %v4900, 0.014752088
        %v4902 = vmul.f32 %v4886, %v4901
        %v4903 = vadd.f32 %v4902, 0.112945676
        %v4904 = vmul.f32 %v4886, %v4903
        %v4905 = vadd.f32 %v4904, 0.4994258
        %v4906 = vmul.f32 %v4886, %v4905
        %v4907 = vadd.f32 %v4906, 1.0
        %v4908 = vrcp.pop %v4907
        %v4909 = vmul.f32 %v4907, %v4908
        %v4910 = vsub.f32 1.0, %v4909
        %v4911 = vmul.f32 %v4908, %v4910
        %v4912 = vadd.f32 %v4908, %v4911
        %vm4913 = vweird.f32 %v4907
        %vm4914 = vweird.f32 %v4908
        %vm4915 = vmor %vm4913, %vm4914
        %v4916 = vsel %vm4915, %v4908, %v4912
        %v4917 = vand.u32 2147483647, %v4907
        %vm4918 = vcmp.eq.f32.partialorder %v4917, 8.507059e+37
        %v4919 = vand.u32 %v4907, 2147483648
        %v4920 = vor.u32 1.1754944e-38, %v4919
        %v4921 = vsel %vm4918, %v4920, %v4916
        %v4922 = vmul.f32 %v4897, %v4921
        %v4923 = vmin.f32 %v4922, 1.0
        %v4924 = vmax.f32 %v4923, -1.0
        %v4925 = vmul.f32 %v4201, %v4201
        %v4926 = vmin.f32 16.0, %v4925
        %v4927 = vmul.f32 %v4926, 2.1237322e-06
        %v4928 = vadd.f32 %v4927, 0.00028619796
        %v4929 = vmul.f32 %v4926, %v4928
        %v4930 = vadd.f32 %v4929, 0.0036580483
        %v4931 = vmul.f32 %v4926, %v4930
        %v4932 = vadd.f32 %v4931, 0.05243302
        %v4933 = vmul.f32 %v4926, %v4932
        %v4934 = vadd.f32 %v4933, 0.18741608
        %v4935 = vmul.f32 %v4926, %v4934
        %v4936 = vadd.f32 %v4935, 1.1283791
        %v4937 = vmul.f32 %v4201, %v4936
        %v4938 = vmul.f32 %v4926, 3.8918573e-05
        %v4939 = vadd.f32 %v4938, 0.001143296
        %v4940 = vmul.f32 %v4926, %v4939
        %v4941 = vadd.f32 %v4940, 0.014752088
        %v4942 = vmul.f32 %v4926, %v4941
        %v4943 = vadd.f32 %v4942, 0.112945676
        %v4944 = vmul.f32 %v4926, %v4943
        %v4945 = vadd.f32 %v4944, 0.4994258
        %v4946 = vmul.f32 %v4926, %v4945
        %v4947 = vadd.f32 %v4946, 1.0
        %v4948 = vrcp.pop %v4947
        %v4949 = vmul.f32 %v4947, %v4948
        %v4950 = vsub.f32 1.0, %v4949
        %v4951 = vmul.f32 %v4948, %v4950
        %v4952 = vadd.f32 %v4948, %v4951
        %vm4953 = vweird.f32 %v4947
        %vm4954 = vweird.f32 %v4948
        %vm4955 = vmor %vm4953, %vm4954
        %v4956 = vsel %vm4955, %v4948, %v4952
        %v4957 = vand.u32 2147483647, %v4947
        %vm4958 = vcmp.eq.f32.partialorder %v4957, 8.507059e+37
        %v4959 = vand.u32 %v4947, 2147483648
        %v4960 = vor.u32 1.1754944e-38, %v4959
        %v4961 = vsel %vm4958, %v4960, %v4956
        %v4962 = vmul.f32 %v4937, %v4961
        %v4963 = vmin.f32 %v4962, 1.0
        %v4964 = vmax.f32 %v4963, -1.0
        %v4965 = vmul.f32 %v4202, %v4202
        %v4966 = vmin.f32 16.0, %v4965
        %v4967 = vmul.f32 %v4966, 2.1237322e-06
        %v4968 = vadd.f32 %v4967, 0.00028619796
        %v4969 = vmul.f32 %v4966, %v4968
        %v4970 = vadd.f32 %v4969, 0.0036580483
        %v4971 = vmul.f32 %v4966, %v4970
        %v4972 = vadd.f32 %v4971, 0.05243302
        %v4973 = vmul.f32 %v4966, %v4972
        %v4974 = vadd.f32 %v4973, 0.18741608
        %v4975 = vmul.f32 %v4966, %v4974
        %v4976 = vadd.f32 %v4975, 1.1283791
        %v4977 = vmul.f32 %v4202, %v4976
        %v4978 = vmul.f32 %v4966, 3.8918573e-05
        %v4979 = vadd.f32 %v4978, 0.001143296
        %v4980 = vmul.f32 %v4966, %v4979
        %v4981 = vadd.f32 %v4980, 0.014752088
        %v4982 = vmul.f32 %v4966, %v4981
        %v4983 = vadd.f32 %v4982, 0.112945676
        %v4984 = vmul.f32 %v4966, %v4983
        %v4985 = vadd.f32 %v4984, 0.4994258
        %v4986 = vmul.f32 %v4966, %v4985
        %v4987 = vadd.f32 %v4986, 1.0
        %v4988 = vrcp.pop %v4987
        %v4989 = vmul.f32 %v4987, %v4988
        %v4990 = vsub.f32 1.0, %v4989
        %v4991 = vmul.f32 %v4988, %v4990
        %v4992 = vadd.f32 %v4988, %v4991
        %vm4993 = vweird.f32 %v4987
        %vm4994 = vweird.f32 %v4988
        %vm4995 = vmor %vm4993, %vm4994
        %v4996 = vsel %vm4995, %v4988, %v4992
        %v4997 = vand.u32 2147483647, %v4987
        %vm4998 = vcmp.eq.f32.partialorder %v4997, 8.507059e+37
        %v4999 = vand.u32 %v4987, 2147483648
        %v5000 = vor.u32 1.1754944e-38, %v4999
        %v5001 = vsel %vm4998, %v5000, %v4996
        %v5002 = vmul.f32 %v4977, %v5001
        %v5003 = vmin.f32 %v5002, 1.0
        %v5004 = vmax.f32 %v5003, -1.0
        %v5005 = vmul.f32 %v4203, %v4203
        %v5006 = vmin.f32 16.0, %v5005
        %v5007 = vmul.f32 %v5006, 2.1237322e-06
        %v5008 = vadd.f32 %v5007, 0.00028619796
        %v5009 = vmul.f32 %v5006, %v5008
        %v5010 = vadd.f32 %v5009, 0.0036580483
        %v5011 = vmul.f32 %v5006, %v5010
        %v5012 = vadd.f32 %v5011, 0.05243302
        %v5013 = vmul.f32 %v5006, %v5012
        %v5014 = vadd.f32 %v5013, 0.18741608
        %v5015 = vmul.f32 %v5006, %v5014
        %v5016 = vadd.f32 %v5015, 1.1283791
        %v5017 = vmul.f32 %v4203, %v5016
        %v5018 = vmul.f32 %v5006, 3.8918573e-05
        %v5019 = vadd.f32 %v5018, 0.001143296
        %v5020 = vmul.f32 %v5006, %v5019
        %v5021 = vadd.f32 %v5020, 0.014752088
        %v5022 = vmul.f32 %v5006, %v5021
        %v5023 = vadd.f32 %v5022, 0.112945676
        %v5024 = vmul.f32 %v5006, %v5023
        %v5025 = vadd.f32 %v5024, 0.4994258
        %v5026 = vmul.f32 %v5006, %v5025
        %v5027 = vadd.f32 %v5026, 1.0
        %v5028 = vrcp.pop %v5027
        %v5029 = vmul.f32 %v5027, %v5028
        %v5030 = vsub.f32 1.0, %v5029
        %v5031 = vmul.f32 %v5028, %v5030
        %v5032 = vadd.f32 %v5028, %v5031
        %vm5033 = vweird.f32 %v5027
        %vm5034 = vweird.f32 %v5028
        %vm5035 = vmor %vm5033, %vm5034
        %v5036 = vsel %vm5035, %v5028, %v5032
        %v5037 = vand.u32 2147483647, %v5027
        %vm5038 = vcmp.eq.f32.partialorder %v5037, 8.507059e+37
        %v5039 = vand.u32 %v5027, 2147483648
        %v5040 = vor.u32 1.1754944e-38, %v5039
        %v5041 = vsel %vm5038, %v5040, %v5036
        %v5042 = vmul.f32 %v5017, %v5041
        %v5043 = vmin.f32 %v5042, 1.0
        %v5044 = vmax.f32 %v5043, -1.0
        %v5045 = vmul.f32 %v4204, %v4204
        %v5046 = vmin.f32 16.0, %v5045
        %v5047 = vmul.f32 %v5046, 2.1237322e-06
        %v5048 = vadd.f32 %v5047, 0.00028619796
        %v5049 = vmul.f32 %v5046, %v5048
        %v5050 = vadd.f32 %v5049, 0.0036580483
        %v5051 = vmul.f32 %v5046, %v5050
        %v5052 = vadd.f32 %v5051, 0.05243302
        %v5053 = vmul.f32 %v5046, %v5052
        %v5054 = vadd.f32 %v5053, 0.18741608
        %v5055 = vmul.f32 %v5046, %v5054
        %v5056 = vadd.f32 %v5055, 1.1283791
        %v5057 = vmul.f32 %v4204, %v5056
        %v5058 = vmul.f32 %v5046, 3.8918573e-05
        %v5059 = vadd.f32 %v5058, 0.001143296
        %v5060 = vmul.f32 %v5046, %v5059
        %v5061 = vadd.f32 %v5060, 0.014752088
        %v5062 = vmul.f32 %v5046, %v5061
        %v5063 = vadd.f32 %v5062, 0.112945676
        %v5064 = vmul.f32 %v5046, %v5063
        %v5065 = vadd.f32 %v5064, 0.4994258
        %v5066 = vmul.f32 %v5046, %v5065
        %v5067 = vadd.f32 %v5066, 1.0
        %v5068 = vrcp.pop %v5067
        %v5069 = vmul.f32 %v5067, %v5068
        %v5070 = vsub.f32 1.0, %v5069
        %v5071 = vmul.f32 %v5068, %v5070
        %v5072 = vadd.f32 %v5068, %v5071
        %vm5073 = vweird.f32 %v5067
        %vm5074 = vweird.f32 %v5068
        %vm5075 = vmor %vm5073, %vm5074
        %v5076 = vsel %vm5075, %v5068, %v5072
        %v5077 = vand.u32 2147483647, %v5067
        %vm5078 = vcmp.eq.f32.partialorder %v5077, 8.507059e+37
        %v5079 = vand.u32 %v5067, 2147483648
        %v5080 = vor.u32 1.1754944e-38, %v5079
        %v5081 = vsel %vm5078, %v5080, %v5076
        %v5082 = vmul.f32 %v5057, %v5081
        %v5083 = vmin.f32 %v5082, 1.0
        %v5084 = vmax.f32 %v5083, -1.0
        %v5085 = vmul.f32 %v4205, %v4205
        %v5086 = vmin.f32 16.0, %v5085
        %v5087 = vmul.f32 %v5086, 2.1237322e-06
        %v5088 = vadd.f32 %v5087, 0.00028619796
        %v5089 = vmul.f32 %v5086, %v5088
        %v5090 = vadd.f32 %v5089, 0.0036580483
        %v5091 = vmul.f32 %v5086, %v5090
        %v5092 = vadd.f32 %v5091, 0.05243302
        %v5093 = vmul.f32 %v5086, %v5092
        %v5094 = vadd.f32 %v5093, 0.18741608
        %v5095 = vmul.f32 %v5086, %v5094
        %v5096 = vadd.f32 %v5095, 1.1283791
        %v5097 = vmul.f32 %v4205, %v5096
        %v5098 = vmul.f32 %v5086, 3.8918573e-05
        %v5099 = vadd.f32 %v5098, 0.001143296
        %v5100 = vmul.f32 %v5086, %v5099
        %v5101 = vadd.f32 %v5100, 0.014752088
        %v5102 = vmul.f32 %v5086, %v5101
        %v5103 = vadd.f32 %v5102, 0.112945676
        %v5104 = vmul.f32 %v5086, %v5103
        %v5105 = vadd.f32 %v5104, 0.4994258
        %v5106 = vmul.f32 %v5086, %v5105
        %v5107 = vadd.f32 %v5106, 1.0
        %v5108 = vrcp.pop %v5107
        %v5109 = vmul.f32 %v5107, %v5108
        %v5110 = vsub.f32 1.0, %v5109
        %v5111 = vmul.f32 %v5108, %v5110
        %v5112 = vadd.f32 %v5108, %v5111
        %vm5113 = vweird.f32 %v5107
        %vm5114 = vweird.f32 %v5108
        %vm5115 = vmor %vm5113, %vm5114
        %v5116 = vsel %vm5115, %v5108, %v5112
        %v5117 = vand.u32 2147483647, %v5107
        %vm5118 = vcmp.eq.f32.partialorder %v5117, 8.507059e+37
        %v5119 = vand.u32 %v5107, 2147483648
        %v5120 = vor.u32 1.1754944e-38, %v5119
        %v5121 = vsel %vm5118, %v5120, %v5116
        %v5122 = vmul.f32 %v5097, %v5121
        %v5123 = vmin.f32 %v5122, 1.0
        %v5124 = vmax.f32 %v5123, -1.0
        %v5125 = vmul.f32 %v4206, %v4206
        %v5126 = vmin.f32 16.0, %v5125
        %v5127 = vmul.f32 %v5126, 2.1237322e-06
        %v5128 = vadd.f32 %v5127, 0.00028619796
        %v5129 = vmul.f32 %v5126, %v5128
        %v5130 = vadd.f32 %v5129, 0.0036580483
        %v5131 = vmul.f32 %v5126, %v5130
        %v5132 = vadd.f32 %v5131, 0.05243302
        %v5133 = vmul.f32 %v5126, %v5132
        %v5134 = vadd.f32 %v5133, 0.18741608
        %v5135 = vmul.f32 %v5126, %v5134
        %v5136 = vadd.f32 %v5135, 1.1283791
        %v5137 = vmul.f32 %v4206, %v5136
        %v5138 = vmul.f32 %v5126, 3.8918573e-05
        %v5139 = vadd.f32 %v5138, 0.001143296
        %v5140 = vmul.f32 %v5126, %v5139
        %v5141 = vadd.f32 %v5140, 0.014752088
        %v5142 = vmul.f32 %v5126, %v5141
        %v5143 = vadd.f32 %v5142, 0.112945676
        %v5144 = vmul.f32 %v5126, %v5143
        %v5145 = vadd.f32 %v5144, 0.4994258
        %v5146 = vmul.f32 %v5126, %v5145
        %v5147 = vadd.f32 %v5146, 1.0
        %v5148 = vrcp.pop %v5147
        %v5149 = vmul.f32 %v5147, %v5148
        %v5150 = vsub.f32 1.0, %v5149
        %v5151 = vmul.f32 %v5148, %v5150
        %v5152 = vadd.f32 %v5148, %v5151
        %vm5153 = vweird.f32 %v5147
        %vm5154 = vweird.f32 %v5148
        %vm5155 = vmor %vm5153, %vm5154
        %v5156 = vsel %vm5155, %v5148, %v5152
        %v5157 = vand.u32 2147483647, %v5147
        %vm5158 = vcmp.eq.f32.partialorder %v5157, 8.507059e+37
        %v5159 = vand.u32 %v5147, 2147483648
        %v5160 = vor.u32 1.1754944e-38, %v5159
        %v5161 = vsel %vm5158, %v5160, %v5156
        %v5162 = vmul.f32 %v5137, %v5161
        %v5163 = vmin.f32 %v5162, 1.0
        %v5164 = vmax.f32 %v5163, -1.0
        %v5165 = vmul.f32 %v4207, %v4207
        %v5166 = vmin.f32 16.0, %v5165
        %v5167 = vmul.f32 %v5166, 2.1237322e-06
        %v5168 = vadd.f32 %v5167, 0.00028619796
        %v5169 = vmul.f32 %v5166, %v5168
        %v5170 = vadd.f32 %v5169, 0.0036580483
        %v5171 = vmul.f32 %v5166, %v5170
        %v5172 = vadd.f32 %v5171, 0.05243302
        %v5173 = vmul.f32 %v5166, %v5172
        %v5174 = vadd.f32 %v5173, 0.18741608
        %v5175 = vmul.f32 %v5166, %v5174
        %v5176 = vadd.f32 %v5175, 1.1283791
        %v5177 = vmul.f32 %v4207, %v5176
        %v5178 = vmul.f32 %v5166, 3.8918573e-05
        %v5179 = vadd.f32 %v5178, 0.001143296
        %v5180 = vmul.f32 %v5166, %v5179
        %v5181 = vadd.f32 %v5180, 0.014752088
        %v5182 = vmul.f32 %v5166, %v5181
        %v5183 = vadd.f32 %v5182, 0.112945676
        %v5184 = vmul.f32 %v5166, %v5183
        %v5185 = vadd.f32 %v5184, 0.4994258
        %v5186 = vmul.f32 %v5166, %v5185
        %v5187 = vadd.f32 %v5186, 1.0
        %v5188 = vrcp.pop %v5187
        %v5189 = vmul.f32 %v5187, %v5188
        %v5190 = vsub.f32 1.0, %v5189
        %v5191 = vmul.f32 %v5188, %v5190
        %v5192 = vadd.f32 %v5188, %v5191
        %vm5193 = vweird.f32 %v5187
        %vm5194 = vweird.f32 %v5188
        %vm5195 = vmor %vm5193, %vm5194
        %v5196 = vsel %vm5195, %v5188, %v5192
        %v5197 = vand.u32 2147483647, %v5187
        %vm5198 = vcmp.eq.f32.partialorder %v5197, 8.507059e+37
        %v5199 = vand.u32 %v5187, 2147483648
        %v5200 = vor.u32 1.1754944e-38, %v5199
        %v5201 = vsel %vm5198, %v5200, %v5196
        %v5202 = vmul.f32 %v5177, %v5201
        %v5203 = vmin.f32 %v5202, 1.0
        %v5204 = vmax.f32 %v5203, -1.0
        %v5205 = vmul.f32 %v4208, %v4208
        %v5206 = vmin.f32 16.0, %v5205
        %v5207 = vmul.f32 %v5206, 2.1237322e-06
        %v5208 = vadd.f32 %v5207, 0.00028619796
        %v5209 = vmul.f32 %v5206, %v5208
        %v5210 = vadd.f32 %v5209, 0.0036580483
        %v5211 = vmul.f32 %v5206, %v5210
        %v5212 = vadd.f32 %v5211, 0.05243302
        %v5213 = vmul.f32 %v5206, %v5212
        %v5214 = vadd.f32 %v5213, 0.18741608
        %v5215 = vmul.f32 %v5206, %v5214
        %v5216 = vadd.f32 %v5215, 1.1283791
        %v5217 = vmul.f32 %v4208, %v5216
        %v5218 = vmul.f32 %v5206, 3.8918573e-05
        %v5219 = vadd.f32 %v5218, 0.001143296
        %v5220 = vmul.f32 %v5206, %v5219
        %v5221 = vadd.f32 %v5220, 0.014752088
        %v5222 = vmul.f32 %v5206, %v5221
        %v5223 = vadd.f32 %v5222, 0.112945676
        %v5224 = vmul.f32 %v5206, %v5223
        %v5225 = vadd.f32 %v5224, 0.4994258
        %v5226 = vmul.f32 %v5206, %v5225
        %v5227 = vadd.f32 %v5226, 1.0
        %v5228 = vrcp.pop %v5227
        %v5229 = vmul.f32 %v5227, %v5228
        %v5230 = vsub.f32 1.0, %v5229
        %v5231 = vmul.f32 %v5228, %v5230
        %v5232 = vadd.f32 %v5228, %v5231
        %vm5233 = vweird.f32 %v5227
        %vm5234 = vweird.f32 %v5228
        %vm5235 = vmor %vm5233, %vm5234
        %v5236 = vsel %vm5235, %v5228, %v5232
        %v5237 = vand.u32 2147483647, %v5227
        %vm5238 = vcmp.eq.f32.partialorder %v5237, 8.507059e+37
        %v5239 = vand.u32 %v5227, 2147483648
        %v5240 = vor.u32 1.1754944e-38, %v5239
        %v5241 = vsel %vm5238, %v5240, %v5236
        %v5242 = vmul.f32 %v5217, %v5241
        %v5243 = vmin.f32 %v5242, 1.0
        %v5244 = vmax.f32 %v5243, -1.0
        %v5245 = vmul.f32 %v4209, %v4209
        %v5246 = vmin.f32 16.0, %v5245
        %v5247 = vmul.f32 %v5246, 2.1237322e-06
        %v5248 = vadd.f32 %v5247, 0.00028619796
        %v5249 = vmul.f32 %v5246, %v5248
        %v5250 = vadd.f32 %v5249, 0.0036580483
        %v5251 = vmul.f32 %v5246, %v5250
        %v5252 = vadd.f32 %v5251, 0.05243302
        %v5253 = vmul.f32 %v5246, %v5252
        %v5254 = vadd.f32 %v5253, 0.18741608
        %v5255 = vmul.f32 %v5246, %v5254
        %v5256 = vadd.f32 %v5255, 1.1283791
        %v5257 = vmul.f32 %v4209, %v5256
        %v5258 = vmul.f32 %v5246, 3.8918573e-05
        %v5259 = vadd.f32 %v5258, 0.001143296
        %v5260 = vmul.f32 %v5246, %v5259
        %v5261 = vadd.f32 %v5260, 0.014752088
        %v5262 = vmul.f32 %v5246, %v5261
        %v5263 = vadd.f32 %v5262, 0.112945676
        %v5264 = vmul.f32 %v5246, %v5263
        %v5265 = vadd.f32 %v5264, 0.4994258
        %v5266 = vmul.f32 %v5246, %v5265
        %v5267 = vadd.f32 %v5266, 1.0
        %v5268 = vrcp.pop %v5267
        %v5269 = vmul.f32 %v5267, %v5268
        %v5270 = vsub.f32 1.0, %v5269
        %v5271 = vmul.f32 %v5268, %v5270
        %v5272 = vadd.f32 %v5268, %v5271
        %vm5273 = vweird.f32 %v5267
        %vm5274 = vweird.f32 %v5268
        %vm5275 = vmor %vm5273, %vm5274
        %v5276 = vsel %vm5275, %v5268, %v5272
        %v5277 = vand.u32 2147483647, %v5267
        %vm5278 = vcmp.eq.f32.partialorder %v5277, 8.507059e+37
        %v5279 = vand.u32 %v5267, 2147483648
        %v5280 = vor.u32 1.1754944e-38, %v5279
        %v5281 = vsel %vm5278, %v5280, %v5276
        %v5282 = vmul.f32 %v5257, %v5281
        %v5283 = vmin.f32 %v5282, 1.0
        %v5284 = vmax.f32 %v5283, -1.0
        %v5285 = vmul.f32 %v4210, %v4210
        %v5286 = vmin.f32 16.0, %v5285
        %v5287 = vmul.f32 %v5286, 2.1237322e-06
        %v5288 = vadd.f32 %v5287, 0.00028619796
        %v5289 = vmul.f32 %v5286, %v5288
        %v5290 = vadd.f32 %v5289, 0.0036580483
        %v5291 = vmul.f32 %v5286, %v5290
        %v5292 = vadd.f32 %v5291, 0.05243302
        %v5293 = vmul.f32 %v5286, %v5292
        %v5294 = vadd.f32 %v5293, 0.18741608
        %v5295 = vmul.f32 %v5286, %v5294
        %v5296 = vadd.f32 %v5295, 1.1283791
        %v5297 = vmul.f32 %v4210, %v5296
        %v5298 = vmul.f32 %v5286, 3.8918573e-05
        %v5299 = vadd.f32 %v5298, 0.001143296
        %v5300 = vmul.f32 %v5286, %v5299
        %v5301 = vadd.f32 %v5300, 0.014752088
        %v5302 = vmul.f32 %v5286, %v5301
        %v5303 = vadd.f32 %v5302, 0.112945676
        %v5304 = vmul.f32 %v5286, %v5303
        %v5305 = vadd.f32 %v5304, 0.4994258
        %v5306 = vmul.f32 %v5286, %v5305
        %v5307 = vadd.f32 %v5306, 1.0
        %v5308 = vrcp.pop %v5307
        %v5309 = vmul.f32 %v5307, %v5308
        %v5310 = vsub.f32 1.0, %v5309
        %v5311 = vmul.f32 %v5308, %v5310
        %v5312 = vadd.f32 %v5308, %v5311
        %vm5313 = vweird.f32 %v5307
        %vm5314 = vweird.f32 %v5308
        %vm5315 = vmor %vm5313, %vm5314
        %v5316 = vsel %vm5315, %v5308, %v5312
        %v5317 = vand.u32 2147483647, %v5307
        %vm5318 = vcmp.eq.f32.partialorder %v5317, 8.507059e+37
        %v5319 = vand.u32 %v5307, 2147483648
        %v5320 = vor.u32 1.1754944e-38, %v5319
        %v5321 = vsel %vm5318, %v5320, %v5316
        %v5322 = vmul.f32 %v5297, %v5321
        %v5323 = vmin.f32 %v5322, 1.0
        %v5324 = vmax.f32 %v5323, -1.0
        %v5325 = vmul.f32 %v4211, %v4211
        %v5326 = vmin.f32 16.0, %v5325
        %v5327 = vmul.f32 %v5326, 2.1237322e-06
        %v5328 = vadd.f32 %v5327, 0.00028619796
        %v5329 = vmul.f32 %v5326, %v5328
        %v5330 = vadd.f32 %v5329, 0.0036580483
        %v5331 = vmul.f32 %v5326, %v5330
        %v5332 = vadd.f32 %v5331, 0.05243302
        %v5333 = vmul.f32 %v5326, %v5332
        %v5334 = vadd.f32 %v5333, 0.18741608
        %v5335 = vmul.f32 %v5326, %v5334
        %v5336 = vadd.f32 %v5335, 1.1283791
        %v5337 = vmul.f32 %v4211, %v5336
        %v5338 = vmul.f32 %v5326, 3.8918573e-05
        %v5339 = vadd.f32 %v5338, 0.001143296
        %v5340 = vmul.f32 %v5326, %v5339
        %v5341 = vadd.f32 %v5340, 0.014752088
        %v5342 = vmul.f32 %v5326, %v5341
        %v5343 = vadd.f32 %v5342, 0.112945676
        %v5344 = vmul.f32 %v5326, %v5343
        %v5345 = vadd.f32 %v5344, 0.4994258
        %v5346 = vmul.f32 %v5326, %v5345
        %v5347 = vadd.f32 %v5346, 1.0
        %v5348 = vrcp.pop %v5347
        %v5349 = vmul.f32 %v5347, %v5348
        %v5350 = vsub.f32 1.0, %v5349
        %v5351 = vmul.f32 %v5348, %v5350
        %v5352 = vadd.f32 %v5348, %v5351
        %vm5353 = vweird.f32 %v5347
        %vm5354 = vweird.f32 %v5348
        %vm5355 = vmor %vm5353, %vm5354
        %v5356 = vsel %vm5355, %v5348, %v5352
        %v5357 = vand.u32 2147483647, %v5347
        %vm5358 = vcmp.eq.f32.partialorder %v5357, 8.507059e+37
        %v5359 = vand.u32 %v5347, 2147483648
        %v5360 = vor.u32 1.1754944e-38, %v5359
        %v5361 = vsel %vm5358, %v5360, %v5356
        %v5362 = vmul.f32 %v5337, %v5361
        %v5363 = vmin.f32 %v5362, 1.0
        %v5364 = vmax.f32 %v5363, -1.0
        %v5365 = vmul.f32 %v4212, %v4212
        %v5366 = vmin.f32 16.0, %v5365
        %v5367 = vmul.f32 %v5366, 2.1237322e-06
        %v5368 = vadd.f32 %v5367, 0.00028619796
        %v5369 = vmul.f32 %v5366, %v5368
        %v5370 = vadd.f32 %v5369, 0.0036580483
        %v5371 = vmul.f32 %v5366, %v5370
        %v5372 = vadd.f32 %v5371, 0.05243302
        %v5373 = vmul.f32 %v5366, %v5372
        %v5374 = vadd.f32 %v5373, 0.18741608
        %v5375 = vmul.f32 %v5366, %v5374
        %v5376 = vadd.f32 %v5375, 1.1283791
        %v5377 = vmul.f32 %v4212, %v5376
        %v5378 = vmul.f32 %v5366, 3.8918573e-05
        %v5379 = vadd.f32 %v5378, 0.001143296
        %v5380 = vmul.f32 %v5366, %v5379
        %v5381 = vadd.f32 %v5380, 0.014752088
        %v5382 = vmul.f32 %v5366, %v5381
        %v5383 = vadd.f32 %v5382, 0.112945676
        %v5384 = vmul.f32 %v5366, %v5383
        %v5385 = vadd.f32 %v5384, 0.4994258
        %v5386 = vmul.f32 %v5366, %v5385
        %v5387 = vadd.f32 %v5386, 1.0
        %v5388 = vrcp.pop %v5387
        %v5389 = vmul.f32 %v5387, %v5388
        %v5390 = vsub.f32 1.0, %v5389
        %v5391 = vmul.f32 %v5388, %v5390
        %v5392 = vadd.f32 %v5388, %v5391
        %vm5393 = vweird.f32 %v5387
        %vm5394 = vweird.f32 %v5388
        %vm5395 = vmor %vm5393, %vm5394
        %v5396 = vsel %vm5395, %v5388, %v5392
        %v5397 = vand.u32 2147483647, %v5387
        %vm5398 = vcmp.eq.f32.partialorder %v5397, 8.507059e+37
        %v5399 = vand.u32 %v5387, 2147483648
        %v5400 = vor.u32 1.1754944e-38, %v5399
        %v5401 = vsel %vm5398, %v5400, %v5396
        %v5402 = vmul.f32 %v5377, %v5401
        %v5403 = vmin.f32 %v5402, 1.0
        %v5404 = vmax.f32 %v5403, -1.0
        %v5405 = vmul.f32 %v4213, %v4213
        %v5406 = vmin.f32 16.0, %v5405
        %v5407 = vmul.f32 %v5406, 2.1237322e-06
        %v5408 = vadd.f32 %v5407, 0.00028619796
        %v5409 = vmul.f32 %v5406, %v5408
        %v5410 = vadd.f32 %v5409, 0.0036580483
        %v5411 = vmul.f32 %v5406, %v5410
        %v5412 = vadd.f32 %v5411, 0.05243302
        %v5413 = vmul.f32 %v5406, %v5412
        %v5414 = vadd.f32 %v5413, 0.18741608
        %v5415 = vmul.f32 %v5406, %v5414
        %v5416 = vadd.f32 %v5415, 1.1283791
        %v5417 = vmul.f32 %v4213, %v5416
        %v5418 = vmul.f32 %v5406, 3.8918573e-05
        %v5419 = vadd.f32 %v5418, 0.001143296
        %v5420 = vmul.f32 %v5406, %v5419
        %v5421 = vadd.f32 %v5420, 0.014752088
        %v5422 = vmul.f32 %v5406, %v5421
        %v5423 = vadd.f32 %v5422, 0.112945676
        %v5424 = vmul.f32 %v5406, %v5423
        %v5425 = vadd.f32 %v5424, 0.4994258
        %v5426 = vmul.f32 %v5406, %v5425
        %v5427 = vadd.f32 %v5426, 1.0
        %v5428 = vrcp.pop %v5427
        %v5429 = vmul.f32 %v5427, %v5428
        %v5430 = vsub.f32 1.0, %v5429
        %v5431 = vmul.f32 %v5428, %v5430
        %v5432 = vadd.f32 %v5428, %v5431
        %vm5433 = vweird.f32 %v5427
        %vm5434 = vweird.f32 %v5428
        %vm5435 = vmor %vm5433, %vm5434
        %v5436 = vsel %vm5435, %v5428, %v5432
        %v5437 = vand.u32 2147483647, %v5427
        %vm5438 = vcmp.eq.f32.partialorder %v5437, 8.507059e+37
        %v5439 = vand.u32 %v5427, 2147483648
        %v5440 = vor.u32 1.1754944e-38, %v5439
        %v5441 = vsel %vm5438, %v5440, %v5436
        %v5442 = vmul.f32 %v5417, %v5441
        %v5443 = vmin.f32 %v5442, 1.0
        %v5444 = vmax.f32 %v5443, -1.0
        %v5445 = vmul.f32 %v4214, %v4214
        %v5446 = vmin.f32 16.0, %v5445
        %v5447 = vmul.f32 %v5446, 2.1237322e-06
        %v5448 = vadd.f32 %v5447, 0.00028619796
        %v5449 = vmul.f32 %v5446, %v5448
        %v5450 = vadd.f32 %v5449, 0.0036580483
        %v5451 = vmul.f32 %v5446, %v5450
        %v5452 = vadd.f32 %v5451, 0.05243302
        %v5453 = vmul.f32 %v5446, %v5452
        %v5454 = vadd.f32 %v5453, 0.18741608
        %v5455 = vmul.f32 %v5446, %v5454
        %v5456 = vadd.f32 %v5455, 1.1283791
        %v5457 = vmul.f32 %v4214, %v5456
        %v5458 = vmul.f32 %v5446, 3.8918573e-05
        %v5459 = vadd.f32 %v5458, 0.001143296
        %v5460 = vmul.f32 %v5446, %v5459
        %v5461 = vadd.f32 %v5460, 0.014752088
        %v5462 = vmul.f32 %v5446, %v5461
        %v5463 = vadd.f32 %v5462, 0.112945676
        %v5464 = vmul.f32 %v5446, %v5463
        %v5465 = vadd.f32 %v5464, 0.4994258
        %v5466 = vmul.f32 %v5446, %v5465
        %v5467 = vadd.f32 %v5466, 1.0
        %v5468 = vrcp.pop %v5467
        %v5469 = vmul.f32 %v5467, %v5468
        %v5470 = vsub.f32 1.0, %v5469
        %v5471 = vmul.f32 %v5468, %v5470
        %v5472 = vadd.f32 %v5468, %v5471
        %vm5473 = vweird.f32 %v5467
        %vm5474 = vweird.f32 %v5468
        %vm5475 = vmor %vm5473, %vm5474
        %v5476 = vsel %vm5475, %v5468, %v5472
        %v5477 = vand.u32 2147483647, %v5467
        %vm5478 = vcmp.eq.f32.partialorder %v5477, 8.507059e+37
        %v5479 = vand.u32 %v5467, 2147483648
        %v5480 = vor.u32 1.1754944e-38, %v5479
        %v5481 = vsel %vm5478, %v5480, %v5476
        %v5482 = vmul.f32 %v5457, %v5481
        %v5483 = vmin.f32 %v5482, 1.0
        %v5484 = vmax.f32 %v5483, -1.0
        %v5485 = vmul.f32 %v4215, %v4215
        %v5486 = vmin.f32 16.0, %v5485
        %v5487 = vmul.f32 %v5486, 2.1237322e-06
        %v5488 = vadd.f32 %v5487, 0.00028619796
        %v5489 = vmul.f32 %v5486, %v5488
        %v5490 = vadd.f32 %v5489, 0.0036580483
        %v5491 = vmul.f32 %v5486, %v5490
        %v5492 = vadd.f32 %v5491, 0.05243302
        %v5493 = vmul.f32 %v5486, %v5492
        %v5494 = vadd.f32 %v5493, 0.18741608
        %v5495 = vmul.f32 %v5486, %v5494
        %v5496 = vadd.f32 %v5495, 1.1283791
        %v5497 = vmul.f32 %v4215, %v5496
        %v5498 = vmul.f32 %v5486, 3.8918573e-05
        %v5499 = vadd.f32 %v5498, 0.001143296
        %v5500 = vmul.f32 %v5486, %v5499
        %v5501 = vadd.f32 %v5500, 0.014752088
        %v5502 = vmul.f32 %v5486, %v5501
        %v5503 = vadd.f32 %v5502, 0.112945676
        %v5504 = vmul.f32 %v5486, %v5503
        %v5505 = vadd.f32 %v5504, 0.4994258
        %v5506 = vmul.f32 %v5486, %v5505
        %v5507 = vadd.f32 %v5506, 1.0
        %v5508 = vrcp.pop %v5507
        %v5509 = vmul.f32 %v5507, %v5508
        %v5510 = vsub.f32 1.0, %v5509
        %v5511 = vmul.f32 %v5508, %v5510
        %v5512 = vadd.f32 %v5508, %v5511
        %vm5513 = vweird.f32 %v5507
        %vm5514 = vweird.f32 %v5508
        %vm5515 = vmor %vm5513, %vm5514
        %v5516 = vsel %vm5515, %v5508, %v5512
        %v5517 = vand.u32 2147483647, %v5507
        %vm5518 = vcmp.eq.f32.partialorder %v5517, 8.507059e+37
        %v5519 = vand.u32 %v5507, 2147483648
        %v5520 = vor.u32 1.1754944e-38, %v5519
        %v5521 = vsel %vm5518, %v5520, %v5516
        %v5522 = vmul.f32 %v5497, %v5521
        %v5523 = vmin.f32 %v5522, 1.0
        %v5524 = vmax.f32 %v5523, -1.0
        %v5525 = vmul.f32 %v4216, %v4216
        %v5526 = vmin.f32 16.0, %v5525
        %v5527 = vmul.f32 %v5526, 2.1237322e-06
        %v5528 = vadd.f32 %v5527, 0.00028619796
        %v5529 = vmul.f32 %v5526, %v5528
        %v5530 = vadd.f32 %v5529, 0.0036580483
        %v5531 = vmul.f32 %v5526, %v5530
        %v5532 = vadd.f32 %v5531, 0.05243302
        %v5533 = vmul.f32 %v5526, %v5532
        %v5534 = vadd.f32 %v5533, 0.18741608
        %v5535 = vmul.f32 %v5526, %v5534
        %v5536 = vadd.f32 %v5535, 1.1283791
        %v5537 = vmul.f32 %v4216, %v5536
        %v5538 = vmul.f32 %v5526, 3.8918573e-05
        %v5539 = vadd.f32 %v5538, 0.001143296
        %v5540 = vmul.f32 %v5526, %v5539
        %v5541 = vadd.f32 %v5540, 0.014752088
        %v5542 = vmul.f32 %v5526, %v5541
        %v5543 = vadd.f32 %v5542, 0.112945676
        %v5544 = vmul.f32 %v5526, %v5543
        %v5545 = vadd.f32 %v5544, 0.4994258
        %v5546 = vmul.f32 %v5526, %v5545
        %v5547 = vadd.f32 %v5546, 1.0
        %v5548 = vrcp.pop %v5547
        %v5549 = vmul.f32 %v5547, %v5548
        %v5550 = vsub.f32 1.0, %v5549
        %v5551 = vmul.f32 %v5548, %v5550
        %v5552 = vadd.f32 %v5548, %v5551
        %vm5553 = vweird.f32 %v5547
        %vm5554 = vweird.f32 %v5548
        %vm5555 = vmor %vm5553, %vm5554
        %v5556 = vsel %vm5555, %v5548, %v5552
        %v5557 = vand.u32 2147483647, %v5547
        %vm5558 = vcmp.eq.f32.partialorder %v5557, 8.507059e+37
        %v5559 = vand.u32 %v5547, 2147483648
        %v5560 = vor.u32 1.1754944e-38, %v5559
        %v5561 = vsel %vm5558, %v5560, %v5556
        %v5562 = vmul.f32 %v5537, %v5561
        %v5563 = vmin.f32 %v5562, 1.0
        %v5564 = vmax.f32 %v5563, -1.0
        %v5565 = vmul.f32 %v4217, %v4217
        %v5566 = vmin.f32 16.0, %v5565
        %v5567 = vmul.f32 %v5566, 2.1237322e-06
        %v5568 = vadd.f32 %v5567, 0.00028619796
        %v5569 = vmul.f32 %v5566, %v5568
        %v5570 = vadd.f32 %v5569, 0.0036580483
        %v5571 = vmul.f32 %v5566, %v5570
        %v5572 = vadd.f32 %v5571, 0.05243302
        %v5573 = vmul.f32 %v5566, %v5572
        %v5574 = vadd.f32 %v5573, 0.18741608
        %v5575 = vmul.f32 %v5566, %v5574
        %v5576 = vadd.f32 %v5575, 1.1283791
        %v5577 = vmul.f32 %v4217, %v5576
        %v5578 = vmul.f32 %v5566, 3.8918573e-05
        %v5579 = vadd.f32 %v5578, 0.001143296
        %v5580 = vmul.f32 %v5566, %v5579
        %v5581 = vadd.f32 %v5580, 0.014752088
        %v5582 = vmul.f32 %v5566, %v5581
        %v5583 = vadd.f32 %v5582, 0.112945676
        %v5584 = vmul.f32 %v5566, %v5583
        %v5585 = vadd.f32 %v5584, 0.4994258
        %v5586 = vmul.f32 %v5566, %v5585
        %v5587 = vadd.f32 %v5586, 1.0
        %v5588 = vrcp.pop %v5587
        %v5589 = vmul.f32 %v5587, %v5588
        %v5590 = vsub.f32 1.0, %v5589
        %v5591 = vmul.f32 %v5588, %v5590
        %v5592 = vadd.f32 %v5588, %v5591
        %vm5593 = vweird.f32 %v5587
        %vm5594 = vweird.f32 %v5588
        %vm5595 = vmor %vm5593, %vm5594
        %v5596 = vsel %vm5595, %v5588, %v5592
        %v5597 = vand.u32 2147483647, %v5587
        %vm5598 = vcmp.eq.f32.partialorder %v5597, 8.507059e+37
        %v5599 = vand.u32 %v5587, 2147483648
        %v5600 = vor.u32 1.1754944e-38, %v5599
        %v5601 = vsel %vm5598, %v5600, %v5596
        %v5602 = vmul.f32 %v5577, %v5601
        %v5603 = vmin.f32 %v5602, 1.0
        %v5604 = vmax.f32 %v5603, -1.0
        %v5605 = vmul.f32 %v4218, %v4218
        %v5606 = vmin.f32 16.0, %v5605
        %v5607 = vmul.f32 %v5606, 2.1237322e-06
        %v5608 = vadd.f32 %v5607, 0.00028619796
        %v5609 = vmul.f32 %v5606, %v5608
        %v5610 = vadd.f32 %v5609, 0.0036580483
        %v5611 = vmul.f32 %v5606, %v5610
        %v5612 = vadd.f32 %v5611, 0.05243302
        %v5613 = vmul.f32 %v5606, %v5612
        %v5614 = vadd.f32 %v5613, 0.18741608
        %v5615 = vmul.f32 %v5606, %v5614
        %v5616 = vadd.f32 %v5615, 1.1283791
        %v5617 = vmul.f32 %v4218, %v5616
        %v5618 = vmul.f32 %v5606, 3.8918573e-05
        %v5619 = vadd.f32 %v5618, 0.001143296
        %v5620 = vmul.f32 %v5606, %v5619
        %v5621 = vadd.f32 %v5620, 0.014752088
        %v5622 = vmul.f32 %v5606, %v5621
        %v5623 = vadd.f32 %v5622, 0.112945676
        %v5624 = vmul.f32 %v5606, %v5623
        %v5625 = vadd.f32 %v5624, 0.4994258
        %v5626 = vmul.f32 %v5606, %v5625
        %v5627 = vadd.f32 %v5626, 1.0
        %v5628 = vrcp.pop %v5627
        %v5629 = vmul.f32 %v5627, %v5628
        %v5630 = vsub.f32 1.0, %v5629
        %v5631 = vmul.f32 %v5628, %v5630
        %v5632 = vadd.f32 %v5628, %v5631
        %vm5633 = vweird.f32 %v5627
        %vm5634 = vweird.f32 %v5628
        %vm5635 = vmor %vm5633, %vm5634
        %v5636 = vsel %vm5635, %v5628, %v5632
        %v5637 = vand.u32 2147483647, %v5627
        %vm5638 = vcmp.eq.f32.partialorder %v5637, 8.507059e+37
        %v5639 = vand.u32 %v5627, 2147483648
        %v5640 = vor.u32 1.1754944e-38, %v5639
        %v5641 = vsel %vm5638, %v5640, %v5636
        %v5642 = vmul.f32 %v5617, %v5641
        %v5643 = vmin.f32 %v5642, 1.0
        %v5644 = vmax.f32 %v5643, -1.0
        %v5645 = vmul.f32 %v4219, %v4219
        %v5646 = vmin.f32 16.0, %v5645
        %v5647 = vmul.f32 %v5646, 2.1237322e-06
        %v5648 = vadd.f32 %v5647, 0.00028619796
        %v5649 = vmul.f32 %v5646, %v5648
        %v5650 = vadd.f32 %v5649, 0.0036580483
        %v5651 = vmul.f32 %v5646, %v5650
        %v5652 = vadd.f32 %v5651, 0.05243302
        %v5653 = vmul.f32 %v5646, %v5652
        %v5654 = vadd.f32 %v5653, 0.18741608
        %v5655 = vmul.f32 %v5646, %v5654
        %v5656 = vadd.f32 %v5655, 1.1283791
        %v5657 = vmul.f32 %v4219, %v5656
        %v5658 = vmul.f32 %v5646, 3.8918573e-05
        %v5659 = vadd.f32 %v5658, 0.001143296
        %v5660 = vmul.f32 %v5646, %v5659
        %v5661 = vadd.f32 %v5660, 0.014752088
        %v5662 = vmul.f32 %v5646, %v5661
        %v5663 = vadd.f32 %v5662, 0.112945676
        %v5664 = vmul.f32 %v5646, %v5663
        %v5665 = vadd.f32 %v5664, 0.4994258
        %v5666 = vmul.f32 %v5646, %v5665
        %v5667 = vadd.f32 %v5666, 1.0
        %v5668 = vrcp.pop %v5667
        %v5669 = vmul.f32 %v5667, %v5668
        %v5670 = vsub.f32 1.0, %v5669
        %v5671 = vmul.f32 %v5668, %v5670
        %v5672 = vadd.f32 %v5668, %v5671
        %vm5673 = vweird.f32 %v5667
        %vm5674 = vweird.f32 %v5668
        %vm5675 = vmor %vm5673, %vm5674
        %v5676 = vsel %vm5675, %v5668, %v5672
        %v5677 = vand.u32 2147483647, %v5667
        %vm5678 = vcmp.eq.f32.partialorder %v5677, 8.507059e+37
        %v5679 = vand.u32 %v5667, 2147483648
        %v5680 = vor.u32 1.1754944e-38, %v5679
        %v5681 = vsel %vm5678, %v5680, %v5676
        %v5682 = vmul.f32 %v5657, %v5681
        %v5683 = vmin.f32 %v5682, 1.0
        %v5684 = vmax.f32 %v5683, -1.0
        %v5685 = vmul.f32 %v4220, %v4220
        %v5686 = vmin.f32 16.0, %v5685
        %v5687 = vmul.f32 %v5686, 2.1237322e-06
        %v5688 = vadd.f32 %v5687, 0.00028619796
        %v5689 = vmul.f32 %v5686, %v5688
        %v5690 = vadd.f32 %v5689, 0.0036580483
        %v5691 = vmul.f32 %v5686, %v5690
        %v5692 = vadd.f32 %v5691, 0.05243302
        %v5693 = vmul.f32 %v5686, %v5692
        %v5694 = vadd.f32 %v5693, 0.18741608
        %v5695 = vmul.f32 %v5686, %v5694
        %v5696 = vadd.f32 %v5695, 1.1283791
        %v5697 = vmul.f32 %v4220, %v5696
        %v5698 = vmul.f32 %v5686, 3.8918573e-05
        %v5699 = vadd.f32 %v5698, 0.001143296
        %v5700 = vmul.f32 %v5686, %v5699
        %v5701 = vadd.f32 %v5700, 0.014752088
        %v5702 = vmul.f32 %v5686, %v5701
        %v5703 = vadd.f32 %v5702, 0.112945676
        %v5704 = vmul.f32 %v5686, %v5703
        %v5705 = vadd.f32 %v5704, 0.4994258
        %v5706 = vmul.f32 %v5686, %v5705
        %v5707 = vadd.f32 %v5706, 1.0
        %v5708 = vrcp.pop %v5707
        %v5709 = vmul.f32 %v5707, %v5708
        %v5710 = vsub.f32 1.0, %v5709
        %v5711 = vmul.f32 %v5708, %v5710
        %v5712 = vadd.f32 %v5708, %v5711
        %vm5713 = vweird.f32 %v5707
        %vm5714 = vweird.f32 %v5708
        %vm5715 = vmor %vm5713, %vm5714
        %v5716 = vsel %vm5715, %v5708, %v5712
        %v5717 = vand.u32 2147483647, %v5707
        %vm5718 = vcmp.eq.f32.partialorder %v5717, 8.507059e+37
        %v5719 = vand.u32 %v5707, 2147483648
        %v5720 = vor.u32 1.1754944e-38, %v5719
        %v5721 = vsel %vm5718, %v5720, %v5716
        %v5722 = vmul.f32 %v5697, %v5721
        %v5723 = vmin.f32 %v5722, 1.0
        %v5724 = vmax.f32 %v5723, -1.0
        %v5725 = vmul.f32 %v4221, %v4221
        %v5726 = vmin.f32 16.0, %v5725
        %v5727 = vmul.f32 %v5726, 2.1237322e-06
        %v5728 = vadd.f32 %v5727, 0.00028619796
        %v5729 = vmul.f32 %v5726, %v5728
        %v5730 = vadd.f32 %v5729, 0.0036580483
        %v5731 = vmul.f32 %v5726, %v5730
        %v5732 = vadd.f32 %v5731, 0.05243302
        %v5733 = vmul.f32 %v5726, %v5732
        %v5734 = vadd.f32 %v5733, 0.18741608
        %v5735 = vmul.f32 %v5726, %v5734
        %v5736 = vadd.f32 %v5735, 1.1283791
        %v5737 = vmul.f32 %v4221, %v5736
        %v5738 = vmul.f32 %v5726, 3.8918573e-05
        %v5739 = vadd.f32 %v5738, 0.001143296
        %v5740 = vmul.f32 %v5726, %v5739
        %v5741 = vadd.f32 %v5740, 0.014752088
        %v5742 = vmul.f32 %v5726, %v5741
        %v5743 = vadd.f32 %v5742, 0.112945676
        %v5744 = vmul.f32 %v5726, %v5743
        %v5745 = vadd.f32 %v5744, 0.4994258
        %v5746 = vmul.f32 %v5726, %v5745
        %v5747 = vadd.f32 %v5746, 1.0
        %v5748 = vrcp.pop %v5747
        %v5749 = vmul.f32 %v5747, %v5748
        %v5750 = vsub.f32 1.0, %v5749
        %v5751 = vmul.f32 %v5748, %v5750
        %v5752 = vadd.f32 %v5748, %v5751
        %vm5753 = vweird.f32 %v5747
        %vm5754 = vweird.f32 %v5748
        %vm5755 = vmor %vm5753, %vm5754
        %v5756 = vsel %vm5755, %v5748, %v5752
        %v5757 = vand.u32 2147483647, %v5747
        %vm5758 = vcmp.eq.f32.partialorder %v5757, 8.507059e+37
        %v5759 = vand.u32 %v5747, 2147483648
        %v5760 = vor.u32 1.1754944e-38, %v5759
        %v5761 = vsel %vm5758, %v5760, %v5756
        %v5762 = vmul.f32 %v5737, %v5761
        %v5763 = vmin.f32 %v5762, 1.0
        %v5764 = vmax.f32 %v5763, -1.0
        %v5765 = vmul.f32 %v4222, %v4222
        %v5766 = vmin.f32 16.0, %v5765
        %v5767 = vmul.f32 %v5766, 2.1237322e-06
        %v5768 = vadd.f32 %v5767, 0.00028619796
        %v5769 = vmul.f32 %v5766, %v5768
        %v5770 = vadd.f32 %v5769, 0.0036580483
        %v5771 = vmul.f32 %v5766, %v5770
        %v5772 = vadd.f32 %v5771, 0.05243302
        %v5773 = vmul.f32 %v5766, %v5772
        %v5774 = vadd.f32 %v5773, 0.18741608
        %v5775 = vmul.f32 %v5766, %v5774
        %v5776 = vadd.f32 %v5775, 1.1283791
        %v5777 = vmul.f32 %v4222, %v5776
        %v5778 = vmul.f32 %v5766, 3.8918573e-05
        %v5779 = vadd.f32 %v5778, 0.001143296
        %v5780 = vmul.f32 %v5766, %v5779
        %v5781 = vadd.f32 %v5780, 0.014752088
        %v5782 = vmul.f32 %v5766, %v5781
        %v5783 = vadd.f32 %v5782, 0.112945676
        %v5784 = vmul.f32 %v5766, %v5783
        %v5785 = vadd.f32 %v5784, 0.4994258
        %v5786 = vmul.f32 %v5766, %v5785
        %v5787 = vadd.f32 %v5786, 1.0
        %v5788 = vrcp.pop %v5787
        %v5789 = vmul.f32 %v5787, %v5788
        %v5790 = vsub.f32 1.0, %v5789
        %v5791 = vmul.f32 %v5788, %v5790
        %v5792 = vadd.f32 %v5788, %v5791
        %vm5793 = vweird.f32 %v5787
        %vm5794 = vweird.f32 %v5788
        %vm5795 = vmor %vm5793, %vm5794
        %v5796 = vsel %vm5795, %v5788, %v5792
        %v5797 = vand.u32 2147483647, %v5787
        %vm5798 = vcmp.eq.f32.partialorder %v5797, 8.507059e+37
        %v5799 = vand.u32 %v5787, 2147483648
        %v5800 = vor.u32 1.1754944e-38, %v5799
        %v5801 = vsel %vm5798, %v5800, %v5796
        %v5802 = vmul.f32 %v5777, %v5801
        %v5803 = vmin.f32 %v5802, 1.0
        %v5804 = vmax.f32 %v5803, -1.0
        %v5805 = vmul.f32 %v4223, %v4223
        %v5806 = vmin.f32 16.0, %v5805
        %v5807 = vmul.f32 %v5806, 2.1237322e-06
        %v5808 = vadd.f32 %v5807, 0.00028619796
        %v5809 = vmul.f32 %v5806, %v5808
        %v5810 = vadd.f32 %v5809, 0.0036580483
        %v5811 = vmul.f32 %v5806, %v5810
        %v5812 = vadd.f32 %v5811, 0.05243302
        %v5813 = vmul.f32 %v5806, %v5812
        %v5814 = vadd.f32 %v5813, 0.18741608
        %v5815 = vmul.f32 %v5806, %v5814
        %v5816 = vadd.f32 %v5815, 1.1283791
        %v5817 = vmul.f32 %v4223, %v5816
        %v5818 = vmul.f32 %v5806, 3.8918573e-05
        %v5819 = vadd.f32 %v5818, 0.001143296
        %v5820 = vmul.f32 %v5806, %v5819
        %v5821 = vadd.f32 %v5820, 0.014752088
        %v5822 = vmul.f32 %v5806, %v5821
        %v5823 = vadd.f32 %v5822, 0.112945676
        %v5824 = vmul.f32 %v5806, %v5823
        %v5825 = vadd.f32 %v5824, 0.4994258
        %v5826 = vmul.f32 %v5806, %v5825
        %v5827 = vadd.f32 %v5826, 1.0
        %v5828 = vrcp.pop %v5827
        %v5829 = vmul.f32 %v5827, %v5828
        %v5830 = vsub.f32 1.0, %v5829
        %v5831 = vmul.f32 %v5828, %v5830
        %v5832 = vadd.f32 %v5828, %v5831
        %vm5833 = vweird.f32 %v5827
        %vm5834 = vweird.f32 %v5828
        %vm5835 = vmor %vm5833, %vm5834
        %v5836 = vsel %vm5835, %v5828, %v5832
        %v5837 = vand.u32 2147483647, %v5827
        %vm5838 = vcmp.eq.f32.partialorder %v5837, 8.507059e+37
        %v5839 = vand.u32 %v5827, 2147483648
        %v5840 = vor.u32 1.1754944e-38, %v5839
        %v5841 = vsel %vm5838, %v5840, %v5836
        %v5842 = vmul.f32 %v5817, %v5841
        %v5843 = vmin.f32 %v5842, 1.0
        %v5844 = vmax.f32 %v5843, -1.0
        %v5845 = vmul.f32 %v4224, %v4224
        %v5846 = vmin.f32 16.0, %v5845
        %v5847 = vmul.f32 %v5846, 2.1237322e-06
        %v5848 = vadd.f32 %v5847, 0.00028619796
        %v5849 = vmul.f32 %v5846, %v5848
        %v5850 = vadd.f32 %v5849, 0.0036580483
        %v5851 = vmul.f32 %v5846, %v5850
        %v5852 = vadd.f32 %v5851, 0.05243302
        %v5853 = vmul.f32 %v5846, %v5852
        %v5854 = vadd.f32 %v5853, 0.18741608
        %v5855 = vmul.f32 %v5846, %v5854
        %v5856 = vadd.f32 %v5855, 1.1283791
        %v5857 = vmul.f32 %v4224, %v5856
        %v5858 = vmul.f32 %v5846, 3.8918573e-05
        %v5859 = vadd.f32 %v5858, 0.001143296
        %v5860 = vmul.f32 %v5846, %v5859
        %v5861 = vadd.f32 %v5860, 0.014752088
        %v5862 = vmul.f32 %v5846, %v5861
        %v5863 = vadd.f32 %v5862, 0.112945676
        %v5864 = vmul.f32 %v5846, %v5863
        %v5865 = vadd.f32 %v5864, 0.4994258
        %v5866 = vmul.f32 %v5846, %v5865
        %v5867 = vadd.f32 %v5866, 1.0
        %v5868 = vrcp.pop %v5867
        %v5869 = vmul.f32 %v5867, %v5868
        %v5870 = vsub.f32 1.0, %v5869
        %v5871 = vmul.f32 %v5868, %v5870
        %v5872 = vadd.f32 %v5868, %v5871
        %vm5873 = vweird.f32 %v5867
        %vm5874 = vweird.f32 %v5868
        %vm5875 = vmor %vm5873, %vm5874
        %v5876 = vsel %vm5875, %v5868, %v5872
        %v5877 = vand.u32 2147483647, %v5867
        %vm5878 = vcmp.eq.f32.partialorder %v5877, 8.507059e+37
        %v5879 = vand.u32 %v5867, 2147483648
        %v5880 = vor.u32 1.1754944e-38, %v5879
        %v5881 = vsel %vm5878, %v5880, %v5876
        %v5882 = vmul.f32 %v5857, %v5881
        %v5883 = vmin.f32 %v5882, 1.0
        %v5884 = vmax.f32 %v5883, -1.0
        %v5885 = vmul.f32 %v4225, %v4225
        %v5886 = vmin.f32 16.0, %v5885
        %v5887 = vmul.f32 %v5886, 2.1237322e-06
        %v5888 = vadd.f32 %v5887, 0.00028619796
        %v5889 = vmul.f32 %v5886, %v5888
        %v5890 = vadd.f32 %v5889, 0.0036580483
        %v5891 = vmul.f32 %v5886, %v5890
        %v5892 = vadd.f32 %v5891, 0.05243302
        %v5893 = vmul.f32 %v5886, %v5892
        %v5894 = vadd.f32 %v5893, 0.18741608
        %v5895 = vmul.f32 %v5886, %v5894
        %v5896 = vadd.f32 %v5895, 1.1283791
        %v5897 = vmul.f32 %v4225, %v5896
        %v5898 = vmul.f32 %v5886, 3.8918573e-05
        %v5899 = vadd.f32 %v5898, 0.001143296
        %v5900 = vmul.f32 %v5886, %v5899
        %v5901 = vadd.f32 %v5900, 0.014752088
        %v5902 = vmul.f32 %v5886, %v5901
        %v5903 = vadd.f32 %v5902, 0.112945676
        %v5904 = vmul.f32 %v5886, %v5903
        %v5905 = vadd.f32 %v5904, 0.4994258
        %v5906 = vmul.f32 %v5886, %v5905
        %v5907 = vadd.f32 %v5906, 1.0
        %v5908 = vrcp.pop %v5907
        %v5909 = vmul.f32 %v5907, %v5908
        %v5910 = vsub.f32 1.0, %v5909
        %v5911 = vmul.f32 %v5908, %v5910
        %v5912 = vadd.f32 %v5908, %v5911
        %vm5913 = vweird.f32 %v5907
        %vm5914 = vweird.f32 %v5908
        %vm5915 = vmor %vm5913, %vm5914
        %v5916 = vsel %vm5915, %v5908, %v5912
        %v5917 = vand.u32 2147483647, %v5907
        %vm5918 = vcmp.eq.f32.partialorder %v5917, 8.507059e+37
        %v5919 = vand.u32 %v5907, 2147483648
        %v5920 = vor.u32 1.1754944e-38, %v5919
        %v5921 = vsel %vm5918, %v5920, %v5916
        %v5922 = vmul.f32 %v5897, %v5921
        %v5923 = vmin.f32 %v5922, 1.0
        %v5924 = vmax.f32 %v5923, -1.0
        %v5925 = vmul.f32 %v4226, %v4226
        %v5926 = vmin.f32 16.0, %v5925
        %v5927 = vmul.f32 %v5926, 2.1237322e-06
        %v5928 = vadd.f32 %v5927, 0.00028619796
        %v5929 = vmul.f32 %v5926, %v5928
        %v5930 = vadd.f32 %v5929, 0.0036580483
        %v5931 = vmul.f32 %v5926, %v5930
        %v5932 = vadd.f32 %v5931, 0.05243302
        %v5933 = vmul.f32 %v5926, %v5932
        %v5934 = vadd.f32 %v5933, 0.18741608
        %v5935 = vmul.f32 %v5926, %v5934
        %v5936 = vadd.f32 %v5935, 1.1283791
        %v5937 = vmul.f32 %v4226, %v5936
        %v5938 = vmul.f32 %v5926, 3.8918573e-05
        %v5939 = vadd.f32 %v5938, 0.001143296
        %v5940 = vmul.f32 %v5926, %v5939
        %v5941 = vadd.f32 %v5940, 0.014752088
        %v5942 = vmul.f32 %v5926, %v5941
        %v5943 = vadd.f32 %v5942, 0.112945676
        %v5944 = vmul.f32 %v5926, %v5943
        %v5945 = vadd.f32 %v5944, 0.4994258
        %v5946 = vmul.f32 %v5926, %v5945
        %v5947 = vadd.f32 %v5946, 1.0
        %v5948 = vrcp.pop %v5947
        %v5949 = vmul.f32 %v5947, %v5948
        %v5950 = vsub.f32 1.0, %v5949
        %v5951 = vmul.f32 %v5948, %v5950
        %v5952 = vadd.f32 %v5948, %v5951
        %vm5953 = vweird.f32 %v5947
        %vm5954 = vweird.f32 %v5948
        %vm5955 = vmor %vm5953, %vm5954
        %v5956 = vsel %vm5955, %v5948, %v5952
        %v5957 = vand.u32 2147483647, %v5947
        %vm5958 = vcmp.eq.f32.partialorder %v5957, 8.507059e+37
        %v5959 = vand.u32 %v5947, 2147483648
        %v5960 = vor.u32 1.1754944e-38, %v5959
        %v5961 = vsel %vm5958, %v5960, %v5956
        %v5962 = vmul.f32 %v5937, %v5961
        %v5963 = vmin.f32 %v5962, 1.0
        %v5964 = vmax.f32 %v5963, -1.0
        %v5965 = vmul.f32 %v4227, %v4227
        %v5966 = vmin.f32 16.0, %v5965
        %v5967 = vmul.f32 %v5966, 2.1237322e-06
        %v5968 = vadd.f32 %v5967, 0.00028619796
        %v5969 = vmul.f32 %v5966, %v5968
        %v5970 = vadd.f32 %v5969, 0.0036580483
        %v5971 = vmul.f32 %v5966, %v5970
        %v5972 = vadd.f32 %v5971, 0.05243302
        %v5973 = vmul.f32 %v5966, %v5972
        %v5974 = vadd.f32 %v5973, 0.18741608
        %v5975 = vmul.f32 %v5966, %v5974
        %v5976 = vadd.f32 %v5975, 1.1283791
        %v5977 = vmul.f32 %v4227, %v5976
        %v5978 = vmul.f32 %v5966, 3.8918573e-05
        %v5979 = vadd.f32 %v5978, 0.001143296
        %v5980 = vmul.f32 %v5966, %v5979
        %v5981 = vadd.f32 %v5980, 0.014752088
        %v5982 = vmul.f32 %v5966, %v5981
        %v5983 = vadd.f32 %v5982, 0.112945676
        %v5984 = vmul.f32 %v5966, %v5983
        %v5985 = vadd.f32 %v5984, 0.4994258
        %v5986 = vmul.f32 %v5966, %v5985
        %v5987 = vadd.f32 %v5986, 1.0
        %v5988 = vrcp.pop %v5987
        %v5989 = vmul.f32 %v5987, %v5988
        %v5990 = vsub.f32 1.0, %v5989
        %v5991 = vmul.f32 %v5988, %v5990
        %v5992 = vadd.f32 %v5988, %v5991
        %vm5993 = vweird.f32 %v5987
        %vm5994 = vweird.f32 %v5988
        %vm5995 = vmor %vm5993, %vm5994
        %v5996 = vsel %vm5995, %v5988, %v5992
        %v5997 = vand.u32 2147483647, %v5987
        %vm5998 = vcmp.eq.f32.partialorder %v5997, 8.507059e+37
        %v5999 = vand.u32 %v5987, 2147483648
        %v6000 = vor.u32 1.1754944e-38, %v5999
        %v6001 = vsel %vm5998, %v6000, %v5996
        %v6002 = vmul.f32 %v5977, %v6001
        %v6003 = vmin.f32 %v6002, 1.0
        %v6004 = vmax.f32 %v6003, -1.0
        %v6005 = vmul.f32 %v4228, %v4228
        %v6006 = vmin.f32 16.0, %v6005
        %v6007 = vmul.f32 %v6006, 2.1237322e-06
        %v6008 = vadd.f32 %v6007, 0.00028619796
        %v6009 = vmul.f32 %v6006, %v6008
        %v6010 = vadd.f32 %v6009, 0.0036580483
        %v6011 = vmul.f32 %v6006, %v6010
        %v6012 = vadd.f32 %v6011, 0.05243302
        %v6013 = vmul.f32 %v6006, %v6012
        %v6014 = vadd.f32 %v6013, 0.18741608
        %v6015 = vmul.f32 %v6006, %v6014
        %v6016 = vadd.f32 %v6015, 1.1283791
        %v6017 = vmul.f32 %v4228, %v6016
        %v6018 = vmul.f32 %v6006, 3.8918573e-05
        %v6019 = vadd.f32 %v6018, 0.001143296
        %v6020 = vmul.f32 %v6006, %v6019
        %v6021 = vadd.f32 %v6020, 0.014752088
        %v6022 = vmul.f32 %v6006, %v6021
        %v6023 = vadd.f32 %v6022, 0.112945676
        %v6024 = vmul.f32 %v6006, %v6023
        %v6025 = vadd.f32 %v6024, 0.4994258
        %v6026 = vmul.f32 %v6006, %v6025
        %v6027 = vadd.f32 %v6026, 1.0
        %v6028 = vrcp.pop %v6027
        %v6029 = vmul.f32 %v6027, %v6028
        %v6030 = vsub.f32 1.0, %v6029
        %v6031 = vmul.f32 %v6028, %v6030
        %v6032 = vadd.f32 %v6028, %v6031
        %vm6033 = vweird.f32 %v6027
        %vm6034 = vweird.f32 %v6028
        %vm6035 = vmor %vm6033, %vm6034
        %v6036 = vsel %vm6035, %v6028, %v6032
        %v6037 = vand.u32 2147483647, %v6027
        %vm6038 = vcmp.eq.f32.partialorder %v6037, 8.507059e+37
        %v6039 = vand.u32 %v6027, 2147483648
        %v6040 = vor.u32 1.1754944e-38, %v6039
        %v6041 = vsel %vm6038, %v6040, %v6036
        %v6042 = vmul.f32 %v6017, %v6041
        %v6043 = vmin.f32 %v6042, 1.0
        %v6044 = vmax.f32 %v6043, -1.0
        %v6045 = vmul.f32 %v4229, %v4229
        %v6046 = vmin.f32 16.0, %v6045
        %v6047 = vmul.f32 %v6046, 2.1237322e-06
        %v6048 = vadd.f32 %v6047, 0.00028619796
        %v6049 = vmul.f32 %v6046, %v6048
        %v6050 = vadd.f32 %v6049, 0.0036580483
        %v6051 = vmul.f32 %v6046, %v6050
        %v6052 = vadd.f32 %v6051, 0.05243302
        %v6053 = vmul.f32 %v6046, %v6052
        %v6054 = vadd.f32 %v6053, 0.18741608
        %v6055 = vmul.f32 %v6046, %v6054
        %v6056 = vadd.f32 %v6055, 1.1283791
        %v6057 = vmul.f32 %v4229, %v6056
        %v6058 = vmul.f32 %v6046, 3.8918573e-05
        %v6059 = vadd.f32 %v6058, 0.001143296
        %v6060 = vmul.f32 %v6046, %v6059
        %v6061 = vadd.f32 %v6060, 0.014752088
        %v6062 = vmul.f32 %v6046, %v6061
        %v6063 = vadd.f32 %v6062, 0.112945676
        %v6064 = vmul.f32 %v6046, %v6063
        %v6065 = vadd.f32 %v6064, 0.4994258
        %v6066 = vmul.f32 %v6046, %v6065
        %v6067 = vadd.f32 %v6066, 1.0
        %v6068 = vrcp.pop %v6067
        %v6069 = vmul.f32 %v6067, %v6068
        %v6070 = vsub.f32 1.0, %v6069
        %v6071 = vmul.f32 %v6068, %v6070
        %v6072 = vadd.f32 %v6068, %v6071
        %vm6073 = vweird.f32 %v6067
        %vm6074 = vweird.f32 %v6068
        %vm6075 = vmor %vm6073, %vm6074
        %v6076 = vsel %vm6075, %v6068, %v6072
        %v6077 = vand.u32 2147483647, %v6067
        %vm6078 = vcmp.eq.f32.partialorder %v6077, 8.507059e+37
        %v6079 = vand.u32 %v6067, 2147483648
        %v6080 = vor.u32 1.1754944e-38, %v6079
        %v6081 = vsel %vm6078, %v6080, %v6076
        %v6082 = vmul.f32 %v6057, %v6081
        %v6083 = vmin.f32 %v6082, 1.0
        %v6084 = vmax.f32 %v6083, -1.0
        %v6085 = vmul.f32 %v4230, %v4230
        %v6086 = vmin.f32 16.0, %v6085
        %v6087 = vmul.f32 %v6086, 2.1237322e-06
        %v6088 = vadd.f32 %v6087, 0.00028619796
        %v6089 = vmul.f32 %v6086, %v6088
        %v6090 = vadd.f32 %v6089, 0.0036580483
        %v6091 = vmul.f32 %v6086, %v6090
        %v6092 = vadd.f32 %v6091, 0.05243302
        %v6093 = vmul.f32 %v6086, %v6092
        %v6094 = vadd.f32 %v6093, 0.18741608
        %v6095 = vmul.f32 %v6086, %v6094
        %v6096 = vadd.f32 %v6095, 1.1283791
        %v6097 = vmul.f32 %v4230, %v6096
        %v6098 = vmul.f32 %v6086, 3.8918573e-05
        %v6099 = vadd.f32 %v6098, 0.001143296
        %v6100 = vmul.f32 %v6086, %v6099
        %v6101 = vadd.f32 %v6100, 0.014752088
        %v6102 = vmul.f32 %v6086, %v6101
        %v6103 = vadd.f32 %v6102, 0.112945676
        %v6104 = vmul.f32 %v6086, %v6103
        %v6105 = vadd.f32 %v6104, 0.4994258
        %v6106 = vmul.f32 %v6086, %v6105
        %v6107 = vadd.f32 %v6106, 1.0
        %v6108 = vrcp.pop %v6107
        %v6109 = vmul.f32 %v6107, %v6108
        %v6110 = vsub.f32 1.0, %v6109
        %v6111 = vmul.f32 %v6108, %v6110
        %v6112 = vadd.f32 %v6108, %v6111
        %vm6113 = vweird.f32 %v6107
        %vm6114 = vweird.f32 %v6108
        %vm6115 = vmor %vm6113, %vm6114
        %v6116 = vsel %vm6115, %v6108, %v6112
        %v6117 = vand.u32 2147483647, %v6107
        %vm6118 = vcmp.eq.f32.partialorder %v6117, 8.507059e+37
        %v6119 = vand.u32 %v6107, 2147483648
        %v6120 = vor.u32 1.1754944e-38, %v6119
        %v6121 = vsel %vm6118, %v6120, %v6116
        %v6122 = vmul.f32 %v6097, %v6121
        %v6123 = vmin.f32 %v6122, 1.0
        %v6124 = vmax.f32 %v6123, -1.0
        %v6125 = vmul.f32 %v4231, %v4231
        %v6126 = vmin.f32 16.0, %v6125
        %v6127 = vmul.f32 %v6126, 2.1237322e-06
        %v6128 = vadd.f32 %v6127, 0.00028619796
        %v6129 = vmul.f32 %v6126, %v6128
        %v6130 = vadd.f32 %v6129, 0.0036580483
        %v6131 = vmul.f32 %v6126, %v6130
        %v6132 = vadd.f32 %v6131, 0.05243302
        %v6133 = vmul.f32 %v6126, %v6132
        %v6134 = vadd.f32 %v6133, 0.18741608
        %v6135 = vmul.f32 %v6126, %v6134
        %v6136 = vadd.f32 %v6135, 1.1283791
        %v6137 = vmul.f32 %v4231, %v6136
        %v6138 = vmul.f32 %v6126, 3.8918573e-05
        %v6139 = vadd.f32 %v6138, 0.001143296
        %v6140 = vmul.f32 %v6126, %v6139
        %v6141 = vadd.f32 %v6140, 0.014752088
        %v6142 = vmul.f32 %v6126, %v6141
        %v6143 = vadd.f32 %v6142, 0.112945676
        %v6144 = vmul.f32 %v6126, %v6143
        %v6145 = vadd.f32 %v6144, 0.4994258
        %v6146 = vmul.f32 %v6126, %v6145
        %v6147 = vadd.f32 %v6146, 1.0
        %v6148 = vrcp.pop %v6147
        %v6149 = vmul.f32 %v6147, %v6148
        %v6150 = vsub.f32 1.0, %v6149
        %v6151 = vmul.f32 %v6148, %v6150
        %v6152 = vadd.f32 %v6148, %v6151
        %vm6153 = vweird.f32 %v6147
        %vm6154 = vweird.f32 %v6148
        %vm6155 = vmor %vm6153, %vm6154
        %v6156 = vsel %vm6155, %v6148, %v6152
        %v6157 = vand.u32 2147483647, %v6147
        %vm6158 = vcmp.eq.f32.partialorder %v6157, 8.507059e+37
        %v6159 = vand.u32 %v6147, 2147483648
        %v6160 = vor.u32 1.1754944e-38, %v6159
        %v6161 = vsel %vm6158, %v6160, %v6156
        %v6162 = vmul.f32 %v6137, %v6161
        %v6163 = vmin.f32 %v6162, 1.0
        %v6164 = vmax.f32 %v6163, -1.0
        %v6165 = vmul.f32 %v4232, %v4232
        %v6166 = vmin.f32 16.0, %v6165
        %v6167 = vmul.f32 %v6166, 2.1237322e-06
        %v6168 = vadd.f32 %v6167, 0.00028619796
        %v6169 = vmul.f32 %v6166, %v6168
        %v6170 = vadd.f32 %v6169, 0.0036580483
        %v6171 = vmul.f32 %v6166, %v6170
        %v6172 = vadd.f32 %v6171, 0.05243302
        %v6173 = vmul.f32 %v6166, %v6172
        %v6174 = vadd.f32 %v6173, 0.18741608
        %v6175 = vmul.f32 %v6166, %v6174
        %v6176 = vadd.f32 %v6175, 1.1283791
        %v6177 = vmul.f32 %v4232, %v6176
        %v6178 = vmul.f32 %v6166, 3.8918573e-05
        %v6179 = vadd.f32 %v6178, 0.001143296
        %v6180 = vmul.f32 %v6166, %v6179
        %v6181 = vadd.f32 %v6180, 0.014752088
        %v6182 = vmul.f32 %v6166, %v6181
        %v6183 = vadd.f32 %v6182, 0.112945676
        %v6184 = vmul.f32 %v6166, %v6183
        %v6185 = vadd.f32 %v6184, 0.4994258
        %v6186 = vmul.f32 %v6166, %v6185
        %v6187 = vadd.f32 %v6186, 1.0
        %v6188 = vrcp.pop %v6187
        %v6189 = vmul.f32 %v6187, %v6188
        %v6190 = vsub.f32 1.0, %v6189
        %v6191 = vmul.f32 %v6188, %v6190
        %v6192 = vadd.f32 %v6188, %v6191
        %vm6193 = vweird.f32 %v6187
        %vm6194 = vweird.f32 %v6188
        %vm6195 = vmor %vm6193, %vm6194
        %v6196 = vsel %vm6195, %v6188, %v6192
        %v6197 = vand.u32 2147483647, %v6187
        %vm6198 = vcmp.eq.f32.partialorder %v6197, 8.507059e+37
        %v6199 = vand.u32 %v6187, 2147483648
        %v6200 = vor.u32 1.1754944e-38, %v6199
        %v6201 = vsel %vm6198, %v6200, %v6196
        %v6202 = vmul.f32 %v6177, %v6201
        %v6203 = vmin.f32 %v6202, 1.0
        %v6204 = vmax.f32 %v6203, -1.0
        %v6205 = vmul.f32 %v4233, %v4233
        %v6206 = vmin.f32 16.0, %v6205
        %v6207 = vmul.f32 %v6206, 2.1237322e-06
        %v6208 = vadd.f32 %v6207, 0.00028619796
        %v6209 = vmul.f32 %v6206, %v6208
        %v6210 = vadd.f32 %v6209, 0.0036580483
        %v6211 = vmul.f32 %v6206, %v6210
        %v6212 = vadd.f32 %v6211, 0.05243302
        %v6213 = vmul.f32 %v6206, %v6212
        %v6214 = vadd.f32 %v6213, 0.18741608
        %v6215 = vmul.f32 %v6206, %v6214
        %v6216 = vadd.f32 %v6215, 1.1283791
        %v6217 = vmul.f32 %v4233, %v6216
        %v6218 = vmul.f32 %v6206, 3.8918573e-05
        %v6219 = vadd.f32 %v6218, 0.001143296
        %v6220 = vmul.f32 %v6206, %v6219
        %v6221 = vadd.f32 %v6220, 0.014752088
        %v6222 = vmul.f32 %v6206, %v6221
        %v6223 = vadd.f32 %v6222, 0.112945676
        %v6224 = vmul.f32 %v6206, %v6223
        %v6225 = vadd.f32 %v6224, 0.4994258
        %v6226 = vmul.f32 %v6206, %v6225
        %v6227 = vadd.f32 %v6226, 1.0
        %v6228 = vrcp.pop %v6227
        %v6229 = vmul.f32 %v6227, %v6228
        %v6230 = vsub.f32 1.0, %v6229
        %v6231 = vmul.f32 %v6228, %v6230
        %v6232 = vadd.f32 %v6228, %v6231
        %vm6233 = vweird.f32 %v6227
        %vm6234 = vweird.f32 %v6228
        %vm6235 = vmor %vm6233, %vm6234
        %v6236 = vsel %vm6235, %v6228, %v6232
        %v6237 = vand.u32 2147483647, %v6227
        %vm6238 = vcmp.eq.f32.partialorder %v6237, 8.507059e+37
        %v6239 = vand.u32 %v6227, 2147483648
        %v6240 = vor.u32 1.1754944e-38, %v6239
        %v6241 = vsel %vm6238, %v6240, %v6236
        %v6242 = vmul.f32 %v6217, %v6241
        %v6243 = vmin.f32 %v6242, 1.0
        %v6244 = vmax.f32 %v6243, -1.0
        %v6245 = vmul.f32 %v4234, %v4234
        %v6246 = vmin.f32 16.0, %v6245
        %v6247 = vmul.f32 %v6246, 2.1237322e-06
        %v6248 = vadd.f32 %v6247, 0.00028619796
        %v6249 = vmul.f32 %v6246, %v6248
        %v6250 = vadd.f32 %v6249, 0.0036580483
        %v6251 = vmul.f32 %v6246, %v6250
        %v6252 = vadd.f32 %v6251, 0.05243302
        %v6253 = vmul.f32 %v6246, %v6252
        %v6254 = vadd.f32 %v6253, 0.18741608
        %v6255 = vmul.f32 %v6246, %v6254
        %v6256 = vadd.f32 %v6255, 1.1283791
        %v6257 = vmul.f32 %v4234, %v6256
        %v6258 = vmul.f32 %v6246, 3.8918573e-05
        %v6259 = vadd.f32 %v6258, 0.001143296
        %v6260 = vmul.f32 %v6246, %v6259
        %v6261 = vadd.f32 %v6260, 0.014752088
        %v6262 = vmul.f32 %v6246, %v6261
        %v6263 = vadd.f32 %v6262, 0.112945676
        %v6264 = vmul.f32 %v6246, %v6263
        %v6265 = vadd.f32 %v6264, 0.4994258
        %v6266 = vmul.f32 %v6246, %v6265
        %v6267 = vadd.f32 %v6266, 1.0
        %v6268 = vrcp.pop %v6267
        %v6269 = vmul.f32 %v6267, %v6268
        %v6270 = vsub.f32 1.0, %v6269
        %v6271 = vmul.f32 %v6268, %v6270
        %v6272 = vadd.f32 %v6268, %v6271
        %vm6273 = vweird.f32 %v6267
        %vm6274 = vweird.f32 %v6268
        %vm6275 = vmor %vm6273, %vm6274
        %v6276 = vsel %vm6275, %v6268, %v6272
        %v6277 = vand.u32 2147483647, %v6267
        %vm6278 = vcmp.eq.f32.partialorder %v6277, 8.507059e+37
        %v6279 = vand.u32 %v6267, 2147483648
        %v6280 = vor.u32 1.1754944e-38, %v6279
        %v6281 = vsel %vm6278, %v6280, %v6276
        %v6282 = vmul.f32 %v6257, %v6281
        %v6283 = vmin.f32 %v6282, 1.0
        %v6284 = vmax.f32 %v6283, -1.0
        %v6285 = vmul.f32 %v4235, %v4235
        %v6286 = vmin.f32 16.0, %v6285
        %v6287 = vmul.f32 %v6286, 2.1237322e-06
        %v6288 = vadd.f32 %v6287, 0.00028619796
        %v6289 = vmul.f32 %v6286, %v6288
        %v6290 = vadd.f32 %v6289, 0.0036580483
        %v6291 = vmul.f32 %v6286, %v6290
        %v6292 = vadd.f32 %v6291, 0.05243302
        %v6293 = vmul.f32 %v6286, %v6292
        %v6294 = vadd.f32 %v6293, 0.18741608
        %v6295 = vmul.f32 %v6286, %v6294
        %v6296 = vadd.f32 %v6295, 1.1283791
        %v6297 = vmul.f32 %v4235, %v6296
        %v6298 = vmul.f32 %v6286, 3.8918573e-05
        %v6299 = vadd.f32 %v6298, 0.001143296
        %v6300 = vmul.f32 %v6286, %v6299
        %v6301 = vadd.f32 %v6300, 0.014752088
        %v6302 = vmul.f32 %v6286, %v6301
        %v6303 = vadd.f32 %v6302, 0.112945676
        %v6304 = vmul.f32 %v6286, %v6303
        %v6305 = vadd.f32 %v6304, 0.4994258
        %v6306 = vmul.f32 %v6286, %v6305
        %v6307 = vadd.f32 %v6306, 1.0
        %v6308 = vrcp.pop %v6307
        %v6309 = vmul.f32 %v6307, %v6308
        %v6310 = vsub.f32 1.0, %v6309
        %v6311 = vmul.f32 %v6308, %v6310
        %v6312 = vadd.f32 %v6308, %v6311
        %vm6313 = vweird.f32 %v6307
        %vm6314 = vweird.f32 %v6308
        %vm6315 = vmor %vm6313, %vm6314
        %v6316 = vsel %vm6315, %v6308, %v6312
        %v6317 = vand.u32 2147483647, %v6307
        %vm6318 = vcmp.eq.f32.partialorder %v6317, 8.507059e+37
        %v6319 = vand.u32 %v6307, 2147483648
        %v6320 = vor.u32 1.1754944e-38, %v6319
        %v6321 = vsel %vm6318, %v6320, %v6316
        %v6322 = vmul.f32 %v6297, %v6321
        %v6323 = vmin.f32 %v6322, 1.0
        %v6324 = vmax.f32 %v6323, -1.0
        %v6325 = vmul.f32 %v4236, %v4236
        %v6326 = vmin.f32 16.0, %v6325
        %v6327 = vmul.f32 %v6326, 2.1237322e-06
        %v6328 = vadd.f32 %v6327, 0.00028619796
        %v6329 = vmul.f32 %v6326, %v6328
        %v6330 = vadd.f32 %v6329, 0.0036580483
        %v6331 = vmul.f32 %v6326, %v6330
        %v6332 = vadd.f32 %v6331, 0.05243302
        %v6333 = vmul.f32 %v6326, %v6332
        %v6334 = vadd.f32 %v6333, 0.18741608
        %v6335 = vmul.f32 %v6326, %v6334
        %v6336 = vadd.f32 %v6335, 1.1283791
        %v6337 = vmul.f32 %v4236, %v6336
        %v6338 = vmul.f32 %v6326, 3.8918573e-05
        %v6339 = vadd.f32 %v6338, 0.001143296
        %v6340 = vmul.f32 %v6326, %v6339
        %v6341 = vadd.f32 %v6340, 0.014752088
        %v6342 = vmul.f32 %v6326, %v6341
        %v6343 = vadd.f32 %v6342, 0.112945676
        %v6344 = vmul.f32 %v6326, %v6343
        %v6345 = vadd.f32 %v6344, 0.4994258
        %v6346 = vmul.f32 %v6326, %v6345
        %v6347 = vadd.f32 %v6346, 1.0
        %v6348 = vrcp.pop %v6347
        %v6349 = vmul.f32 %v6347, %v6348
        %v6350 = vsub.f32 1.0, %v6349
        %v6351 = vmul.f32 %v6348, %v6350
        %v6352 = vadd.f32 %v6348, %v6351
        %vm6353 = vweird.f32 %v6347
        %vm6354 = vweird.f32 %v6348
        %vm6355 = vmor %vm6353, %vm6354
        %v6356 = vsel %vm6355, %v6348, %v6352
        %v6357 = vand.u32 2147483647, %v6347
        %vm6358 = vcmp.eq.f32.partialorder %v6357, 8.507059e+37
        %v6359 = vand.u32 %v6347, 2147483648
        %v6360 = vor.u32 1.1754944e-38, %v6359
        %v6361 = vsel %vm6358, %v6360, %v6356
        %v6362 = vmul.f32 %v6337, %v6361
        %v6363 = vmin.f32 %v6362, 1.0
        %v6364 = vmax.f32 %v6363, -1.0
        %v6365 = vmul.f32 %v4237, %v4237
        %v6366 = vmin.f32 16.0, %v6365
        %v6367 = vmul.f32 %v6366, 2.1237322e-06
        %v6368 = vadd.f32 %v6367, 0.00028619796
        %v6369 = vmul.f32 %v6366, %v6368
        %v6370 = vadd.f32 %v6369, 0.0036580483
        %v6371 = vmul.f32 %v6366, %v6370
        %v6372 = vadd.f32 %v6371, 0.05243302
        %v6373 = vmul.f32 %v6366, %v6372
        %v6374 = vadd.f32 %v6373, 0.18741608
        %v6375 = vmul.f32 %v6366, %v6374
        %v6376 = vadd.f32 %v6375, 1.1283791
        %v6377 = vmul.f32 %v4237, %v6376
        %v6378 = vmul.f32 %v6366, 3.8918573e-05
        %v6379 = vadd.f32 %v6378, 0.001143296
        %v6380 = vmul.f32 %v6366, %v6379
        %v6381 = vadd.f32 %v6380, 0.014752088
        %v6382 = vmul.f32 %v6366, %v6381
        %v6383 = vadd.f32 %v6382, 0.112945676
        %v6384 = vmul.f32 %v6366, %v6383
        %v6385 = vadd.f32 %v6384, 0.4994258
        %v6386 = vmul.f32 %v6366, %v6385
        %v6387 = vadd.f32 %v6386, 1.0
        %v6388 = vrcp.pop %v6387
        %v6389 = vmul.f32 %v6387, %v6388
        %v6390 = vsub.f32 1.0, %v6389
        %v6391 = vmul.f32 %v6388, %v6390
        %v6392 = vadd.f32 %v6388, %v6391
        %vm6393 = vweird.f32 %v6387
        %vm6394 = vweird.f32 %v6388
        %vm6395 = vmor %vm6393, %vm6394
        %v6396 = vsel %vm6395, %v6388, %v6392
        %v6397 = vand.u32 2147483647, %v6387
        %vm6398 = vcmp.eq.f32.partialorder %v6397, 8.507059e+37
        %v6399 = vand.u32 %v6387, 2147483648
        %v6400 = vor.u32 1.1754944e-38, %v6399
        %v6401 = vsel %vm6398, %v6400, %v6396
        %v6402 = vmul.f32 %v6377, %v6401
        %v6403 = vmin.f32 %v6402, 1.0
        %v6404 = vmax.f32 %v6403, -1.0
        %v6405 = vmul.f32 %v4238, %v4238
        %v6406 = vmin.f32 16.0, %v6405
        %v6407 = vmul.f32 %v6406, 2.1237322e-06
        %v6408 = vadd.f32 %v6407, 0.00028619796
        %v6409 = vmul.f32 %v6406, %v6408
        %v6410 = vadd.f32 %v6409, 0.0036580483
        %v6411 = vmul.f32 %v6406, %v6410
        %v6412 = vadd.f32 %v6411, 0.05243302
        %v6413 = vmul.f32 %v6406, %v6412
        %v6414 = vadd.f32 %v6413, 0.18741608
        %v6415 = vmul.f32 %v6406, %v6414
        %v6416 = vadd.f32 %v6415, 1.1283791
        %v6417 = vmul.f32 %v4238, %v6416
        %v6418 = vmul.f32 %v6406, 3.8918573e-05
        %v6419 = vadd.f32 %v6418, 0.001143296
        %v6420 = vmul.f32 %v6406, %v6419
        %v6421 = vadd.f32 %v6420, 0.014752088
        %v6422 = vmul.f32 %v6406, %v6421
        %v6423 = vadd.f32 %v6422, 0.112945676
        %v6424 = vmul.f32 %v6406, %v6423
        %v6425 = vadd.f32 %v6424, 0.4994258
        %v6426 = vmul.f32 %v6406, %v6425
        %v6427 = vadd.f32 %v6426, 1.0
        %v6428 = vrcp.pop %v6427
        %v6429 = vmul.f32 %v6427, %v6428
        %v6430 = vsub.f32 1.0, %v6429
        %v6431 = vmul.f32 %v6428, %v6430
        %v6432 = vadd.f32 %v6428, %v6431
        %vm6433 = vweird.f32 %v6427
        %vm6434 = vweird.f32 %v6428
        %vm6435 = vmor %vm6433, %vm6434
        %v6436 = vsel %vm6435, %v6428, %v6432
        %v6437 = vand.u32 2147483647, %v6427
        %vm6438 = vcmp.eq.f32.partialorder %v6437, 8.507059e+37
        %v6439 = vand.u32 %v6427, 2147483648
        %v6440 = vor.u32 1.1754944e-38, %v6439
        %v6441 = vsel %vm6438, %v6440, %v6436
        %v6442 = vmul.f32 %v6417, %v6441
        %v6443 = vmin.f32 %v6442, 1.0
        %v6444 = vmax.f32 %v6443, -1.0
        %v6445 = vmul.f32 %v4239, %v4239
        %v6446 = vmin.f32 16.0, %v6445
        %v6447 = vmul.f32 %v6446, 2.1237322e-06
        %v6448 = vadd.f32 %v6447, 0.00028619796
        %v6449 = vmul.f32 %v6446, %v6448
        %v6450 = vadd.f32 %v6449, 0.0036580483
        %v6451 = vmul.f32 %v6446, %v6450
        %v6452 = vadd.f32 %v6451, 0.05243302
        %v6453 = vmul.f32 %v6446, %v6452
        %v6454 = vadd.f32 %v6453, 0.18741608
        %v6455 = vmul.f32 %v6446, %v6454
        %v6456 = vadd.f32 %v6455, 1.1283791
        %v6457 = vmul.f32 %v4239, %v6456
        %v6458 = vmul.f32 %v6446, 3.8918573e-05
        %v6459 = vadd.f32 %v6458, 0.001143296
        %v6460 = vmul.f32 %v6446, %v6459
        %v6461 = vadd.f32 %v6460, 0.014752088
        %v6462 = vmul.f32 %v6446, %v6461
        %v6463 = vadd.f32 %v6462, 0.112945676
        %v6464 = vmul.f32 %v6446, %v6463
        %v6465 = vadd.f32 %v6464, 0.4994258
        %v6466 = vmul.f32 %v6446, %v6465
        %v6467 = vadd.f32 %v6466, 1.0
        %v6468 = vrcp.pop %v6467
        %v6469 = vmul.f32 %v6467, %v6468
        %v6470 = vsub.f32 1.0, %v6469
        %v6471 = vmul.f32 %v6468, %v6470
        %v6472 = vadd.f32 %v6468, %v6471
        %vm6473 = vweird.f32 %v6467
        %vm6474 = vweird.f32 %v6468
        %vm6475 = vmor %vm6473, %vm6474
        %v6476 = vsel %vm6475, %v6468, %v6472
        %v6477 = vand.u32 2147483647, %v6467
        %vm6478 = vcmp.eq.f32.partialorder %v6477, 8.507059e+37
        %v6479 = vand.u32 %v6467, 2147483648
        %v6480 = vor.u32 1.1754944e-38, %v6479
        %v6481 = vsel %vm6478, %v6480, %v6476
        %v6482 = vmul.f32 %v6457, %v6481
        %v6483 = vmin.f32 %v6482, 1.0
        %v6484 = vmax.f32 %v6483, -1.0
        %v6485 = vmul.f32 %v4240, %v4240
        %v6486 = vmin.f32 16.0, %v6485
        %v6487 = vmul.f32 %v6486, 2.1237322e-06
        %v6488 = vadd.f32 %v6487, 0.00028619796
        %v6489 = vmul.f32 %v6486, %v6488
        %v6490 = vadd.f32 %v6489, 0.0036580483
        %v6491 = vmul.f32 %v6486, %v6490
        %v6492 = vadd.f32 %v6491, 0.05243302
        %v6493 = vmul.f32 %v6486, %v6492
        %v6494 = vadd.f32 %v6493, 0.18741608
        %v6495 = vmul.f32 %v6486, %v6494
        %v6496 = vadd.f32 %v6495, 1.1283791
        %v6497 = vmul.f32 %v4240, %v6496
        %v6498 = vmul.f32 %v6486, 3.8918573e-05
        %v6499 = vadd.f32 %v6498, 0.001143296
        %v6500 = vmul.f32 %v6486, %v6499
        %v6501 = vadd.f32 %v6500, 0.014752088
        %v6502 = vmul.f32 %v6486, %v6501
        %v6503 = vadd.f32 %v6502, 0.112945676
        %v6504 = vmul.f32 %v6486, %v6503
        %v6505 = vadd.f32 %v6504, 0.4994258
        %v6506 = vmul.f32 %v6486, %v6505
        %v6507 = vadd.f32 %v6506, 1.0
        %v6508 = vrcp.pop %v6507
        %v6509 = vmul.f32 %v6507, %v6508
        %v6510 = vsub.f32 1.0, %v6509
        %v6511 = vmul.f32 %v6508, %v6510
        %v6512 = vadd.f32 %v6508, %v6511
        %vm6513 = vweird.f32 %v6507
        %vm6514 = vweird.f32 %v6508
        %vm6515 = vmor %vm6513, %vm6514
        %v6516 = vsel %vm6515, %v6508, %v6512
        %v6517 = vand.u32 2147483647, %v6507
        %vm6518 = vcmp.eq.f32.partialorder %v6517, 8.507059e+37
        %v6519 = vand.u32 %v6507, 2147483648
        %v6520 = vor.u32 1.1754944e-38, %v6519
        %v6521 = vsel %vm6518, %v6520, %v6516
        %v6522 = vmul.f32 %v6497, %v6521
        %v6523 = vmin.f32 %v6522, 1.0
        %v6524 = vmax.f32 %v6523, -1.0
        %v6525 = vmul.f32 %v4241, %v4241
        %v6526 = vmin.f32 16.0, %v6525
        %v6527 = vmul.f32 %v6526, 2.1237322e-06
        %v6528 = vadd.f32 %v6527, 0.00028619796
        %v6529 = vmul.f32 %v6526, %v6528
        %v6530 = vadd.f32 %v6529, 0.0036580483
        %v6531 = vmul.f32 %v6526, %v6530
        %v6532 = vadd.f32 %v6531, 0.05243302
        %v6533 = vmul.f32 %v6526, %v6532
        %v6534 = vadd.f32 %v6533, 0.18741608
        %v6535 = vmul.f32 %v6526, %v6534
        %v6536 = vadd.f32 %v6535, 1.1283791
        %v6537 = vmul.f32 %v4241, %v6536
        %v6538 = vmul.f32 %v6526, 3.8918573e-05
        %v6539 = vadd.f32 %v6538, 0.001143296
        %v6540 = vmul.f32 %v6526, %v6539
        %v6541 = vadd.f32 %v6540, 0.014752088
        %v6542 = vmul.f32 %v6526, %v6541
        %v6543 = vadd.f32 %v6542, 0.112945676
        %v6544 = vmul.f32 %v6526, %v6543
        %v6545 = vadd.f32 %v6544, 0.4994258
        %v6546 = vmul.f32 %v6526, %v6545
        %v6547 = vadd.f32 %v6546, 1.0
        %v6548 = vrcp.pop %v6547
        %v6549 = vmul.f32 %v6547, %v6548
        %v6550 = vsub.f32 1.0, %v6549
        %v6551 = vmul.f32 %v6548, %v6550
        %v6552 = vadd.f32 %v6548, %v6551
        %vm6553 = vweird.f32 %v6547
        %vm6554 = vweird.f32 %v6548
        %vm6555 = vmor %vm6553, %vm6554
        %v6556 = vsel %vm6555, %v6548, %v6552
        %v6557 = vand.u32 2147483647, %v6547
        %vm6558 = vcmp.eq.f32.partialorder %v6557, 8.507059e+37
        %v6559 = vand.u32 %v6547, 2147483648
        %v6560 = vor.u32 1.1754944e-38, %v6559
        %v6561 = vsel %vm6558, %v6560, %v6556
        %v6562 = vmul.f32 %v6537, %v6561
        %v6563 = vmin.f32 %v6562, 1.0
        %v6564 = vmax.f32 %v6563, -1.0
        %v6565 = vmul.f32 %v4242, %v4242
        %v6566 = vmin.f32 16.0, %v6565
        %v6567 = vmul.f32 %v6566, 2.1237322e-06
        %v6568 = vadd.f32 %v6567, 0.00028619796
        %v6569 = vmul.f32 %v6566, %v6568
        %v6570 = vadd.f32 %v6569, 0.0036580483
        %v6571 = vmul.f32 %v6566, %v6570
        %v6572 = vadd.f32 %v6571, 0.05243302
        %v6573 = vmul.f32 %v6566, %v6572
        %v6574 = vadd.f32 %v6573, 0.18741608
        %v6575 = vmul.f32 %v6566, %v6574
        %v6576 = vadd.f32 %v6575, 1.1283791
        %v6577 = vmul.f32 %v4242, %v6576
        %v6578 = vmul.f32 %v6566, 3.8918573e-05
        %v6579 = vadd.f32 %v6578, 0.001143296
        %v6580 = vmul.f32 %v6566, %v6579
        %v6581 = vadd.f32 %v6580, 0.014752088
        %v6582 = vmul.f32 %v6566, %v6581
        %v6583 = vadd.f32 %v6582, 0.112945676
        %v6584 = vmul.f32 %v6566, %v6583
        %v6585 = vadd.f32 %v6584, 0.4994258
        %v6586 = vmul.f32 %v6566, %v6585
        %v6587 = vadd.f32 %v6586, 1.0
        %v6588 = vrcp.pop %v6587
        %v6589 = vmul.f32 %v6587, %v6588
        %v6590 = vsub.f32 1.0, %v6589
        %v6591 = vmul.f32 %v6588, %v6590
        %v6592 = vadd.f32 %v6588, %v6591
        %vm6593 = vweird.f32 %v6587
        %vm6594 = vweird.f32 %v6588
        %vm6595 = vmor %vm6593, %vm6594
        %v6596 = vsel %vm6595, %v6588, %v6592
        %v6597 = vand.u32 2147483647, %v6587
        %vm6598 = vcmp.eq.f32.partialorder %v6597, 8.507059e+37
        %v6599 = vand.u32 %v6587, 2147483648
        %v6600 = vor.u32 1.1754944e-38, %v6599
        %v6601 = vsel %vm6598, %v6600, %v6596
        %v6602 = vmul.f32 %v6577, %v6601
        %v6603 = vmin.f32 %v6602, 1.0
        %v6604 = vmax.f32 %v6603, -1.0
        %v6605 = vmul.f32 %v4243, %v4243
        %v6606 = vmin.f32 16.0, %v6605
        %v6607 = vmul.f32 %v6606, 2.1237322e-06
        %v6608 = vadd.f32 %v6607, 0.00028619796
        %v6609 = vmul.f32 %v6606, %v6608
        %v6610 = vadd.f32 %v6609, 0.0036580483
        %v6611 = vmul.f32 %v6606, %v6610
        %v6612 = vadd.f32 %v6611, 0.05243302
        %v6613 = vmul.f32 %v6606, %v6612
        %v6614 = vadd.f32 %v6613, 0.18741608
        %v6615 = vmul.f32 %v6606, %v6614
        %v6616 = vadd.f32 %v6615, 1.1283791
        %v6617 = vmul.f32 %v4243, %v6616
        %v6618 = vmul.f32 %v6606, 3.8918573e-05
        %v6619 = vadd.f32 %v6618, 0.001143296
        %v6620 = vmul.f32 %v6606, %v6619
        %v6621 = vadd.f32 %v6620, 0.014752088
        %v6622 = vmul.f32 %v6606, %v6621
        %v6623 = vadd.f32 %v6622, 0.112945676
        %v6624 = vmul.f32 %v6606, %v6623
        %v6625 = vadd.f32 %v6624, 0.4994258
        %v6626 = vmul.f32 %v6606, %v6625
        %v6627 = vadd.f32 %v6626, 1.0
        %v6628 = vrcp.pop %v6627
        %v6629 = vmul.f32 %v6627, %v6628
        %v6630 = vsub.f32 1.0, %v6629
        %v6631 = vmul.f32 %v6628, %v6630
        %v6632 = vadd.f32 %v6628, %v6631
        %vm6633 = vweird.f32 %v6627
        %vm6634 = vweird.f32 %v6628
        %vm6635 = vmor %vm6633, %vm6634
        %v6636 = vsel %vm6635, %v6628, %v6632
        %v6637 = vand.u32 2147483647, %v6627
        %vm6638 = vcmp.eq.f32.partialorder %v6637, 8.507059e+37
        %v6639 = vand.u32 %v6627, 2147483648
        %v6640 = vor.u32 1.1754944e-38, %v6639
        %v6641 = vsel %vm6638, %v6640, %v6636
        %v6642 = vmul.f32 %v6617, %v6641
        %v6643 = vmin.f32 %v6642, 1.0
        %v6644 = vmax.f32 %v6643, -1.0
        %v6645 = vmul.f32 %v4244, %v4244
        %v6646 = vmin.f32 16.0, %v6645
        %v6647 = vmul.f32 %v6646, 2.1237322e-06
        %v6648 = vadd.f32 %v6647, 0.00028619796
        %v6649 = vmul.f32 %v6646, %v6648
        %v6650 = vadd.f32 %v6649, 0.0036580483
        %v6651 = vmul.f32 %v6646, %v6650
        %v6652 = vadd.f32 %v6651, 0.05243302
        %v6653 = vmul.f32 %v6646, %v6652
        %v6654 = vadd.f32 %v6653, 0.18741608
        %v6655 = vmul.f32 %v6646, %v6654
        %v6656 = vadd.f32 %v6655, 1.1283791
        %v6657 = vmul.f32 %v4244, %v6656
        %v6658 = vmul.f32 %v6646, 3.8918573e-05
        %v6659 = vadd.f32 %v6658, 0.001143296
        %v6660 = vmul.f32 %v6646, %v6659
        %v6661 = vadd.f32 %v6660, 0.014752088
        %v6662 = vmul.f32 %v6646, %v6661
        %v6663 = vadd.f32 %v6662, 0.112945676
        %v6664 = vmul.f32 %v6646, %v6663
        %v6665 = vadd.f32 %v6664, 0.4994258
        %v6666 = vmul.f32 %v6646, %v6665
        %v6667 = vadd.f32 %v6666, 1.0
        %v6668 = vrcp.pop %v6667
        %v6669 = vmul.f32 %v6667, %v6668
        %v6670 = vsub.f32 1.0, %v6669
        %v6671 = vmul.f32 %v6668, %v6670
        %v6672 = vadd.f32 %v6668, %v6671
        %vm6673 = vweird.f32 %v6667
        %vm6674 = vweird.f32 %v6668
        %vm6675 = vmor %vm6673, %vm6674
        %v6676 = vsel %vm6675, %v6668, %v6672
        %v6677 = vand.u32 2147483647, %v6667
        %vm6678 = vcmp.eq.f32.partialorder %v6677, 8.507059e+37
        %v6679 = vand.u32 %v6667, 2147483648
        %v6680 = vor.u32 1.1754944e-38, %v6679
        %v6681 = vsel %vm6678, %v6680, %v6676
        %v6682 = vmul.f32 %v6657, %v6681
        %v6683 = vmin.f32 %v6682, 1.0
        %v6684 = vmax.f32 %v6683, -1.0
        %v6685 = vmul.f32 %v4245, %v4245
        %v6686 = vmin.f32 16.0, %v6685
        %v6687 = vmul.f32 %v6686, 2.1237322e-06
        %v6688 = vadd.f32 %v6687, 0.00028619796
        %v6689 = vmul.f32 %v6686, %v6688
        %v6690 = vadd.f32 %v6689, 0.0036580483
        %v6691 = vmul.f32 %v6686, %v6690
        %v6692 = vadd.f32 %v6691, 0.05243302
        %v6693 = vmul.f32 %v6686, %v6692
        %v6694 = vadd.f32 %v6693, 0.18741608
        %v6695 = vmul.f32 %v6686, %v6694
        %v6696 = vadd.f32 %v6695, 1.1283791
        %v6697 = vmul.f32 %v4245, %v6696
        %v6698 = vmul.f32 %v6686, 3.8918573e-05
        %v6699 = vadd.f32 %v6698, 0.001143296
        %v6700 = vmul.f32 %v6686, %v6699
        %v6701 = vadd.f32 %v6700, 0.014752088
        %v6702 = vmul.f32 %v6686, %v6701
        %v6703 = vadd.f32 %v6702, 0.112945676
        %v6704 = vmul.f32 %v6686, %v6703
        %v6705 = vadd.f32 %v6704, 0.4994258
        %v6706 = vmul.f32 %v6686, %v6705
        %v6707 = vadd.f32 %v6706, 1.0
        %v6708 = vrcp.pop %v6707
        %v6709 = vmul.f32 %v6707, %v6708
        %v6710 = vsub.f32 1.0, %v6709
        %v6711 = vmul.f32 %v6708, %v6710
        %v6712 = vadd.f32 %v6708, %v6711
        %vm6713 = vweird.f32 %v6707
        %vm6714 = vweird.f32 %v6708
        %vm6715 = vmor %vm6713, %vm6714
        %v6716 = vsel %vm6715, %v6708, %v6712
        %v6717 = vand.u32 2147483647, %v6707
        %vm6718 = vcmp.eq.f32.partialorder %v6717, 8.507059e+37
        %v6719 = vand.u32 %v6707, 2147483648
        %v6720 = vor.u32 1.1754944e-38, %v6719
        %v6721 = vsel %vm6718, %v6720, %v6716
        %v6722 = vmul.f32 %v6697, %v6721
        %v6723 = vmin.f32 %v6722, 1.0
        %v6724 = vmax.f32 %v6723, -1.0
        %v6725 = vmul.f32 %v4246, %v4246
        %v6726 = vmin.f32 16.0, %v6725
        %v6727 = vmul.f32 %v6726, 2.1237322e-06
        %v6728 = vadd.f32 %v6727, 0.00028619796
        %v6729 = vmul.f32 %v6726, %v6728
        %v6730 = vadd.f32 %v6729, 0.0036580483
        %v6731 = vmul.f32 %v6726, %v6730
        %v6732 = vadd.f32 %v6731, 0.05243302
        %v6733 = vmul.f32 %v6726, %v6732
        %v6734 = vadd.f32 %v6733, 0.18741608
        %v6735 = vmul.f32 %v6726, %v6734
        %v6736 = vadd.f32 %v6735, 1.1283791
        %v6737 = vmul.f32 %v4246, %v6736
        %v6738 = vmul.f32 %v6726, 3.8918573e-05
        %v6739 = vadd.f32 %v6738, 0.001143296
        %v6740 = vmul.f32 %v6726, %v6739
        %v6741 = vadd.f32 %v6740, 0.014752088
        %v6742 = vmul.f32 %v6726, %v6741
        %v6743 = vadd.f32 %v6742, 0.112945676
        %v6744 = vmul.f32 %v6726, %v6743
        %v6745 = vadd.f32 %v6744, 0.4994258
        %v6746 = vmul.f32 %v6726, %v6745
        %v6747 = vadd.f32 %v6746, 1.0
        %v6748 = vrcp.pop %v6747
        %v6749 = vmul.f32 %v6747, %v6748
        %v6750 = vsub.f32 1.0, %v6749
        %v6751 = vmul.f32 %v6748, %v6750
        %v6752 = vadd.f32 %v6748, %v6751
        %vm6753 = vweird.f32 %v6747
        %vm6754 = vweird.f32 %v6748
        %vm6755 = vmor %vm6753, %vm6754
        %v6756 = vsel %vm6755, %v6748, %v6752
        %v6757 = vand.u32 2147483647, %v6747
        %vm6758 = vcmp.eq.f32.partialorder %v6757, 8.507059e+37
        %v6759 = vand.u32 %v6747, 2147483648
        %v6760 = vor.u32 1.1754944e-38, %v6759
        %v6761 = vsel %vm6758, %v6760, %v6756
        %v6762 = vmul.f32 %v6737, %v6761
        %v6763 = vmin.f32 %v6762, 1.0
        %v6764 = vmax.f32 %v6763, -1.0
        %v6765 = vmul.f32 %v4247, %v4247
        %v6766 = vmin.f32 16.0, %v6765
        %v6767 = vmul.f32 %v6766, 2.1237322e-06
        %v6768 = vadd.f32 %v6767, 0.00028619796
        %v6769 = vmul.f32 %v6766, %v6768
        %v6770 = vadd.f32 %v6769, 0.0036580483
        %v6771 = vmul.f32 %v6766, %v6770
        %v6772 = vadd.f32 %v6771, 0.05243302
        %v6773 = vmul.f32 %v6766, %v6772
        %v6774 = vadd.f32 %v6773, 0.18741608
        %v6775 = vmul.f32 %v6766, %v6774
        %v6776 = vadd.f32 %v6775, 1.1283791
        %v6777 = vmul.f32 %v4247, %v6776
        %v6778 = vmul.f32 %v6766, 3.8918573e-05
        %v6779 = vadd.f32 %v6778, 0.001143296
        %v6780 = vmul.f32 %v6766, %v6779
        %v6781 = vadd.f32 %v6780, 0.014752088
        %v6782 = vmul.f32 %v6766, %v6781
        %v6783 = vadd.f32 %v6782, 0.112945676
        %v6784 = vmul.f32 %v6766, %v6783
        %v6785 = vadd.f32 %v6784, 0.4994258
        %v6786 = vmul.f32 %v6766, %v6785
        %v6787 = vadd.f32 %v6786, 1.0
        %v6788 = vrcp.pop %v6787
        %v6789 = vmul.f32 %v6787, %v6788
        %v6790 = vsub.f32 1.0, %v6789
        %v6791 = vmul.f32 %v6788, %v6790
        %v6792 = vadd.f32 %v6788, %v6791
        %vm6793 = vweird.f32 %v6787
        %vm6794 = vweird.f32 %v6788
        %vm6795 = vmor %vm6793, %vm6794
        %v6796 = vsel %vm6795, %v6788, %v6792
        %v6797 = vand.u32 2147483647, %v6787
        %vm6798 = vcmp.eq.f32.partialorder %v6797, 8.507059e+37
        %v6799 = vand.u32 %v6787, 2147483648
        %v6800 = vor.u32 1.1754944e-38, %v6799
        %v6801 = vsel %vm6798, %v6800, %v6796
        %v6802 = vmul.f32 %v6777, %v6801
        %v6803 = vmin.f32 %v6802, 1.0
        %v6804 = vmax.f32 %v6803, -1.0
        %v6805 = vmul.f32 %v4248, %v4248
        %v6806 = vmin.f32 16.0, %v6805
        %v6807 = vmul.f32 %v6806, 2.1237322e-06
        %v6808 = vadd.f32 %v6807, 0.00028619796
        %v6809 = vmul.f32 %v6806, %v6808
        %v6810 = vadd.f32 %v6809, 0.0036580483
        %v6811 = vmul.f32 %v6806, %v6810
        %v6812 = vadd.f32 %v6811, 0.05243302
        %v6813 = vmul.f32 %v6806, %v6812
        %v6814 = vadd.f32 %v6813, 0.18741608
        %v6815 = vmul.f32 %v6806, %v6814
        %v6816 = vadd.f32 %v6815, 1.1283791
        %v6817 = vmul.f32 %v4248, %v6816
        %v6818 = vmul.f32 %v6806, 3.8918573e-05
        %v6819 = vadd.f32 %v6818, 0.001143296
        %v6820 = vmul.f32 %v6806, %v6819
        %v6821 = vadd.f32 %v6820, 0.014752088
        %v6822 = vmul.f32 %v6806, %v6821
        %v6823 = vadd.f32 %v6822, 0.112945676
        %v6824 = vmul.f32 %v6806, %v6823
        %v6825 = vadd.f32 %v6824, 0.4994258
        %v6826 = vmul.f32 %v6806, %v6825
        %v6827 = vadd.f32 %v6826, 1.0
        %v6828 = vrcp.pop %v6827
        %v6829 = vmul.f32 %v6827, %v6828
        %v6830 = vsub.f32 1.0, %v6829
        %v6831 = vmul.f32 %v6828, %v6830
        %v6832 = vadd.f32 %v6828, %v6831
        %vm6833 = vweird.f32 %v6827
        %vm6834 = vweird.f32 %v6828
        %vm6835 = vmor %vm6833, %vm6834
        %v6836 = vsel %vm6835, %v6828, %v6832
        %v6837 = vand.u32 2147483647, %v6827
        %vm6838 = vcmp.eq.f32.partialorder %v6837, 8.507059e+37
        %v6839 = vand.u32 %v6827, 2147483648
        %v6840 = vor.u32 1.1754944e-38, %v6839
        %v6841 = vsel %vm6838, %v6840, %v6836
        %v6842 = vmul.f32 %v6817, %v6841
        %v6843 = vmin.f32 %v6842, 1.0
        %v6844 = vmax.f32 %v6843, -1.0
        %v6845 = vmul.f32 %v4249, %v4249
        %v6846 = vmin.f32 16.0, %v6845
        %v6847 = vmul.f32 %v6846, 2.1237322e-06
        %v6848 = vadd.f32 %v6847, 0.00028619796
        %v6849 = vmul.f32 %v6846, %v6848
        %v6850 = vadd.f32 %v6849, 0.0036580483
        %v6851 = vmul.f32 %v6846, %v6850
        %v6852 = vadd.f32 %v6851, 0.05243302
        %v6853 = vmul.f32 %v6846, %v6852
        %v6854 = vadd.f32 %v6853, 0.18741608
        %v6855 = vmul.f32 %v6846, %v6854
        %v6856 = vadd.f32 %v6855, 1.1283791
        %v6857 = vmul.f32 %v4249, %v6856
        %v6858 = vmul.f32 %v6846, 3.8918573e-05
        %v6859 = vadd.f32 %v6858, 0.001143296
        %v6860 = vmul.f32 %v6846, %v6859
        %v6861 = vadd.f32 %v6860, 0.014752088
        %v6862 = vmul.f32 %v6846, %v6861
        %v6863 = vadd.f32 %v6862, 0.112945676
        %v6864 = vmul.f32 %v6846, %v6863
        %v6865 = vadd.f32 %v6864, 0.4994258
        %v6866 = vmul.f32 %v6846, %v6865
        %v6867 = vadd.f32 %v6866, 1.0
        %v6868 = vrcp.pop %v6867
        %v6869 = vmul.f32 %v6867, %v6868
        %v6870 = vsub.f32 1.0, %v6869
        %v6871 = vmul.f32 %v6868, %v6870
        %v6872 = vadd.f32 %v6868, %v6871
        %vm6873 = vweird.f32 %v6867
        %vm6874 = vweird.f32 %v6868
        %vm6875 = vmor %vm6873, %vm6874
        %v6876 = vsel %vm6875, %v6868, %v6872
        %v6877 = vand.u32 2147483647, %v6867
        %vm6878 = vcmp.eq.f32.partialorder %v6877, 8.507059e+37
        %v6879 = vand.u32 %v6867, 2147483648
        %v6880 = vor.u32 1.1754944e-38, %v6879
        %v6881 = vsel %vm6878, %v6880, %v6876
        %v6882 = vmul.f32 %v6857, %v6881
        %v6883 = vmin.f32 %v6882, 1.0
        %v6884 = vmax.f32 %v6883, -1.0
        %v6885 = vmul.f32 %v4250, %v4250
        %v6886 = vmin.f32 16.0, %v6885
        %v6887 = vmul.f32 %v6886, 2.1237322e-06
        %v6888 = vadd.f32 %v6887, 0.00028619796
        %v6889 = vmul.f32 %v6886, %v6888
        %v6890 = vadd.f32 %v6889, 0.0036580483
        %v6891 = vmul.f32 %v6886, %v6890
        %v6892 = vadd.f32 %v6891, 0.05243302
        %v6893 = vmul.f32 %v6886, %v6892
        %v6894 = vadd.f32 %v6893, 0.18741608
        %v6895 = vmul.f32 %v6886, %v6894
        %v6896 = vadd.f32 %v6895, 1.1283791
        %v6897 = vmul.f32 %v4250, %v6896
        %v6898 = vmul.f32 %v6886, 3.8918573e-05
        %v6899 = vadd.f32 %v6898, 0.001143296
        %v6900 = vmul.f32 %v6886, %v6899
        %v6901 = vadd.f32 %v6900, 0.014752088
        %v6902 = vmul.f32 %v6886, %v6901
        %v6903 = vadd.f32 %v6902, 0.112945676
        %v6904 = vmul.f32 %v6886, %v6903
        %v6905 = vadd.f32 %v6904, 0.4994258
        %v6906 = vmul.f32 %v6886, %v6905
        %v6907 = vadd.f32 %v6906, 1.0
        %v6908 = vrcp.pop %v6907
        %v6909 = vmul.f32 %v6907, %v6908
        %v6910 = vsub.f32 1.0, %v6909
        %v6911 = vmul.f32 %v6908, %v6910
        %v6912 = vadd.f32 %v6908, %v6911
        %vm6913 = vweird.f32 %v6907
        %vm6914 = vweird.f32 %v6908
        %vm6915 = vmor %vm6913, %vm6914
        %v6916 = vsel %vm6915, %v6908, %v6912
        %v6917 = vand.u32 2147483647, %v6907
        %vm6918 = vcmp.eq.f32.partialorder %v6917, 8.507059e+37
        %v6919 = vand.u32 %v6907, 2147483648
        %v6920 = vor.u32 1.1754944e-38, %v6919
        %v6921 = vsel %vm6918, %v6920, %v6916
        %v6922 = vmul.f32 %v6897, %v6921
        %v6923 = vmin.f32 %v6922, 1.0
        %v6924 = vmax.f32 %v6923, -1.0
        %v6925 = vmul.f32 %v4251, %v4251
        %v6926 = vmin.f32 16.0, %v6925
        %v6927 = vmul.f32 %v6926, 2.1237322e-06
        %v6928 = vadd.f32 %v6927, 0.00028619796
        %v6929 = vmul.f32 %v6926, %v6928
        %v6930 = vadd.f32 %v6929, 0.0036580483
        %v6931 = vmul.f32 %v6926, %v6930
        %v6932 = vadd.f32 %v6931, 0.05243302
        %v6933 = vmul.f32 %v6926, %v6932
        %v6934 = vadd.f32 %v6933, 0.18741608
        %v6935 = vmul.f32 %v6926, %v6934
        %v6936 = vadd.f32 %v6935, 1.1283791
        %v6937 = vmul.f32 %v4251, %v6936
        %v6938 = vmul.f32 %v6926, 3.8918573e-05
        %v6939 = vadd.f32 %v6938, 0.001143296
        %v6940 = vmul.f32 %v6926, %v6939
        %v6941 = vadd.f32 %v6940, 0.014752088
        %v6942 = vmul.f32 %v6926, %v6941
        %v6943 = vadd.f32 %v6942, 0.112945676
        %v6944 = vmul.f32 %v6926, %v6943
        %v6945 = vadd.f32 %v6944, 0.4994258
        %v6946 = vmul.f32 %v6926, %v6945
        %v6947 = vadd.f32 %v6946, 1.0
        %v6948 = vrcp.pop %v6947
        %v6949 = vmul.f32 %v6947, %v6948
        %v6950 = vsub.f32 1.0, %v6949
        %v6951 = vmul.f32 %v6948, %v6950
        %v6952 = vadd.f32 %v6948, %v6951
        %vm6953 = vweird.f32 %v6947
        %vm6954 = vweird.f32 %v6948
        %vm6955 = vmor %vm6953, %vm6954
        %v6956 = vsel %vm6955, %v6948, %v6952
        %v6957 = vand.u32 2147483647, %v6947
        %vm6958 = vcmp.eq.f32.partialorder %v6957, 8.507059e+37
        %v6959 = vand.u32 %v6947, 2147483648
        %v6960 = vor.u32 1.1754944e-38, %v6959
        %v6961 = vsel %vm6958, %v6960, %v6956
        %v6962 = vmul.f32 %v6937, %v6961
        %v6963 = vmin.f32 %v6962, 1.0
        %v6964 = vmax.f32 %v6963, -1.0
        %v6965 = vmul.f32 %v4252, %v4252
        %v6966 = vmin.f32 16.0, %v6965
        %v6967 = vmul.f32 %v6966, 2.1237322e-06
        %v6968 = vadd.f32 %v6967, 0.00028619796
        %v6969 = vmul.f32 %v6966, %v6968
        %v6970 = vadd.f32 %v6969, 0.0036580483
        %v6971 = vmul.f32 %v6966, %v6970
        %v6972 = vadd.f32 %v6971, 0.05243302
        %v6973 = vmul.f32 %v6966, %v6972
        %v6974 = vadd.f32 %v6973, 0.18741608
        %v6975 = vmul.f32 %v6966, %v6974
        %v6976 = vadd.f32 %v6975, 1.1283791
        %v6977 = vmul.f32 %v4252, %v6976
        %v6978 = vmul.f32 %v6966, 3.8918573e-05
        %v6979 = vadd.f32 %v6978, 0.001143296
        %v6980 = vmul.f32 %v6966, %v6979
        %v6981 = vadd.f32 %v6980, 0.014752088
        %v6982 = vmul.f32 %v6966, %v6981
        %v6983 = vadd.f32 %v6982, 0.112945676
        %v6984 = vmul.f32 %v6966, %v6983
        %v6985 = vadd.f32 %v6984, 0.4994258
        %v6986 = vmul.f32 %v6966, %v6985
        %v6987 = vadd.f32 %v6986, 1.0
        %v6988 = vrcp.pop %v6987
        %v6989 = vmul.f32 %v6987, %v6988
        %v6990 = vsub.f32 1.0, %v6989
        %v6991 = vmul.f32 %v6988, %v6990
        %v6992 = vadd.f32 %v6988, %v6991
        %vm6993 = vweird.f32 %v6987
        %vm6994 = vweird.f32 %v6988
        %vm6995 = vmor %vm6993, %vm6994
        %v6996 = vsel %vm6995, %v6988, %v6992
        %v6997 = vand.u32 2147483647, %v6987
        %vm6998 = vcmp.eq.f32.partialorder %v6997, 8.507059e+37
        %v6999 = vand.u32 %v6987, 2147483648
        %v7000 = vor.u32 1.1754944e-38, %v6999
        %v7001 = vsel %vm6998, %v7000, %v6996
        %v7002 = vmul.f32 %v6977, %v7001
        %v7003 = vmin.f32 %v7002, 1.0
        %v7004 = vmax.f32 %v7003, -1.0
        %v7005 = vmul.f32 %v4253, %v4253
        %v7006 = vmin.f32 16.0, %v7005
        %v7007 = vmul.f32 %v7006, 2.1237322e-06
        %v7008 = vadd.f32 %v7007, 0.00028619796
        %v7009 = vmul.f32 %v7006, %v7008
        %v7010 = vadd.f32 %v7009, 0.0036580483
        %v7011 = vmul.f32 %v7006, %v7010
        %v7012 = vadd.f32 %v7011, 0.05243302
        %v7013 = vmul.f32 %v7006, %v7012
        %v7014 = vadd.f32 %v7013, 0.18741608
        %v7015 = vmul.f32 %v7006, %v7014
        %v7016 = vadd.f32 %v7015, 1.1283791
        %v7017 = vmul.f32 %v4253, %v7016
        %v7018 = vmul.f32 %v7006, 3.8918573e-05
        %v7019 = vadd.f32 %v7018, 0.001143296
        %v7020 = vmul.f32 %v7006, %v7019
        %v7021 = vadd.f32 %v7020, 0.014752088
        %v7022 = vmul.f32 %v7006, %v7021
        %v7023 = vadd.f32 %v7022, 0.112945676
        %v7024 = vmul.f32 %v7006, %v7023
        %v7025 = vadd.f32 %v7024, 0.4994258
        %v7026 = vmul.f32 %v7006, %v7025
        %v7027 = vadd.f32 %v7026, 1.0
        %v7028 = vrcp.pop %v7027
        %v7029 = vmul.f32 %v7027, %v7028
        %v7030 = vsub.f32 1.0, %v7029
        %v7031 = vmul.f32 %v7028, %v7030
        %v7032 = vadd.f32 %v7028, %v7031
        %vm7033 = vweird.f32 %v7027
        %vm7034 = vweird.f32 %v7028
        %vm7035 = vmor %vm7033, %vm7034
        %v7036 = vsel %vm7035, %v7028, %v7032
        %v7037 = vand.u32 2147483647, %v7027
        %vm7038 = vcmp.eq.f32.partialorder %v7037, 8.507059e+37
        %v7039 = vand.u32 %v7027, 2147483648
        %v7040 = vor.u32 1.1754944e-38, %v7039
        %v7041 = vsel %vm7038, %v7040, %v7036
        %v7042 = vmul.f32 %v7017, %v7041
        %v7043 = vmin.f32 %v7042, 1.0
        %v7044 = vmax.f32 %v7043, -1.0
        %v7045 = vmul.f32 %v4254, %v4254
        %v7046 = vmin.f32 16.0, %v7045
        %v7047 = vmul.f32 %v7046, 2.1237322e-06
        %v7048 = vadd.f32 %v7047, 0.00028619796
        %v7049 = vmul.f32 %v7046, %v7048
        %v7050 = vadd.f32 %v7049, 0.0036580483
        %v7051 = vmul.f32 %v7046, %v7050
        %v7052 = vadd.f32 %v7051, 0.05243302
        %v7053 = vmul.f32 %v7046, %v7052
        %v7054 = vadd.f32 %v7053, 0.18741608
        %v7055 = vmul.f32 %v7046, %v7054
        %v7056 = vadd.f32 %v7055, 1.1283791
        %v7057 = vmul.f32 %v4254, %v7056
        %v7058 = vmul.f32 %v7046, 3.8918573e-05
        %v7059 = vadd.f32 %v7058, 0.001143296
        %v7060 = vmul.f32 %v7046, %v7059
        %v7061 = vadd.f32 %v7060, 0.014752088
        %v7062 = vmul.f32 %v7046, %v7061
        %v7063 = vadd.f32 %v7062, 0.112945676
        %v7064 = vmul.f32 %v7046, %v7063
        %v7065 = vadd.f32 %v7064, 0.4994258
        %v7066 = vmul.f32 %v7046, %v7065
        %v7067 = vadd.f32 %v7066, 1.0
        %v7068 = vrcp.pop %v7067
        %v7069 = vmul.f32 %v7067, %v7068
        %v7070 = vsub.f32 1.0, %v7069
        %v7071 = vmul.f32 %v7068, %v7070
        %v7072 = vadd.f32 %v7068, %v7071
        %vm7073 = vweird.f32 %v7067
        %vm7074 = vweird.f32 %v7068
        %vm7075 = vmor %vm7073, %vm7074
        %v7076 = vsel %vm7075, %v7068, %v7072
        %v7077 = vand.u32 2147483647, %v7067
        %vm7078 = vcmp.eq.f32.partialorder %v7077, 8.507059e+37
        %v7079 = vand.u32 %v7067, 2147483648
        %v7080 = vor.u32 1.1754944e-38, %v7079
        %v7081 = vsel %vm7078, %v7080, %v7076
        %v7082 = vmul.f32 %v7057, %v7081
        %v7083 = vmin.f32 %v7082, 1.0
        %v7084 = vmax.f32 %v7083, -1.0
        %v7085 = vmul.f32 %v4255, %v4255
        %v7086 = vmin.f32 16.0, %v7085
        %v7087 = vmul.f32 %v7086, 2.1237322e-06
        %v7088 = vadd.f32 %v7087, 0.00028619796
        %v7089 = vmul.f32 %v7086, %v7088
        %v7090 = vadd.f32 %v7089, 0.0036580483
        %v7091 = vmul.f32 %v7086, %v7090
        %v7092 = vadd.f32 %v7091, 0.05243302
        %v7093 = vmul.f32 %v7086, %v7092
        %v7094 = vadd.f32 %v7093, 0.18741608
        %v7095 = vmul.f32 %v7086, %v7094
        %v7096 = vadd.f32 %v7095, 1.1283791
        %v7097 = vmul.f32 %v4255, %v7096
        %v7098 = vmul.f32 %v7086, 3.8918573e-05
        %v7099 = vadd.f32 %v7098, 0.001143296
        %v7100 = vmul.f32 %v7086, %v7099
        %v7101 = vadd.f32 %v7100, 0.014752088
        %v7102 = vmul.f32 %v7086, %v7101
        %v7103 = vadd.f32 %v7102, 0.112945676
        %v7104 = vmul.f32 %v7086, %v7103
        %v7105 = vadd.f32 %v7104, 0.4994258
        %v7106 = vmul.f32 %v7086, %v7105
        %v7107 = vadd.f32 %v7106, 1.0
        %v7108 = vrcp.pop %v7107
        %v7109 = vmul.f32 %v7107, %v7108
        %v7110 = vsub.f32 1.0, %v7109
        %v7111 = vmul.f32 %v7108, %v7110
        %v7112 = vadd.f32 %v7108, %v7111
        %vm7113 = vweird.f32 %v7107
        %vm7114 = vweird.f32 %v7108
        %vm7115 = vmor %vm7113, %vm7114
        %v7116 = vsel %vm7115, %v7108, %v7112
        %v7117 = vand.u32 2147483647, %v7107
        %vm7118 = vcmp.eq.f32.partialorder %v7117, 8.507059e+37
        %v7119 = vand.u32 %v7107, 2147483648
        %v7120 = vor.u32 1.1754944e-38, %v7119
        %v7121 = vsel %vm7118, %v7120, %v7116
        %v7122 = vmul.f32 %v7097, %v7121
        %v7123 = vmin.f32 %v7122, 1.0
        %v7124 = vmax.f32 %v7123, -1.0
        %v7125 = vmul.f32 %v4256, %v4256
        %v7126 = vmin.f32 16.0, %v7125
        %v7127 = vmul.f32 %v7126, 2.1237322e-06
        %v7128 = vadd.f32 %v7127, 0.00028619796
        %v7129 = vmul.f32 %v7126, %v7128
        %v7130 = vadd.f32 %v7129, 0.0036580483
        %v7131 = vmul.f32 %v7126, %v7130
        %v7132 = vadd.f32 %v7131, 0.05243302
        %v7133 = vmul.f32 %v7126, %v7132
        %v7134 = vadd.f32 %v7133, 0.18741608
        %v7135 = vmul.f32 %v7126, %v7134
        %v7136 = vadd.f32 %v7135, 1.1283791
        %v7137 = vmul.f32 %v4256, %v7136
        %v7138 = vmul.f32 %v7126, 3.8918573e-05
        %v7139 = vadd.f32 %v7138, 0.001143296
        %v7140 = vmul.f32 %v7126, %v7139
        %v7141 = vadd.f32 %v7140, 0.014752088
        %v7142 = vmul.f32 %v7126, %v7141
        %v7143 = vadd.f32 %v7142, 0.112945676
        %v7144 = vmul.f32 %v7126, %v7143
        %v7145 = vadd.f32 %v7144, 0.4994258
        %v7146 = vmul.f32 %v7126, %v7145
        %v7147 = vadd.f32 %v7146, 1.0
        %v7148 = vrcp.pop %v7147
        %v7149 = vmul.f32 %v7147, %v7148
        %v7150 = vsub.f32 1.0, %v7149
        %v7151 = vmul.f32 %v7148, %v7150
        %v7152 = vadd.f32 %v7148, %v7151
        %vm7153 = vweird.f32 %v7147
        %vm7154 = vweird.f32 %v7148
        %vm7155 = vmor %vm7153, %vm7154
        %v7156 = vsel %vm7155, %v7148, %v7152
        %v7157 = vand.u32 2147483647, %v7147
        %vm7158 = vcmp.eq.f32.partialorder %v7157, 8.507059e+37
        %v7159 = vand.u32 %v7147, 2147483648
        %v7160 = vor.u32 1.1754944e-38, %v7159
        %v7161 = vsel %vm7158, %v7160, %v7156
        %v7162 = vmul.f32 %v7137, %v7161
        %v7163 = vmin.f32 %v7162, 1.0
        %v7164 = vmax.f32 %v7163, -1.0
        %v7165 = vmul.f32 %v4257, %v4257
        %v7166 = vmin.f32 16.0, %v7165
        %v7167 = vmul.f32 %v7166, 2.1237322e-06
        %v7168 = vadd.f32 %v7167, 0.00028619796
        %v7169 = vmul.f32 %v7166, %v7168
        %v7170 = vadd.f32 %v7169, 0.0036580483
        %v7171 = vmul.f32 %v7166, %v7170
        %v7172 = vadd.f32 %v7171, 0.05243302
        %v7173 = vmul.f32 %v7166, %v7172
        %v7174 = vadd.f32 %v7173, 0.18741608
        %v7175 = vmul.f32 %v7166, %v7174
        %v7176 = vadd.f32 %v7175, 1.1283791
        %v7177 = vmul.f32 %v4257, %v7176
        %v7178 = vmul.f32 %v7166, 3.8918573e-05
        %v7179 = vadd.f32 %v7178, 0.001143296
        %v7180 = vmul.f32 %v7166, %v7179
        %v7181 = vadd.f32 %v7180, 0.014752088
        %v7182 = vmul.f32 %v7166, %v7181
        %v7183 = vadd.f32 %v7182, 0.112945676
        %v7184 = vmul.f32 %v7166, %v7183
        %v7185 = vadd.f32 %v7184, 0.4994258
        %v7186 = vmul.f32 %v7166, %v7185
        %v7187 = vadd.f32 %v7186, 1.0
        %v7188 = vrcp.pop %v7187
        %v7189 = vmul.f32 %v7187, %v7188
        %v7190 = vsub.f32 1.0, %v7189
        %v7191 = vmul.f32 %v7188, %v7190
        %v7192 = vadd.f32 %v7188, %v7191
        %vm7193 = vweird.f32 %v7187
        %vm7194 = vweird.f32 %v7188
        %vm7195 = vmor %vm7193, %vm7194
        %v7196 = vsel %vm7195, %v7188, %v7192
        %v7197 = vand.u32 2147483647, %v7187
        %vm7198 = vcmp.eq.f32.partialorder %v7197, 8.507059e+37
        %v7199 = vand.u32 %v7187, 2147483648
        %v7200 = vor.u32 1.1754944e-38, %v7199
        %v7201 = vsel %vm7198, %v7200, %v7196
        %v7202 = vmul.f32 %v7177, %v7201
        %v7203 = vmin.f32 %v7202, 1.0
        %v7204 = vmax.f32 %v7203, -1.0
        %v7205 = vmul.f32 %v4258, %v4258
        %v7206 = vmin.f32 16.0, %v7205
        %v7207 = vmul.f32 %v7206, 2.1237322e-06
        %v7208 = vadd.f32 %v7207, 0.00028619796
        %v7209 = vmul.f32 %v7206, %v7208
        %v7210 = vadd.f32 %v7209, 0.0036580483
        %v7211 = vmul.f32 %v7206, %v7210
        %v7212 = vadd.f32 %v7211, 0.05243302
        %v7213 = vmul.f32 %v7206, %v7212
        %v7214 = vadd.f32 %v7213, 0.18741608
        %v7215 = vmul.f32 %v7206, %v7214
        %v7216 = vadd.f32 %v7215, 1.1283791
        %v7217 = vmul.f32 %v4258, %v7216
        %v7218 = vmul.f32 %v7206, 3.8918573e-05
        %v7219 = vadd.f32 %v7218, 0.001143296
        %v7220 = vmul.f32 %v7206, %v7219
        %v7221 = vadd.f32 %v7220, 0.014752088
        %v7222 = vmul.f32 %v7206, %v7221
        %v7223 = vadd.f32 %v7222, 0.112945676
        %v7224 = vmul.f32 %v7206, %v7223
        %v7225 = vadd.f32 %v7224, 0.4994258
        %v7226 = vmul.f32 %v7206, %v7225
        %v7227 = vadd.f32 %v7226, 1.0
        %v7228 = vrcp.pop %v7227
        %v7229 = vmul.f32 %v7227, %v7228
        %v7230 = vsub.f32 1.0, %v7229
        %v7231 = vmul.f32 %v7228, %v7230
        %v7232 = vadd.f32 %v7228, %v7231
        %vm7233 = vweird.f32 %v7227
        %vm7234 = vweird.f32 %v7228
        %vm7235 = vmor %vm7233, %vm7234
        %v7236 = vsel %vm7235, %v7228, %v7232
        %v7237 = vand.u32 2147483647, %v7227
        %vm7238 = vcmp.eq.f32.partialorder %v7237, 8.507059e+37
        %v7239 = vand.u32 %v7227, 2147483648
        %v7240 = vor.u32 1.1754944e-38, %v7239
        %v7241 = vsel %vm7238, %v7240, %v7236
        %v7242 = vmul.f32 %v7217, %v7241
        %v7243 = vmin.f32 %v7242, 1.0
        %v7244 = vmax.f32 %v7243, -1.0
        %v7245 = vmul.f32 %v4259, %v4259
        %v7246 = vmin.f32 16.0, %v7245
        %v7247 = vmul.f32 %v7246, 2.1237322e-06
        %v7248 = vadd.f32 %v7247, 0.00028619796
        %v7249 = vmul.f32 %v7246, %v7248
        %v7250 = vadd.f32 %v7249, 0.0036580483
        %v7251 = vmul.f32 %v7246, %v7250
        %v7252 = vadd.f32 %v7251, 0.05243302
        %v7253 = vmul.f32 %v7246, %v7252
        %v7254 = vadd.f32 %v7253, 0.18741608
        %v7255 = vmul.f32 %v7246, %v7254
        %v7256 = vadd.f32 %v7255, 1.1283791
        %v7257 = vmul.f32 %v4259, %v7256
        %v7258 = vmul.f32 %v7246, 3.8918573e-05
        %v7259 = vadd.f32 %v7258, 0.001143296
        %v7260 = vmul.f32 %v7246, %v7259
        %v7261 = vadd.f32 %v7260, 0.014752088
        %v7262 = vmul.f32 %v7246, %v7261
        %v7263 = vadd.f32 %v7262, 0.112945676
        %v7264 = vmul.f32 %v7246, %v7263
        %v7265 = vadd.f32 %v7264, 0.4994258
        %v7266 = vmul.f32 %v7246, %v7265
        %v7267 = vadd.f32 %v7266, 1.0
        %v7268 = vrcp.pop %v7267
        %v7269 = vmul.f32 %v7267, %v7268
        %v7270 = vsub.f32 1.0, %v7269
        %v7271 = vmul.f32 %v7268, %v7270
        %v7272 = vadd.f32 %v7268, %v7271
        %vm7273 = vweird.f32 %v7267
        %vm7274 = vweird.f32 %v7268
        %vm7275 = vmor %vm7273, %vm7274
        %v7276 = vsel %vm7275, %v7268, %v7272
        %v7277 = vand.u32 2147483647, %v7267
        %vm7278 = vcmp.eq.f32.partialorder %v7277, 8.507059e+37
        %v7279 = vand.u32 %v7267, 2147483648
        %v7280 = vor.u32 1.1754944e-38, %v7279
        %v7281 = vsel %vm7278, %v7280, %v7276
        %v7282 = vmul.f32 %v7257, %v7281
        %v7283 = vmin.f32 %v7282, 1.0
        %v7284 = vmax.f32 %v7283, -1.0
        %v7285 = vmul.f32 %v4260, %v4260
        %v7286 = vmin.f32 16.0, %v7285
        %v7287 = vmul.f32 %v7286, 2.1237322e-06
        %v7288 = vadd.f32 %v7287, 0.00028619796
        %v7289 = vmul.f32 %v7286, %v7288
        %v7290 = vadd.f32 %v7289, 0.0036580483
        %v7291 = vmul.f32 %v7286, %v7290
        %v7292 = vadd.f32 %v7291, 0.05243302
        %v7293 = vmul.f32 %v7286, %v7292
        %v7294 = vadd.f32 %v7293, 0.18741608
        %v7295 = vmul.f32 %v7286, %v7294
        %v7296 = vadd.f32 %v7295, 1.1283791
        %v7297 = vmul.f32 %v4260, %v7296
        %v7298 = vmul.f32 %v7286, 3.8918573e-05
        %v7299 = vadd.f32 %v7298, 0.001143296
        %v7300 = vmul.f32 %v7286, %v7299
        %v7301 = vadd.f32 %v7300, 0.014752088
        %v7302 = vmul.f32 %v7286, %v7301
        %v7303 = vadd.f32 %v7302, 0.112945676
        %v7304 = vmul.f32 %v7286, %v7303
        %v7305 = vadd.f32 %v7304, 0.4994258
        %v7306 = vmul.f32 %v7286, %v7305
        %v7307 = vadd.f32 %v7306, 1.0
        %v7308 = vrcp.pop %v7307
        %v7309 = vmul.f32 %v7307, %v7308
        %v7310 = vsub.f32 1.0, %v7309
        %v7311 = vmul.f32 %v7308, %v7310
        %v7312 = vadd.f32 %v7308, %v7311
        %vm7313 = vweird.f32 %v7307
        %vm7314 = vweird.f32 %v7308
        %vm7315 = vmor %vm7313, %vm7314
        %v7316 = vsel %vm7315, %v7308, %v7312
        %v7317 = vand.u32 2147483647, %v7307
        %vm7318 = vcmp.eq.f32.partialorder %v7317, 8.507059e+37
        %v7319 = vand.u32 %v7307, 2147483648
        %v7320 = vor.u32 1.1754944e-38, %v7319
        %v7321 = vsel %vm7318, %v7320, %v7316
        %v7322 = vmul.f32 %v7297, %v7321
        %v7323 = vmin.f32 %v7322, 1.0
        %v7324 = vmax.f32 %v7323, -1.0
        %v7325 = vmul.f32 %v4261, %v4261
        %v7326 = vmin.f32 16.0, %v7325
        %v7327 = vmul.f32 %v7326, 2.1237322e-06
        %v7328 = vadd.f32 %v7327, 0.00028619796
        %v7329 = vmul.f32 %v7326, %v7328
        %v7330 = vadd.f32 %v7329, 0.0036580483
        %v7331 = vmul.f32 %v7326, %v7330
        %v7332 = vadd.f32 %v7331, 0.05243302
        %v7333 = vmul.f32 %v7326, %v7332
        %v7334 = vadd.f32 %v7333, 0.18741608
        %v7335 = vmul.f32 %v7326, %v7334
        %v7336 = vadd.f32 %v7335, 1.1283791
        %v7337 = vmul.f32 %v4261, %v7336
        %v7338 = vmul.f32 %v7326, 3.8918573e-05
        %v7339 = vadd.f32 %v7338, 0.001143296
        %v7340 = vmul.f32 %v7326, %v7339
        %v7341 = vadd.f32 %v7340, 0.014752088
        %v7342 = vmul.f32 %v7326, %v7341
        %v7343 = vadd.f32 %v7342, 0.112945676
        %v7344 = vmul.f32 %v7326, %v7343
        %v7345 = vadd.f32 %v7344, 0.4994258
        %v7346 = vmul.f32 %v7326, %v7345
        %v7347 = vadd.f32 %v7346, 1.0
        %v7348 = vrcp.pop %v7347
        %v7349 = vmul.f32 %v7347, %v7348
        %v7350 = vsub.f32 1.0, %v7349
        %v7351 = vmul.f32 %v7348, %v7350
        %v7352 = vadd.f32 %v7348, %v7351
        %vm7353 = vweird.f32 %v7347
        %vm7354 = vweird.f32 %v7348
        %vm7355 = vmor %vm7353, %vm7354
        %v7356 = vsel %vm7355, %v7348, %v7352
        %v7357 = vand.u32 2147483647, %v7347
        %vm7358 = vcmp.eq.f32.partialorder %v7357, 8.507059e+37
        %v7359 = vand.u32 %v7347, 2147483648
        %v7360 = vor.u32 1.1754944e-38, %v7359
        %v7361 = vsel %vm7358, %v7360, %v7356
        %v7362 = vmul.f32 %v7337, %v7361
        %v7363 = vmin.f32 %v7362, 1.0
        %v7364 = vmax.f32 %v7363, -1.0
        %v7365 = vmul.f32 %v4262, %v4262
        %v7366 = vmin.f32 16.0, %v7365
        %v7367 = vmul.f32 %v7366, 2.1237322e-06
        %v7368 = vadd.f32 %v7367, 0.00028619796
        %v7369 = vmul.f32 %v7366, %v7368
        %v7370 = vadd.f32 %v7369, 0.0036580483
        %v7371 = vmul.f32 %v7366, %v7370
        %v7372 = vadd.f32 %v7371, 0.05243302
        %v7373 = vmul.f32 %v7366, %v7372
        %v7374 = vadd.f32 %v7373, 0.18741608
        %v7375 = vmul.f32 %v7366, %v7374
        %v7376 = vadd.f32 %v7375, 1.1283791
        %v7377 = vmul.f32 %v4262, %v7376
        %v7378 = vmul.f32 %v7366, 3.8918573e-05
        %v7379 = vadd.f32 %v7378, 0.001143296
        %v7380 = vmul.f32 %v7366, %v7379
        %v7381 = vadd.f32 %v7380, 0.014752088
        %v7382 = vmul.f32 %v7366, %v7381
        %v7383 = vadd.f32 %v7382, 0.112945676
        %v7384 = vmul.f32 %v7366, %v7383
        %v7385 = vadd.f32 %v7384, 0.4994258
        %v7386 = vmul.f32 %v7366, %v7385
        %v7387 = vadd.f32 %v7386, 1.0
        %v7388 = vrcp.pop %v7387
        %v7389 = vmul.f32 %v7387, %v7388
        %v7390 = vsub.f32 1.0, %v7389
        %v7391 = vmul.f32 %v7388, %v7390
        %v7392 = vadd.f32 %v7388, %v7391
        %vm7393 = vweird.f32 %v7387
        %vm7394 = vweird.f32 %v7388
        %vm7395 = vmor %vm7393, %vm7394
        %v7396 = vsel %vm7395, %v7388, %v7392
        %v7397 = vand.u32 2147483647, %v7387
        %vm7398 = vcmp.eq.f32.partialorder %v7397, 8.507059e+37
        %v7399 = vand.u32 %v7387, 2147483648
        %v7400 = vor.u32 1.1754944e-38, %v7399
        %v7401 = vsel %vm7398, %v7400, %v7396
        %v7402 = vmul.f32 %v7377, %v7401
        %v7403 = vmin.f32 %v7402, 1.0
        %v7404 = vmax.f32 %v7403, -1.0
        %v7405 = vmul.f32 %v4263, %v4263
        %v7406 = vmin.f32 16.0, %v7405
        %v7407 = vmul.f32 %v7406, 2.1237322e-06
        %v7408 = vadd.f32 %v7407, 0.00028619796
        %v7409 = vmul.f32 %v7406, %v7408
        %v7410 = vadd.f32 %v7409, 0.0036580483
        %v7411 = vmul.f32 %v7406, %v7410
        %v7412 = vadd.f32 %v7411, 0.05243302
        %v7413 = vmul.f32 %v7406, %v7412
        %v7414 = vadd.f32 %v7413, 0.18741608
        %v7415 = vmul.f32 %v7406, %v7414
        %v7416 = vadd.f32 %v7415, 1.1283791
        %v7417 = vmul.f32 %v4263, %v7416
        %v7418 = vmul.f32 %v7406, 3.8918573e-05
        %v7419 = vadd.f32 %v7418, 0.001143296
        %v7420 = vmul.f32 %v7406, %v7419
        %v7421 = vadd.f32 %v7420, 0.014752088
        %v7422 = vmul.f32 %v7406, %v7421
        %v7423 = vadd.f32 %v7422, 0.112945676
        %v7424 = vmul.f32 %v7406, %v7423
        %v7425 = vadd.f32 %v7424, 0.4994258
        %v7426 = vmul.f32 %v7406, %v7425
        %v7427 = vadd.f32 %v7426, 1.0
        %v7428 = vrcp.pop %v7427
        %v7429 = vmul.f32 %v7427, %v7428
        %v7430 = vsub.f32 1.0, %v7429
        %v7431 = vmul.f32 %v7428, %v7430
        %v7432 = vadd.f32 %v7428, %v7431
        %vm7433 = vweird.f32 %v7427
        %vm7434 = vweird.f32 %v7428
        %vm7435 = vmor %vm7433, %vm7434
        %v7436 = vsel %vm7435, %v7428, %v7432
        %v7437 = vand.u32 2147483647, %v7427
        %vm7438 = vcmp.eq.f32.partialorder %v7437, 8.507059e+37
        %v7439 = vand.u32 %v7427, 2147483648
        %v7440 = vor.u32 1.1754944e-38, %v7439
        %v7441 = vsel %vm7438, %v7440, %v7436
        %v7442 = vmul.f32 %v7417, %v7441
        %v7443 = vmin.f32 %v7442, 1.0
        %v7444 = vmax.f32 %v7443, -1.0
        %v7445 = vmul.f32 %v4264, %v4264
        %v7446 = vmin.f32 16.0, %v7445
        %v7447 = vmul.f32 %v7446, 2.1237322e-06
        %v7448 = vadd.f32 %v7447, 0.00028619796
        %v7449 = vmul.f32 %v7446, %v7448
        %v7450 = vadd.f32 %v7449, 0.0036580483
        %v7451 = vmul.f32 %v7446, %v7450
        %v7452 = vadd.f32 %v7451, 0.05243302
        %v7453 = vmul.f32 %v7446, %v7452
        %v7454 = vadd.f32 %v7453, 0.18741608
        %v7455 = vmul.f32 %v7446, %v7454
        %v7456 = vadd.f32 %v7455, 1.1283791
        %v7457 = vmul.f32 %v4264, %v7456
        %v7458 = vmul.f32 %v7446, 3.8918573e-05
        %v7459 = vadd.f32 %v7458, 0.001143296
        %v7460 = vmul.f32 %v7446, %v7459
        %v7461 = vadd.f32 %v7460, 0.014752088
        %v7462 = vmul.f32 %v7446, %v7461
        %v7463 = vadd.f32 %v7462, 0.112945676
        %v7464 = vmul.f32 %v7446, %v7463
        %v7465 = vadd.f32 %v7464, 0.4994258
        %v7466 = vmul.f32 %v7446, %v7465
        %v7467 = vadd.f32 %v7466, 1.0
        %v7468 = vrcp.pop %v7467
        %v7469 = vmul.f32 %v7467, %v7468
        %v7470 = vsub.f32 1.0, %v7469
        %v7471 = vmul.f32 %v7468, %v7470
        %v7472 = vadd.f32 %v7468, %v7471
        %vm7473 = vweird.f32 %v7467
        %vm7474 = vweird.f32 %v7468
        %vm7475 = vmor %vm7473, %vm7474
        %v7476 = vsel %vm7475, %v7468, %v7472
        %v7477 = vand.u32 2147483647, %v7467
        %vm7478 = vcmp.eq.f32.partialorder %v7477, 8.507059e+37
        %v7479 = vand.u32 %v7467, 2147483648
        %v7480 = vor.u32 1.1754944e-38, %v7479
        %v7481 = vsel %vm7478, %v7480, %v7476
        %v7482 = vmul.f32 %v7457, %v7481
        %v7483 = vmin.f32 %v7482, 1.0
        %v7484 = vmax.f32 %v7483, -1.0
        %v7485 = vmul.f32 %v4265, %v4265
        %v7486 = vmin.f32 16.0, %v7485
        %v7487 = vmul.f32 %v7486, 2.1237322e-06
        %v7488 = vadd.f32 %v7487, 0.00028619796
        %v7489 = vmul.f32 %v7486, %v7488
        %v7490 = vadd.f32 %v7489, 0.0036580483
        %v7491 = vmul.f32 %v7486, %v7490
        %v7492 = vadd.f32 %v7491, 0.05243302
        %v7493 = vmul.f32 %v7486, %v7492
        %v7494 = vadd.f32 %v7493, 0.18741608
        %v7495 = vmul.f32 %v7486, %v7494
        %v7496 = vadd.f32 %v7495, 1.1283791
        %v7497 = vmul.f32 %v4265, %v7496
        %v7498 = vmul.f32 %v7486, 3.8918573e-05
        %v7499 = vadd.f32 %v7498, 0.001143296
        %v7500 = vmul.f32 %v7486, %v7499
        %v7501 = vadd.f32 %v7500, 0.014752088
        %v7502 = vmul.f32 %v7486, %v7501
        %v7503 = vadd.f32 %v7502, 0.112945676
        %v7504 = vmul.f32 %v7486, %v7503
        %v7505 = vadd.f32 %v7504, 0.4994258
        %v7506 = vmul.f32 %v7486, %v7505
        %v7507 = vadd.f32 %v7506, 1.0
        %v7508 = vrcp.pop %v7507
        %v7509 = vmul.f32 %v7507, %v7508
        %v7510 = vsub.f32 1.0, %v7509
        %v7511 = vmul.f32 %v7508, %v7510
        %v7512 = vadd.f32 %v7508, %v7511
        %vm7513 = vweird.f32 %v7507
        %vm7514 = vweird.f32 %v7508
        %vm7515 = vmor %vm7513, %vm7514
        %v7516 = vsel %vm7515, %v7508, %v7512
        %v7517 = vand.u32 2147483647, %v7507
        %vm7518 = vcmp.eq.f32.partialorder %v7517, 8.507059e+37
        %v7519 = vand.u32 %v7507, 2147483648
        %v7520 = vor.u32 1.1754944e-38, %v7519
        %v7521 = vsel %vm7518, %v7520, %v7516
        %v7522 = vmul.f32 %v7497, %v7521
        %v7523 = vmin.f32 %v7522, 1.0
        %v7524 = vmax.f32 %v7523, -1.0
        %v7525 = vmul.f32 %v4266, %v4266
        %v7526 = vmin.f32 16.0, %v7525
        %v7527 = vmul.f32 %v7526, 2.1237322e-06
        %v7528 = vadd.f32 %v7527, 0.00028619796
        %v7529 = vmul.f32 %v7526, %v7528
        %v7530 = vadd.f32 %v7529, 0.0036580483
        %v7531 = vmul.f32 %v7526, %v7530
        %v7532 = vadd.f32 %v7531, 0.05243302
        %v7533 = vmul.f32 %v7526, %v7532
        %v7534 = vadd.f32 %v7533, 0.18741608
        %v7535 = vmul.f32 %v7526, %v7534
        %v7536 = vadd.f32 %v7535, 1.1283791
        %v7537 = vmul.f32 %v4266, %v7536
        %v7538 = vmul.f32 %v7526, 3.8918573e-05
        %v7539 = vadd.f32 %v7538, 0.001143296
        %v7540 = vmul.f32 %v7526, %v7539
        %v7541 = vadd.f32 %v7540, 0.014752088
        %v7542 = vmul.f32 %v7526, %v7541
        %v7543 = vadd.f32 %v7542, 0.112945676
        %v7544 = vmul.f32 %v7526, %v7543
        %v7545 = vadd.f32 %v7544, 0.4994258
        %v7546 = vmul.f32 %v7526, %v7545
        %v7547 = vadd.f32 %v7546, 1.0
        %v7548 = vrcp.pop %v7547
        %v7549 = vmul.f32 %v7547, %v7548
        %v7550 = vsub.f32 1.0, %v7549
        %v7551 = vmul.f32 %v7548, %v7550
        %v7552 = vadd.f32 %v7548, %v7551
        %vm7553 = vweird.f32 %v7547
        %vm7554 = vweird.f32 %v7548
        %vm7555 = vmor %vm7553, %vm7554
        %v7556 = vsel %vm7555, %v7548, %v7552
        %v7557 = vand.u32 2147483647, %v7547
        %vm7558 = vcmp.eq.f32.partialorder %v7557, 8.507059e+37
        %v7559 = vand.u32 %v7547, 2147483648
        %v7560 = vor.u32 1.1754944e-38, %v7559
        %v7561 = vsel %vm7558, %v7560, %v7556
        %v7562 = vmul.f32 %v7537, %v7561
        %v7563 = vmin.f32 %v7562, 1.0
        %v7564 = vmax.f32 %v7563, -1.0
        %v7565 = vmul.f32 %v4267, %v4267
        %v7566 = vmin.f32 16.0, %v7565
        %v7567 = vmul.f32 %v7566, 2.1237322e-06
        %v7568 = vadd.f32 %v7567, 0.00028619796
        %v7569 = vmul.f32 %v7566, %v7568
        %v7570 = vadd.f32 %v7569, 0.0036580483
        %v7571 = vmul.f32 %v7566, %v7570
        %v7572 = vadd.f32 %v7571, 0.05243302
        %v7573 = vmul.f32 %v7566, %v7572
        %v7574 = vadd.f32 %v7573, 0.18741608
        %v7575 = vmul.f32 %v7566, %v7574
        %v7576 = vadd.f32 %v7575, 1.1283791
        %v7577 = vmul.f32 %v4267, %v7576
        %v7578 = vmul.f32 %v7566, 3.8918573e-05
        %v7579 = vadd.f32 %v7578, 0.001143296
        %v7580 = vmul.f32 %v7566, %v7579
        %v7581 = vadd.f32 %v7580, 0.014752088
        %v7582 = vmul.f32 %v7566, %v7581
        %v7583 = vadd.f32 %v7582, 0.112945676
        %v7584 = vmul.f32 %v7566, %v7583
        %v7585 = vadd.f32 %v7584, 0.4994258
        %v7586 = vmul.f32 %v7566, %v7585
        %v7587 = vadd.f32 %v7586, 1.0
        %v7588 = vrcp.pop %v7587
        %v7589 = vmul.f32 %v7587, %v7588
        %v7590 = vsub.f32 1.0, %v7589
        %v7591 = vmul.f32 %v7588, %v7590
        %v7592 = vadd.f32 %v7588, %v7591
        %vm7593 = vweird.f32 %v7587
        %vm7594 = vweird.f32 %v7588
        %vm7595 = vmor %vm7593, %vm7594
        %v7596 = vsel %vm7595, %v7588, %v7592
        %v7597 = vand.u32 2147483647, %v7587
        %vm7598 = vcmp.eq.f32.partialorder %v7597, 8.507059e+37
        %v7599 = vand.u32 %v7587, 2147483648
        %v7600 = vor.u32 1.1754944e-38, %v7599
        %v7601 = vsel %vm7598, %v7600, %v7596
        %v7602 = vmul.f32 %v7577, %v7601
        %v7603 = vmin.f32 %v7602, 1.0
        %v7604 = vmax.f32 %v7603, -1.0
        %v7605 = vmul.f32 %v4268, %v4268
        %v7606 = vmin.f32 16.0, %v7605
        %v7607 = vmul.f32 %v7606, 2.1237322e-06
        %v7608 = vadd.f32 %v7607, 0.00028619796
        %v7609 = vmul.f32 %v7606, %v7608
        %v7610 = vadd.f32 %v7609, 0.0036580483
        %v7611 = vmul.f32 %v7606, %v7610
        %v7612 = vadd.f32 %v7611, 0.05243302
        %v7613 = vmul.f32 %v7606, %v7612
        %v7614 = vadd.f32 %v7613, 0.18741608
        %v7615 = vmul.f32 %v7606, %v7614
        %v7616 = vadd.f32 %v7615, 1.1283791
        %v7617 = vmul.f32 %v4268, %v7616
        %v7618 = vmul.f32 %v7606, 3.8918573e-05
        %v7619 = vadd.f32 %v7618, 0.001143296
        %v7620 = vmul.f32 %v7606, %v7619
        %v7621 = vadd.f32 %v7620, 0.014752088
        %v7622 = vmul.f32 %v7606, %v7621
        %v7623 = vadd.f32 %v7622, 0.112945676
        %v7624 = vmul.f32 %v7606, %v7623
        %v7625 = vadd.f32 %v7624, 0.4994258
        %v7626 = vmul.f32 %v7606, %v7625
        %v7627 = vadd.f32 %v7626, 1.0
        %v7628 = vrcp.pop %v7627
        %v7629 = vmul.f32 %v7627, %v7628
        %v7630 = vsub.f32 1.0, %v7629
        %v7631 = vmul.f32 %v7628, %v7630
        %v7632 = vadd.f32 %v7628, %v7631
        %vm7633 = vweird.f32 %v7627
        %vm7634 = vweird.f32 %v7628
        %vm7635 = vmor %vm7633, %vm7634
        %v7636 = vsel %vm7635, %v7628, %v7632
        %v7637 = vand.u32 2147483647, %v7627
        %vm7638 = vcmp.eq.f32.partialorder %v7637, 8.507059e+37
        %v7639 = vand.u32 %v7627, 2147483648
        %v7640 = vor.u32 1.1754944e-38, %v7639
        %v7641 = vsel %vm7638, %v7640, %v7636
        %v7642 = vmul.f32 %v7617, %v7641
        %v7643 = vmin.f32 %v7642, 1.0
        %v7644 = vmax.f32 %v7643, -1.0
        %v7645 = vmul.f32 %v4269, %v4269
        %v7646 = vmin.f32 16.0, %v7645
        %v7647 = vmul.f32 %v7646, 2.1237322e-06
        %v7648 = vadd.f32 %v7647, 0.00028619796
        %v7649 = vmul.f32 %v7646, %v7648
        %v7650 = vadd.f32 %v7649, 0.0036580483
        %v7651 = vmul.f32 %v7646, %v7650
        %v7652 = vadd.f32 %v7651, 0.05243302
        %v7653 = vmul.f32 %v7646, %v7652
        %v7654 = vadd.f32 %v7653, 0.18741608
        %v7655 = vmul.f32 %v7646, %v7654
        %v7656 = vadd.f32 %v7655, 1.1283791
        %v7657 = vmul.f32 %v4269, %v7656
        %v7658 = vmul.f32 %v7646, 3.8918573e-05
        %v7659 = vadd.f32 %v7658, 0.001143296
        %v7660 = vmul.f32 %v7646, %v7659
        %v7661 = vadd.f32 %v7660, 0.014752088
        %v7662 = vmul.f32 %v7646, %v7661
        %v7663 = vadd.f32 %v7662, 0.112945676
        %v7664 = vmul.f32 %v7646, %v7663
        %v7665 = vadd.f32 %v7664, 0.4994258
        %v7666 = vmul.f32 %v7646, %v7665
        %v7667 = vadd.f32 %v7666, 1.0
        %v7668 = vrcp.pop %v7667
        %v7669 = vmul.f32 %v7667, %v7668
        %v7670 = vsub.f32 1.0, %v7669
        %v7671 = vmul.f32 %v7668, %v7670
        %v7672 = vadd.f32 %v7668, %v7671
        %vm7673 = vweird.f32 %v7667
        %vm7674 = vweird.f32 %v7668
        %vm7675 = vmor %vm7673, %vm7674
        %v7676 = vsel %vm7675, %v7668, %v7672
        %v7677 = vand.u32 2147483647, %v7667
        %vm7678 = vcmp.eq.f32.partialorder %v7677, 8.507059e+37
        %v7679 = vand.u32 %v7667, 2147483648
        %v7680 = vor.u32 1.1754944e-38, %v7679
        %v7681 = vsel %vm7678, %v7680, %v7676
        %v7682 = vmul.f32 %v7657, %v7681
        %v7683 = vmin.f32 %v7682, 1.0
        %v7684 = vmax.f32 %v7683, -1.0
        %v7685 = vmul.f32 %v4270, %v4270
        %v7686 = vmin.f32 16.0, %v7685
        %v7687 = vmul.f32 %v7686, 2.1237322e-06
        %v7688 = vadd.f32 %v7687, 0.00028619796
        %v7689 = vmul.f32 %v7686, %v7688
        %v7690 = vadd.f32 %v7689, 0.0036580483
        %v7691 = vmul.f32 %v7686, %v7690
        %v7692 = vadd.f32 %v7691, 0.05243302
        %v7693 = vmul.f32 %v7686, %v7692
        %v7694 = vadd.f32 %v7693, 0.18741608
        %v7695 = vmul.f32 %v7686, %v7694
        %v7696 = vadd.f32 %v7695, 1.1283791
        %v7697 = vmul.f32 %v4270, %v7696
        %v7698 = vmul.f32 %v7686, 3.8918573e-05
        %v7699 = vadd.f32 %v7698, 0.001143296
        %v7700 = vmul.f32 %v7686, %v7699
        %v7701 = vadd.f32 %v7700, 0.014752088
        %v7702 = vmul.f32 %v7686, %v7701
        %v7703 = vadd.f32 %v7702, 0.112945676
        %v7704 = vmul.f32 %v7686, %v7703
        %v7705 = vadd.f32 %v7704, 0.4994258
        %v7706 = vmul.f32 %v7686, %v7705
        %v7707 = vadd.f32 %v7706, 1.0
        %v7708 = vrcp.pop %v7707
        %v7709 = vmul.f32 %v7707, %v7708
        %v7710 = vsub.f32 1.0, %v7709
        %v7711 = vmul.f32 %v7708, %v7710
        %v7712 = vadd.f32 %v7708, %v7711
        %vm7713 = vweird.f32 %v7707
        %vm7714 = vweird.f32 %v7708
        %vm7715 = vmor %vm7713, %vm7714
        %v7716 = vsel %vm7715, %v7708, %v7712
        %v7717 = vand.u32 2147483647, %v7707
        %vm7718 = vcmp.eq.f32.partialorder %v7717, 8.507059e+37
        %v7719 = vand.u32 %v7707, 2147483648
        %v7720 = vor.u32 1.1754944e-38, %v7719
        %v7721 = vsel %vm7718, %v7720, %v7716
        %v7722 = vmul.f32 %v7697, %v7721
        %v7723 = vmin.f32 %v7722, 1.0
        %v7724 = vmax.f32 %v7723, -1.0
        %v7725 = vmul.f32 %v4271, %v4271
        %v7726 = vmin.f32 16.0, %v7725
        %v7727 = vmul.f32 %v7726, 2.1237322e-06
        %v7728 = vadd.f32 %v7727, 0.00028619796
        %v7729 = vmul.f32 %v7726, %v7728
        %v7730 = vadd.f32 %v7729, 0.0036580483
        %v7731 = vmul.f32 %v7726, %v7730
        %v7732 = vadd.f32 %v7731, 0.05243302
        %v7733 = vmul.f32 %v7726, %v7732
        %v7734 = vadd.f32 %v7733, 0.18741608
        %v7735 = vmul.f32 %v7726, %v7734
        %v7736 = vadd.f32 %v7735, 1.1283791
        %v7737 = vmul.f32 %v4271, %v7736
        %v7738 = vmul.f32 %v7726, 3.8918573e-05
        %v7739 = vadd.f32 %v7738, 0.001143296
        %v7740 = vmul.f32 %v7726, %v7739
        %v7741 = vadd.f32 %v7740, 0.014752088
        %v7742 = vmul.f32 %v7726, %v7741
        %v7743 = vadd.f32 %v7742, 0.112945676
        %v7744 = vmul.f32 %v7726, %v7743
        %v7745 = vadd.f32 %v7744, 0.4994258
        %v7746 = vmul.f32 %v7726, %v7745
        %v7747 = vadd.f32 %v7746, 1.0
        %v7748 = vrcp.pop %v7747
        %v7749 = vmul.f32 %v7747, %v7748
        %v7750 = vsub.f32 1.0, %v7749
        %v7751 = vmul.f32 %v7748, %v7750
        %v7752 = vadd.f32 %v7748, %v7751
        %vm7753 = vweird.f32 %v7747
        %vm7754 = vweird.f32 %v7748
        %vm7755 = vmor %vm7753, %vm7754
        %v7756 = vsel %vm7755, %v7748, %v7752
        %v7757 = vand.u32 2147483647, %v7747
        %vm7758 = vcmp.eq.f32.partialorder %v7757, 8.507059e+37
        %v7759 = vand.u32 %v7747, 2147483648
        %v7760 = vor.u32 1.1754944e-38, %v7759
        %v7761 = vsel %vm7758, %v7760, %v7756
        %v7762 = vmul.f32 %v7737, %v7761
        %v7763 = vmin.f32 %v7762, 1.0
        %v7764 = vmax.f32 %v7763, -1.0
        %v7765 = vmul.f32 %v4272, %v4272
        %v7766 = vmin.f32 16.0, %v7765
        %v7767 = vmul.f32 %v7766, 2.1237322e-06
        %v7768 = vadd.f32 %v7767, 0.00028619796
        %v7769 = vmul.f32 %v7766, %v7768
        %v7770 = vadd.f32 %v7769, 0.0036580483
        %v7771 = vmul.f32 %v7766, %v7770
        %v7772 = vadd.f32 %v7771, 0.05243302
        %v7773 = vmul.f32 %v7766, %v7772
        %v7774 = vadd.f32 %v7773, 0.18741608
        %v7775 = vmul.f32 %v7766, %v7774
        %v7776 = vadd.f32 %v7775, 1.1283791
        %v7777 = vmul.f32 %v4272, %v7776
        %v7778 = vmul.f32 %v7766, 3.8918573e-05
        %v7779 = vadd.f32 %v7778, 0.001143296
        %v7780 = vmul.f32 %v7766, %v7779
        %v7781 = vadd.f32 %v7780, 0.014752088
        %v7782 = vmul.f32 %v7766, %v7781
        %v7783 = vadd.f32 %v7782, 0.112945676
        %v7784 = vmul.f32 %v7766, %v7783
        %v7785 = vadd.f32 %v7784, 0.4994258
        %v7786 = vmul.f32 %v7766, %v7785
        %v7787 = vadd.f32 %v7786, 1.0
        %v7788 = vrcp.pop %v7787
        %v7789 = vmul.f32 %v7787, %v7788
        %v7790 = vsub.f32 1.0, %v7789
        %v7791 = vmul.f32 %v7788, %v7790
        %v7792 = vadd.f32 %v7788, %v7791
        %vm7793 = vweird.f32 %v7787
        %vm7794 = vweird.f32 %v7788
        %vm7795 = vmor %vm7793, %vm7794
        %v7796 = vsel %vm7795, %v7788, %v7792
        %v7797 = vand.u32 2147483647, %v7787
        %vm7798 = vcmp.eq.f32.partialorder %v7797, 8.507059e+37
        %v7799 = vand.u32 %v7787, 2147483648
        %v7800 = vor.u32 1.1754944e-38, %v7799
        %v7801 = vsel %vm7798, %v7800, %v7796
        %v7802 = vmul.f32 %v7777, %v7801
        %v7803 = vmin.f32 %v7802, 1.0
        %v7804 = vmax.f32 %v7803, -1.0
        %v7805 = vmul.f32 %v4273, %v4273
        %v7806 = vmin.f32 16.0, %v7805
        %v7807 = vmul.f32 %v7806, 2.1237322e-06
        %v7808 = vadd.f32 %v7807, 0.00028619796
        %v7809 = vmul.f32 %v7806, %v7808
        %v7810 = vadd.f32 %v7809, 0.0036580483
        %v7811 = vmul.f32 %v7806, %v7810
        %v7812 = vadd.f32 %v7811, 0.05243302
        %v7813 = vmul.f32 %v7806, %v7812
        %v7814 = vadd.f32 %v7813, 0.18741608
        %v7815 = vmul.f32 %v7806, %v7814
        %v7816 = vadd.f32 %v7815, 1.1283791
        %v7817 = vmul.f32 %v4273, %v7816
        %v7818 = vmul.f32 %v7806, 3.8918573e-05
        %v7819 = vadd.f32 %v7818, 0.001143296
        %v7820 = vmul.f32 %v7806, %v7819
        %v7821 = vadd.f32 %v7820, 0.014752088
        %v7822 = vmul.f32 %v7806, %v7821
        %v7823 = vadd.f32 %v7822, 0.112945676
        %v7824 = vmul.f32 %v7806, %v7823
        %v7825 = vadd.f32 %v7824, 0.4994258
        %v7826 = vmul.f32 %v7806, %v7825
        %v7827 = vadd.f32 %v7826, 1.0
        %v7828 = vrcp.pop %v7827
        %v7829 = vmul.f32 %v7827, %v7828
        %v7830 = vsub.f32 1.0, %v7829
        %v7831 = vmul.f32 %v7828, %v7830
        %v7832 = vadd.f32 %v7828, %v7831
        %vm7833 = vweird.f32 %v7827
        %vm7834 = vweird.f32 %v7828
        %vm7835 = vmor %vm7833, %vm7834
        %v7836 = vsel %vm7835, %v7828, %v7832
        %v7837 = vand.u32 2147483647, %v7827
        %vm7838 = vcmp.eq.f32.partialorder %v7837, 8.507059e+37
        %v7839 = vand.u32 %v7827, 2147483648
        %v7840 = vor.u32 1.1754944e-38, %v7839
        %v7841 = vsel %vm7838, %v7840, %v7836
        %v7842 = vmul.f32 %v7817, %v7841
        %v7843 = vmin.f32 %v7842, 1.0
        %v7844 = vmax.f32 %v7843, -1.0
        %v7845 = vmul.f32 %v4274, %v4274
        %v7846 = vmin.f32 16.0, %v7845
        %v7847 = vmul.f32 %v7846, 2.1237322e-06
        %v7848 = vadd.f32 %v7847, 0.00028619796
        %v7849 = vmul.f32 %v7846, %v7848
        %v7850 = vadd.f32 %v7849, 0.0036580483
        %v7851 = vmul.f32 %v7846, %v7850
        %v7852 = vadd.f32 %v7851, 0.05243302
        %v7853 = vmul.f32 %v7846, %v7852
        %v7854 = vadd.f32 %v7853, 0.18741608
        %v7855 = vmul.f32 %v7846, %v7854
        %v7856 = vadd.f32 %v7855, 1.1283791
        %v7857 = vmul.f32 %v4274, %v7856
        %v7858 = vmul.f32 %v7846, 3.8918573e-05
        %v7859 = vadd.f32 %v7858, 0.001143296
        %v7860 = vmul.f32 %v7846, %v7859
        %v7861 = vadd.f32 %v7860, 0.014752088
        %v7862 = vmul.f32 %v7846, %v7861
        %v7863 = vadd.f32 %v7862, 0.112945676
        %v7864 = vmul.f32 %v7846, %v7863
        %v7865 = vadd.f32 %v7864, 0.4994258
        %v7866 = vmul.f32 %v7846, %v7865
        %v7867 = vadd.f32 %v7866, 1.0
        %v7868 = vrcp.pop %v7867
        %v7869 = vmul.f32 %v7867, %v7868
        %v7870 = vsub.f32 1.0, %v7869
        %v7871 = vmul.f32 %v7868, %v7870
        %v7872 = vadd.f32 %v7868, %v7871
        %vm7873 = vweird.f32 %v7867
        %vm7874 = vweird.f32 %v7868
        %vm7875 = vmor %vm7873, %vm7874
        %v7876 = vsel %vm7875, %v7868, %v7872
        %v7877 = vand.u32 2147483647, %v7867
        %vm7878 = vcmp.eq.f32.partialorder %v7877, 8.507059e+37
        %v7879 = vand.u32 %v7867, 2147483648
        %v7880 = vor.u32 1.1754944e-38, %v7879
        %v7881 = vsel %vm7878, %v7880, %v7876
        %v7882 = vmul.f32 %v7857, %v7881
        %v7883 = vmin.f32 %v7882, 1.0
        %v7884 = vmax.f32 %v7883, -1.0
        %v7885 = vmul.f32 %v4275, %v4275
        %v7886 = vmin.f32 16.0, %v7885
        %v7887 = vmul.f32 %v7886, 2.1237322e-06
        %v7888 = vadd.f32 %v7887, 0.00028619796
        %v7889 = vmul.f32 %v7886, %v7888
        %v7890 = vadd.f32 %v7889, 0.0036580483
        %v7891 = vmul.f32 %v7886, %v7890
        %v7892 = vadd.f32 %v7891, 0.05243302
        %v7893 = vmul.f32 %v7886, %v7892
        %v7894 = vadd.f32 %v7893, 0.18741608
        %v7895 = vmul.f32 %v7886, %v7894
        %v7896 = vadd.f32 %v7895, 1.1283791
        %v7897 = vmul.f32 %v4275, %v7896
        %v7898 = vmul.f32 %v7886, 3.8918573e-05
        %v7899 = vadd.f32 %v7898, 0.001143296
        %v7900 = vmul.f32 %v7886, %v7899
        %v7901 = vadd.f32 %v7900, 0.014752088
        %v7902 = vmul.f32 %v7886, %v7901
        %v7903 = vadd.f32 %v7902, 0.112945676
        %v7904 = vmul.f32 %v7886, %v7903
        %v7905 = vadd.f32 %v7904, 0.4994258
        %v7906 = vmul.f32 %v7886, %v7905
        %v7907 = vadd.f32 %v7906, 1.0
        %v7908 = vrcp.pop %v7907
        %v7909 = vmul.f32 %v7907, %v7908
        %v7910 = vsub.f32 1.0, %v7909
        %v7911 = vmul.f32 %v7908, %v7910
        %v7912 = vadd.f32 %v7908, %v7911
        %vm7913 = vweird.f32 %v7907
        %vm7914 = vweird.f32 %v7908
        %vm7915 = vmor %vm7913, %vm7914
        %v7916 = vsel %vm7915, %v7908, %v7912
        %v7917 = vand.u32 2147483647, %v7907
        %vm7918 = vcmp.eq.f32.partialorder %v7917, 8.507059e+37
        %v7919 = vand.u32 %v7907, 2147483648
        %v7920 = vor.u32 1.1754944e-38, %v7919
        %v7921 = vsel %vm7918, %v7920, %v7916
        %v7922 = vmul.f32 %v7897, %v7921
        %v7923 = vmin.f32 %v7922, 1.0
        %v7924 = vmax.f32 %v7923, -1.0
        %v7925 = vmul.f32 %v4276, %v4276
        %v7926 = vmin.f32 16.0, %v7925
        %v7927 = vmul.f32 %v7926, 2.1237322e-06
        %v7928 = vadd.f32 %v7927, 0.00028619796
        %v7929 = vmul.f32 %v7926, %v7928
        %v7930 = vadd.f32 %v7929, 0.0036580483
        %v7931 = vmul.f32 %v7926, %v7930
        %v7932 = vadd.f32 %v7931, 0.05243302
        %v7933 = vmul.f32 %v7926, %v7932
        %v7934 = vadd.f32 %v7933, 0.18741608
        %v7935 = vmul.f32 %v7926, %v7934
        %v7936 = vadd.f32 %v7935, 1.1283791
        %v7937 = vmul.f32 %v4276, %v7936
        %v7938 = vmul.f32 %v7926, 3.8918573e-05
        %v7939 = vadd.f32 %v7938, 0.001143296
        %v7940 = vmul.f32 %v7926, %v7939
        %v7941 = vadd.f32 %v7940, 0.014752088
        %v7942 = vmul.f32 %v7926, %v7941
        %v7943 = vadd.f32 %v7942, 0.112945676
        %v7944 = vmul.f32 %v7926, %v7943
        %v7945 = vadd.f32 %v7944, 0.4994258
        %v7946 = vmul.f32 %v7926, %v7945
        %v7947 = vadd.f32 %v7946, 1.0
        %v7948 = vrcp.pop %v7947
        %v7949 = vmul.f32 %v7947, %v7948
        %v7950 = vsub.f32 1.0, %v7949
        %v7951 = vmul.f32 %v7948, %v7950
        %v7952 = vadd.f32 %v7948, %v7951
        %vm7953 = vweird.f32 %v7947
        %vm7954 = vweird.f32 %v7948
        %vm7955 = vmor %vm7953, %vm7954
        %v7956 = vsel %vm7955, %v7948, %v7952
        %v7957 = vand.u32 2147483647, %v7947
        %vm7958 = vcmp.eq.f32.partialorder %v7957, 8.507059e+37
        %v7959 = vand.u32 %v7947, 2147483648
        %v7960 = vor.u32 1.1754944e-38, %v7959
        %v7961 = vsel %vm7958, %v7960, %v7956
        %v7962 = vmul.f32 %v7937, %v7961
        %v7963 = vmin.f32 %v7962, 1.0
        %v7964 = vmax.f32 %v7963, -1.0
        %v7965 = vmul.f32 %v4277, %v4277
        %v7966 = vmin.f32 16.0, %v7965
        %v7967 = vmul.f32 %v7966, 2.1237322e-06
        %v7968 = vadd.f32 %v7967, 0.00028619796
        %v7969 = vmul.f32 %v7966, %v7968
        %v7970 = vadd.f32 %v7969, 0.0036580483
        %v7971 = vmul.f32 %v7966, %v7970
        %v7972 = vadd.f32 %v7971, 0.05243302
        %v7973 = vmul.f32 %v7966, %v7972
        %v7974 = vadd.f32 %v7973, 0.18741608
        %v7975 = vmul.f32 %v7966, %v7974
        %v7976 = vadd.f32 %v7975, 1.1283791
        %v7977 = vmul.f32 %v4277, %v7976
        %v7978 = vmul.f32 %v7966, 3.8918573e-05
        %v7979 = vadd.f32 %v7978, 0.001143296
        %v7980 = vmul.f32 %v7966, %v7979
        %v7981 = vadd.f32 %v7980, 0.014752088
        %v7982 = vmul.f32 %v7966, %v7981
        %v7983 = vadd.f32 %v7982, 0.112945676
        %v7984 = vmul.f32 %v7966, %v7983
        %v7985 = vadd.f32 %v7984, 0.4994258
        %v7986 = vmul.f32 %v7966, %v7985
        %v7987 = vadd.f32 %v7986, 1.0
        %v7988 = vrcp.pop %v7987
        %v7989 = vmul.f32 %v7987, %v7988
        %v7990 = vsub.f32 1.0, %v7989
        %v7991 = vmul.f32 %v7988, %v7990
        %v7992 = vadd.f32 %v7988, %v7991
        %vm7993 = vweird.f32 %v7987
        %vm7994 = vweird.f32 %v7988
        %vm7995 = vmor %vm7993, %vm7994
        %v7996 = vsel %vm7995, %v7988, %v7992
        %v7997 = vand.u32 2147483647, %v7987
        %vm7998 = vcmp.eq.f32.partialorder %v7997, 8.507059e+37
        %v7999 = vand.u32 %v7987, 2147483648
        %v8000 = vor.u32 1.1754944e-38, %v7999
        %v8001 = vsel %vm7998, %v8000, %v7996
        %v8002 = vmul.f32 %v7977, %v8001
        %v8003 = vmin.f32 %v8002, 1.0
        %v8004 = vmax.f32 %v8003, -1.0
        %v8005 = vmul.f32 %v4278, %v4278
        %v8006 = vmin.f32 16.0, %v8005
        %v8007 = vmul.f32 %v8006, 2.1237322e-06
        %v8008 = vadd.f32 %v8007, 0.00028619796
        %v8009 = vmul.f32 %v8006, %v8008
        %v8010 = vadd.f32 %v8009, 0.0036580483
        %v8011 = vmul.f32 %v8006, %v8010
        %v8012 = vadd.f32 %v8011, 0.05243302
        %v8013 = vmul.f32 %v8006, %v8012
        %v8014 = vadd.f32 %v8013, 0.18741608
        %v8015 = vmul.f32 %v8006, %v8014
        %v8016 = vadd.f32 %v8015, 1.1283791
        %v8017 = vmul.f32 %v4278, %v8016
        %v8018 = vmul.f32 %v8006, 3.8918573e-05
        %v8019 = vadd.f32 %v8018, 0.001143296
        %v8020 = vmul.f32 %v8006, %v8019
        %v8021 = vadd.f32 %v8020, 0.014752088
        %v8022 = vmul.f32 %v8006, %v8021
        %v8023 = vadd.f32 %v8022, 0.112945676
        %v8024 = vmul.f32 %v8006, %v8023
        %v8025 = vadd.f32 %v8024, 0.4994258
        %v8026 = vmul.f32 %v8006, %v8025
        %v8027 = vadd.f32 %v8026, 1.0
        %v8028 = vrcp.pop %v8027
        %v8029 = vmul.f32 %v8027, %v8028
        %v8030 = vsub.f32 1.0, %v8029
        %v8031 = vmul.f32 %v8028, %v8030
        %v8032 = vadd.f32 %v8028, %v8031
        %vm8033 = vweird.f32 %v8027
        %vm8034 = vweird.f32 %v8028
        %vm8035 = vmor %vm8033, %vm8034
        %v8036 = vsel %vm8035, %v8028, %v8032
        %v8037 = vand.u32 2147483647, %v8027
        %vm8038 = vcmp.eq.f32.partialorder %v8037, 8.507059e+37
        %v8039 = vand.u32 %v8027, 2147483648
        %v8040 = vor.u32 1.1754944e-38, %v8039
        %v8041 = vsel %vm8038, %v8040, %v8036
        %v8042 = vmul.f32 %v8017, %v8041
        %v8043 = vmin.f32 %v8042, 1.0
        %v8044 = vmax.f32 %v8043, -1.0
        %v8045 = vmul.f32 %v4279, %v4279
        %v8046 = vmin.f32 16.0, %v8045
        %v8047 = vmul.f32 %v8046, 2.1237322e-06
        %v8048 = vadd.f32 %v8047, 0.00028619796
        %v8049 = vmul.f32 %v8046, %v8048
        %v8050 = vadd.f32 %v8049, 0.0036580483
        %v8051 = vmul.f32 %v8046, %v8050
        %v8052 = vadd.f32 %v8051, 0.05243302
        %v8053 = vmul.f32 %v8046, %v8052
        %v8054 = vadd.f32 %v8053, 0.18741608
        %v8055 = vmul.f32 %v8046, %v8054
        %v8056 = vadd.f32 %v8055, 1.1283791
        %v8057 = vmul.f32 %v4279, %v8056
        %v8058 = vmul.f32 %v8046, 3.8918573e-05
        %v8059 = vadd.f32 %v8058, 0.001143296
        %v8060 = vmul.f32 %v8046, %v8059
        %v8061 = vadd.f32 %v8060, 0.014752088
        %v8062 = vmul.f32 %v8046, %v8061
        %v8063 = vadd.f32 %v8062, 0.112945676
        %v8064 = vmul.f32 %v8046, %v8063
        %v8065 = vadd.f32 %v8064, 0.4994258
        %v8066 = vmul.f32 %v8046, %v8065
        %v8067 = vadd.f32 %v8066, 1.0
        %v8068 = vrcp.pop %v8067
        %v8069 = vmul.f32 %v8067, %v8068
        %v8070 = vsub.f32 1.0, %v8069
        %v8071 = vmul.f32 %v8068, %v8070
        %v8072 = vadd.f32 %v8068, %v8071
        %vm8073 = vweird.f32 %v8067
        %vm8074 = vweird.f32 %v8068
        %vm8075 = vmor %vm8073, %vm8074
        %v8076 = vsel %vm8075, %v8068, %v8072
        %v8077 = vand.u32 2147483647, %v8067
        %vm8078 = vcmp.eq.f32.partialorder %v8077, 8.507059e+37
        %v8079 = vand.u32 %v8067, 2147483648
        %v8080 = vor.u32 1.1754944e-38, %v8079
        %v8081 = vsel %vm8078, %v8080, %v8076
        %v8082 = vmul.f32 %v8057, %v8081
        %v8083 = vmin.f32 %v8082, 1.0
        %v8084 = vmax.f32 %v8083, -1.0
        %v8085 = vmul.f32 %v4280, %v4280
        %v8086 = vmin.f32 16.0, %v8085
        %v8087 = vmul.f32 %v8086, 2.1237322e-06
        %v8088 = vadd.f32 %v8087, 0.00028619796
        %v8089 = vmul.f32 %v8086, %v8088
        %v8090 = vadd.f32 %v8089, 0.0036580483
        %v8091 = vmul.f32 %v8086, %v8090
        %v8092 = vadd.f32 %v8091, 0.05243302
        %v8093 = vmul.f32 %v8086, %v8092
        %v8094 = vadd.f32 %v8093, 0.18741608
        %v8095 = vmul.f32 %v8086, %v8094
        %v8096 = vadd.f32 %v8095, 1.1283791
        %v8097 = vmul.f32 %v4280, %v8096
        %v8098 = vmul.f32 %v8086, 3.8918573e-05
        %v8099 = vadd.f32 %v8098, 0.001143296
        %v8100 = vmul.f32 %v8086, %v8099
        %v8101 = vadd.f32 %v8100, 0.014752088
        %v8102 = vmul.f32 %v8086, %v8101
        %v8103 = vadd.f32 %v8102, 0.112945676
        %v8104 = vmul.f32 %v8086, %v8103
        %v8105 = vadd.f32 %v8104, 0.4994258
        %v8106 = vmul.f32 %v8086, %v8105
        %v8107 = vadd.f32 %v8106, 1.0
        %v8108 = vrcp.pop %v8107
        %v8109 = vmul.f32 %v8107, %v8108
        %v8110 = vsub.f32 1.0, %v8109
        %v8111 = vmul.f32 %v8108, %v8110
        %v8112 = vadd.f32 %v8108, %v8111
        %vm8113 = vweird.f32 %v8107
        %vm8114 = vweird.f32 %v8108
        %vm8115 = vmor %vm8113, %vm8114
        %v8116 = vsel %vm8115, %v8108, %v8112
        %v8117 = vand.u32 2147483647, %v8107
        %vm8118 = vcmp.eq.f32.partialorder %v8117, 8.507059e+37
        %v8119 = vand.u32 %v8107, 2147483648
        %v8120 = vor.u32 1.1754944e-38, %v8119
        %v8121 = vsel %vm8118, %v8120, %v8116
        %v8122 = vmul.f32 %v8097, %v8121
        %v8123 = vmin.f32 %v8122, 1.0
        %v8124 = vmax.f32 %v8123, -1.0
        %v8125 = vmul.f32 %v4281, %v4281
        %v8126 = vmin.f32 16.0, %v8125
        %v8127 = vmul.f32 %v8126, 2.1237322e-06
        %v8128 = vadd.f32 %v8127, 0.00028619796
        %v8129 = vmul.f32 %v8126, %v8128
        %v8130 = vadd.f32 %v8129, 0.0036580483
        %v8131 = vmul.f32 %v8126, %v8130
        %v8132 = vadd.f32 %v8131, 0.05243302
        %v8133 = vmul.f32 %v8126, %v8132
        %v8134 = vadd.f32 %v8133, 0.18741608
        %v8135 = vmul.f32 %v8126, %v8134
        %v8136 = vadd.f32 %v8135, 1.1283791
        %v8137 = vmul.f32 %v4281, %v8136
        %v8138 = vmul.f32 %v8126, 3.8918573e-05
        %v8139 = vadd.f32 %v8138, 0.001143296
        %v8140 = vmul.f32 %v8126, %v8139
        %v8141 = vadd.f32 %v8140, 0.014752088
        %v8142 = vmul.f32 %v8126, %v8141
        %v8143 = vadd.f32 %v8142, 0.112945676
        %v8144 = vmul.f32 %v8126, %v8143
        %v8145 = vadd.f32 %v8144, 0.4994258
        %v8146 = vmul.f32 %v8126, %v8145
        %v8147 = vadd.f32 %v8146, 1.0
        %v8148 = vrcp.pop %v8147
        %v8149 = vmul.f32 %v8147, %v8148
        %v8150 = vsub.f32 1.0, %v8149
        %v8151 = vmul.f32 %v8148, %v8150
        %v8152 = vadd.f32 %v8148, %v8151
        %vm8153 = vweird.f32 %v8147
        %vm8154 = vweird.f32 %v8148
        %vm8155 = vmor %vm8153, %vm8154
        %v8156 = vsel %vm8155, %v8148, %v8152
        %v8157 = vand.u32 2147483647, %v8147
        %vm8158 = vcmp.eq.f32.partialorder %v8157, 8.507059e+37
        %v8159 = vand.u32 %v8147, 2147483648
        %v8160 = vor.u32 1.1754944e-38, %v8159
        %v8161 = vsel %vm8158, %v8160, %v8156
        %v8162 = vmul.f32 %v8137, %v8161
        %v8163 = vmin.f32 %v8162, 1.0
        %v8164 = vmax.f32 %v8163, -1.0
        %v8165 = vmul.f32 %v4282, %v4282
        %v8166 = vmin.f32 16.0, %v8165
        %v8167 = vmul.f32 %v8166, 2.1237322e-06
        %v8168 = vadd.f32 %v8167, 0.00028619796
        %v8169 = vmul.f32 %v8166, %v8168
        %v8170 = vadd.f32 %v8169, 0.0036580483
        %v8171 = vmul.f32 %v8166, %v8170
        %v8172 = vadd.f32 %v8171, 0.05243302
        %v8173 = vmul.f32 %v8166, %v8172
        %v8174 = vadd.f32 %v8173, 0.18741608
        %v8175 = vmul.f32 %v8166, %v8174
        %v8176 = vadd.f32 %v8175, 1.1283791
        %v8177 = vmul.f32 %v4282, %v8176
        %v8178 = vmul.f32 %v8166, 3.8918573e-05
        %v8179 = vadd.f32 %v8178, 0.001143296
        %v8180 = vmul.f32 %v8166, %v8179
        %v8181 = vadd.f32 %v8180, 0.014752088
        %v8182 = vmul.f32 %v8166, %v8181
        %v8183 = vadd.f32 %v8182, 0.112945676
        %v8184 = vmul.f32 %v8166, %v8183
        %v8185 = vadd.f32 %v8184, 0.4994258
        %v8186 = vmul.f32 %v8166, %v8185
        %v8187 = vadd.f32 %v8186, 1.0
        %v8188 = vrcp.pop %v8187
        %v8189 = vmul.f32 %v8187, %v8188
        %v8190 = vsub.f32 1.0, %v8189
        %v8191 = vmul.f32 %v8188, %v8190
        %v8192 = vadd.f32 %v8188, %v8191
        %vm8193 = vweird.f32 %v8187
        %vm8194 = vweird.f32 %v8188
        %vm8195 = vmor %vm8193, %vm8194
        %v8196 = vsel %vm8195, %v8188, %v8192
        %v8197 = vand.u32 2147483647, %v8187
        %vm8198 = vcmp.eq.f32.partialorder %v8197, 8.507059e+37
        %v8199 = vand.u32 %v8187, 2147483648
        %v8200 = vor.u32 1.1754944e-38, %v8199
        %v8201 = vsel %vm8198, %v8200, %v8196
        %v8202 = vmul.f32 %v8177, %v8201
        %v8203 = vmin.f32 %v8202, 1.0
        %v8204 = vmax.f32 %v8203, -1.0
        %v8205 = vmul.f32 %v4283, %v4283
        %v8206 = vmin.f32 16.0, %v8205
        %v8207 = vmul.f32 %v8206, 2.1237322e-06
        %v8208 = vadd.f32 %v8207, 0.00028619796
        %v8209 = vmul.f32 %v8206, %v8208
        %v8210 = vadd.f32 %v8209, 0.0036580483
        %v8211 = vmul.f32 %v8206, %v8210
        %v8212 = vadd.f32 %v8211, 0.05243302
        %v8213 = vmul.f32 %v8206, %v8212
        %v8214 = vadd.f32 %v8213, 0.18741608
        %v8215 = vmul.f32 %v8206, %v8214
        %v8216 = vadd.f32 %v8215, 1.1283791
        %v8217 = vmul.f32 %v4283, %v8216
        %v8218 = vmul.f32 %v8206, 3.8918573e-05
        %v8219 = vadd.f32 %v8218, 0.001143296
        %v8220 = vmul.f32 %v8206, %v8219
        %v8221 = vadd.f32 %v8220, 0.014752088
        %v8222 = vmul.f32 %v8206, %v8221
        %v8223 = vadd.f32 %v8222, 0.112945676
        %v8224 = vmul.f32 %v8206, %v8223
        %v8225 = vadd.f32 %v8224, 0.4994258
        %v8226 = vmul.f32 %v8206, %v8225
        %v8227 = vadd.f32 %v8226, 1.0
        %v8228 = vrcp.pop %v8227
        %v8229 = vmul.f32 %v8227, %v8228
        %v8230 = vsub.f32 1.0, %v8229
        %v8231 = vmul.f32 %v8228, %v8230
        %v8232 = vadd.f32 %v8228, %v8231
        %vm8233 = vweird.f32 %v8227
        %vm8234 = vweird.f32 %v8228
        %vm8235 = vmor %vm8233, %vm8234
        %v8236 = vsel %vm8235, %v8228, %v8232
        %v8237 = vand.u32 2147483647, %v8227
        %vm8238 = vcmp.eq.f32.partialorder %v8237, 8.507059e+37
        %v8239 = vand.u32 %v8227, 2147483648
        %v8240 = vor.u32 1.1754944e-38, %v8239
        %v8241 = vsel %vm8238, %v8240, %v8236
        %v8242 = vmul.f32 %v8217, %v8241
        %v8243 = vmin.f32 %v8242, 1.0
        %v8244 = vmax.f32 %v8243, -1.0
        %v8245 = vmul.f32 %v4284, %v4284
        %v8246 = vmin.f32 16.0, %v8245
        %v8247 = vmul.f32 %v8246, 2.1237322e-06
        %v8248 = vadd.f32 %v8247, 0.00028619796
        %v8249 = vmul.f32 %v8246, %v8248
        %v8250 = vadd.f32 %v8249, 0.0036580483
        %v8251 = vmul.f32 %v8246, %v8250
        %v8252 = vadd.f32 %v8251, 0.05243302
        %v8253 = vmul.f32 %v8246, %v8252
        %v8254 = vadd.f32 %v8253, 0.18741608
        %v8255 = vmul.f32 %v8246, %v8254
        %v8256 = vadd.f32 %v8255, 1.1283791
        %v8257 = vmul.f32 %v4284, %v8256
        %v8258 = vmul.f32 %v8246, 3.8918573e-05
        %v8259 = vadd.f32 %v8258, 0.001143296
        %v8260 = vmul.f32 %v8246, %v8259
        %v8261 = vadd.f32 %v8260, 0.014752088
        %v8262 = vmul.f32 %v8246, %v8261
        %v8263 = vadd.f32 %v8262, 0.112945676
        %v8264 = vmul.f32 %v8246, %v8263
        %v8265 = vadd.f32 %v8264, 0.4994258
        %v8266 = vmul.f32 %v8246, %v8265
        %v8267 = vadd.f32 %v8266, 1.0
        %v8268 = vrcp.pop %v8267
        %v8269 = vmul.f32 %v8267, %v8268
        %v8270 = vsub.f32 1.0, %v8269
        %v8271 = vmul.f32 %v8268, %v8270
        %v8272 = vadd.f32 %v8268, %v8271
        %vm8273 = vweird.f32 %v8267
        %vm8274 = vweird.f32 %v8268
        %vm8275 = vmor %vm8273, %vm8274
        %v8276 = vsel %vm8275, %v8268, %v8272
        %v8277 = vand.u32 2147483647, %v8267
        %vm8278 = vcmp.eq.f32.partialorder %v8277, 8.507059e+37
        %v8279 = vand.u32 %v8267, 2147483648
        %v8280 = vor.u32 1.1754944e-38, %v8279
        %v8281 = vsel %vm8278, %v8280, %v8276
        %v8282 = vmul.f32 %v8257, %v8281
        %v8283 = vmin.f32 %v8282, 1.0
        %v8284 = vmax.f32 %v8283, -1.0
        %v8285 = vadd.f32 %v4324, 1.0
        %v8286 = vadd.f32 %v4364, 1.0
        %v8287 = vadd.f32 %v4404, 1.0
        %v8288 = vadd.f32 %v4444, 1.0
        %v8289 = vadd.f32 %v4484, 1.0
        %v8290 = vadd.f32 %v4524, 1.0
        %v8291 = vadd.f32 %v4564, 1.0
        %v8292 = vadd.f32 %v4604, 1.0
        %v8293 = vadd.f32 %v4644, 1.0
        %v8294 = vadd.f32 %v4684, 1.0
        %v8295 = vadd.f32 %v4724, 1.0
        %v8296 = vadd.f32 %v4764, 1.0
        %v8297 = vadd.f32 %v4804, 1.0
        %v8298 = vadd.f32 %v4844, 1.0
        %v8299 = vadd.f32 %v4884, 1.0
        %v8300 = vadd.f32 %v4924, 1.0
        %v8301 = vadd.f32 %v4964, 1.0
        %v8302 = vadd.f32 %v5004, 1.0
        %v8303 = vadd.f32 %v5044, 1.0
        %v8304 = vadd.f32 %v5084, 1.0
        %v8305 = vadd.f32 %v5124, 1.0
        %v8306 = vadd.f32 %v5164, 1.0
        %v8307 = vadd.f32 %v5204, 1.0
        %v8308 = vadd.f32 %v5244, 1.0
        %v8309 = vadd.f32 %v5284, 1.0
        %v8310 = vadd.f32 %v5324, 1.0
        %v8311 = vadd.f32 %v5364, 1.0
        %v8312 = vadd.f32 %v5404, 1.0
        %v8313 = vadd.f32 %v5444, 1.0
        %v8314 = vadd.f32 %v5484, 1.0
        %v8315 = vadd.f32 %v5524, 1.0
        %v8316 = vadd.f32 %v5564, 1.0
        %v8317 = vadd.f32 %v5604, 1.0
        %v8318 = vadd.f32 %v5644, 1.0
        %v8319 = vadd.f32 %v5684, 1.0
        %v8320 = vadd.f32 %v5724, 1.0
        %v8321 = vadd.f32 %v5764, 1.0
        %v8322 = vadd.f32 %v5804, 1.0
        %v8323 = vadd.f32 %v5844, 1.0
        %v8324 = vadd.f32 %v5884, 1.0
        %v8325 = vadd.f32 %v5924, 1.0
        %v8326 = vadd.f32 %v5964, 1.0
        %v8327 = vadd.f32 %v6004, 1.0
        %v8328 = vadd.f32 %v6044, 1.0
        %v8329 = vadd.f32 %v6084, 1.0
        %v8330 = vadd.f32 %v6124, 1.0
        %v8331 = vadd.f32 %v6164, 1.0
        %v8332 = vadd.f32 %v6204, 1.0
        %v8333 = vadd.f32 %v6244, 1.0
        %v8334 = vadd.f32 %v6284, 1.0
        %v8335 = vadd.f32 %v6324, 1.0
        %v8336 = vadd.f32 %v6364, 1.0
        %v8337 = vadd.f32 %v6404, 1.0
        %v8338 = vadd.f32 %v6444, 1.0
        %v8339 = vadd.f32 %v6484, 1.0
        %v8340 = vadd.f32 %v6524, 1.0
        %v8341 = vadd.f32 %v6564, 1.0
        %v8342 = vadd.f32 %v6604, 1.0
        %v8343 = vadd.f32 %v6644, 1.0
        %v8344 = vadd.f32 %v6684, 1.0
        %v8345 = vadd.f32 %v6724, 1.0
        %v8346 = vadd.f32 %v6764, 1.0
        %v8347 = vadd.f32 %v6804, 1.0
        %v8348 = vadd.f32 %v6844, 1.0
        %v8349 = vadd.f32 %v6884, 1.0
        %v8350 = vadd.f32 %v6924, 1.0
        %v8351 = vadd.f32 %v6964, 1.0
        %v8352 = vadd.f32 %v7004, 1.0
        %v8353 = vadd.f32 %v7044, 1.0
        %v8354 = vadd.f32 %v7084, 1.0
        %v8355 = vadd.f32 %v7124, 1.0
        %v8356 = vadd.f32 %v7164, 1.0
        %v8357 = vadd.f32 %v7204, 1.0
        %v8358 = vadd.f32 %v7244, 1.0
        %v8359 = vadd.f32 %v7284, 1.0
        %v8360 = vadd.f32 %v7324, 1.0
        %v8361 = vadd.f32 %v7364, 1.0
        %v8362 = vadd.f32 %v7404, 1.0
        %v8363 = vadd.f32 %v7444, 1.0
        %v8364 = vadd.f32 %v7484, 1.0
        %v8365 = vadd.f32 %v7524, 1.0
        %v8366 = vadd.f32 %v7564, 1.0
        %v8367 = vadd.f32 %v7604, 1.0
        %v8368 = vadd.f32 %v7644, 1.0
        %v8369 = vadd.f32 %v7684, 1.0
        %v8370 = vadd.f32 %v7724, 1.0
        %v8371 = vadd.f32 %v7764, 1.0
        %v8372 = vadd.f32 %v7804, 1.0
        %v8373 = vadd.f32 %v7844, 1.0
        %v8374 = vadd.f32 %v7884, 1.0
        %v8375 = vadd.f32 %v7924, 1.0
        %v8376 = vadd.f32 %v7964, 1.0
        %v8377 = vadd.f32 %v8004, 1.0
        %v8378 = vadd.f32 %v8044, 1.0
        %v8379 = vadd.f32 %v8084, 1.0
        %v8380 = vadd.f32 %v8124, 1.0
        %v8381 = vadd.f32 %v8164, 1.0
        %v8382 = vadd.f32 %v8204, 1.0
        %v8383 = vadd.f32 %v8244, 1.0
        %v8384 = vadd.f32 %v8284, 1.0
        %v8385 = vmul.f32 %v4085, %v8285
        %v8386 = vmul.f32 %v4086, %v8286
        %v8387 = vmul.f32 %v4087, %v8287
        %v8388 = vmul.f32 %v4088, %v8288
        %v8389 = vmul.f32 %v4089, %v8289
        %v8390 = vmul.f32 %v4090, %v8290
        %v8391 = vmul.f32 %v4091, %v8291
        %v8392 = vmul.f32 %v4092, %v8292
        %v8393 = vmul.f32 %v4093, %v8293
        %v8394 = vmul.f32 %v4094, %v8294
        %v8395 = vmul.f32 %v4095, %v8295
        %v8396 = vmul.f32 %v4096, %v8296
        %v8397 = vmul.f32 %v4097, %v8297
        %v8398 = vmul.f32 %v4098, %v8298
        %v8399 = vmul.f32 %v4099, %v8299
        %v8400 = vmul.f32 %v4100, %v8300
        %v8401 = vmul.f32 %v4101, %v8301
        %v8402 = vmul.f32 %v4102, %v8302
        %v8403 = vmul.f32 %v4103, %v8303
        %v8404 = vmul.f32 %v4104, %v8304
        %v8405 = vmul.f32 %v4105, %v8305
        %v8406 = vmul.f32 %v4106, %v8306
        %v8407 = vmul.f32 %v4107, %v8307
        %v8408 = vmul.f32 %v4108, %v8308
        %v8409 = vmul.f32 %v4109, %v8309
        %v8410 = vmul.f32 %v4110, %v8310
        %v8411 = vmul.f32 %v4111, %v8311
        %v8412 = vmul.f32 %v4112, %v8312
        %v8413 = vmul.f32 %v4113, %v8313
        %v8414 = vmul.f32 %v4114, %v8314
        %v8415 = vmul.f32 %v4115, %v8315
        %v8416 = vmul.f32 %v4116, %v8316
        %v8417 = vmul.f32 %v4117, %v8317
        %v8418 = vmul.f32 %v4118, %v8318
        %v8419 = vmul.f32 %v4119, %v8319
        %v8420 = vmul.f32 %v4120, %v8320
        %v8421 = vmul.f32 %v4121, %v8321
        %v8422 = vmul.f32 %v4122, %v8322
        %v8423 = vmul.f32 %v4123, %v8323
        %v8424 = vmul.f32 %v4124, %v8324
        %v8425 = vmul.f32 %v4125, %v8325
        %v8426 = vmul.f32 %v4126, %v8326
        %v8427 = vmul.f32 %v4127, %v8327
        %v8428 = vmul.f32 %v4128, %v8328
        %v8429 = vmul.f32 %v4129, %v8329
        %v8430 = vmul.f32 %v4130, %v8330
        %v8431 = vmul.f32 %v4131, %v8331
        %v8432 = vmul.f32 %v4132, %v8332
        %v8433 = vmul.f32 %v4133, %v8333
        %v8434 = vmul.f32 %v4134, %v8334
        %v8435 = vmul.f32 %v4135, %v8335
        %v8436 = vmul.f32 %v4136, %v8336
        %v8437 = vmul.f32 %v4137, %v8337
        %v8438 = vmul.f32 %v4138, %v8338
        %v8439 = vmul.f32 %v4139, %v8339
        %v8440 = vmul.f32 %v4140, %v8340
        %v8441 = vmul.f32 %v4141, %v8341
        %v8442 = vmul.f32 %v4142, %v8342
        %v8443 = vmul.f32 %v4143, %v8343
        %v8444 = vmul.f32 %v4144, %v8344
        %v8445 = vmul.f32 %v4145, %v8345
        %v8446 = vmul.f32 %v4146, %v8346
        %v8447 = vmul.f32 %v4147, %v8347
        %v8448 = vmul.f32 %v4148, %v8348
        %v8449 = vmul.f32 %v4149, %v8349
        %v8450 = vmul.f32 %v4150, %v8350
        %v8451 = vmul.f32 %v4151, %v8351
        %v8452 = vmul.f32 %v4152, %v8352
        %v8453 = vmul.f32 %v4153, %v8353
        %v8454 = vmul.f32 %v4154, %v8354
        %v8455 = vmul.f32 %v4155, %v8355
        %v8456 = vmul.f32 %v4156, %v8356
        %v8457 = vmul.f32 %v4157, %v8357
        %v8458 = vmul.f32 %v4158, %v8358
        %v8459 = vmul.f32 %v4159, %v8359
        %v8460 = vmul.f32 %v4160, %v8360
        %v8461 = vmul.f32 %v4161, %v8361
        %v8462 = vmul.f32 %v4162, %v8362
        %v8463 = vmul.f32 %v4163, %v8363
        %v8464 = vmul.f32 %v4164, %v8364
        %v8465 = vmul.f32 %v4165, %v8365
        %v8466 = vmul.f32 %v4166, %v8366
        %v8467 = vmul.f32 %v4167, %v8367
        %v8468 = vmul.f32 %v4168, %v8368
        %v8469 = vmul.f32 %v4169, %v8369
        %v8470 = vmul.f32 %v4170, %v8370
        %v8471 = vmul.f32 %v4171, %v8371
        %v8472 = vmul.f32 %v4172, %v8372
        %v8473 = vmul.f32 %v4173, %v8373
        %v8474 = vmul.f32 %v4174, %v8374
        %v8475 = vmul.f32 %v4175, %v8375
        %v8476 = vmul.f32 %v4176, %v8376
        %v8477 = vmul.f32 %v4177, %v8377
        %v8478 = vmul.f32 %v4178, %v8378
        %v8479 = vmul.f32 %v4179, %v8379
        %v8480 = vmul.f32 %v4180, %v8380
        %v8481 = vmul.f32 %v4181, %v8381
        %v8482 = vmul.f32 %v4182, %v8382
        %v8483 = vmul.f32 %v4183, %v8383
        %v8484 = vmul.f32 %v4184, %v8384
        %v8485 = vld [vmem:[#allocation3] sm:$0xff]
        %v8486 = vld [vmem:[#allocation3 + $0x8] sm:$0xff]
        %v8487 = vld [vmem:[#allocation3 + $0x10] sm:$0xff]
        %v8488 = vld [vmem:[#allocation3 + $0x18] sm:$0xff]
        %v8489 = vld [vmem:[#allocation3 + $0x20] sm:$0xff]
        %v8490 = vld [vmem:[#allocation3 + $0x28] sm:$0xff]
        %v8491 = vld [vmem:[#allocation3 + $0x30] sm:$0xff]
        %v8492 = vld [vmem:[#allocation3 + $0x38] sm:$0xff]
        %v8493 = vld [vmem:[#allocation3 + $0x40] sm:$0xff]
        %v8494 = vld [vmem:[#allocation3 + $0x48] sm:$0xff]
        %v8495 = vld [vmem:[#allocation3 + $0x50] sm:$0xff]
        %v8496 = vld [vmem:[#allocation3 + $0x58] sm:$0xff]
        %v8497 = vld [vmem:[#allocation3 + $0x60] sm:$0xff]
        %v8498 = vld [vmem:[#allocation3 + $0x68] sm:$0xff]
        %v8499 = vld [vmem:[#allocation3 + $0x70] sm:$0xff]
        %v8500 = vld [vmem:[#allocation3 + $0x78] sm:$0xff]
        %v8501 = vld [vmem:[#allocation3 + $0x80] sm:$0xff]
        %v8502 = vld [vmem:[#allocation3 + $0x88] sm:$0xff]
        %v8503 = vld [vmem:[#allocation3 + $0x90] sm:$0xff]
        %v8504 = vld [vmem:[#allocation3 + $0x98] sm:$0xff]
        %v8505 = vld [vmem:[#allocation3 + $0xa0] sm:$0xff]
        %v8506 = vld [vmem:[#allocation3 + $0xa8] sm:$0xff]
        %v8507 = vld [vmem:[#allocation3 + $0xb0] sm:$0xff]
        %v8508 = vld [vmem:[#allocation3 + $0xb8] sm:$0xff]
        %v8509 = vld [vmem:[#allocation3 + $0xc0] sm:$0xff]
        %v8510 = vld [vmem:[#allocation3 + $0xc8] sm:$0xff]
        %v8511 = vld [vmem:[#allocation3 + $0xd0] sm:$0xff]
        %v8512 = vld [vmem:[#allocation3 + $0xd8] sm:$0xff]
        %v8513 = vld [vmem:[#allocation3 + $0xe0] sm:$0xff]
        %v8514 = vld [vmem:[#allocation3 + $0xe8] sm:$0xff]
        %v8515 = vld [vmem:[#allocation3 + $0xf0] sm:$0xff]
        %v8516 = vld [vmem:[#allocation3 + $0xf8] sm:$0xff]
        %v8517 = vld [vmem:[#allocation3 + $0x100] sm:$0xff]
        %v8518 = vld [vmem:[#allocation3 + $0x108] sm:$0xff]
        %v8519 = vld [vmem:[#allocation3 + $0x110] sm:$0xff]
        %v8520 = vld [vmem:[#allocation3 + $0x118] sm:$0xff]
        %v8521 = vld [vmem:[#allocation3 + $0x120] sm:$0xff]
        %v8522 = vld [vmem:[#allocation3 + $0x128] sm:$0xff]
        %v8523 = vld [vmem:[#allocation3 + $0x130] sm:$0xff]
        %v8524 = vld [vmem:[#allocation3 + $0x138] sm:$0xff]
        %v8525 = vld [vmem:[#allocation3 + $0x140] sm:$0xff]
        %v8526 = vld [vmem:[#allocation3 + $0x148] sm:$0xff]
        %v8527 = vld [vmem:[#allocation3 + $0x150] sm:$0xff]
        %v8528 = vld [vmem:[#allocation3 + $0x158] sm:$0xff]
        %v8529 = vld [vmem:[#allocation3 + $0x160] sm:$0xff]
        %v8530 = vld [vmem:[#allocation3 + $0x168] sm:$0xff]
        %v8531 = vld [vmem:[#allocation3 + $0x170] sm:$0xff]
        %v8532 = vld [vmem:[#allocation3 + $0x178] sm:$0xff]
        %v8533 = vld [vmem:[#allocation3 + $0x180] sm:$0xff]
        %v8534 = vld [vmem:[#allocation3 + $0x188] sm:$0xff]
        %v8535 = vld [vmem:[#allocation3 + $0x190] sm:$0xff]
        %v8536 = vld [vmem:[#allocation3 + $0x198] sm:$0xff]
        %v8537 = vld [vmem:[#allocation3 + $0x1a0] sm:$0xff]
        %v8538 = vld [vmem:[#allocation3 + $0x1a8] sm:$0xff]
        %v8539 = vld [vmem:[#allocation3 + $0x1b0] sm:$0xff]
        %v8540 = vld [vmem:[#allocation3 + $0x1b8] sm:$0xff]
        %v8541 = vld [vmem:[#allocation3 + $0x1c0] sm:$0xff]
        %v8542 = vld [vmem:[#allocation3 + $0x1c8] sm:$0xff]
        %v8543 = vld [vmem:[#allocation3 + $0x1d0] sm:$0xff]
        %v8544 = vld [vmem:[#allocation3 + $0x1d8] sm:$0xff]
        %v8545 = vld [vmem:[#allocation3 + $0x1e0] sm:$0xff]
        %v8546 = vld [vmem:[#allocation3 + $0x1e8] sm:$0xff]
        %v8547 = vld [vmem:[#allocation3 + $0x1f0] sm:$0xff]
        %v8548 = vld [vmem:[#allocation3 + $0x1f8] sm:$0xff]
        %v8549 = vld [vmem:[#allocation3 + $0x200] sm:$0xff]
        %v8550 = vld [vmem:[#allocation3 + $0x208] sm:$0xff]
        %v8551 = vld [vmem:[#allocation3 + $0x210] sm:$0xff]
        %v8552 = vld [vmem:[#allocation3 + $0x218] sm:$0xff]
        %v8553 = vld [vmem:[#allocation3 + $0x220] sm:$0xff]
        %v8554 = vld [vmem:[#allocation3 + $0x228] sm:$0xff]
        %v8555 = vld [vmem:[#allocation3 + $0x230] sm:$0xff]
        %v8556 = vld [vmem:[#allocation3 + $0x238] sm:$0xff]
        %v8557 = vld [vmem:[#allocation3 + $0x240] sm:$0xff]
        %v8558 = vld [vmem:[#allocation3 + $0x248] sm:$0xff]
        %v8559 = vld [vmem:[#allocation3 + $0x250] sm:$0xff]
        %v8560 = vld [vmem:[#allocation3 + $0x258] sm:$0xff]
        %v8561 = vld [vmem:[#allocation3 + $0x260] sm:$0xff]
        %v8562 = vld [vmem:[#allocation3 + $0x268] sm:$0xff]
        %v8563 = vld [vmem:[#allocation3 + $0x270] sm:$0xff]
        %v8564 = vld [vmem:[#allocation3 + $0x278] sm:$0xff]
        %v8565 = vld [vmem:[#allocation3 + $0x280] sm:$0xff]
        %v8566 = vld [vmem:[#allocation3 + $0x288] sm:$0xff]
        %v8567 = vld [vmem:[#allocation3 + $0x290] sm:$0xff]
        %v8568 = vld [vmem:[#allocation3 + $0x298] sm:$0xff]
        %v8569 = vld [vmem:[#allocation3 + $0x2a0] sm:$0xff]
        %v8570 = vld [vmem:[#allocation3 + $0x2a8] sm:$0xff]
        %v8571 = vld [vmem:[#allocation3 + $0x2b0] sm:$0xff]
        %v8572 = vld [vmem:[#allocation3 + $0x2b8] sm:$0xff]
        %v8573 = vld [vmem:[#allocation3 + $0x2c0] sm:$0xff]
        %v8574 = vld [vmem:[#allocation3 + $0x2c8] sm:$0xff]
        %v8575 = vld [vmem:[#allocation3 + $0x2d0] sm:$0xff]
        %v8576 = vld [vmem:[#allocation3 + $0x2d8] sm:$0xff]
        %v8577 = vld [vmem:[#allocation3 + $0x2e0] sm:$0xff]
        %v8578 = vld [vmem:[#allocation3 + $0x2e8] sm:$0xff]
        %v8579 = vld [vmem:[#allocation3 + $0x2f0] sm:$0xff]
        %v8580 = vld [vmem:[#allocation3 + $0x2f8] sm:$0xff]
        %v8581 = vld [vmem:[#allocation3 + $0x300] sm:$0xff]
        %v8582 = vld [vmem:[#allocation3 + $0x308] sm:$0xff]
        %v8583 = vld [vmem:[#allocation3 + $0x310] sm:$0xff]
        %v8584 = vld [vmem:[#allocation3 + $0x318] sm:$0xff]
        %v8585 = vpack.c.bf16 %v8389, %v8385
        %v8586 = vpack.c.bf16 %v8390, %v8386
        %v8587 = vpack.c.bf16 %v8391, %v8387
        %v8588 = vpack.c.bf16 %v8392, %v8388
        %v8589 = vpack.c.bf16 %v8397, %v8393
        %v8590 = vpack.c.bf16 %v8398, %v8394
        %v8591 = vpack.c.bf16 %v8399, %v8395
        %v8592 = vpack.c.bf16 %v8400, %v8396
        %v8593 = vpack.c.bf16 %v8405, %v8401
        %v8594 = vpack.c.bf16 %v8406, %v8402
        %v8595 = vpack.c.bf16 %v8407, %v8403
        %v8596 = vpack.c.bf16 %v8408, %v8404
        %v8597 = vpack.c.bf16 %v8413, %v8409
        %v8598 = vpack.c.bf16 %v8414, %v8410
        %v8599 = vpack.c.bf16 %v8415, %v8411
        %v8600 = vpack.c.bf16 %v8416, %v8412
        %v8601 = vpack.c.bf16 %v8421, %v8417
        %v8602 = vpack.c.bf16 %v8422, %v8418
        %v8603 = vpack.c.bf16 %v8423, %v8419
        %v8604 = vpack.c.bf16 %v8424, %v8420
        %v8605 = vpack.c.bf16 %v8429, %v8425
        %v8606 = vpack.c.bf16 %v8430, %v8426
        %v8607 = vpack.c.bf16 %v8431, %v8427
        %v8608 = vpack.c.bf16 %v8432, %v8428
        %v8609 = vpack.c.bf16 %v8437, %v8433
        %v8610 = vpack.c.bf16 %v8438, %v8434
        %v8611 = vpack.c.bf16 %v8439, %v8435
        %v8612 = vpack.c.bf16 %v8440, %v8436
        %v8613 = vpack.c.bf16 %v8445, %v8441
        %v8614 = vpack.c.bf16 %v8446, %v8442
        %v8615 = vpack.c.bf16 %v8447, %v8443
        %v8616 = vpack.c.bf16 %v8448, %v8444
        %v8617 = vpack.c.bf16 %v8453, %v8449
        %v8618 = vpack.c.bf16 %v8454, %v8450
        %v8619 = vpack.c.bf16 %v8455, %v8451
        %v8620 = vpack.c.bf16 %v8456, %v8452
        %v8621 = vpack.c.bf16 %v8461, %v8457
        %v8622 = vpack.c.bf16 %v8462, %v8458
        %v8623 = vpack.c.bf16 %v8463, %v8459
        %v8624 = vpack.c.bf16 %v8464, %v8460
        %v8625 = vpack.c.bf16 %v8469, %v8465
        %v8626 = vpack.c.bf16 %v8470, %v8466
        %v8627 = vpack.c.bf16 %v8471, %v8467
        %v8628 = vpack.c.bf16 %v8472, %v8468
        %v8629 = vpack.c.bf16 %v8477, %v8473
        %v8630 = vpack.c.bf16 %v8478, %v8474
        %v8631 = vpack.c.bf16 %v8479, %v8475
        %v8632 = vpack.c.bf16 %v8480, %v8476
        %v8633 = vpack.c.bf16 %v8481, %v8481
        %v8634 = vpack.c.bf16 %v8482, %v8482
        %v8635 = vpack.c.bf16 %v8483, %v8483
        %v8636 = vpack.c.bf16 %v8484, %v8484
        %v8637 = vld [vmem:[%s384] sm:$0xff]
        %v8638 = vld [vmem:[%s384 + $0x8] sm:$0xff]
        %v8639 = vld [vmem:[%s384 + $0x10] sm:$0xff]
        %v8640 = vld [vmem:[%s384 + $0x18] sm:$0xff]
        %v8641 = vld [vmem:[%s384 + $0x20] sm:$0xff]
        %v8642 = vld [vmem:[%s384 + $0x28] sm:$0xff]
        %v8643 = vld [vmem:[%s384 + $0x30] sm:$0xff]
        %v8644 = vld [vmem:[%s384 + $0x38] sm:$0xff]
        %v8645 = vld [vmem:[%s384 + $0x40] sm:$0xff]
        %v8646 = vld [vmem:[%s384 + $0x48] sm:$0xff]
        %v8647 = vld [vmem:[%s384 + $0x50] sm:$0xff]
        %v8648 = vld [vmem:[%s384 + $0x58] sm:$0xff]
        %v8649 = vld [vmem:[%s384 + $0x60] sm:$0xff]
        %v8650 = vld [vmem:[%s384 + $0x68] sm:$0xff]
        %v8651 = vld [vmem:[%s384 + $0x70] sm:$0xff]
        %v8652 = vld [vmem:[%s384 + $0x78] sm:$0xff]
        %v8653 = vld [vmem:[%s384 + $0x80] sm:$0xff]
        %v8654 = vld [vmem:[%s384 + $0x88] sm:$0xff]
        %v8655 = vld [vmem:[%s384 + $0x90] sm:$0xff]
        %v8656 = vld [vmem:[%s384 + $0x98] sm:$0xff]
        %v8657 = vld [vmem:[%s384 + $0xa0] sm:$0xff]
        %v8658 = vld [vmem:[%s384 + $0xa8] sm:$0xff]
        %v8659 = vld [vmem:[%s384 + $0xb0] sm:$0xff]
        %v8660 = vld [vmem:[%s384 + $0xb8] sm:$0xff]
        %v8661 = vld [vmem:[%s384 + $0xc0] sm:$0xff]
        %v8662 = vld [vmem:[%s384 + $0xc8] sm:$0xff]
        %v8663 = vld [vmem:[%s384 + $0xd0] sm:$0xff]
        %v8664 = vld [vmem:[%s384 + $0xd8] sm:$0xff]
        %v8665 = vld [vmem:[%s384 + $0xe0] sm:$0xff]
        %v8666 = vld [vmem:[%s384 + $0xe8] sm:$0xff]
        %v8667 = vld [vmem:[%s384 + $0xf0] sm:$0xff]
        %v8668 = vld [vmem:[%s384 + $0xf8] sm:$0xff]
        %v8669 = vld [vmem:[%s384 + $0x100] sm:$0xff]
        %v8670 = vld [vmem:[%s384 + $0x108] sm:$0xff]
        %v8671 = vld [vmem:[%s384 + $0x110] sm:$0xff]
        %v8672 = vld [vmem:[%s384 + $0x118] sm:$0xff]
        %v8673 = vld [vmem:[%s384 + $0x120] sm:$0xff]
        %v8674 = vld [vmem:[%s384 + $0x128] sm:$0xff]
        %v8675 = vld [vmem:[%s384 + $0x130] sm:$0xff]
        %v8676 = vld [vmem:[%s384 + $0x138] sm:$0xff]
        %v8677 = vld [vmem:[%s384 + $0x140] sm:$0xff]
        %v8678 = vld [vmem:[%s384 + $0x148] sm:$0xff]
        %v8679 = vld [vmem:[%s384 + $0x150] sm:$0xff]
        %v8680 = vld [vmem:[%s384 + $0x158] sm:$0xff]
        %v8681 = vld [vmem:[%s384 + $0x160] sm:$0xff]
        %v8682 = vld [vmem:[%s384 + $0x168] sm:$0xff]
        %v8683 = vld [vmem:[%s384 + $0x170] sm:$0xff]
        %v8684 = vld [vmem:[%s384 + $0x178] sm:$0xff]
        %v8685 = vld [vmem:[%s384 + $0x180] sm:$0xff]
        %v8686 = vld [vmem:[%s384 + $0x188] sm:$0xff]
        %v8687 = vld [vmem:[%s384 + $0x190] sm:$0xff]
        %v8688 = vld [vmem:[%s384 + $0x198] sm:$0xff]
        %v8689 = vld [vmem:[%s384 + $0x1a0] sm:$0xff]
        %v8690 = vld [vmem:[%s384 + $0x1a8] sm:$0xff]
        %v8691 = vld [vmem:[%s384 + $0x1b0] sm:$0xff]
        %v8692 = vld [vmem:[%s384 + $0x1b8] sm:$0xff]
        %v8693 = vld [vmem:[%s384 + $0x1c0] sm:$0xff]
        %v8694 = vld [vmem:[%s384 + $0x1c8] sm:$0xff]
        %v8695 = vld [vmem:[%s384 + $0x1d0] sm:$0xff]
        %v8696 = vld [vmem:[%s384 + $0x1d8] sm:$0xff]
        %v8697 = vld [vmem:[%s384 + $0x1e0] sm:$0xff]
        %v8698 = vld [vmem:[%s384 + $0x1e8] sm:$0xff]
        %v8699 = vld [vmem:[%s384 + $0x1f0] sm:$0xff]
        %v8700 = vld [vmem:[%s384 + $0x1f8] sm:$0xff]
        %v8701 = vld [vmem:[%s384 + $0x200] sm:$0xff]
        %v8702 = vld [vmem:[%s384 + $0x208] sm:$0xff]
        %v8703 = vld [vmem:[%s384 + $0x210] sm:$0xff]
        %v8704 = vld [vmem:[%s384 + $0x218] sm:$0xff]
        %v8705 = vld [vmem:[%s384 + $0x220] sm:$0xff]
        %v8706 = vld [vmem:[%s384 + $0x228] sm:$0xff]
        %v8707 = vld [vmem:[%s384 + $0x230] sm:$0xff]
        %v8708 = vld [vmem:[%s384 + $0x238] sm:$0xff]
        %v8709 = vld [vmem:[%s384 + $0x240] sm:$0xff]
        %v8710 = vld [vmem:[%s384 + $0x248] sm:$0xff]
        %v8711 = vld [vmem:[%s384 + $0x250] sm:$0xff]
        %v8712 = vld [vmem:[%s384 + $0x258] sm:$0xff]
        %v8713 = vld [vmem:[%s384 + $0x260] sm:$0xff]
        %v8714 = vld [vmem:[%s384 + $0x268] sm:$0xff]
        %v8715 = vld [vmem:[%s384 + $0x270] sm:$0xff]
        %v8716 = vld [vmem:[%s384 + $0x278] sm:$0xff]
        %v8717 = vld [vmem:[%s384 + $0x280] sm:$0xff]
        %v8718 = vld [vmem:[%s384 + $0x288] sm:$0xff]
        %v8719 = vld [vmem:[%s384 + $0x290] sm:$0xff]
        %v8720 = vld [vmem:[%s384 + $0x298] sm:$0xff]
        %v8721 = vld [vmem:[%s384 + $0x2a0] sm:$0xff]
        %v8722 = vld [vmem:[%s384 + $0x2a8] sm:$0xff]
        %v8723 = vld [vmem:[%s384 + $0x2b0] sm:$0xff]
        %v8724 = vld [vmem:[%s384 + $0x2b8] sm:$0xff]
        %v8725 = vld [vmem:[%s384 + $0x2c0] sm:$0xff]
        %v8726 = vld [vmem:[%s384 + $0x2c8] sm:$0xff]
        %v8727 = vld [vmem:[%s384 + $0x2d0] sm:$0xff]
        %v8728 = vld [vmem:[%s384 + $0x2d8] sm:$0xff]
        %v8729 = vld [vmem:[%s384 + $0x2e0] sm:$0xff]
        %v8730 = vld [vmem:[%s384 + $0x2e8] sm:$0xff]
        %v8731 = vld [vmem:[%s384 + $0x2f0] sm:$0xff]
        %v8732 = vld [vmem:[%s384 + $0x2f8] sm:$0xff]
        %v8733 = vld [vmem:[%s384 + $0x300] sm:$0xff]
        %v8734 = vld [vmem:[%s384 + $0x308] sm:$0xff]
        %v8735 = vld [vmem:[%s384 + $0x310] sm:$0xff]
        %v8736 = vld [vmem:[%s384 + $0x318] sm:$0xff]
        %v8737 = vld [vmem:[%s384 + $0x320] sm:$0xff]
        %v8738 = vld [vmem:[%s384 + $0x328] sm:$0xff]
        %v8739 = vld [vmem:[%s384 + $0x330] sm:$0xff]
        %v8740 = vld [vmem:[%s384 + $0x338] sm:$0xff]
        %v8741 = vld [vmem:[%s384 + $0x340] sm:$0xff]
        %v8742 = vld [vmem:[%s384 + $0x348] sm:$0xff]
        %v8743 = vld [vmem:[%s384 + $0x350] sm:$0xff]
        %v8744 = vld [vmem:[%s384 + $0x358] sm:$0xff]
        %v8745 = vld [vmem:[%s384 + $0x360] sm:$0xff]
        %v8746 = vld [vmem:[%s384 + $0x368] sm:$0xff]
        %v8747 = vld [vmem:[%s384 + $0x370] sm:$0xff]
        %v8748 = vld [vmem:[%s384 + $0x378] sm:$0xff]
        %v8749 = vld [vmem:[%s384 + $0x380] sm:$0xff]
        %v8750 = vld [vmem:[%s384 + $0x388] sm:$0xff]
        %v8751 = vld [vmem:[%s384 + $0x390] sm:$0xff]
        %v8752 = vld [vmem:[%s384 + $0x398] sm:$0xff]
        %v8753 = vld [vmem:[%s384 + $0x3a0] sm:$0xff]
        %v8754 = vld [vmem:[%s384 + $0x3a8] sm:$0xff]
        %v8755 = vld [vmem:[%s384 + $0x3b0] sm:$0xff]
        %v8756 = vld [vmem:[%s384 + $0x3b8] sm:$0xff]
        %v8757 = vld [vmem:[%s384 + $0x3c0] sm:$0xff]
        %v8758 = vld [vmem:[%s384 + $0x3c8] sm:$0xff]
        %v8759 = vld [vmem:[%s384 + $0x3d0] sm:$0xff]
        %v8760 = vld [vmem:[%s384 + $0x3d8] sm:$0xff]
        %v8761 = vld [vmem:[%s384 + $0x3e0] sm:$0xff]
        %v8762 = vld [vmem:[%s384 + $0x3e8] sm:$0xff]
        %v8763 = vld [vmem:[%s384 + $0x3f0] sm:$0xff]
        %v8764 = vld [vmem:[%s384 + $0x3f8] sm:$0xff]
        %v8893 = vunpack.c.l.b16 %v8637
        %v8894 = vunpack.c.h.b16 %v8637
        %v8895 = vunpack.c.l.b16 %v8638
        %v8896 = vunpack.c.h.b16 %v8638
        %v8897 = vunpack.c.l.b16 %v8639
        %v8898 = vunpack.c.h.b16 %v8639
        %v8899 = vunpack.c.l.b16 %v8640
        %v8900 = vunpack.c.h.b16 %v8640
        %v8901 = vunpack.c.l.b16 %v8641
        %v8902 = vunpack.c.h.b16 %v8641
        %v8903 = vunpack.c.l.b16 %v8642
        %v8904 = vunpack.c.h.b16 %v8642
        %v8905 = vunpack.c.l.b16 %v8643
        %v8906 = vunpack.c.h.b16 %v8643
        %v8907 = vunpack.c.l.b16 %v8644
        %v8908 = vunpack.c.h.b16 %v8644
        %v8909 = vunpack.c.l.b16 %v8645
        %v8910 = vunpack.c.h.b16 %v8645
        %v8911 = vunpack.c.l.b16 %v8646
        %v8912 = vunpack.c.h.b16 %v8646
        %v8913 = vunpack.c.l.b16 %v8647
        %v8914 = vunpack.c.h.b16 %v8647
        %v8915 = vunpack.c.l.b16 %v8648
        %v8916 = vunpack.c.h.b16 %v8648
        %v8917 = vunpack.c.l.b16 %v8649
        %v8918 = vunpack.c.h.b16 %v8649
        %v8919 = vunpack.c.l.b16 %v8650
        %v8920 = vunpack.c.h.b16 %v8650
        %v8921 = vunpack.c.l.b16 %v8651
        %v8922 = vunpack.c.h.b16 %v8651
        %v8923 = vunpack.c.l.b16 %v8652
        %v8924 = vunpack.c.h.b16 %v8652
        %v8925 = vunpack.c.l.b16 %v8653
        %v8926 = vunpack.c.h.b16 %v8653
        %v8927 = vunpack.c.l.b16 %v8654
        %v8928 = vunpack.c.h.b16 %v8654
        %v8929 = vunpack.c.l.b16 %v8655
        %v8930 = vunpack.c.h.b16 %v8655
        %v8931 = vunpack.c.l.b16 %v8656
        %v8932 = vunpack.c.h.b16 %v8656
        %v8933 = vunpack.c.l.b16 %v8657
        %v8934 = vunpack.c.h.b16 %v8657
        %v8935 = vunpack.c.l.b16 %v8658
        %v8936 = vunpack.c.h.b16 %v8658
        %v8937 = vunpack.c.l.b16 %v8659
        %v8938 = vunpack.c.h.b16 %v8659
        %v8939 = vunpack.c.l.b16 %v8660
        %v8940 = vunpack.c.h.b16 %v8660
        %v8941 = vunpack.c.l.b16 %v8661
        %v8942 = vunpack.c.h.b16 %v8661
        %v8943 = vunpack.c.l.b16 %v8662
        %v8944 = vunpack.c.h.b16 %v8662
        %v8945 = vunpack.c.l.b16 %v8663
        %v8946 = vunpack.c.h.b16 %v8663
        %v8947 = vunpack.c.l.b16 %v8664
        %v8948 = vunpack.c.h.b16 %v8664
        %v8949 = vunpack.c.l.b16 %v8665
        %v8950 = vunpack.c.h.b16 %v8665
        %v8951 = vunpack.c.l.b16 %v8666
        %v8952 = vunpack.c.h.b16 %v8666
        %v8953 = vunpack.c.l.b16 %v8667
        %v8954 = vunpack.c.h.b16 %v8667
        %v8955 = vunpack.c.l.b16 %v8668
        %v8956 = vunpack.c.h.b16 %v8668
        %v8957 = vunpack.c.l.b16 %v8669
        %v8958 = vunpack.c.h.b16 %v8669
        %v8959 = vunpack.c.l.b16 %v8670
        %v8960 = vunpack.c.h.b16 %v8670
        %v8961 = vunpack.c.l.b16 %v8671
        %v8962 = vunpack.c.h.b16 %v8671
        %v8963 = vunpack.c.l.b16 %v8672
        %v8964 = vunpack.c.h.b16 %v8672
        %v8965 = vunpack.c.l.b16 %v8673
        %v8966 = vunpack.c.h.b16 %v8673
        %v8967 = vunpack.c.l.b16 %v8674
        %v8968 = vunpack.c.h.b16 %v8674
        %v8969 = vunpack.c.l.b16 %v8675
        %v8970 = vunpack.c.h.b16 %v8675
        %v8971 = vunpack.c.l.b16 %v8676
        %v8972 = vunpack.c.h.b16 %v8676
        %v8973 = vunpack.c.l.b16 %v8677
        %v8974 = vunpack.c.h.b16 %v8677
        %v8975 = vunpack.c.l.b16 %v8678
        %v8976 = vunpack.c.h.b16 %v8678
        %v8977 = vunpack.c.l.b16 %v8679
        %v8978 = vunpack.c.h.b16 %v8679
        %v8979 = vunpack.c.l.b16 %v8680
        %v8980 = vunpack.c.h.b16 %v8680
        %v8981 = vunpack.c.l.b16 %v8681
        %v8982 = vunpack.c.h.b16 %v8681
        %v8983 = vunpack.c.l.b16 %v8682
        %v8984 = vunpack.c.h.b16 %v8682
        %v8985 = vunpack.c.l.b16 %v8683
        %v8986 = vunpack.c.h.b16 %v8683
        %v8987 = vunpack.c.l.b16 %v8684
        %v8988 = vunpack.c.h.b16 %v8684
        %v8989 = vunpack.c.l.b16 %v8685
        %v8990 = vunpack.c.h.b16 %v8685
        %v8991 = vunpack.c.l.b16 %v8686
        %v8992 = vunpack.c.h.b16 %v8686
        %v8993 = vunpack.c.l.b16 %v8687
        %v8994 = vunpack.c.h.b16 %v8687
        %v8995 = vunpack.c.l.b16 %v8688
        %v8996 = vunpack.c.h.b16 %v8688
        %v8997 = vunpack.c.l.b16 %v8689
        %v8998 = vunpack.c.h.b16 %v8689
        %v8999 = vunpack.c.l.b16 %v8690
        %v9000 = vunpack.c.h.b16 %v8690
        %v9001 = vunpack.c.l.b16 %v8691
        %v9002 = vunpack.c.h.b16 %v8691
        %v9003 = vunpack.c.l.b16 %v8692
        %v9004 = vunpack.c.h.b16 %v8692
        %v9005 = vunpack.c.l.b16 %v8693
        %v9006 = vunpack.c.h.b16 %v8693
        %v9007 = vunpack.c.l.b16 %v8694
        %v9008 = vunpack.c.h.b16 %v8694
        %v9009 = vunpack.c.l.b16 %v8695
        %v9010 = vunpack.c.h.b16 %v8695
        %v9011 = vunpack.c.l.b16 %v8696
        %v9012 = vunpack.c.h.b16 %v8696
        %v9013 = vunpack.c.l.b16 %v8697
        %v9014 = vunpack.c.h.b16 %v8697
        %v9015 = vunpack.c.l.b16 %v8698
        %v9016 = vunpack.c.h.b16 %v8698
        %v9017 = vunpack.c.l.b16 %v8699
        %v9018 = vunpack.c.h.b16 %v8699
        %v9019 = vunpack.c.l.b16 %v8700
        %v9020 = vunpack.c.h.b16 %v8700
        %v9021 = vunpack.c.l.b16 %v8701
        %v9022 = vunpack.c.h.b16 %v8701
        %v9023 = vunpack.c.l.b16 %v8702
        %v9024 = vunpack.c.h.b16 %v8702
        %v9025 = vunpack.c.l.b16 %v8703
        %v9026 = vunpack.c.h.b16 %v8703
        %v9027 = vunpack.c.l.b16 %v8704
        %v9028 = vunpack.c.h.b16 %v8704
        %v9029 = vunpack.c.l.b16 %v8705
        %v9030 = vunpack.c.h.b16 %v8705
        %v9031 = vunpack.c.l.b16 %v8706
        %v9032 = vunpack.c.h.b16 %v8706
        %v9033 = vunpack.c.l.b16 %v8707
        %v9034 = vunpack.c.h.b16 %v8707
        %v9035 = vunpack.c.l.b16 %v8708
        %v9036 = vunpack.c.h.b16 %v8708
        %v9037 = vunpack.c.l.b16 %v8709
        %v9038 = vunpack.c.h.b16 %v8709
        %v9039 = vunpack.c.l.b16 %v8710
        %v9040 = vunpack.c.h.b16 %v8710
        %v9041 = vunpack.c.l.b16 %v8711
        %v9042 = vunpack.c.h.b16 %v8711
        %v9043 = vunpack.c.l.b16 %v8712
        %v9044 = vunpack.c.h.b16 %v8712
        %v9045 = vunpack.c.l.b16 %v8713
        %v9046 = vunpack.c.h.b16 %v8713
        %v9047 = vunpack.c.l.b16 %v8714
        %v9048 = vunpack.c.h.b16 %v8714
        %v9049 = vunpack.c.l.b16 %v8715
        %v9050 = vunpack.c.h.b16 %v8715
        %v9051 = vunpack.c.l.b16 %v8716
        %v9052 = vunpack.c.h.b16 %v8716
        %v9053 = vunpack.c.l.b16 %v8717
        %v9054 = vunpack.c.h.b16 %v8717
        %v9055 = vunpack.c.l.b16 %v8718
        %v9056 = vunpack.c.h.b16 %v8718
        %v9057 = vunpack.c.l.b16 %v8719
        %v9058 = vunpack.c.h.b16 %v8719
        %v9059 = vunpack.c.l.b16 %v8720
        %v9060 = vunpack.c.h.b16 %v8720
        %v9061 = vunpack.c.l.b16 %v8721
        %v9062 = vunpack.c.h.b16 %v8721
        %v9063 = vunpack.c.l.b16 %v8722
        %v9064 = vunpack.c.h.b16 %v8722
        %v9065 = vunpack.c.l.b16 %v8723
        %v9066 = vunpack.c.h.b16 %v8723
        %v9067 = vunpack.c.l.b16 %v8724
        %v9068 = vunpack.c.h.b16 %v8724
        %v9069 = vunpack.c.l.b16 %v8725
        %v9070 = vunpack.c.h.b16 %v8725
        %v9071 = vunpack.c.l.b16 %v8726
        %v9072 = vunpack.c.h.b16 %v8726
        %v9073 = vunpack.c.l.b16 %v8727
        %v9074 = vunpack.c.h.b16 %v8727
        %v9075 = vunpack.c.l.b16 %v8728
        %v9076 = vunpack.c.h.b16 %v8728
        %v9077 = vunpack.c.l.b16 %v8729
        %v9078 = vunpack.c.h.b16 %v8729
        %v9079 = vunpack.c.l.b16 %v8730
        %v9080 = vunpack.c.h.b16 %v8730
        %v9081 = vunpack.c.l.b16 %v8731
        %v9082 = vunpack.c.h.b16 %v8731
        %v9083 = vunpack.c.l.b16 %v8732
        %v9084 = vunpack.c.h.b16 %v8732
        %v9085 = vunpack.c.l.b16 %v8733
        %v9086 = vunpack.c.h.b16 %v8733
        %v9087 = vunpack.c.l.b16 %v8734
        %v9088 = vunpack.c.h.b16 %v8734
        %v9089 = vunpack.c.l.b16 %v8735
        %v9090 = vunpack.c.h.b16 %v8735
        %v9091 = vunpack.c.l.b16 %v8736
        %v9092 = vunpack.c.h.b16 %v8736
        %v9093 = vunpack.c.l.b16 %v8737
        %v9094 = vunpack.c.h.b16 %v8737
        %v9095 = vunpack.c.l.b16 %v8738
        %v9096 = vunpack.c.h.b16 %v8738
        %v9097 = vunpack.c.l.b16 %v8739
        %v9098 = vunpack.c.h.b16 %v8739
        %v9099 = vunpack.c.l.b16 %v8740
        %v9100 = vunpack.c.h.b16 %v8740
        %v9101 = vunpack.c.l.b16 %v8741
        %v9102 = vunpack.c.h.b16 %v8741
        %v9103 = vunpack.c.l.b16 %v8742
        %v9104 = vunpack.c.h.b16 %v8742
        %v9105 = vunpack.c.l.b16 %v8743
        %v9106 = vunpack.c.h.b16 %v8743
        %v9107 = vunpack.c.l.b16 %v8744
        %v9108 = vunpack.c.h.b16 %v8744
        %v9109 = vunpack.c.l.b16 %v8745
        %v9110 = vunpack.c.h.b16 %v8745
        %v9111 = vunpack.c.l.b16 %v8746
        %v9112 = vunpack.c.h.b16 %v8746
        %v9113 = vunpack.c.l.b16 %v8747
        %v9114 = vunpack.c.h.b16 %v8747
        %v9115 = vunpack.c.l.b16 %v8748
        %v9116 = vunpack.c.h.b16 %v8748
        %v9117 = vunpack.c.l.b16 %v8749
        %v9118 = vunpack.c.h.b16 %v8749
        %v9119 = vunpack.c.l.b16 %v8750
        %v9120 = vunpack.c.h.b16 %v8750
        %v9121 = vunpack.c.l.b16 %v8751
        %v9122 = vunpack.c.h.b16 %v8751
        %v9123 = vunpack.c.l.b16 %v8752
        %v9124 = vunpack.c.h.b16 %v8752
        %v9125 = vunpack.c.l.b16 %v8753
        %v9126 = vunpack.c.h.b16 %v8753
        %v9127 = vunpack.c.l.b16 %v8754
        %v9128 = vunpack.c.h.b16 %v8754
        %v9129 = vunpack.c.l.b16 %v8755
        %v9130 = vunpack.c.h.b16 %v8755
        %v9131 = vunpack.c.l.b16 %v8756
        %v9132 = vunpack.c.h.b16 %v8756
        %v9133 = vunpack.c.l.b16 %v8757
        %v9134 = vunpack.c.h.b16 %v8757
        %v9135 = vunpack.c.l.b16 %v8758
        %v9136 = vunpack.c.h.b16 %v8758
        %v9137 = vunpack.c.l.b16 %v8759
        %v9138 = vunpack.c.h.b16 %v8759
        %v9139 = vunpack.c.l.b16 %v8760
        %v9140 = vunpack.c.h.b16 %v8760
        %v9141 = vunpack.c.l.b16 %v8761
        %v9142 = vunpack.c.h.b16 %v8761
        %v9143 = vunpack.c.l.b16 %v8762
        %v9144 = vunpack.c.h.b16 %v8762
        %v9145 = vunpack.c.l.b16 %v8763
        %v9146 = vunpack.c.h.b16 %v8763
        %v9147 = vunpack.c.l.b16 %v8764
        %v9148 = vunpack.c.h.b16 %v8764
        %v9149 = vpack.c.b16 %v8897, %v8893
        %v9150 = vpack.c.b16 %v8898, %v8894
        %v9151 = vpack.c.b16 %v8899, %v8895
        %v9152 = vpack.c.b16 %v8900, %v8896
        %v9153 = vpack.c.b16 %v8905, %v8901
        %v9154 = vpack.c.b16 %v8906, %v8902
        %v9155 = vpack.c.b16 %v8907, %v8903
        %v9156 = vpack.c.b16 %v8908, %v8904
        %v9157 = vpack.c.b16 %v8913, %v8909
        %v9158 = vpack.c.b16 %v8914, %v8910
        %v9159 = vpack.c.b16 %v8915, %v8911
        %v9160 = vpack.c.b16 %v8916, %v8912
        %v9161 = vpack.c.b16 %v8921, %v8917
        %v9162 = vpack.c.b16 %v8922, %v8918
        %v9163 = vpack.c.b16 %v8923, %v8919
        %v9164 = vpack.c.b16 %v8924, %v8920
        %v9165 = vpack.c.b16 %v8929, %v8925
        %v9166 = vpack.c.b16 %v8930, %v8926
        %v9167 = vpack.c.b16 %v8931, %v8927
        %v9168 = vpack.c.b16 %v8932, %v8928
        %v9169 = vpack.c.b16 %v8937, %v8933
        %v9170 = vpack.c.b16 %v8938, %v8934
        %v9171 = vpack.c.b16 %v8939, %v8935
        %v9172 = vpack.c.b16 %v8940, %v8936
        %v9173 = vpack.c.b16 %v8945, %v8941
        %v9174 = vpack.c.b16 %v8946, %v8942
        %v9175 = vpack.c.b16 %v8947, %v8943
        %v9176 = vpack.c.b16 %v8948, %v8944
        %v9177 = vpack.c.b16 %v8953, %v8949
        %v9178 = vpack.c.b16 %v8954, %v8950
        %v9179 = vpack.c.b16 %v8955, %v8951
        %v9180 = vpack.c.b16 %v8956, %v8952
        %v9181 = vpack.c.b16 %v8961, %v8957
        %v9182 = vpack.c.b16 %v8962, %v8958
        %v9183 = vpack.c.b16 %v8963, %v8959
        %v9184 = vpack.c.b16 %v8964, %v8960
        %v9185 = vpack.c.b16 %v8969, %v8965
        %v9186 = vpack.c.b16 %v8970, %v8966
        %v9187 = vpack.c.b16 %v8971, %v8967
        %v9188 = vpack.c.b16 %v8972, %v8968
        %v9189 = vpack.c.b16 %v8977, %v8973
        %v9190 = vpack.c.b16 %v8978, %v8974
        %v9191 = vpack.c.b16 %v8979, %v8975
        %v9192 = vpack.c.b16 %v8980, %v8976
        %v9193 = vpack.c.b16 %v8985, %v8981
        %v9194 = vpack.c.b16 %v8986, %v8982
        %v9195 = vpack.c.b16 %v8987, %v8983
        %v9196 = vpack.c.b16 %v8988, %v8984
        %v9197 = vpack.c.b16 %v8993, %v8989
        %v9198 = vpack.c.b16 %v8994, %v8990
        %v9199 = vpack.c.b16 %v8995, %v8991
        %v9200 = vpack.c.b16 %v8996, %v8992
        %v9201 = vpack.c.b16 %v9001, %v8997
        %v9202 = vpack.c.b16 %v9002, %v8998
        %v9203 = vpack.c.b16 %v9003, %v8999
        %v9204 = vpack.c.b16 %v9004, %v9000
        %v9205 = vpack.c.b16 %v9009, %v9005
        %v9206 = vpack.c.b16 %v9010, %v9006
        %v9207 = vpack.c.b16 %v9011, %v9007
        %v9208 = vpack.c.b16 %v9012, %v9008
        %v9209 = vpack.c.b16 %v9017, %v9013
        %v9210 = vpack.c.b16 %v9018, %v9014
        %v9211 = vpack.c.b16 %v9019, %v9015
        %v9212 = vpack.c.b16 %v9020, %v9016
        %v9213 = vpack.c.b16 %v9025, %v9021
        %v9214 = vpack.c.b16 %v9026, %v9022
        %v9215 = vpack.c.b16 %v9027, %v9023
        %v9216 = vpack.c.b16 %v9028, %v9024
        %v9217 = vpack.c.b16 %v9033, %v9029
        %v9218 = vpack.c.b16 %v9034, %v9030
        %v9219 = vpack.c.b16 %v9035, %v9031
        %v9220 = vpack.c.b16 %v9036, %v9032
        %v9221 = vpack.c.b16 %v9041, %v9037
        %v9222 = vpack.c.b16 %v9042, %v9038
        %v9223 = vpack.c.b16 %v9043, %v9039
        %v9224 = vpack.c.b16 %v9044, %v9040
        %v9225 = vpack.c.b16 %v9049, %v9045
        %v9226 = vpack.c.b16 %v9050, %v9046
        %v9227 = vpack.c.b16 %v9051, %v9047
        %v9228 = vpack.c.b16 %v9052, %v9048
        %v9229 = vpack.c.b16 %v9057, %v9053
        %v9230 = vpack.c.b16 %v9058, %v9054
        %v9231 = vpack.c.b16 %v9059, %v9055
        %v9232 = vpack.c.b16 %v9060, %v9056
        %v9233 = vpack.c.b16 %v9065, %v9061
        %v9234 = vpack.c.b16 %v9066, %v9062
        %v9235 = vpack.c.b16 %v9067, %v9063
        %v9236 = vpack.c.b16 %v9068, %v9064
        %v9237 = vpack.c.b16 %v9073, %v9069
        %v9238 = vpack.c.b16 %v9074, %v9070
        %v9239 = vpack.c.b16 %v9075, %v9071
        %v9240 = vpack.c.b16 %v9076, %v9072
        %v9241 = vpack.c.b16 %v9081, %v9077
        %v9242 = vpack.c.b16 %v9082, %v9078
        %v9243 = vpack.c.b16 %v9083, %v9079
        %v9244 = vpack.c.b16 %v9084, %v9080
        %v9245 = vpack.c.b16 %v9089, %v9085
        %v9246 = vpack.c.b16 %v9090, %v9086
        %v9247 = vpack.c.b16 %v9091, %v9087
        %v9248 = vpack.c.b16 %v9092, %v9088
        %v9249 = vpack.c.b16 %v9097, %v9093
        %v9250 = vpack.c.b16 %v9098, %v9094
        %v9251 = vpack.c.b16 %v9099, %v9095
        %v9252 = vpack.c.b16 %v9100, %v9096
        %v9253 = vpack.c.b16 %v9105, %v9101
        %v9254 = vpack.c.b16 %v9106, %v9102
        %v9255 = vpack.c.b16 %v9107, %v9103
        %v9256 = vpack.c.b16 %v9108, %v9104
        %v9257 = vpack.c.b16 %v9113, %v9109
        %v9258 = vpack.c.b16 %v9114, %v9110
        %v9259 = vpack.c.b16 %v9115, %v9111
        %v9260 = vpack.c.b16 %v9116, %v9112
        %v9261 = vpack.c.b16 %v9121, %v9117
        %v9262 = vpack.c.b16 %v9122, %v9118
        %v9263 = vpack.c.b16 %v9123, %v9119
        %v9264 = vpack.c.b16 %v9124, %v9120
        %v9265 = vpack.c.b16 %v9129, %v9125
        %v9266 = vpack.c.b16 %v9130, %v9126
        %v9267 = vpack.c.b16 %v9131, %v9127
        %v9268 = vpack.c.b16 %v9132, %v9128
        %v9269 = vpack.c.b16 %v9137, %v9133
        %v9270 = vpack.c.b16 %v9138, %v9134
        %v9271 = vpack.c.b16 %v9139, %v9135
        %v9272 = vpack.c.b16 %v9140, %v9136
        %v9273 = vpack.c.b16 %v9145, %v9141
        %v9274 = vpack.c.b16 %v9146, %v9142
        %v9275 = vpack.c.b16 %v9147, %v9143
        %v9276 = vpack.c.b16 %v9148, %v9144
        %9405 = vmatpush.bf16.msra.mxu0 %v9177
        %9406 = vmatpush.bf16.msra.mxu0 %v9173
        %9407 = vmatpush.bf16.msra.mxu0 %v9169
        %9408 = vmatpush.bf16.msra.mxu0 %v9165
        %9409 = vmatpush.bf16.msra.mxu0 %v9161
        %9410 = vmatpush.bf16.msra.mxu0 %v9157
        %9411 = vmatpush.bf16.msra.mxu0 %v9153
        %9412 = vmatpush.bf16.msra.mxu0 %v9149
        %9413 = vmatmul.bf16.gmra.mxu0 %v8585
        %v9414 = vpop.f32.mrf.mxu0
        %v9415 = vadd.f32 0.0, %v9414
        %v9416 = vpop.f32.mrf.mxu0
        %v9417 = vadd.f32 0.0, %v9416
        %9418 = vmatmul.bf16.gmra.mxu0 %v8589
        %v9419 = vpop.f32.mrf.mxu0
        %v9420 = vadd.f32 0.0, %v9419
        %v9421 = vpop.f32.mrf.mxu0
        %v9422 = vadd.f32 0.0, %v9421
        %9423 = vmatmul.bf16.gmra.mxu0 %v8593
        %v9424 = vpop.f32.mrf.mxu0
        %v9425 = vadd.f32 0.0, %v9424
        %v9426 = vpop.f32.mrf.mxu0
        %v9427 = vadd.f32 0.0, %v9426
        %9428 = vmatmul.bf16.gmra.mxu0 %v8597
        %v9429 = vpop.f32.mrf.mxu0
        %v9430 = vadd.f32 0.0, %v9429
        %v9431 = vpop.f32.mrf.mxu0
        %v9432 = vadd.f32 0.0, %v9431
        %9433 = vmatmul.bf16.gmra.mxu0 %v8601
        %v9434 = vpop.f32.mrf.mxu0
        %v9435 = vadd.f32 0.0, %v9434
        %v9436 = vpop.f32.mrf.mxu0
        %v9437 = vadd.f32 0.0, %v9436
        %9438 = vmatmul.bf16.gmra.mxu0 %v8605
        %v9439 = vpop.f32.mrf.mxu0
        %v9440 = vadd.f32 0.0, %v9439
        %v9441 = vpop.f32.mrf.mxu0
        %v9442 = vadd.f32 0.0, %v9441
        %9443 = vmatmul.bf16.gmra.mxu0 %v8609
        %v9444 = vpop.f32.mrf.mxu0
        %v9445 = vadd.f32 0.0, %v9444
        %v9446 = vpop.f32.mrf.mxu0
        %v9447 = vadd.f32 0.0, %v9446
        %9448 = vmatmul.bf16.gmra.mxu0 %v8613
        %v9449 = vpop.f32.mrf.mxu0
        %v9450 = vadd.f32 0.0, %v9449
        %v9451 = vpop.f32.mrf.mxu0
        %v9452 = vadd.f32 0.0, %v9451
        %9453 = vmatmul.bf16.gmra.mxu0 %v8617
        %v9454 = vpop.f32.mrf.mxu0
        %v9455 = vadd.f32 0.0, %v9454
        %v9456 = vpop.f32.mrf.mxu0
        %v9457 = vadd.f32 0.0, %v9456
        %9458 = vmatmul.bf16.gmra.mxu0 %v8621
        %v9459 = vpop.f32.mrf.mxu0
        %v9460 = vadd.f32 0.0, %v9459
        %v9461 = vpop.f32.mrf.mxu0
        %v9462 = vadd.f32 0.0, %v9461
        %9463 = vmatmul.bf16.gmra.mxu0 %v8625
        %v9464 = vpop.f32.mrf.mxu0
        %v9465 = vadd.f32 0.0, %v9464
        %v9466 = vpop.f32.mrf.mxu0
        %v9467 = vadd.f32 0.0, %v9466
        %9468 = vmatmul.bf16.gmra.mxu0 %v8629
        %v9469 = vpop.f32.mrf.mxu0
        %v9470 = vadd.f32 0.0, %v9469
        %v9471 = vpop.f32.mrf.mxu0
        %v9472 = vadd.f32 0.0, %v9471
        %9473 = vmatmul.bf16.gmra.mxu0 %v8633
        %v9474 = vpop.f32.mrf.mxu0
        %v9475 = vadd.f32 0.0, %v9474
        %v9476 = vpop.f32.mrf.mxu0
        %9477 = vdwg.mxu0
        %9478 = vmatpush.bf16.msra.mxu0 %v9209
        %9479 = vmatpush.bf16.msra.mxu0 %v9205
        %9480 = vmatpush.bf16.msra.mxu0 %v9201
        %9481 = vmatpush.bf16.msra.mxu0 %v9197
        %9482 = vmatpush.bf16.msra.mxu0 %v9193
        %9483 = vmatpush.bf16.msra.mxu0 %v9189
        %9484 = vmatpush.bf16.msra.mxu0 %v9185
        %9485 = vmatpush.bf16.msra.mxu0 %v9181
        %9486 = vmatmul.bf16.gmra.mxu0 %v8586
        %v9487 = vpop.f32.mrf.mxu0
        %v9488 = vadd.f32 %v9415, %v9487
        %v9489 = vpop.f32.mrf.mxu0
        %v9490 = vadd.f32 %v9417, %v9489
        %9491 = vmatmul.bf16.gmra.mxu0 %v8590
        %v9492 = vpop.f32.mrf.mxu0
        %v9493 = vadd.f32 %v9420, %v9492
        %v9494 = vpop.f32.mrf.mxu0
        %v9495 = vadd.f32 %v9422, %v9494
        %9496 = vmatmul.bf16.gmra.mxu0 %v8594
        %v9497 = vpop.f32.mrf.mxu0
        %v9498 = vadd.f32 %v9425, %v9497
        %v9499 = vpop.f32.mrf.mxu0
        %v9500 = vadd.f32 %v9427, %v9499
        %9501 = vmatmul.bf16.gmra.mxu0 %v8598
        %v9502 = vpop.f32.mrf.mxu0
        %v9503 = vadd.f32 %v9430, %v9502
        %v9504 = vpop.f32.mrf.mxu0
        %v9505 = vadd.f32 %v9432, %v9504
        %9506 = vmatmul.bf16.gmra.mxu0 %v8602
        %v9507 = vpop.f32.mrf.mxu0
        %v9508 = vadd.f32 %v9435, %v9507
        %v9509 = vpop.f32.mrf.mxu0
        %v9510 = vadd.f32 %v9437, %v9509
        %9511 = vmatmul.bf16.gmra.mxu0 %v8606
        %v9512 = vpop.f32.mrf.mxu0
        %v9513 = vadd.f32 %v9440, %v9512
        %v9514 = vpop.f32.mrf.mxu0
        %v9515 = vadd.f32 %v9442, %v9514
        %9516 = vmatmul.bf16.gmra.mxu0 %v8610
        %v9517 = vpop.f32.mrf.mxu0
        %v9518 = vadd.f32 %v9445, %v9517
        %v9519 = vpop.f32.mrf.mxu0
        %v9520 = vadd.f32 %v9447, %v9519
        %9521 = vmatmul.bf16.gmra.mxu0 %v8614
        %v9522 = vpop.f32.mrf.mxu0
        %v9523 = vadd.f32 %v9450, %v9522
        %v9524 = vpop.f32.mrf.mxu0
        %v9525 = vadd.f32 %v9452, %v9524
        %9526 = vmatmul.bf16.gmra.mxu0 %v8618
        %v9527 = vpop.f32.mrf.mxu0
        %v9528 = vadd.f32 %v9455, %v9527
        %v9529 = vpop.f32.mrf.mxu0
        %v9530 = vadd.f32 %v9457, %v9529
        %9531 = vmatmul.bf16.gmra.mxu0 %v8622
        %v9532 = vpop.f32.mrf.mxu0
        %v9533 = vadd.f32 %v9460, %v9532
        %v9534 = vpop.f32.mrf.mxu0
        %v9535 = vadd.f32 %v9462, %v9534
        %9536 = vmatmul.bf16.gmra.mxu0 %v8626
        %v9537 = vpop.f32.mrf.mxu0
        %v9538 = vadd.f32 %v9465, %v9537
        %v9539 = vpop.f32.mrf.mxu0
        %v9540 = vadd.f32 %v9467, %v9539
        %9541 = vmatmul.bf16.gmra.mxu0 %v8630
        %v9542 = vpop.f32.mrf.mxu0
        %v9543 = vadd.f32 %v9470, %v9542
        %v9544 = vpop.f32.mrf.mxu0
        %v9545 = vadd.f32 %v9472, %v9544
        %9546 = vmatmul.bf16.gmra.mxu0 %v8634
        %v9547 = vpop.f32.mrf.mxu0
        %v9548 = vadd.f32 %v9475, %v9547
        %v9549 = vpop.f32.mrf.mxu0
        %9550 = vdwg.mxu0
        %9551 = vmatpush.bf16.msra.mxu0 %v9241
        %9552 = vmatpush.bf16.msra.mxu0 %v9237
        %9553 = vmatpush.bf16.msra.mxu0 %v9233
        %9554 = vmatpush.bf16.msra.mxu0 %v9229
        %9555 = vmatpush.bf16.msra.mxu0 %v9225
        %9556 = vmatpush.bf16.msra.mxu0 %v9221
        %9557 = vmatpush.bf16.msra.mxu0 %v9217
        %9558 = vmatpush.bf16.msra.mxu0 %v9213
        %9559 = vmatmul.bf16.gmra.mxu0 %v8587
        %v9560 = vpop.f32.mrf.mxu0
        %v9561 = vadd.f32 %v9488, %v9560
        %v9562 = vpop.f32.mrf.mxu0
        %v9563 = vadd.f32 %v9490, %v9562
        %9564 = vmatmul.bf16.gmra.mxu0 %v8591
        %v9565 = vpop.f32.mrf.mxu0
        %v9566 = vadd.f32 %v9493, %v9565
        %v9567 = vpop.f32.mrf.mxu0
        %v9568 = vadd.f32 %v9495, %v9567
        %9569 = vmatmul.bf16.gmra.mxu0 %v8595
        %v9570 = vpop.f32.mrf.mxu0
        %v9571 = vadd.f32 %v9498, %v9570
        %v9572 = vpop.f32.mrf.mxu0
        %v9573 = vadd.f32 %v9500, %v9572
        %9574 = vmatmul.bf16.gmra.mxu0 %v8599
        %v9575 = vpop.f32.mrf.mxu0
        %v9576 = vadd.f32 %v9503, %v9575
        %v9577 = vpop.f32.mrf.mxu0
        %v9578 = vadd.f32 %v9505, %v9577
        %9579 = vmatmul.bf16.gmra.mxu0 %v8603
        %v9580 = vpop.f32.mrf.mxu0
        %v9581 = vadd.f32 %v9508, %v9580
        %v9582 = vpop.f32.mrf.mxu0
        %v9583 = vadd.f32 %v9510, %v9582
        %9584 = vmatmul.bf16.gmra.mxu0 %v8607
        %v9585 = vpop.f32.mrf.mxu0
        %v9586 = vadd.f32 %v9513, %v9585
        %v9587 = vpop.f32.mrf.mxu0
        %v9588 = vadd.f32 %v9515, %v9587
        %9589 = vmatmul.bf16.gmra.mxu0 %v8611
        %v9590 = vpop.f32.mrf.mxu0
        %v9591 = vadd.f32 %v9518, %v9590
        %v9592 = vpop.f32.mrf.mxu0
        %v9593 = vadd.f32 %v9520, %v9592
        %9594 = vmatmul.bf16.gmra.mxu0 %v8615
        %v9595 = vpop.f32.mrf.mxu0
        %v9596 = vadd.f32 %v9523, %v9595
        %v9597 = vpop.f32.mrf.mxu0
        %v9598 = vadd.f32 %v9525, %v9597
        %9599 = vmatmul.bf16.gmra.mxu0 %v8619
        %v9600 = vpop.f32.mrf.mxu0
        %v9601 = vadd.f32 %v9528, %v9600
        %v9602 = vpop.f32.mrf.mxu0
        %v9603 = vadd.f32 %v9530, %v9602
        %9604 = vmatmul.bf16.gmra.mxu0 %v8623
        %v9605 = vpop.f32.mrf.mxu0
        %v9606 = vadd.f32 %v9533, %v9605
        %v9607 = vpop.f32.mrf.mxu0
        %v9608 = vadd.f32 %v9535, %v9607
        %9609 = vmatmul.bf16.gmra.mxu0 %v8627
        %v9610 = vpop.f32.mrf.mxu0
        %v9611 = vadd.f32 %v9538, %v9610
        %v9612 = vpop.f32.mrf.mxu0
        %v9613 = vadd.f32 %v9540, %v9612
        %9614 = vmatmul.bf16.gmra.mxu0 %v8631
        %v9615 = vpop.f32.mrf.mxu0
        %v9616 = vadd.f32 %v9543, %v9615
        %v9617 = vpop.f32.mrf.mxu0
        %v9618 = vadd.f32 %v9545, %v9617
        %9619 = vmatmul.bf16.gmra.mxu0 %v8635
        %v9620 = vpop.f32.mrf.mxu0
        %v9621 = vadd.f32 %v9548, %v9620
        %v9622 = vpop.f32.mrf.mxu0
        %9623 = vdwg.mxu0
        %9624 = vmatpush.bf16.msra.mxu0 %v9273
        %9625 = vmatpush.bf16.msra.mxu0 %v9269
        %9626 = vmatpush.bf16.msra.mxu0 %v9265
        %9627 = vmatpush.bf16.msra.mxu0 %v9261
        %9628 = vmatpush.bf16.msra.mxu0 %v9257
        %9629 = vmatpush.bf16.msra.mxu0 %v9253
        %9630 = vmatpush.bf16.msra.mxu0 %v9249
        %9631 = vmatpush.bf16.msra.mxu0 %v9245
        %9632 = vmatmul.bf16.gmra.mxu0 %v8588
        %v9633 = vpop.f32.mrf.mxu0
        %v9634 = vadd.f32 %v9561, %v9633
        %v9635 = vpop.f32.mrf.mxu0
        %v9636 = vadd.f32 %v9563, %v9635
        %9637 = vmatmul.bf16.gmra.mxu0 %v8592
        %v9638 = vpop.f32.mrf.mxu0
        %v9639 = vadd.f32 %v9566, %v9638
        %v9640 = vpop.f32.mrf.mxu0
        %v9641 = vadd.f32 %v9568, %v9640
        %9642 = vmatmul.bf16.gmra.mxu0 %v8596
        %v9643 = vpop.f32.mrf.mxu0
        %v9644 = vadd.f32 %v9571, %v9643
        %v9645 = vpop.f32.mrf.mxu0
        %v9646 = vadd.f32 %v9573, %v9645
        %9647 = vmatmul.bf16.gmra.mxu0 %v8600
        %v9648 = vpop.f32.mrf.mxu0
        %v9649 = vadd.f32 %v9576, %v9648
        %v9650 = vpop.f32.mrf.mxu0
        %v9651 = vadd.f32 %v9578, %v9650
        %9652 = vmatmul.bf16.gmra.mxu0 %v8604
        %v9653 = vpop.f32.mrf.mxu0
        %v9654 = vadd.f32 %v9581, %v9653
        %v9655 = vpop.f32.mrf.mxu0
        %v9656 = vadd.f32 %v9583, %v9655
        %9657 = vmatmul.bf16.gmra.mxu0 %v8608
        %v9658 = vpop.f32.mrf.mxu0
        %v9659 = vadd.f32 %v9586, %v9658
        %v9660 = vpop.f32.mrf.mxu0
        %v9661 = vadd.f32 %v9588, %v9660
        %9662 = vmatmul.bf16.gmra.mxu0 %v8612
        %v9663 = vpop.f32.mrf.mxu0
        %v9664 = vadd.f32 %v9591, %v9663
        %v9665 = vpop.f32.mrf.mxu0
        %v9666 = vadd.f32 %v9593, %v9665
        %9667 = vmatmul.bf16.gmra.mxu0 %v8616
        %v9668 = vpop.f32.mrf.mxu0
        %v9669 = vadd.f32 %v9596, %v9668
        %v9670 = vpop.f32.mrf.mxu0
        %v9671 = vadd.f32 %v9598, %v9670
        %9672 = vmatmul.bf16.gmra.mxu0 %v8620
        %v9673 = vpop.f32.mrf.mxu0
        %v9674 = vadd.f32 %v9601, %v9673
        %v9675 = vpop.f32.mrf.mxu0
        %v9676 = vadd.f32 %v9603, %v9675
        %9677 = vmatmul.bf16.gmra.mxu0 %v8624
        %v9678 = vpop.f32.mrf.mxu0
        %v9679 = vadd.f32 %v9606, %v9678
        %v9680 = vpop.f32.mrf.mxu0
        %v9681 = vadd.f32 %v9608, %v9680
        %9682 = vmatmul.bf16.gmra.mxu0 %v8628
        %v9683 = vpop.f32.mrf.mxu0
        %v9684 = vadd.f32 %v9611, %v9683
        %v9685 = vpop.f32.mrf.mxu0
        %v9686 = vadd.f32 %v9613, %v9685
        %9687 = vmatmul.bf16.gmra.mxu0 %v8632
        %v9688 = vpop.f32.mrf.mxu0
        %v9689 = vadd.f32 %v9616, %v9688
        %v9690 = vpop.f32.mrf.mxu0
        %v9691 = vadd.f32 %v9618, %v9690
        %9692 = vmatmul.bf16.gmra.mxu0 %v8636
        %v9693 = vpop.f32.mrf.mxu0
        %v9694 = vadd.f32 %v9621, %v9693
        %v9695 = vpop.f32.mrf.mxu0
        %9696 = vdwg.mxu0
        %9697 = vmatpush.bf16.msra.mxu0 %v9178
        %9698 = vmatpush.bf16.msra.mxu0 %v9174
        %9699 = vmatpush.bf16.msra.mxu0 %v9170
        %9700 = vmatpush.bf16.msra.mxu0 %v9166
        %9701 = vmatpush.bf16.msra.mxu0 %v9162
        %9702 = vmatpush.bf16.msra.mxu0 %v9158
        %9703 = vmatpush.bf16.msra.mxu0 %v9154
        %9704 = vmatpush.bf16.msra.mxu0 %v9150
        %9705 = vmatmul.bf16.gmra.mxu0 %v8585
        %v9706 = vpop.f32.mrf.mxu0
        %v9707 = vadd.f32 0.0, %v9706
        %v9708 = vpop.f32.mrf.mxu0
        %v9709 = vadd.f32 0.0, %v9708
        %9710 = vmatmul.bf16.gmra.mxu0 %v8589
        %v9711 = vpop.f32.mrf.mxu0
        %v9712 = vadd.f32 0.0, %v9711
        %v9713 = vpop.f32.mrf.mxu0
        %v9714 = vadd.f32 0.0, %v9713
        %9715 = vmatmul.bf16.gmra.mxu0 %v8593
        %v9716 = vpop.f32.mrf.mxu0
        %v9717 = vadd.f32 0.0, %v9716
        %v9718 = vpop.f32.mrf.mxu0
        %v9719 = vadd.f32 0.0, %v9718
        %9720 = vmatmul.bf16.gmra.mxu0 %v8597
        %v9721 = vpop.f32.mrf.mxu0
        %v9722 = vadd.f32 0.0, %v9721
        %v9723 = vpop.f32.mrf.mxu0
        %v9724 = vadd.f32 0.0, %v9723
        %9725 = vmatmul.bf16.gmra.mxu0 %v8601
        %v9726 = vpop.f32.mrf.mxu0
        %v9727 = vadd.f32 0.0, %v9726
        %v9728 = vpop.f32.mrf.mxu0
        %v9729 = vadd.f32 0.0, %v9728
        %9730 = vmatmul.bf16.gmra.mxu0 %v8605
        %v9731 = vpop.f32.mrf.mxu0
        %v9732 = vadd.f32 0.0, %v9731
        %v9733 = vpop.f32.mrf.mxu0
        %v9734 = vadd.f32 0.0, %v9733
        %9735 = vmatmul.bf16.gmra.mxu0 %v8609
        %v9736 = vpop.f32.mrf.mxu0
        %v9737 = vadd.f32 0.0, %v9736
        %v9738 = vpop.f32.mrf.mxu0
        %v9739 = vadd.f32 0.0, %v9738
        %9740 = vmatmul.bf16.gmra.mxu0 %v8613
        %v9741 = vpop.f32.mrf.mxu0
        %v9742 = vadd.f32 0.0, %v9741
        %v9743 = vpop.f32.mrf.mxu0
        %v9744 = vadd.f32 0.0, %v9743
        %9745 = vmatmul.bf16.gmra.mxu0 %v8617
        %v9746 = vpop.f32.mrf.mxu0
        %v9747 = vadd.f32 0.0, %v9746
        %v9748 = vpop.f32.mrf.mxu0
        %v9749 = vadd.f32 0.0, %v9748
        %9750 = vmatmul.bf16.gmra.mxu0 %v8621
        %v9751 = vpop.f32.mrf.mxu0
        %v9752 = vadd.f32 0.0, %v9751
        %v9753 = vpop.f32.mrf.mxu0
        %v9754 = vadd.f32 0.0, %v9753
        %9755 = vmatmul.bf16.gmra.mxu0 %v8625
        %v9756 = vpop.f32.mrf.mxu0
        %v9757 = vadd.f32 0.0, %v9756
        %v9758 = vpop.f32.mrf.mxu0
        %v9759 = vadd.f32 0.0, %v9758
        %9760 = vmatmul.bf16.gmra.mxu0 %v8629
        %v9761 = vpop.f32.mrf.mxu0
        %v9762 = vadd.f32 0.0, %v9761
        %v9763 = vpop.f32.mrf.mxu0
        %v9764 = vadd.f32 0.0, %v9763
        %9765 = vmatmul.bf16.gmra.mxu0 %v8633
        %v9766 = vpop.f32.mrf.mxu0
        %v9767 = vadd.f32 0.0, %v9766
        %v9768 = vpop.f32.mrf.mxu0
        %9769 = vdwg.mxu0
        %9770 = vmatpush.bf16.msra.mxu0 %v9210
        %9771 = vmatpush.bf16.msra.mxu0 %v9206
        %9772 = vmatpush.bf16.msra.mxu0 %v9202
        %9773 = vmatpush.bf16.msra.mxu0 %v9198
        %9774 = vmatpush.bf16.msra.mxu0 %v9194
        %9775 = vmatpush.bf16.msra.mxu0 %v9190
        %9776 = vmatpush.bf16.msra.mxu0 %v9186
        %9777 = vmatpush.bf16.msra.mxu0 %v9182
        %9778 = vmatmul.bf16.gmra.mxu0 %v8586
        %v9779 = vpop.f32.mrf.mxu0
        %v9780 = vadd.f32 %v9707, %v9779
        %v9781 = vpop.f32.mrf.mxu0
        %v9782 = vadd.f32 %v9709, %v9781
        %9783 = vmatmul.bf16.gmra.mxu0 %v8590
        %v9784 = vpop.f32.mrf.mxu0
        %v9785 = vadd.f32 %v9712, %v9784
        %v9786 = vpop.f32.mrf.mxu0
        %v9787 = vadd.f32 %v9714, %v9786
        %9788 = vmatmul.bf16.gmra.mxu0 %v8594
        %v9789 = vpop.f32.mrf.mxu0
        %v9790 = vadd.f32 %v9717, %v9789
        %v9791 = vpop.f32.mrf.mxu0
        %v9792 = vadd.f32 %v9719, %v9791
        %9793 = vmatmul.bf16.gmra.mxu0 %v8598
        %v9794 = vpop.f32.mrf.mxu0
        %v9795 = vadd.f32 %v9722, %v9794
        %v9796 = vpop.f32.mrf.mxu0
        %v9797 = vadd.f32 %v9724, %v9796
        %9798 = vmatmul.bf16.gmra.mxu0 %v8602
        %v9799 = vpop.f32.mrf.mxu0
        %v9800 = vadd.f32 %v9727, %v9799
        %v9801 = vpop.f32.mrf.mxu0
        %v9802 = vadd.f32 %v9729, %v9801
        %9803 = vmatmul.bf16.gmra.mxu0 %v8606
        %v9804 = vpop.f32.mrf.mxu0
        %v9805 = vadd.f32 %v9732, %v9804
        %v9806 = vpop.f32.mrf.mxu0
        %v9807 = vadd.f32 %v9734, %v9806
        %9808 = vmatmul.bf16.gmra.mxu0 %v8610
        %v9809 = vpop.f32.mrf.mxu0
        %v9810 = vadd.f32 %v9737, %v9809
        %v9811 = vpop.f32.mrf.mxu0
        %v9812 = vadd.f32 %v9739, %v9811
        %9813 = vmatmul.bf16.gmra.mxu0 %v8614
        %v9814 = vpop.f32.mrf.mxu0
        %v9815 = vadd.f32 %v9742, %v9814
        %v9816 = vpop.f32.mrf.mxu0
        %v9817 = vadd.f32 %v9744, %v9816
        %9818 = vmatmul.bf16.gmra.mxu0 %v8618
        %v9819 = vpop.f32.mrf.mxu0
        %v9820 = vadd.f32 %v9747, %v9819
        %v9821 = vpop.f32.mrf.mxu0
        %v9822 = vadd.f32 %v9749, %v9821
        %9823 = vmatmul.bf16.gmra.mxu0 %v8622
        %v9824 = vpop.f32.mrf.mxu0
        %v9825 = vadd.f32 %v9752, %v9824
        %v9826 = vpop.f32.mrf.mxu0
        %v9827 = vadd.f32 %v9754, %v9826
        %9828 = vmatmul.bf16.gmra.mxu0 %v8626
        %v9829 = vpop.f32.mrf.mxu0
        %v9830 = vadd.f32 %v9757, %v9829
        %v9831 = vpop.f32.mrf.mxu0
        %v9832 = vadd.f32 %v9759, %v9831
        %9833 = vmatmul.bf16.gmra.mxu0 %v8630
        %v9834 = vpop.f32.mrf.mxu0
        %v9835 = vadd.f32 %v9762, %v9834
        %v9836 = vpop.f32.mrf.mxu0
        %v9837 = vadd.f32 %v9764, %v9836
        %9838 = vmatmul.bf16.gmra.mxu0 %v8634
        %v9839 = vpop.f32.mrf.mxu0
        %v9840 = vadd.f32 %v9767, %v9839
        %v9841 = vpop.f32.mrf.mxu0
        %9842 = vdwg.mxu0
        %9843 = vmatpush.bf16.msra.mxu0 %v9242
        %9844 = vmatpush.bf16.msra.mxu0 %v9238
        %9845 = vmatpush.bf16.msra.mxu0 %v9234
        %9846 = vmatpush.bf16.msra.mxu0 %v9230
        %9847 = vmatpush.bf16.msra.mxu0 %v9226
        %9848 = vmatpush.bf16.msra.mxu0 %v9222
        %9849 = vmatpush.bf16.msra.mxu0 %v9218
        %9850 = vmatpush.bf16.msra.mxu0 %v9214
        %9851 = vmatmul.bf16.gmra.mxu0 %v8587
        %v9852 = vpop.f32.mrf.mxu0
        %v9853 = vadd.f32 %v9780, %v9852
        %v9854 = vpop.f32.mrf.mxu0
        %v9855 = vadd.f32 %v9782, %v9854
        %9856 = vmatmul.bf16.gmra.mxu0 %v8591
        %v9857 = vpop.f32.mrf.mxu0
        %v9858 = vadd.f32 %v9785, %v9857
        %v9859 = vpop.f32.mrf.mxu0
        %v9860 = vadd.f32 %v9787, %v9859
        %9861 = vmatmul.bf16.gmra.mxu0 %v8595
        %v9862 = vpop.f32.mrf.mxu0
        %v9863 = vadd.f32 %v9790, %v9862
        %v9864 = vpop.f32.mrf.mxu0
        %v9865 = vadd.f32 %v9792, %v9864
        %9866 = vmatmul.bf16.gmra.mxu0 %v8599
        %v9867 = vpop.f32.mrf.mxu0
        %v9868 = vadd.f32 %v9795, %v9867
        %v9869 = vpop.f32.mrf.mxu0
        %v9870 = vadd.f32 %v9797, %v9869
        %9871 = vmatmul.bf16.gmra.mxu0 %v8603
        %v9872 = vpop.f32.mrf.mxu0
        %v9873 = vadd.f32 %v9800, %v9872
        %v9874 = vpop.f32.mrf.mxu0
        %v9875 = vadd.f32 %v9802, %v9874
        %9876 = vmatmul.bf16.gmra.mxu0 %v8607
        %v9877 = vpop.f32.mrf.mxu0
        %v9878 = vadd.f32 %v9805, %v9877
        %v9879 = vpop.f32.mrf.mxu0
        %v9880 = vadd.f32 %v9807, %v9879
        %9881 = vmatmul.bf16.gmra.mxu0 %v8611
        %v9882 = vpop.f32.mrf.mxu0
        %v9883 = vadd.f32 %v9810, %v9882
        %v9884 = vpop.f32.mrf.mxu0
        %v9885 = vadd.f32 %v9812, %v9884
        %9886 = vmatmul.bf16.gmra.mxu0 %v8615
        %v9887 = vpop.f32.mrf.mxu0
        %v9888 = vadd.f32 %v9815, %v9887
        %v9889 = vpop.f32.mrf.mxu0
        %v9890 = vadd.f32 %v9817, %v9889
        %9891 = vmatmul.bf16.gmra.mxu0 %v8619
        %v9892 = vpop.f32.mrf.mxu0
        %v9893 = vadd.f32 %v9820, %v9892
        %v9894 = vpop.f32.mrf.mxu0
        %v9895 = vadd.f32 %v9822, %v9894
        %9896 = vmatmul.bf16.gmra.mxu0 %v8623
        %v9897 = vpop.f32.mrf.mxu0
        %v9898 = vadd.f32 %v9825, %v9897
        %v9899 = vpop.f32.mrf.mxu0
        %v9900 = vadd.f32 %v9827, %v9899
        %9901 = vmatmul.bf16.gmra.mxu0 %v8627
        %v9902 = vpop.f32.mrf.mxu0
        %v9903 = vadd.f32 %v9830, %v9902
        %v9904 = vpop.f32.mrf.mxu0
        %v9905 = vadd.f32 %v9832, %v9904
        %9906 = vmatmul.bf16.gmra.mxu0 %v8631
        %v9907 = vpop.f32.mrf.mxu0
        %v9908 = vadd.f32 %v9835, %v9907
        %v9909 = vpop.f32.mrf.mxu0
        %v9910 = vadd.f32 %v9837, %v9909
        %9911 = vmatmul.bf16.gmra.mxu0 %v8635
        %v9912 = vpop.f32.mrf.mxu0
        %v9913 = vadd.f32 %v9840, %v9912
        %v9914 = vpop.f32.mrf.mxu0
        %9915 = vdwg.mxu0
        %9916 = vmatpush.bf16.msra.mxu0 %v9274
        %9917 = vmatpush.bf16.msra.mxu0 %v9270
        %9918 = vmatpush.bf16.msra.mxu0 %v9266
        %9919 = vmatpush.bf16.msra.mxu0 %v9262
        %9920 = vmatpush.bf16.msra.mxu0 %v9258
        %9921 = vmatpush.bf16.msra.mxu0 %v9254
        %9922 = vmatpush.bf16.msra.mxu0 %v9250
        %9923 = vmatpush.bf16.msra.mxu0 %v9246
        %9924 = vmatmul.bf16.gmra.mxu0 %v8588
        %v9925 = vpop.f32.mrf.mxu0
        %v9926 = vadd.f32 %v9853, %v9925
        %v9927 = vpop.f32.mrf.mxu0
        %v9928 = vadd.f32 %v9855, %v9927
        %9929 = vmatmul.bf16.gmra.mxu0 %v8592
        %v9930 = vpop.f32.mrf.mxu0
        %v9931 = vadd.f32 %v9858, %v9930
        %v9932 = vpop.f32.mrf.mxu0
        %v9933 = vadd.f32 %v9860, %v9932
        %9934 = vmatmul.bf16.gmra.mxu0 %v8596
        %v9935 = vpop.f32.mrf.mxu0
        %v9936 = vadd.f32 %v9863, %v9935
        %v9937 = vpop.f32.mrf.mxu0
        %v9938 = vadd.f32 %v9865, %v9937
        %9939 = vmatmul.bf16.gmra.mxu0 %v8600
        %v9940 = vpop.f32.mrf.mxu0
        %v9941 = vadd.f32 %v9868, %v9940
        %v9942 = vpop.f32.mrf.mxu0
        %v9943 = vadd.f32 %v9870, %v9942
        %9944 = vmatmul.bf16.gmra.mxu0 %v8604
        %v9945 = vpop.f32.mrf.mxu0
        %v9946 = vadd.f32 %v9873, %v9945
        %v9947 = vpop.f32.mrf.mxu0
        %v9948 = vadd.f32 %v9875, %v9947
        %9949 = vmatmul.bf16.gmra.mxu0 %v8608
        %v9950 = vpop.f32.mrf.mxu0
        %v9951 = vadd.f32 %v9878, %v9950
        %v9952 = vpop.f32.mrf.mxu0
        %v9953 = vadd.f32 %v9880, %v9952
        %9954 = vmatmul.bf16.gmra.mxu0 %v8612
        %v9955 = vpop.f32.mrf.mxu0
        %v9956 = vadd.f32 %v9883, %v9955
        %v9957 = vpop.f32.mrf.mxu0
        %v9958 = vadd.f32 %v9885, %v9957
        %9959 = vmatmul.bf16.gmra.mxu0 %v8616
        %v9960 = vpop.f32.mrf.mxu0
        %v9961 = vadd.f32 %v9888, %v9960
        %v9962 = vpop.f32.mrf.mxu0
        %v9963 = vadd.f32 %v9890, %v9962
        %9964 = vmatmul.bf16.gmra.mxu0 %v8620
        %v9965 = vpop.f32.mrf.mxu0
        %v9966 = vadd.f32 %v9893, %v9965
        %v9967 = vpop.f32.mrf.mxu0
        %v9968 = vadd.f32 %v9895, %v9967
        %9969 = vmatmul.bf16.gmra.mxu0 %v8624
        %v9970 = vpop.f32.mrf.mxu0
        %v9971 = vadd.f32 %v9898, %v9970
        %v9972 = vpop.f32.mrf.mxu0
        %v9973 = vadd.f32 %v9900, %v9972
        %9974 = vmatmul.bf16.gmra.mxu0 %v8628
        %v9975 = vpop.f32.mrf.mxu0
        %v9976 = vadd.f32 %v9903, %v9975
        %v9977 = vpop.f32.mrf.mxu0
        %v9978 = vadd.f32 %v9905, %v9977
        %9979 = vmatmul.bf16.gmra.mxu0 %v8632
        %v9980 = vpop.f32.mrf.mxu0
        %v9981 = vadd.f32 %v9908, %v9980
        %v9982 = vpop.f32.mrf.mxu0
        %v9983 = vadd.f32 %v9910, %v9982
        %9984 = vmatmul.bf16.gmra.mxu0 %v8636
        %v9985 = vpop.f32.mrf.mxu0
        %v9986 = vadd.f32 %v9913, %v9985
        %v9987 = vpop.f32.mrf.mxu0
        %9988 = vdwg.mxu0
        %9989 = vmatpush.bf16.msra.mxu0 %v9179
        %9990 = vmatpush.bf16.msra.mxu0 %v9175
        %9991 = vmatpush.bf16.msra.mxu0 %v9171
        %9992 = vmatpush.bf16.msra.mxu0 %v9167
        %9993 = vmatpush.bf16.msra.mxu0 %v9163
        %9994 = vmatpush.bf16.msra.mxu0 %v9159
        %9995 = vmatpush.bf16.msra.mxu0 %v9155
        %9996 = vmatpush.bf16.msra.mxu0 %v9151
        %9997 = vmatmul.bf16.gmra.mxu0 %v8585
        %v9998 = vpop.f32.mrf.mxu0
        %v9999 = vadd.f32 0.0, %v9998
        %v10000 = vpop.f32.mrf.mxu0
        %v10001 = vadd.f32 0.0, %v10000
        %10002 = vmatmul.bf16.gmra.mxu0 %v8589
        %v10003 = vpop.f32.mrf.mxu0
        %v10004 = vadd.f32 0.0, %v10003
        %v10005 = vpop.f32.mrf.mxu0
        %v10006 = vadd.f32 0.0, %v10005
        %10007 = vmatmul.bf16.gmra.mxu0 %v8593
        %v10008 = vpop.f32.mrf.mxu0
        %v10009 = vadd.f32 0.0, %v10008
        %v10010 = vpop.f32.mrf.mxu0
        %v10011 = vadd.f32 0.0, %v10010
        %10012 = vmatmul.bf16.gmra.mxu0 %v8597
        %v10013 = vpop.f32.mrf.mxu0
        %v10014 = vadd.f32 0.0, %v10013
        %v10015 = vpop.f32.mrf.mxu0
        %v10016 = vadd.f32 0.0, %v10015
        %10017 = vmatmul.bf16.gmra.mxu0 %v8601
        %v10018 = vpop.f32.mrf.mxu0
        %v10019 = vadd.f32 0.0, %v10018
        %v10020 = vpop.f32.mrf.mxu0
        %v10021 = vadd.f32 0.0, %v10020
        %10022 = vmatmul.bf16.gmra.mxu0 %v8605
        %v10023 = vpop.f32.mrf.mxu0
        %v10024 = vadd.f32 0.0, %v10023
        %v10025 = vpop.f32.mrf.mxu0
        %v10026 = vadd.f32 0.0, %v10025
        %10027 = vmatmul.bf16.gmra.mxu0 %v8609
        %v10028 = vpop.f32.mrf.mxu0
        %v10029 = vadd.f32 0.0, %v10028
        %v10030 = vpop.f32.mrf.mxu0
        %v10031 = vadd.f32 0.0, %v10030
        %10032 = vmatmul.bf16.gmra.mxu0 %v8613
        %v10033 = vpop.f32.mrf.mxu0
        %v10034 = vadd.f32 0.0, %v10033
        %v10035 = vpop.f32.mrf.mxu0
        %v10036 = vadd.f32 0.0, %v10035
        %10037 = vmatmul.bf16.gmra.mxu0 %v8617
        %v10038 = vpop.f32.mrf.mxu0
        %v10039 = vadd.f32 0.0, %v10038
        %v10040 = vpop.f32.mrf.mxu0
        %v10041 = vadd.f32 0.0, %v10040
        %10042 = vmatmul.bf16.gmra.mxu0 %v8621
        %v10043 = vpop.f32.mrf.mxu0
        %v10044 = vadd.f32 0.0, %v10043
        %v10045 = vpop.f32.mrf.mxu0
        %v10046 = vadd.f32 0.0, %v10045
        %10047 = vmatmul.bf16.gmra.mxu0 %v8625
        %v10048 = vpop.f32.mrf.mxu0
        %v10049 = vadd.f32 0.0, %v10048
        %v10050 = vpop.f32.mrf.mxu0
        %v10051 = vadd.f32 0.0, %v10050
        %10052 = vmatmul.bf16.gmra.mxu0 %v8629
        %v10053 = vpop.f32.mrf.mxu0
        %v10054 = vadd.f32 0.0, %v10053
        %v10055 = vpop.f32.mrf.mxu0
        %v10056 = vadd.f32 0.0, %v10055
        %10057 = vmatmul.bf16.gmra.mxu0 %v8633
        %v10058 = vpop.f32.mrf.mxu0
        %v10059 = vadd.f32 0.0, %v10058
        %v10060 = vpop.f32.mrf.mxu0
        %10061 = vdwg.mxu0
        %10062 = vmatpush.bf16.msra.mxu0 %v9211
        %10063 = vmatpush.bf16.msra.mxu0 %v9207
        %10064 = vmatpush.bf16.msra.mxu0 %v9203
        %10065 = vmatpush.bf16.msra.mxu0 %v9199
        %10066 = vmatpush.bf16.msra.mxu0 %v9195
        %10067 = vmatpush.bf16.msra.mxu0 %v9191
        %10068 = vmatpush.bf16.msra.mxu0 %v9187
        %10069 = vmatpush.bf16.msra.mxu0 %v9183
        %10070 = vmatmul.bf16.gmra.mxu0 %v8586
        %v10071 = vpop.f32.mrf.mxu0
        %v10072 = vadd.f32 %v9999, %v10071
        %v10073 = vpop.f32.mrf.mxu0
        %v10074 = vadd.f32 %v10001, %v10073
        %10075 = vmatmul.bf16.gmra.mxu0 %v8590
        %v10076 = vpop.f32.mrf.mxu0
        %v10077 = vadd.f32 %v10004, %v10076
        %v10078 = vpop.f32.mrf.mxu0
        %v10079 = vadd.f32 %v10006, %v10078
        %10080 = vmatmul.bf16.gmra.mxu0 %v8594
        %v10081 = vpop.f32.mrf.mxu0
        %v10082 = vadd.f32 %v10009, %v10081
        %v10083 = vpop.f32.mrf.mxu0
        %v10084 = vadd.f32 %v10011, %v10083
        %10085 = vmatmul.bf16.gmra.mxu0 %v8598
        %v10086 = vpop.f32.mrf.mxu0
        %v10087 = vadd.f32 %v10014, %v10086
        %v10088 = vpop.f32.mrf.mxu0
        %v10089 = vadd.f32 %v10016, %v10088
        %10090 = vmatmul.bf16.gmra.mxu0 %v8602
        %v10091 = vpop.f32.mrf.mxu0
        %v10092 = vadd.f32 %v10019, %v10091
        %v10093 = vpop.f32.mrf.mxu0
        %v10094 = vadd.f32 %v10021, %v10093
        %10095 = vmatmul.bf16.gmra.mxu0 %v8606
        %v10096 = vpop.f32.mrf.mxu0
        %v10097 = vadd.f32 %v10024, %v10096
        %v10098 = vpop.f32.mrf.mxu0
        %v10099 = vadd.f32 %v10026, %v10098
        %10100 = vmatmul.bf16.gmra.mxu0 %v8610
        %v10101 = vpop.f32.mrf.mxu0
        %v10102 = vadd.f32 %v10029, %v10101
        %v10103 = vpop.f32.mrf.mxu0
        %v10104 = vadd.f32 %v10031, %v10103
        %10105 = vmatmul.bf16.gmra.mxu0 %v8614
        %v10106 = vpop.f32.mrf.mxu0
        %v10107 = vadd.f32 %v10034, %v10106
        %v10108 = vpop.f32.mrf.mxu0
        %v10109 = vadd.f32 %v10036, %v10108
        %10110 = vmatmul.bf16.gmra.mxu0 %v8618
        %v10111 = vpop.f32.mrf.mxu0
        %v10112 = vadd.f32 %v10039, %v10111
        %v10113 = vpop.f32.mrf.mxu0
        %v10114 = vadd.f32 %v10041, %v10113
        %10115 = vmatmul.bf16.gmra.mxu0 %v8622
        %v10116 = vpop.f32.mrf.mxu0
        %v10117 = vadd.f32 %v10044, %v10116
        %v10118 = vpop.f32.mrf.mxu0
        %v10119 = vadd.f32 %v10046, %v10118
        %10120 = vmatmul.bf16.gmra.mxu0 %v8626
        %v10121 = vpop.f32.mrf.mxu0
        %v10122 = vadd.f32 %v10049, %v10121
        %v10123 = vpop.f32.mrf.mxu0
        %v10124 = vadd.f32 %v10051, %v10123
        %10125 = vmatmul.bf16.gmra.mxu0 %v8630
        %v10126 = vpop.f32.mrf.mxu0
        %v10127 = vadd.f32 %v10054, %v10126
        %v10128 = vpop.f32.mrf.mxu0
        %v10129 = vadd.f32 %v10056, %v10128
        %10130 = vmatmul.bf16.gmra.mxu0 %v8634
        %v10131 = vpop.f32.mrf.mxu0
        %v10132 = vadd.f32 %v10059, %v10131
        %v10133 = vpop.f32.mrf.mxu0
        %10134 = vdwg.mxu0
        %10135 = vmatpush.bf16.msra.mxu0 %v9243
        %10136 = vmatpush.bf16.msra.mxu0 %v9239
        %10137 = vmatpush.bf16.msra.mxu0 %v9235
        %10138 = vmatpush.bf16.msra.mxu0 %v9231
        %10139 = vmatpush.bf16.msra.mxu0 %v9227
        %10140 = vmatpush.bf16.msra.mxu0 %v9223
        %10141 = vmatpush.bf16.msra.mxu0 %v9219
        %10142 = vmatpush.bf16.msra.mxu0 %v9215
        %10143 = vmatmul.bf16.gmra.mxu0 %v8587
        %v10144 = vpop.f32.mrf.mxu0
        %v10145 = vadd.f32 %v10072, %v10144
        %v10146 = vpop.f32.mrf.mxu0
        %v10147 = vadd.f32 %v10074, %v10146
        %10148 = vmatmul.bf16.gmra.mxu0 %v8591
        %v10149 = vpop.f32.mrf.mxu0
        %v10150 = vadd.f32 %v10077, %v10149
        %v10151 = vpop.f32.mrf.mxu0
        %v10152 = vadd.f32 %v10079, %v10151
        %10153 = vmatmul.bf16.gmra.mxu0 %v8595
        %v10154 = vpop.f32.mrf.mxu0
        %v10155 = vadd.f32 %v10082, %v10154
        %v10156 = vpop.f32.mrf.mxu0
        %v10157 = vadd.f32 %v10084, %v10156
        %10158 = vmatmul.bf16.gmra.mxu0 %v8599
        %v10159 = vpop.f32.mrf.mxu0
        %v10160 = vadd.f32 %v10087, %v10159
        %v10161 = vpop.f32.mrf.mxu0
        %v10162 = vadd.f32 %v10089, %v10161
        %10163 = vmatmul.bf16.gmra.mxu0 %v8603
        %v10164 = vpop.f32.mrf.mxu0
        %v10165 = vadd.f32 %v10092, %v10164
        %v10166 = vpop.f32.mrf.mxu0
        %v10167 = vadd.f32 %v10094, %v10166
        %10168 = vmatmul.bf16.gmra.mxu0 %v8607
        %v10169 = vpop.f32.mrf.mxu0
        %v10170 = vadd.f32 %v10097, %v10169
        %v10171 = vpop.f32.mrf.mxu0
        %v10172 = vadd.f32 %v10099, %v10171
        %10173 = vmatmul.bf16.gmra.mxu0 %v8611
        %v10174 = vpop.f32.mrf.mxu0
        %v10175 = vadd.f32 %v10102, %v10174
        %v10176 = vpop.f32.mrf.mxu0
        %v10177 = vadd.f32 %v10104, %v10176
        %10178 = vmatmul.bf16.gmra.mxu0 %v8615
        %v10179 = vpop.f32.mrf.mxu0
        %v10180 = vadd.f32 %v10107, %v10179
        %v10181 = vpop.f32.mrf.mxu0
        %v10182 = vadd.f32 %v10109, %v10181
        %10183 = vmatmul.bf16.gmra.mxu0 %v8619
        %v10184 = vpop.f32.mrf.mxu0
        %v10185 = vadd.f32 %v10112, %v10184
        %v10186 = vpop.f32.mrf.mxu0
        %v10187 = vadd.f32 %v10114, %v10186
        %10188 = vmatmul.bf16.gmra.mxu0 %v8623
        %v10189 = vpop.f32.mrf.mxu0
        %v10190 = vadd.f32 %v10117, %v10189
        %v10191 = vpop.f32.mrf.mxu0
        %v10192 = vadd.f32 %v10119, %v10191
        %10193 = vmatmul.bf16.gmra.mxu0 %v8627
        %v10194 = vpop.f32.mrf.mxu0
        %v10195 = vadd.f32 %v10122, %v10194
        %v10196 = vpop.f32.mrf.mxu0
        %v10197 = vadd.f32 %v10124, %v10196
        %10198 = vmatmul.bf16.gmra.mxu0 %v8631
        %v10199 = vpop.f32.mrf.mxu0
        %v10200 = vadd.f32 %v10127, %v10199
        %v10201 = vpop.f32.mrf.mxu0
        %v10202 = vadd.f32 %v10129, %v10201
        %10203 = vmatmul.bf16.gmra.mxu0 %v8635
        %v10204 = vpop.f32.mrf.mxu0
        %v10205 = vadd.f32 %v10132, %v10204
        %v10206 = vpop.f32.mrf.mxu0
        %10207 = vdwg.mxu0
        %10208 = vmatpush.bf16.msra.mxu0 %v9275
        %10209 = vmatpush.bf16.msra.mxu0 %v9271
        %10210 = vmatpush.bf16.msra.mxu0 %v9267
        %10211 = vmatpush.bf16.msra.mxu0 %v9263
        %10212 = vmatpush.bf16.msra.mxu0 %v9259
        %10213 = vmatpush.bf16.msra.mxu0 %v9255
        %10214 = vmatpush.bf16.msra.mxu0 %v9251
        %10215 = vmatpush.bf16.msra.mxu0 %v9247
        %10216 = vmatmul.bf16.gmra.mxu0 %v8588
        %v10217 = vpop.f32.mrf.mxu0
        %v10218 = vadd.f32 %v10145, %v10217
        %v10219 = vpop.f32.mrf.mxu0
        %v10220 = vadd.f32 %v10147, %v10219
        %10221 = vmatmul.bf16.gmra.mxu0 %v8592
        %v10222 = vpop.f32.mrf.mxu0
        %v10223 = vadd.f32 %v10150, %v10222
        %v10224 = vpop.f32.mrf.mxu0
        %v10225 = vadd.f32 %v10152, %v10224
        %10226 = vmatmul.bf16.gmra.mxu0 %v8596
        %v10227 = vpop.f32.mrf.mxu0
        %v10228 = vadd.f32 %v10155, %v10227
        %v10229 = vpop.f32.mrf.mxu0
        %v10230 = vadd.f32 %v10157, %v10229
        %10231 = vmatmul.bf16.gmra.mxu0 %v8600
        %v10232 = vpop.f32.mrf.mxu0
        %v10233 = vadd.f32 %v10160, %v10232
        %v10234 = vpop.f32.mrf.mxu0
        %v10235 = vadd.f32 %v10162, %v10234
        %10236 = vmatmul.bf16.gmra.mxu0 %v8604
        %v10237 = vpop.f32.mrf.mxu0
        %v10238 = vadd.f32 %v10165, %v10237
        %v10239 = vpop.f32.mrf.mxu0
        %v10240 = vadd.f32 %v10167, %v10239
        %10241 = vmatmul.bf16.gmra.mxu0 %v8608
        %v10242 = vpop.f32.mrf.mxu0
        %v10243 = vadd.f32 %v10170, %v10242
        %v10244 = vpop.f32.mrf.mxu0
        %v10245 = vadd.f32 %v10172, %v10244
        %10246 = vmatmul.bf16.gmra.mxu0 %v8612
        %v10247 = vpop.f32.mrf.mxu0
        %v10248 = vadd.f32 %v10175, %v10247
        %v10249 = vpop.f32.mrf.mxu0
        %v10250 = vadd.f32 %v10177, %v10249
        %10251 = vmatmul.bf16.gmra.mxu0 %v8616
        %v10252 = vpop.f32.mrf.mxu0
        %v10253 = vadd.f32 %v10180, %v10252
        %v10254 = vpop.f32.mrf.mxu0
        %v10255 = vadd.f32 %v10182, %v10254
        %10256 = vmatmul.bf16.gmra.mxu0 %v8620
        %v10257 = vpop.f32.mrf.mxu0
        %v10258 = vadd.f32 %v10185, %v10257
        %v10259 = vpop.f32.mrf.mxu0
        %v10260 = vadd.f32 %v10187, %v10259
        %10261 = vmatmul.bf16.gmra.mxu0 %v8624
        %v10262 = vpop.f32.mrf.mxu0
        %v10263 = vadd.f32 %v10190, %v10262
        %v10264 = vpop.f32.mrf.mxu0
        %v10265 = vadd.f32 %v10192, %v10264
        %10266 = vmatmul.bf16.gmra.mxu0 %v8628
        %v10267 = vpop.f32.mrf.mxu0
        %v10268 = vadd.f32 %v10195, %v10267
        %v10269 = vpop.f32.mrf.mxu0
        %v10270 = vadd.f32 %v10197, %v10269
        %10271 = vmatmul.bf16.gmra.mxu0 %v8632
        %v10272 = vpop.f32.mrf.mxu0
        %v10273 = vadd.f32 %v10200, %v10272
        %v10274 = vpop.f32.mrf.mxu0
        %v10275 = vadd.f32 %v10202, %v10274
        %10276 = vmatmul.bf16.gmra.mxu0 %v8636
        %v10277 = vpop.f32.mrf.mxu0
        %v10278 = vadd.f32 %v10205, %v10277
        %v10279 = vpop.f32.mrf.mxu0
        %10280 = vdwg.mxu0
        %10281 = vmatpush.bf16.msra.mxu0 %v9180
        %10282 = vmatpush.bf16.msra.mxu0 %v9176
        %10283 = vmatpush.bf16.msra.mxu0 %v9172
        %10284 = vmatpush.bf16.msra.mxu0 %v9168
        %10285 = vmatpush.bf16.msra.mxu0 %v9164
        %10286 = vmatpush.bf16.msra.mxu0 %v9160
        %10287 = vmatpush.bf16.msra.mxu0 %v9156
        %10288 = vmatpush.bf16.msra.mxu0 %v9152
        %10289 = vmatmul.bf16.gmra.mxu0 %v8585
        %v10290 = vpop.f32.mrf.mxu0
        %v10291 = vadd.f32 0.0, %v10290
        %v10292 = vpop.f32.mrf.mxu0
        %v10293 = vadd.f32 0.0, %v10292
        %10294 = vmatmul.bf16.gmra.mxu0 %v8589
        %v10295 = vpop.f32.mrf.mxu0
        %v10296 = vadd.f32 0.0, %v10295
        %v10297 = vpop.f32.mrf.mxu0
        %v10298 = vadd.f32 0.0, %v10297
        %10299 = vmatmul.bf16.gmra.mxu0 %v8593
        %v10300 = vpop.f32.mrf.mxu0
        %v10301 = vadd.f32 0.0, %v10300
        %v10302 = vpop.f32.mrf.mxu0
        %v10303 = vadd.f32 0.0, %v10302
        %10304 = vmatmul.bf16.gmra.mxu0 %v8597
        %v10305 = vpop.f32.mrf.mxu0
        %v10306 = vadd.f32 0.0, %v10305
        %v10307 = vpop.f32.mrf.mxu0
        %v10308 = vadd.f32 0.0, %v10307
        %10309 = vmatmul.bf16.gmra.mxu0 %v8601
        %v10310 = vpop.f32.mrf.mxu0
        %v10311 = vadd.f32 0.0, %v10310
        %v10312 = vpop.f32.mrf.mxu0
        %v10313 = vadd.f32 0.0, %v10312
        %10314 = vmatmul.bf16.gmra.mxu0 %v8605
        %v10315 = vpop.f32.mrf.mxu0
        %v10316 = vadd.f32 0.0, %v10315
        %v10317 = vpop.f32.mrf.mxu0
        %v10318 = vadd.f32 0.0, %v10317
        %10319 = vmatmul.bf16.gmra.mxu0 %v8609
        %v10320 = vpop.f32.mrf.mxu0
        %v10321 = vadd.f32 0.0, %v10320
        %v10322 = vpop.f32.mrf.mxu0
        %v10323 = vadd.f32 0.0, %v10322
        %10324 = vmatmul.bf16.gmra.mxu0 %v8613
        %v10325 = vpop.f32.mrf.mxu0
        %v10326 = vadd.f32 0.0, %v10325
        %v10327 = vpop.f32.mrf.mxu0
        %v10328 = vadd.f32 0.0, %v10327
        %10329 = vmatmul.bf16.gmra.mxu0 %v8617
        %v10330 = vpop.f32.mrf.mxu0
        %v10331 = vadd.f32 0.0, %v10330
        %v10332 = vpop.f32.mrf.mxu0
        %v10333 = vadd.f32 0.0, %v10332
        %10334 = vmatmul.bf16.gmra.mxu0 %v8621
        %v10335 = vpop.f32.mrf.mxu0
        %v10336 = vadd.f32 0.0, %v10335
        %v10337 = vpop.f32.mrf.mxu0
        %v10338 = vadd.f32 0.0, %v10337
        %10339 = vmatmul.bf16.gmra.mxu0 %v8625
        %v10340 = vpop.f32.mrf.mxu0
        %v10341 = vadd.f32 0.0, %v10340
        %v10342 = vpop.f32.mrf.mxu0
        %v10343 = vadd.f32 0.0, %v10342
        %10344 = vmatmul.bf16.gmra.mxu0 %v8629
        %v10345 = vpop.f32.mrf.mxu0
        %v10346 = vadd.f32 0.0, %v10345
        %v10347 = vpop.f32.mrf.mxu0
        %v10348 = vadd.f32 0.0, %v10347
        %10349 = vmatmul.bf16.gmra.mxu0 %v8633
        %v10350 = vpop.f32.mrf.mxu0
        %v10351 = vadd.f32 0.0, %v10350
        %v10352 = vpop.f32.mrf.mxu0
        %10353 = vdwg.mxu0
        %10354 = vmatpush.bf16.msra.mxu0 %v9212
        %10355 = vmatpush.bf16.msra.mxu0 %v9208
        %10356 = vmatpush.bf16.msra.mxu0 %v9204
        %10357 = vmatpush.bf16.msra.mxu0 %v9200
        %10358 = vmatpush.bf16.msra.mxu0 %v9196
        %10359 = vmatpush.bf16.msra.mxu0 %v9192
        %10360 = vmatpush.bf16.msra.mxu0 %v9188
        %10361 = vmatpush.bf16.msra.mxu0 %v9184
        %10362 = vmatmul.bf16.gmra.mxu0 %v8586
        %v10363 = vpop.f32.mrf.mxu0
        %v10364 = vadd.f32 %v10291, %v10363
        %v10365 = vpop.f32.mrf.mxu0
        %v10366 = vadd.f32 %v10293, %v10365
        %10367 = vmatmul.bf16.gmra.mxu0 %v8590
        %v10368 = vpop.f32.mrf.mxu0
        %v10369 = vadd.f32 %v10296, %v10368
        %v10370 = vpop.f32.mrf.mxu0
        %v10371 = vadd.f32 %v10298, %v10370
        %10372 = vmatmul.bf16.gmra.mxu0 %v8594
        %v10373 = vpop.f32.mrf.mxu0
        %v10374 = vadd.f32 %v10301, %v10373
        %v10375 = vpop.f32.mrf.mxu0
        %v10376 = vadd.f32 %v10303, %v10375
        %10377 = vmatmul.bf16.gmra.mxu0 %v8598
        %v10378 = vpop.f32.mrf.mxu0
        %v10379 = vadd.f32 %v10306, %v10378
        %v10380 = vpop.f32.mrf.mxu0
        %v10381 = vadd.f32 %v10308, %v10380
        %10382 = vmatmul.bf16.gmra.mxu0 %v8602
        %v10383 = vpop.f32.mrf.mxu0
        %v10384 = vadd.f32 %v10311, %v10383
        %v10385 = vpop.f32.mrf.mxu0
        %v10386 = vadd.f32 %v10313, %v10385
        %10387 = vmatmul.bf16.gmra.mxu0 %v8606
        %v10388 = vpop.f32.mrf.mxu0
        %v10389 = vadd.f32 %v10316, %v10388
        %v10390 = vpop.f32.mrf.mxu0
        %v10391 = vadd.f32 %v10318, %v10390
        %10392 = vmatmul.bf16.gmra.mxu0 %v8610
        %v10393 = vpop.f32.mrf.mxu0
        %v10394 = vadd.f32 %v10321, %v10393
        %v10395 = vpop.f32.mrf.mxu0
        %v10396 = vadd.f32 %v10323, %v10395
        %10397 = vmatmul.bf16.gmra.mxu0 %v8614
        %v10398 = vpop.f32.mrf.mxu0
        %v10399 = vadd.f32 %v10326, %v10398
        %v10400 = vpop.f32.mrf.mxu0
        %v10401 = vadd.f32 %v10328, %v10400
        %10402 = vmatmul.bf16.gmra.mxu0 %v8618
        %v10403 = vpop.f32.mrf.mxu0
        %v10404 = vadd.f32 %v10331, %v10403
        %v10405 = vpop.f32.mrf.mxu0
        %v10406 = vadd.f32 %v10333, %v10405
        %10407 = vmatmul.bf16.gmra.mxu0 %v8622
        %v10408 = vpop.f32.mrf.mxu0
        %v10409 = vadd.f32 %v10336, %v10408
        %v10410 = vpop.f32.mrf.mxu0
        %v10411 = vadd.f32 %v10338, %v10410
        %10412 = vmatmul.bf16.gmra.mxu0 %v8626
        %v10413 = vpop.f32.mrf.mxu0
        %v10414 = vadd.f32 %v10341, %v10413
        %v10415 = vpop.f32.mrf.mxu0
        %v10416 = vadd.f32 %v10343, %v10415
        %10417 = vmatmul.bf16.gmra.mxu0 %v8630
        %v10418 = vpop.f32.mrf.mxu0
        %v10419 = vadd.f32 %v10346, %v10418
        %v10420 = vpop.f32.mrf.mxu0
        %v10421 = vadd.f32 %v10348, %v10420
        %10422 = vmatmul.bf16.gmra.mxu0 %v8634
        %v10423 = vpop.f32.mrf.mxu0
        %v10424 = vadd.f32 %v10351, %v10423
        %v10425 = vpop.f32.mrf.mxu0
        %10426 = vdwg.mxu0
        %10427 = vmatpush.bf16.msra.mxu0 %v9244
        %10428 = vmatpush.bf16.msra.mxu0 %v9240
        %10429 = vmatpush.bf16.msra.mxu0 %v9236
        %10430 = vmatpush.bf16.msra.mxu0 %v9232
        %10431 = vmatpush.bf16.msra.mxu0 %v9228
        %10432 = vmatpush.bf16.msra.mxu0 %v9224
        %10433 = vmatpush.bf16.msra.mxu0 %v9220
        %10434 = vmatpush.bf16.msra.mxu0 %v9216
        %10435 = vmatmul.bf16.gmra.mxu0 %v8587
        %v10436 = vpop.f32.mrf.mxu0
        %v10437 = vadd.f32 %v10364, %v10436
        %v10438 = vpop.f32.mrf.mxu0
        %v10439 = vadd.f32 %v10366, %v10438
        %10440 = vmatmul.bf16.gmra.mxu0 %v8591
        %v10441 = vpop.f32.mrf.mxu0
        %v10442 = vadd.f32 %v10369, %v10441
        %v10443 = vpop.f32.mrf.mxu0
        %v10444 = vadd.f32 %v10371, %v10443
        %10445 = vmatmul.bf16.gmra.mxu0 %v8595
        %v10446 = vpop.f32.mrf.mxu0
        %v10447 = vadd.f32 %v10374, %v10446
        %v10448 = vpop.f32.mrf.mxu0
        %v10449 = vadd.f32 %v10376, %v10448
        %10450 = vmatmul.bf16.gmra.mxu0 %v8599
        %v10451 = vpop.f32.mrf.mxu0
        %v10452 = vadd.f32 %v10379, %v10451
        %v10453 = vpop.f32.mrf.mxu0
        %v10454 = vadd.f32 %v10381, %v10453
        %10455 = vmatmul.bf16.gmra.mxu0 %v8603
        %v10456 = vpop.f32.mrf.mxu0
        %v10457 = vadd.f32 %v10384, %v10456
        %v10458 = vpop.f32.mrf.mxu0
        %v10459 = vadd.f32 %v10386, %v10458
        %10460 = vmatmul.bf16.gmra.mxu0 %v8607
        %v10461 = vpop.f32.mrf.mxu0
        %v10462 = vadd.f32 %v10389, %v10461
        %v10463 = vpop.f32.mrf.mxu0
        %v10464 = vadd.f32 %v10391, %v10463
        %10465 = vmatmul.bf16.gmra.mxu0 %v8611
        %v10466 = vpop.f32.mrf.mxu0
        %v10467 = vadd.f32 %v10394, %v10466
        %v10468 = vpop.f32.mrf.mxu0
        %v10469 = vadd.f32 %v10396, %v10468
        %10470 = vmatmul.bf16.gmra.mxu0 %v8615
        %v10471 = vpop.f32.mrf.mxu0
        %v10472 = vadd.f32 %v10399, %v10471
        %v10473 = vpop.f32.mrf.mxu0
        %v10474 = vadd.f32 %v10401, %v10473
        %10475 = vmatmul.bf16.gmra.mxu0 %v8619
        %v10476 = vpop.f32.mrf.mxu0
        %v10477 = vadd.f32 %v10404, %v10476
        %v10478 = vpop.f32.mrf.mxu0
        %v10479 = vadd.f32 %v10406, %v10478
        %10480 = vmatmul.bf16.gmra.mxu0 %v8623
        %v10481 = vpop.f32.mrf.mxu0
        %v10482 = vadd.f32 %v10409, %v10481
        %v10483 = vpop.f32.mrf.mxu0
        %v10484 = vadd.f32 %v10411, %v10483
        %10485 = vmatmul.bf16.gmra.mxu0 %v8627
        %v10486 = vpop.f32.mrf.mxu0
        %v10487 = vadd.f32 %v10414, %v10486
        %v10488 = vpop.f32.mrf.mxu0
        %v10489 = vadd.f32 %v10416, %v10488
        %10490 = vmatmul.bf16.gmra.mxu0 %v8631
        %v10491 = vpop.f32.mrf.mxu0
        %v10492 = vadd.f32 %v10419, %v10491
        %v10493 = vpop.f32.mrf.mxu0
        %v10494 = vadd.f32 %v10421, %v10493
        %10495 = vmatmul.bf16.gmra.mxu0 %v8635
        %v10496 = vpop.f32.mrf.mxu0
        %v10497 = vadd.f32 %v10424, %v10496
        %v10498 = vpop.f32.mrf.mxu0
        %10499 = vdwg.mxu0
        %10500 = vmatpush.bf16.msra.mxu0 %v9276
        %10501 = vmatpush.bf16.msra.mxu0 %v9272
        %10502 = vmatpush.bf16.msra.mxu0 %v9268
        %10503 = vmatpush.bf16.msra.mxu0 %v9264
        %10504 = vmatpush.bf16.msra.mxu0 %v9260
        %10505 = vmatpush.bf16.msra.mxu0 %v9256
        %10506 = vmatpush.bf16.msra.mxu0 %v9252
        %10507 = vmatpush.bf16.msra.mxu0 %v9248
        %10508 = vmatmul.bf16.gmra.mxu0 %v8588
        %v10509 = vpop.f32.mrf.mxu0
        %v10510 = vadd.f32 %v10437, %v10509
        %v10511 = vpop.f32.mrf.mxu0
        %v10512 = vadd.f32 %v10439, %v10511
        %10513 = vmatmul.bf16.gmra.mxu0 %v8592
        %v10514 = vpop.f32.mrf.mxu0
        %v10515 = vadd.f32 %v10442, %v10514
        %v10516 = vpop.f32.mrf.mxu0
        %v10517 = vadd.f32 %v10444, %v10516
        %10518 = vmatmul.bf16.gmra.mxu0 %v8596
        %v10519 = vpop.f32.mrf.mxu0
        %v10520 = vadd.f32 %v10447, %v10519
        %v10521 = vpop.f32.mrf.mxu0
        %v10522 = vadd.f32 %v10449, %v10521
        %10523 = vmatmul.bf16.gmra.mxu0 %v8600
        %v10524 = vpop.f32.mrf.mxu0
        %v10525 = vadd.f32 %v10452, %v10524
        %v10526 = vpop.f32.mrf.mxu0
        %v10527 = vadd.f32 %v10454, %v10526
        %10528 = vmatmul.bf16.gmra.mxu0 %v8604
        %v10529 = vpop.f32.mrf.mxu0
        %v10530 = vadd.f32 %v10457, %v10529
        %v10531 = vpop.f32.mrf.mxu0
        %v10532 = vadd.f32 %v10459, %v10531
        %10533 = vmatmul.bf16.gmra.mxu0 %v8608
        %v10534 = vpop.f32.mrf.mxu0
        %v10535 = vadd.f32 %v10462, %v10534
        %v10536 = vpop.f32.mrf.mxu0
        %v10537 = vadd.f32 %v10464, %v10536
        %10538 = vmatmul.bf16.gmra.mxu0 %v8612
        %v10539 = vpop.f32.mrf.mxu0
        %v10540 = vadd.f32 %v10467, %v10539
        %v10541 = vpop.f32.mrf.mxu0
        %v10542 = vadd.f32 %v10469, %v10541
        %10543 = vmatmul.bf16.gmra.mxu0 %v8616
        %v10544 = vpop.f32.mrf.mxu0
        %v10545 = vadd.f32 %v10472, %v10544
        %v10546 = vpop.f32.mrf.mxu0
        %v10547 = vadd.f32 %v10474, %v10546
        %10548 = vmatmul.bf16.gmra.mxu0 %v8620
        %v10549 = vpop.f32.mrf.mxu0
        %v10550 = vadd.f32 %v10477, %v10549
        %v10551 = vpop.f32.mrf.mxu0
        %v10552 = vadd.f32 %v10479, %v10551
        %10553 = vmatmul.bf16.gmra.mxu0 %v8624
        %v10554 = vpop.f32.mrf.mxu0
        %v10555 = vadd.f32 %v10482, %v10554
        %v10556 = vpop.f32.mrf.mxu0
        %v10557 = vadd.f32 %v10484, %v10556
        %10558 = vmatmul.bf16.gmra.mxu0 %v8628
        %v10559 = vpop.f32.mrf.mxu0
        %v10560 = vadd.f32 %v10487, %v10559
        %v10561 = vpop.f32.mrf.mxu0
        %v10562 = vadd.f32 %v10489, %v10561
        %10563 = vmatmul.bf16.gmra.mxu0 %v8632
        %v10564 = vpop.f32.mrf.mxu0
        %v10565 = vadd.f32 %v10492, %v10564
        %v10566 = vpop.f32.mrf.mxu0
        %v10567 = vadd.f32 %v10494, %v10566
        %10568 = vmatmul.bf16.gmra.mxu0 %v8636
        %v10569 = vpop.f32.mrf.mxu0
        %v10570 = vadd.f32 %v10497, %v10569
        %v10571 = vpop.f32.mrf.mxu0
        %10572 = vdwg.mxu0
        %v10573 = vadd.f32 %v8485, %v9634
        %v10574 = vadd.f32 %v8486, %v9926
        %v10575 = vadd.f32 %v8487, %v10218
        %v10576 = vadd.f32 %v8488, %v10510
        %v10577 = vadd.f32 %v8489, %v9636
        %v10578 = vadd.f32 %v8490, %v9928
        %v10579 = vadd.f32 %v8491, %v10220
        %v10580 = vadd.f32 %v8492, %v10512
        %v10581 = vadd.f32 %v8493, %v9639
        %v10582 = vadd.f32 %v8494, %v9931
        %v10583 = vadd.f32 %v8495, %v10223
        %v10584 = vadd.f32 %v8496, %v10515
        %v10585 = vadd.f32 %v8497, %v9641
        %v10586 = vadd.f32 %v8498, %v9933
        %v10587 = vadd.f32 %v8499, %v10225
        %v10588 = vadd.f32 %v8500, %v10517
        %v10589 = vadd.f32 %v8501, %v9644
        %v10590 = vadd.f32 %v8502, %v9936
        %v10591 = vadd.f32 %v8503, %v10228
        %v10592 = vadd.f32 %v8504, %v10520
        %v10593 = vadd.f32 %v8505, %v9646
        %v10594 = vadd.f32 %v8506, %v9938
        %v10595 = vadd.f32 %v8507, %v10230
        %v10596 = vadd.f32 %v8508, %v10522
        %v10597 = vadd.f32 %v8509, %v9649
        %v10598 = vadd.f32 %v8510, %v9941
        %v10599 = vadd.f32 %v8511, %v10233
        %v10600 = vadd.f32 %v8512, %v10525
        %v10601 = vadd.f32 %v8513, %v9651
        %v10602 = vadd.f32 %v8514, %v9943
        %v10603 = vadd.f32 %v8515, %v10235
        %v10604 = vadd.f32 %v8516, %v10527
        %v10605 = vadd.f32 %v8517, %v9654
        %v10606 = vadd.f32 %v8518, %v9946
        %v10607 = vadd.f32 %v8519, %v10238
        %v10608 = vadd.f32 %v8520, %v10530
        %v10609 = vadd.f32 %v8521, %v9656
        %v10610 = vadd.f32 %v8522, %v9948
        %v10611 = vadd.f32 %v8523, %v10240
        %v10612 = vadd.f32 %v8524, %v10532
        %v10613 = vadd.f32 %v8525, %v9659
        %v10614 = vadd.f32 %v8526, %v9951
        %v10615 = vadd.f32 %v8527, %v10243
        %v10616 = vadd.f32 %v8528, %v10535
        %v10617 = vadd.f32 %v8529, %v9661
        %v10618 = vadd.f32 %v8530, %v9953
        %v10619 = vadd.f32 %v8531, %v10245
        %v10620 = vadd.f32 %v8532, %v10537
        %v10621 = vadd.f32 %v8533, %v9664
        %v10622 = vadd.f32 %v8534, %v9956
        %v10623 = vadd.f32 %v8535, %v10248
        %v10624 = vadd.f32 %v8536, %v10540
        %v10625 = vadd.f32 %v8537, %v9666
        %v10626 = vadd.f32 %v8538, %v9958
        %v10627 = vadd.f32 %v8539, %v10250
        %v10628 = vadd.f32 %v8540, %v10542
        %v10629 = vadd.f32 %v8541, %v9669
        %v10630 = vadd.f32 %v8542, %v9961
        %v10631 = vadd.f32 %v8543, %v10253
        %v10632 = vadd.f32 %v8544, %v10545
        %v10633 = vadd.f32 %v8545, %v9671
        %v10634 = vadd.f32 %v8546, %v9963
        %v10635 = vadd.f32 %v8547, %v10255
        %v10636 = vadd.f32 %v8548, %v10547
        %v10637 = vadd.f32 %v8549, %v9674
        %v10638 = vadd.f32 %v8550, %v9966
        %v10639 = vadd.f32 %v8551, %v10258
        %v10640 = vadd.f32 %v8552, %v10550
        %v10641 = vadd.f32 %v8553, %v9676
        %v10642 = vadd.f32 %v8554, %v9968
        %v10643 = vadd.f32 %v8555, %v10260
        %v10644 = vadd.f32 %v8556, %v10552
        %v10645 = vadd.f32 %v8557, %v9679
        %v10646 = vadd.f32 %v8558, %v9971
        %v10647 = vadd.f32 %v8559, %v10263
        %v10648 = vadd.f32 %v8560, %v10555
        %v10649 = vadd.f32 %v8561, %v9681
        %v10650 = vadd.f32 %v8562, %v9973
        %v10651 = vadd.f32 %v8563, %v10265
        %v10652 = vadd.f32 %v8564, %v10557
        %v10653 = vadd.f32 %v8565, %v9684
        %v10654 = vadd.f32 %v8566, %v9976
        %v10655 = vadd.f32 %v8567, %v10268
        %v10656 = vadd.f32 %v8568, %v10560
        %v10657 = vadd.f32 %v8569, %v9686
        %v10658 = vadd.f32 %v8570, %v9978
        %v10659 = vadd.f32 %v8571, %v10270
        %v10660 = vadd.f32 %v8572, %v10562
        %v10661 = vadd.f32 %v8573, %v9689
        %v10662 = vadd.f32 %v8574, %v9981
        %v10663 = vadd.f32 %v8575, %v10273
        %v10664 = vadd.f32 %v8576, %v10565
        %v10665 = vadd.f32 %v8577, %v9691
        %v10666 = vadd.f32 %v8578, %v9983
        %v10667 = vadd.f32 %v8579, %v10275
        %v10668 = vadd.f32 %v8580, %v10567
        %v10669 = vadd.f32 %v8581, %v9694
        %v10670 = vadd.f32 %v8582, %v9986
        %v10671 = vadd.f32 %v8583, %v10278
        %v10672 = vadd.f32 %v8584, %v10570
        %10673 = vst [vmem:[#allocation3] sm:$0xff] %v10573
        %10674 = vst [vmem:[#allocation3 + $0x8] sm:$0xff] %v10574
        %10675 = vst [vmem:[#allocation3 + $0x10] sm:$0xff] %v10575
        %10676 = vst [vmem:[#allocation3 + $0x18] sm:$0xff] %v10576
        %10677 = vst [vmem:[#allocation3 + $0x20] sm:$0xff] %v10577
        %10678 = vst [vmem:[#allocation3 + $0x28] sm:$0xff] %v10578
        %10679 = vst [vmem:[#allocation3 + $0x30] sm:$0xff] %v10579
        %10680 = vst [vmem:[#allocation3 + $0x38] sm:$0xff] %v10580
        %10681 = vst [vmem:[#allocation3 + $0x40] sm:$0xff] %v10581
        %10682 = vst [vmem:[#allocation3 + $0x48] sm:$0xff] %v10582
        %10683 = vst [vmem:[#allocation3 + $0x50] sm:$0xff] %v10583
        %10684 = vst [vmem:[#allocation3 + $0x58] sm:$0xff] %v10584
        %10685 = vst [vmem:[#allocation3 + $0x60] sm:$0xff] %v10585
        %10686 = vst [vmem:[#allocation3 + $0x68] sm:$0xff] %v10586
        %10687 = vst [vmem:[#allocation3 + $0x70] sm:$0xff] %v10587
        %10688 = vst [vmem:[#allocation3 + $0x78] sm:$0xff] %v10588
        %10689 = vst [vmem:[#allocation3 + $0x80] sm:$0xff] %v10589
        %10690 = vst [vmem:[#allocation3 + $0x88] sm:$0xff] %v10590
        %10691 = vst [vmem:[#allocation3 + $0x90] sm:$0xff] %v10591
        %10692 = vst [vmem:[#allocation3 + $0x98] sm:$0xff] %v10592
        %10693 = vst [vmem:[#allocation3 + $0xa0] sm:$0xff] %v10593
        %10694 = vst [vmem:[#allocation3 + $0xa8] sm:$0xff] %v10594
        %10695 = vst [vmem:[#allocation3 + $0xb0] sm:$0xff] %v10595
        %10696 = vst [vmem:[#allocation3 + $0xb8] sm:$0xff] %v10596
        %10697 = vst [vmem:[#allocation3 + $0xc0] sm:$0xff] %v10597
        %10698 = vst [vmem:[#allocation3 + $0xc8] sm:$0xff] %v10598
        %10699 = vst [vmem:[#allocation3 + $0xd0] sm:$0xff] %v10599
        %10700 = vst [vmem:[#allocation3 + $0xd8] sm:$0xff] %v10600
        %10701 = vst [vmem:[#allocation3 + $0xe0] sm:$0xff] %v10601
        %10702 = vst [vmem:[#allocation3 + $0xe8] sm:$0xff] %v10602
        %10703 = vst [vmem:[#allocation3 + $0xf0] sm:$0xff] %v10603
        %10704 = vst [vmem:[#allocation3 + $0xf8] sm:$0xff] %v10604
        %10705 = vst [vmem:[#allocation3 + $0x100] sm:$0xff] %v10605
        %10706 = vst [vmem:[#allocation3 + $0x108] sm:$0xff] %v10606
        %10707 = vst [vmem:[#allocation3 + $0x110] sm:$0xff] %v10607
        %10708 = vst [vmem:[#allocation3 + $0x118] sm:$0xff] %v10608
        %10709 = vst [vmem:[#allocation3 + $0x120] sm:$0xff] %v10609
        %10710 = vst [vmem:[#allocation3 + $0x128] sm:$0xff] %v10610
        %10711 = vst [vmem:[#allocation3 + $0x130] sm:$0xff] %v10611
        %10712 = vst [vmem:[#allocation3 + $0x138] sm:$0xff] %v10612
        %10713 = vst [vmem:[#allocation3 + $0x140] sm:$0xff] %v10613
        %10714 = vst [vmem:[#allocation3 + $0x148] sm:$0xff] %v10614
        %10715 = vst [vmem:[#allocation3 + $0x150] sm:$0xff] %v10615
        %10716 = vst [vmem:[#allocation3 + $0x158] sm:$0xff] %v10616
        %10717 = vst [vmem:[#allocation3 + $0x160] sm:$0xff] %v10617
        %10718 = vst [vmem:[#allocation3 + $0x168] sm:$0xff] %v10618
        %10719 = vst [vmem:[#allocation3 + $0x170] sm:$0xff] %v10619
        %10720 = vst [vmem:[#allocation3 + $0x178] sm:$0xff] %v10620
        %10721 = vst [vmem:[#allocation3 + $0x180] sm:$0xff] %v10621
        %10722 = vst [vmem:[#allocation3 + $0x188] sm:$0xff] %v10622
        %10723 = vst [vmem:[#allocation3 + $0x190] sm:$0xff] %v10623
        %10724 = vst [vmem:[#allocation3 + $0x198] sm:$0xff] %v10624
        %10725 = vst [vmem:[#allocation3 + $0x1a0] sm:$0xff] %v10625
        %10726 = vst [vmem:[#allocation3 + $0x1a8] sm:$0xff] %v10626
        %10727 = vst [vmem:[#allocation3 + $0x1b0] sm:$0xff] %v10627
        %10728 = vst [vmem:[#allocation3 + $0x1b8] sm:$0xff] %v10628
        %10729 = vst [vmem:[#allocation3 + $0x1c0] sm:$0xff] %v10629
        %10730 = vst [vmem:[#allocation3 + $0x1c8] sm:$0xff] %v10630
        %10731 = vst [vmem:[#allocation3 + $0x1d0] sm:$0xff] %v10631
        %10732 = vst [vmem:[#allocation3 + $0x1d8] sm:$0xff] %v10632
        %10733 = vst [vmem:[#allocation3 + $0x1e0] sm:$0xff] %v10633
        %10734 = vst [vmem:[#allocation3 + $0x1e8] sm:$0xff] %v10634
        %10735 = vst [vmem:[#allocation3 + $0x1f0] sm:$0xff] %v10635
        %10736 = vst [vmem:[#allocation3 + $0x1f8] sm:$0xff] %v10636
        %10737 = vst [vmem:[#allocation3 + $0x200] sm:$0xff] %v10637
        %10738 = vst [vmem:[#allocation3 + $0x208] sm:$0xff] %v10638
        %10739 = vst [vmem:[#allocation3 + $0x210] sm:$0xff] %v10639
        %10740 = vst [vmem:[#allocation3 + $0x218] sm:$0xff] %v10640
        %10741 = vst [vmem:[#allocation3 + $0x220] sm:$0xff] %v10641
        %10742 = vst [vmem:[#allocation3 + $0x228] sm:$0xff] %v10642
        %10743 = vst [vmem:[#allocation3 + $0x230] sm:$0xff] %v10643
        %10744 = vst [vmem:[#allocation3 + $0x238] sm:$0xff] %v10644
        %10745 = vst [vmem:[#allocation3 + $0x240] sm:$0xff] %v10645
        %10746 = vst [vmem:[#allocation3 + $0x248] sm:$0xff] %v10646
        %10747 = vst [vmem:[#allocation3 + $0x250] sm:$0xff] %v10647
        %10748 = vst [vmem:[#allocation3 + $0x258] sm:$0xff] %v10648
        %10749 = vst [vmem:[#allocation3 + $0x260] sm:$0xff] %v10649
        %10750 = vst [vmem:[#allocation3 + $0x268] sm:$0xff] %v10650
        %10751 = vst [vmem:[#allocation3 + $0x270] sm:$0xff] %v10651
        %10752 = vst [vmem:[#allocation3 + $0x278] sm:$0xff] %v10652
        %10753 = vst [vmem:[#allocation3 + $0x280] sm:$0xff] %v10653
        %10754 = vst [vmem:[#allocation3 + $0x288] sm:$0xff] %v10654
        %10755 = vst [vmem:[#allocation3 + $0x290] sm:$0xff] %v10655
        %10756 = vst [vmem:[#allocation3 + $0x298] sm:$0xff] %v10656
        %10757 = vst [vmem:[#allocation3 + $0x2a0] sm:$0xff] %v10657
        %10758 = vst [vmem:[#allocation3 + $0x2a8] sm:$0xff] %v10658
        %10759 = vst [vmem:[#allocation3 + $0x2b0] sm:$0xff] %v10659
        %10760 = vst [vmem:[#allocation3 + $0x2b8] sm:$0xff] %v10660
        %10761 = vst [vmem:[#allocation3 + $0x2c0] sm:$0xff] %v10661
        %10762 = vst [vmem:[#allocation3 + $0x2c8] sm:$0xff] %v10662
        %10763 = vst [vmem:[#allocation3 + $0x2d0] sm:$0xff] %v10663
        %10764 = vst [vmem:[#allocation3 + $0x2d8] sm:$0xff] %v10664
        %10765 = vst [vmem:[#allocation3 + $0x2e0] sm:$0xff] %v10665
        %10766 = vst [vmem:[#allocation3 + $0x2e8] sm:$0xff] %v10666
        %10767 = vst [vmem:[#allocation3 + $0x2f0] sm:$0xff] %v10667
        %10768 = vst [vmem:[#allocation3 + $0x2f8] sm:$0xff] %v10668
        %10769 = vst [vmem:[#allocation3 + $0x300] sm:$0xff] %v10669
        %10770 = vst [vmem:[#allocation3 + $0x308] sm:$0xff] %v10670
        %10771 = vst [vmem:[#allocation3 + $0x310] sm:$0xff] %v10671
        %10772 = vst [vmem:[#allocation3 + $0x318] sm:$0xff] %v10672
        %p10773 = scmp.eq.s32.totalorder %s27, 3
        // Predicated region
        $region81: #{tpu_custom_call.1} parent=47 // pred_check
          %p10774 = pneg %p10773
        $region82: #{tpu_custom_call.1} parent=47 // pred_check_branch
          %10776 = sbr.rel (%p10774) target = $region84
        $region83: #{tpu_custom_call.1} parent=47 // pred_region
          %v10777 = vld [vmem:[#allocation3] sm:$0xff]
          %v10778 = vld [vmem:[#allocation3 + $0x8] sm:$0xff]
          %v10779 = vld [vmem:[#allocation3 + $0x10] sm:$0xff]
          %v10780 = vld [vmem:[#allocation3 + $0x18] sm:$0xff]
          %v10781 = vld [vmem:[#allocation3 + $0x20] sm:$0xff]
          %v10782 = vld [vmem:[#allocation3 + $0x28] sm:$0xff]
          %v10783 = vld [vmem:[#allocation3 + $0x30] sm:$0xff]
          %v10784 = vld [vmem:[#allocation3 + $0x38] sm:$0xff]
          %v10785 = vld [vmem:[#allocation3 + $0x40] sm:$0xff]
          %v10786 = vld [vmem:[#allocation3 + $0x48] sm:$0xff]
          %v10787 = vld [vmem:[#allocation3 + $0x50] sm:$0xff]
          %v10788 = vld [vmem:[#allocation3 + $0x58] sm:$0xff]
          %v10789 = vld [vmem:[#allocation3 + $0x60] sm:$0xff]
          %v10790 = vld [vmem:[#allocation3 + $0x68] sm:$0xff]
          %v10791 = vld [vmem:[#allocation3 + $0x70] sm:$0xff]
          %v10792 = vld [vmem:[#allocation3 + $0x78] sm:$0xff]
          %v10793 = vld [vmem:[#allocation3 + $0x80] sm:$0xff]
          %v10794 = vld [vmem:[#allocation3 + $0x88] sm:$0xff]
          %v10795 = vld [vmem:[#allocation3 + $0x90] sm:$0xff]
          %v10796 = vld [vmem:[#allocation3 + $0x98] sm:$0xff]
          %v10797 = vld [vmem:[#allocation3 + $0xa0] sm:$0xff]
          %v10798 = vld [vmem:[#allocation3 + $0xa8] sm:$0xff]
          %v10799 = vld [vmem:[#allocation3 + $0xb0] sm:$0xff]
          %v10800 = vld [vmem:[#allocation3 + $0xb8] sm:$0xff]
          %v10801 = vld [vmem:[#allocation3 + $0xc0] sm:$0xff]
          %v10802 = vld [vmem:[#allocation3 + $0xc8] sm:$0xff]
          %v10803 = vld [vmem:[#allocation3 + $0xd0] sm:$0xff]
          %v10804 = vld [vmem:[#allocation3 + $0xd8] sm:$0xff]
          %v10805 = vld [vmem:[#allocation3 + $0xe0] sm:$0xff]
          %v10806 = vld [vmem:[#allocation3 + $0xe8] sm:$0xff]
          %v10807 = vld [vmem:[#allocation3 + $0xf0] sm:$0xff]
          %v10808 = vld [vmem:[#allocation3 + $0xf8] sm:$0xff]
          %v10809 = vld [vmem:[#allocation3 + $0x100] sm:$0xff]
          %v10810 = vld [vmem:[#allocation3 + $0x108] sm:$0xff]
          %v10811 = vld [vmem:[#allocation3 + $0x110] sm:$0xff]
          %v10812 = vld [vmem:[#allocation3 + $0x118] sm:$0xff]
          %v10813 = vld [vmem:[#allocation3 + $0x120] sm:$0xff]
          %v10814 = vld [vmem:[#allocation3 + $0x128] sm:$0xff]
          %v10815 = vld [vmem:[#allocation3 + $0x130] sm:$0xff]
          %v10816 = vld [vmem:[#allocation3 + $0x138] sm:$0xff]
          %v10817 = vld [vmem:[#allocation3 + $0x140] sm:$0xff]
          %v10818 = vld [vmem:[#allocation3 + $0x148] sm:$0xff]
          %v10819 = vld [vmem:[#allocation3 + $0x150] sm:$0xff]
          %v10820 = vld [vmem:[#allocation3 + $0x158] sm:$0xff]
          %v10821 = vld [vmem:[#allocation3 + $0x160] sm:$0xff]
          %v10822 = vld [vmem:[#allocation3 + $0x168] sm:$0xff]
          %v10823 = vld [vmem:[#allocation3 + $0x170] sm:$0xff]
          %v10824 = vld [vmem:[#allocation3 + $0x178] sm:$0xff]
          %v10825 = vld [vmem:[#allocation3 + $0x180] sm:$0xff]
          %v10826 = vld [vmem:[#allocation3 + $0x188] sm:$0xff]
          %v10827 = vld [vmem:[#allocation3 + $0x190] sm:$0xff]
          %v10828 = vld [vmem:[#allocation3 + $0x198] sm:$0xff]
          %v10829 = vld [vmem:[#allocation3 + $0x1a0] sm:$0xff]
          %v10830 = vld [vmem:[#allocation3 + $0x1a8] sm:$0xff]
          %v10831 = vld [vmem:[#allocation3 + $0x1b0] sm:$0xff]
          %v10832 = vld [vmem:[#allocation3 + $0x1b8] sm:$0xff]
          %v10833 = vld [vmem:[#allocation3 + $0x1c0] sm:$0xff]
          %v10834 = vld [vmem:[#allocation3 + $0x1c8] sm:$0xff]
          %v10835 = vld [vmem:[#allocation3 + $0x1d0] sm:$0xff]
          %v10836 = vld [vmem:[#allocation3 + $0x1d8] sm:$0xff]
          %v10837 = vld [vmem:[#allocation3 + $0x1e0] sm:$0xff]
          %v10838 = vld [vmem:[#allocation3 + $0x1e8] sm:$0xff]
          %v10839 = vld [vmem:[#allocation3 + $0x1f0] sm:$0xff]
          %v10840 = vld [vmem:[#allocation3 + $0x1f8] sm:$0xff]
          %v10841 = vld [vmem:[#allocation3 + $0x200] sm:$0xff]
          %v10842 = vld [vmem:[#allocation3 + $0x208] sm:$0xff]
          %v10843 = vld [vmem:[#allocation3 + $0x210] sm:$0xff]
          %v10844 = vld [vmem:[#allocation3 + $0x218] sm:$0xff]
          %v10845 = vld [vmem:[#allocation3 + $0x220] sm:$0xff]
          %v10846 = vld [vmem:[#allocation3 + $0x228] sm:$0xff]
          %v10847 = vld [vmem:[#allocation3 + $0x230] sm:$0xff]
          %v10848 = vld [vmem:[#allocation3 + $0x238] sm:$0xff]
          %v10849 = vld [vmem:[#allocation3 + $0x240] sm:$0xff]
          %v10850 = vld [vmem:[#allocation3 + $0x248] sm:$0xff]
          %v10851 = vld [vmem:[#allocation3 + $0x250] sm:$0xff]
          %v10852 = vld [vmem:[#allocation3 + $0x258] sm:$0xff]
          %v10853 = vld [vmem:[#allocation3 + $0x260] sm:$0xff]
          %v10854 = vld [vmem:[#allocation3 + $0x268] sm:$0xff]
          %v10855 = vld [vmem:[#allocation3 + $0x270] sm:$0xff]
          %v10856 = vld [vmem:[#allocation3 + $0x278] sm:$0xff]
          %v10857 = vld [vmem:[#allocation3 + $0x280] sm:$0xff]
          %v10858 = vld [vmem:[#allocation3 + $0x288] sm:$0xff]
          %v10859 = vld [vmem:[#allocation3 + $0x290] sm:$0xff]
          %v10860 = vld [vmem:[#allocation3 + $0x298] sm:$0xff]
          %v10861 = vld [vmem:[#allocation3 + $0x2a0] sm:$0xff]
          %v10862 = vld [vmem:[#allocation3 + $0x2a8] sm:$0xff]
          %v10863 = vld [vmem:[#allocation3 + $0x2b0] sm:$0xff]
          %v10864 = vld [vmem:[#allocation3 + $0x2b8] sm:$0xff]
          %v10865 = vld [vmem:[#allocation3 + $0x2c0] sm:$0xff]
          %v10866 = vld [vmem:[#allocation3 + $0x2c8] sm:$0xff]
          %v10867 = vld [vmem:[#allocation3 + $0x2d0] sm:$0xff]
          %v10868 = vld [vmem:[#allocation3 + $0x2d8] sm:$0xff]
          %v10869 = vld [vmem:[#allocation3 + $0x2e0] sm:$0xff]
          %v10870 = vld [vmem:[#allocation3 + $0x2e8] sm:$0xff]
          %v10871 = vld [vmem:[#allocation3 + $0x2f0] sm:$0xff]
          %v10872 = vld [vmem:[#allocation3 + $0x2f8] sm:$0xff]
          %v10873 = vld [vmem:[#allocation3 + $0x300] sm:$0xff]
          %v10874 = vld [vmem:[#allocation3 + $0x308] sm:$0xff]
          %v10875 = vld [vmem:[#allocation3 + $0x310] sm:$0xff]
          %v10876 = vld [vmem:[#allocation3 + $0x318] sm:$0xff]
          %v10877 = vld [vmem:[#allocation15] sm:$0xf]
          %v10879 = vperm.slane %v10877, 0
          %v10880 = vperm.slane %v10877, 1
          %v10881 = vperm.slane %v10877, 2
          %v10882 = vperm.slane %v10877, 3
          %v10887 = vadd.f32 %v10777, %v10879
          %v10888 = vadd.f32 %v10778, %v10880
          %v10889 = vadd.f32 %v10779, %v10881
          %v10890 = vadd.f32 %v10780, %v10882
          %v10891 = vadd.f32 %v10781, %v10879
          %v10892 = vadd.f32 %v10782, %v10880
          %v10893 = vadd.f32 %v10783, %v10881
          %v10894 = vadd.f32 %v10784, %v10882
          %v10895 = vadd.f32 %v10785, %v10879
          %v10896 = vadd.f32 %v10786, %v10880
          %v10897 = vadd.f32 %v10787, %v10881
          %v10898 = vadd.f32 %v10788, %v10882
          %v10899 = vadd.f32 %v10789, %v10879
          %v10900 = vadd.f32 %v10790, %v10880
          %v10901 = vadd.f32 %v10791, %v10881
          %v10902 = vadd.f32 %v10792, %v10882
          %v10903 = vadd.f32 %v10793, %v10879
          %v10904 = vadd.f32 %v10794, %v10880
          %v10905 = vadd.f32 %v10795, %v10881
          %v10906 = vadd.f32 %v10796, %v10882
          %v10907 = vadd.f32 %v10797, %v10879
          %v10908 = vadd.f32 %v10798, %v10880
          %v10909 = vadd.f32 %v10799, %v10881
          %v10910 = vadd.f32 %v10800, %v10882
          %v10911 = vadd.f32 %v10801, %v10879
          %v10912 = vadd.f32 %v10802, %v10880
          %v10913 = vadd.f32 %v10803, %v10881
          %v10914 = vadd.f32 %v10804, %v10882
          %v10915 = vadd.f32 %v10805, %v10879
          %v10916 = vadd.f32 %v10806, %v10880
          %v10917 = vadd.f32 %v10807, %v10881
          %v10918 = vadd.f32 %v10808, %v10882
          %v10919 = vadd.f32 %v10809, %v10879
          %v10920 = vadd.f32 %v10810, %v10880
          %v10921 = vadd.f32 %v10811, %v10881
          %v10922 = vadd.f32 %v10812, %v10882
          %v10923 = vadd.f32 %v10813, %v10879
          %v10924 = vadd.f32 %v10814, %v10880
          %v10925 = vadd.f32 %v10815, %v10881
          %v10926 = vadd.f32 %v10816, %v10882
          %v10927 = vadd.f32 %v10817, %v10879
          %v10928 = vadd.f32 %v10818, %v10880
          %v10929 = vadd.f32 %v10819, %v10881
          %v10930 = vadd.f32 %v10820, %v10882
          %v10931 = vadd.f32 %v10821, %v10879
          %v10932 = vadd.f32 %v10822, %v10880
          %v10933 = vadd.f32 %v10823, %v10881
          %v10934 = vadd.f32 %v10824, %v10882
          %v10935 = vadd.f32 %v10825, %v10879
          %v10936 = vadd.f32 %v10826, %v10880
          %v10937 = vadd.f32 %v10827, %v10881
          %v10938 = vadd.f32 %v10828, %v10882
          %v10939 = vadd.f32 %v10829, %v10879
          %v10940 = vadd.f32 %v10830, %v10880
          %v10941 = vadd.f32 %v10831, %v10881
          %v10942 = vadd.f32 %v10832, %v10882
          %v10943 = vadd.f32 %v10833, %v10879
          %v10944 = vadd.f32 %v10834, %v10880
          %v10945 = vadd.f32 %v10835, %v10881
          %v10946 = vadd.f32 %v10836, %v10882
          %v10947 = vadd.f32 %v10837, %v10879
          %v10948 = vadd.f32 %v10838, %v10880
          %v10949 = vadd.f32 %v10839, %v10881
          %v10950 = vadd.f32 %v10840, %v10882
          %v10951 = vadd.f32 %v10841, %v10879
          %v10952 = vadd.f32 %v10842, %v10880
          %v10953 = vadd.f32 %v10843, %v10881
          %v10954 = vadd.f32 %v10844, %v10882
          %v10955 = vadd.f32 %v10845, %v10879
          %v10956 = vadd.f32 %v10846, %v10880
          %v10957 = vadd.f32 %v10847, %v10881
          %v10958 = vadd.f32 %v10848, %v10882
          %v10959 = vadd.f32 %v10849, %v10879
          %v10960 = vadd.f32 %v10850, %v10880
          %v10961 = vadd.f32 %v10851, %v10881
          %v10962 = vadd.f32 %v10852, %v10882
          %v10963 = vadd.f32 %v10853, %v10879
          %v10964 = vadd.f32 %v10854, %v10880
          %v10965 = vadd.f32 %v10855, %v10881
          %v10966 = vadd.f32 %v10856, %v10882
          %v10967 = vadd.f32 %v10857, %v10879
          %v10968 = vadd.f32 %v10858, %v10880
          %v10969 = vadd.f32 %v10859, %v10881
          %v10970 = vadd.f32 %v10860, %v10882
          %v10971 = vadd.f32 %v10861, %v10879
          %v10972 = vadd.f32 %v10862, %v10880
          %v10973 = vadd.f32 %v10863, %v10881
          %v10974 = vadd.f32 %v10864, %v10882
          %v10975 = vadd.f32 %v10865, %v10879
          %v10976 = vadd.f32 %v10866, %v10880
          %v10977 = vadd.f32 %v10867, %v10881
          %v10978 = vadd.f32 %v10868, %v10882
          %v10979 = vadd.f32 %v10869, %v10879
          %v10980 = vadd.f32 %v10870, %v10880
          %v10981 = vadd.f32 %v10871, %v10881
          %v10982 = vadd.f32 %v10872, %v10882
          %v10983 = vadd.f32 %v10873, %v10879
          %v10984 = vadd.f32 %v10874, %v10880
          %v10985 = vadd.f32 %v10875, %v10881
          %v10986 = vadd.f32 %v10876, %v10882
          %10987 = vst [vmem:[#allocation16] sm:$0xff] %v10887
          %10988 = vst [vmem:[#allocation16 + $0x8] sm:$0xff] %v10888
          %10989 = vst [vmem:[#allocation16 + $0x10] sm:$0xff] %v10889
          %10990 = vst [vmem:[#allocation16 + $0x18] sm:$0xff] %v10890
          %10991 = vst [vmem:[#allocation16 + $0x20] sm:$0xff] %v10891
          %10992 = vst [vmem:[#allocation16 + $0x28] sm:$0xff] %v10892
          %10993 = vst [vmem:[#allocation16 + $0x30] sm:$0xff] %v10893
          %10994 = vst [vmem:[#allocation16 + $0x38] sm:$0xff] %v10894
          %10995 = vst [vmem:[#allocation16 + $0x40] sm:$0xff] %v10895
          %10996 = vst [vmem:[#allocation16 + $0x48] sm:$0xff] %v10896
          %10997 = vst [vmem:[#allocation16 + $0x50] sm:$0xff] %v10897
          %10998 = vst [vmem:[#allocation16 + $0x58] sm:$0xff] %v10898
          %10999 = vst [vmem:[#allocation16 + $0x60] sm:$0xff] %v10899
          %11000 = vst [vmem:[#allocation16 + $0x68] sm:$0xff] %v10900
          %11001 = vst [vmem:[#allocation16 + $0x70] sm:$0xff] %v10901
          %11002 = vst [vmem:[#allocation16 + $0x78] sm:$0xff] %v10902
          %11003 = vst [vmem:[#allocation16 + $0x80] sm:$0xff] %v10903
          %11004 = vst [vmem:[#allocation16 + $0x88] sm:$0xff] %v10904
          %11005 = vst [vmem:[#allocation16 + $0x90] sm:$0xff] %v10905
          %11006 = vst [vmem:[#allocation16 + $0x98] sm:$0xff] %v10906
          %11007 = vst [vmem:[#allocation16 + $0xa0] sm:$0xff] %v10907
          %11008 = vst [vmem:[#allocation16 + $0xa8] sm:$0xff] %v10908
          %11009 = vst [vmem:[#allocation16 + $0xb0] sm:$0xff] %v10909
          %11010 = vst [vmem:[#allocation16 + $0xb8] sm:$0xff] %v10910
          %11011 = vst [vmem:[#allocation16 + $0xc0] sm:$0xff] %v10911
          %11012 = vst [vmem:[#allocation16 + $0xc8] sm:$0xff] %v10912
          %11013 = vst [vmem:[#allocation16 + $0xd0] sm:$0xff] %v10913
          %11014 = vst [vmem:[#allocation16 + $0xd8] sm:$0xff] %v10914
          %11015 = vst [vmem:[#allocation16 + $0xe0] sm:$0xff] %v10915
          %11016 = vst [vmem:[#allocation16 + $0xe8] sm:$0xff] %v10916
          %11017 = vst [vmem:[#allocation16 + $0xf0] sm:$0xff] %v10917
          %11018 = vst [vmem:[#allocation16 + $0xf8] sm:$0xff] %v10918
          %11019 = vst [vmem:[#allocation16 + $0x100] sm:$0xff] %v10919
          %11020 = vst [vmem:[#allocation16 + $0x108] sm:$0xff] %v10920
          %11021 = vst [vmem:[#allocation16 + $0x110] sm:$0xff] %v10921
          %11022 = vst [vmem:[#allocation16 + $0x118] sm:$0xff] %v10922
          %11023 = vst [vmem:[#allocation16 + $0x120] sm:$0xff] %v10923
          %11024 = vst [vmem:[#allocation16 + $0x128] sm:$0xff] %v10924
          %11025 = vst [vmem:[#allocation16 + $0x130] sm:$0xff] %v10925
          %11026 = vst [vmem:[#allocation16 + $0x138] sm:$0xff] %v10926
          %11027 = vst [vmem:[#allocation16 + $0x140] sm:$0xff] %v10927
          %11028 = vst [vmem:[#allocation16 + $0x148] sm:$0xff] %v10928
          %11029 = vst [vmem:[#allocation16 + $0x150] sm:$0xff] %v10929
          %11030 = vst [vmem:[#allocation16 + $0x158] sm:$0xff] %v10930
          %11031 = vst [vmem:[#allocation16 + $0x160] sm:$0xff] %v10931
          %11032 = vst [vmem:[#allocation16 + $0x168] sm:$0xff] %v10932
          %11033 = vst [vmem:[#allocation16 + $0x170] sm:$0xff] %v10933
          %11034 = vst [vmem:[#allocation16 + $0x178] sm:$0xff] %v10934
          %11035 = vst [vmem:[#allocation16 + $0x180] sm:$0xff] %v10935
          %11036 = vst [vmem:[#allocation16 + $0x188] sm:$0xff] %v10936
          %11037 = vst [vmem:[#allocation16 + $0x190] sm:$0xff] %v10937
          %11038 = vst [vmem:[#allocation16 + $0x198] sm:$0xff] %v10938
          %11039 = vst [vmem:[#allocation16 + $0x1a0] sm:$0xff] %v10939
          %11040 = vst [vmem:[#allocation16 + $0x1a8] sm:$0xff] %v10940
          %11041 = vst [vmem:[#allocation16 + $0x1b0] sm:$0xff] %v10941
          %11042 = vst [vmem:[#allocation16 + $0x1b8] sm:$0xff] %v10942
          %11043 = vst [vmem:[#allocation16 + $0x1c0] sm:$0xff] %v10943
          %11044 = vst [vmem:[#allocation16 + $0x1c8] sm:$0xff] %v10944
          %11045 = vst [vmem:[#allocation16 + $0x1d0] sm:$0xff] %v10945
          %11046 = vst [vmem:[#allocation16 + $0x1d8] sm:$0xff] %v10946
          %11047 = vst [vmem:[#allocation16 + $0x1e0] sm:$0xff] %v10947
          %11048 = vst [vmem:[#allocation16 + $0x1e8] sm:$0xff] %v10948
          %11049 = vst [vmem:[#allocation16 + $0x1f0] sm:$0xff] %v10949
          %11050 = vst [vmem:[#allocation16 + $0x1f8] sm:$0xff] %v10950
          %11051 = vst [vmem:[#allocation16 + $0x200] sm:$0xff] %v10951
          %11052 = vst [vmem:[#allocation16 + $0x208] sm:$0xff] %v10952
          %11053 = vst [vmem:[#allocation16 + $0x210] sm:$0xff] %v10953
          %11054 = vst [vmem:[#allocation16 + $0x218] sm:$0xff] %v10954
          %11055 = vst [vmem:[#allocation16 + $0x220] sm:$0xff] %v10955
          %11056 = vst [vmem:[#allocation16 + $0x228] sm:$0xff] %v10956
          %11057 = vst [vmem:[#allocation16 + $0x230] sm:$0xff] %v10957
          %11058 = vst [vmem:[#allocation16 + $0x238] sm:$0xff] %v10958
          %11059 = vst [vmem:[#allocation16 + $0x240] sm:$0xff] %v10959
          %11060 = vst [vmem:[#allocation16 + $0x248] sm:$0xff] %v10960
          %11061 = vst [vmem:[#allocation16 + $0x250] sm:$0xff] %v10961
          %11062 = vst [vmem:[#allocation16 + $0x258] sm:$0xff] %v10962
          %11063 = vst [vmem:[#allocation16 + $0x260] sm:$0xff] %v10963
          %11064 = vst [vmem:[#allocation16 + $0x268] sm:$0xff] %v10964
          %11065 = vst [vmem:[#allocation16 + $0x270] sm:$0xff] %v10965
          %11066 = vst [vmem:[#allocation16 + $0x278] sm:$0xff] %v10966
          %11067 = vst [vmem:[#allocation16 + $0x280] sm:$0xff] %v10967
          %11068 = vst [vmem:[#allocation16 + $0x288] sm:$0xff] %v10968
          %11069 = vst [vmem:[#allocation16 + $0x290] sm:$0xff] %v10969
          %11070 = vst [vmem:[#allocation16 + $0x298] sm:$0xff] %v10970
          %11071 = vst [vmem:[#allocation16 + $0x2a0] sm:$0xff] %v10971
          %11072 = vst [vmem:[#allocation16 + $0x2a8] sm:$0xff] %v10972
          %11073 = vst [vmem:[#allocation16 + $0x2b0] sm:$0xff] %v10973
          %11074 = vst [vmem:[#allocation16 + $0x2b8] sm:$0xff] %v10974
          %11075 = vst [vmem:[#allocation16 + $0x2c0] sm:$0xff] %v10975
          %11076 = vst [vmem:[#allocation16 + $0x2c8] sm:$0xff] %v10976
          %11077 = vst [vmem:[#allocation16 + $0x2d0] sm:$0xff] %v10977
          %11078 = vst [vmem:[#allocation16 + $0x2d8] sm:$0xff] %v10978
          %11079 = vst [vmem:[#allocation16 + $0x2e0] sm:$0xff] %v10979
          %11080 = vst [vmem:[#allocation16 + $0x2e8] sm:$0xff] %v10980
          %11081 = vst [vmem:[#allocation16 + $0x2f0] sm:$0xff] %v10981
          %11082 = vst [vmem:[#allocation16 + $0x2f8] sm:$0xff] %v10982
          %11083 = vst [vmem:[#allocation16 + $0x300] sm:$0xff] %v10983
          %11084 = vst [vmem:[#allocation16 + $0x308] sm:$0xff] %v10984
          %11085 = vst [vmem:[#allocation16 + $0x310] sm:$0xff] %v10985
          %11086 = vst [vmem:[#allocation16 + $0x318] sm:$0xff] %v10986
        $region84: #{tpu_custom_call.1} parent=47 // pred_fallthru
          _
        // Predicated region
        $region85: #{tpu_custom_call.1} parent=47 // pred_check
          %p11087 = pneg %p202
        $region86: #{tpu_custom_call.1} parent=47 // pred_check_branch
          %11089 = sbr.rel (%p11087) target = $region88
        $region87: #{tpu_custom_call.1} parent=47 // pred_region
          %11091 = vsyncadd [#allocation6], 0
          %s11092 = sshll.u32 [#allocation16], 4
          %s11093 = int_to_ptr.vmem [resolvable:$true] %s11092
          %s11094 = sshll.u32 %s7, 4
          %s11095 = int_to_ptr.hbm [resolvable:$true] %s11094
          %11100 = dma.vmem_to_hbm [thread:$0]  %s11093, 12800, %s11095, [#allocation6], 512, 512, 32
        $region88: #{tpu_custom_call.1} parent=47 // pred_fallthru
          _
        // Predicated region
        $region89: #{tpu_custom_call.1} parent=47 // pred_check
          %p11101 = pneg %p202
        $region90: #{tpu_custom_call.1} parent=47 // pred_check_branch
          %11103 = sbr.rel (%p11101) target = $region92
        $region91: #{tpu_custom_call.1} parent=47 // pred_region
          %11105 = dma.done [#allocation6], 12800
        $region92: #{tpu_custom_call.1} parent=47 // pred_fallthru
          _
      $region48: #{tpu_custom_call.1} parent=5 // pred_fallthru
        _
      %p11106 = scmp.le.s32.totalorder 2, %s22
      // Predicated region
      $region93: #{tpu_custom_call.1} parent=5 // pred_check
        %p11107 = pneg %p11106
      $region94: #{tpu_custom_call.1} parent=5 // pred_check_branch
        %11109 = sbr.rel (%p11107) target = $region96
      $region95: #{tpu_custom_call.1} parent=5 // pred_region
        %s11110 = ssub.s32 %s22, 2
      $region96: #{tpu_custom_call.1} parent=5 // pred_fallthru
        _
    $region6: #{tpu_custom_call.1} parent=1 // loop_footer
      %s26 = sadd.s32 1, %s22
    $region7: #{tpu_custom_call.1} parent=1 // loop_footer_branch
      %21 = sbr.rel target = $region3
    $region8: #{tpu_custom_call.1} parent=1 // loop_exit
      _
    %11111 = vsyncpa [#allocation5], 1
    %s11112 = scalar_lea.sflag [#allocation5], 1
    %11113 = vsyncpa %s11112, 1
    %11114 = vsyncpa [#allocation8], 1
    %11115 = vsyncpa [#allocation11], 1
    %s11116 = scalar_lea.sflag [#allocation11], 1
    %11117 = vsyncpa %s11116, 1
    %11118 = vsyncpa [#allocation14], 1
    %s11119 = scalar_lea.sflag [#allocation14], 1
    %11120 = vsyncpa %s11119, 1
    %11121 = vsyncpa [#allocation6], 1
    %s11122 = scalar_lea.sflag [#allocation6], 1
    %11123 = vsyncpa %s11122, 1

</llo_original>
